<compile_context>
chip_gen: v7x
topology: tpu7x:2x2x1
jax: 0.10.0
libtpu: 0.0.40
codegen_flags: <defaults>
</compile_context>

<pallas_src>
import jax
import jax.numpy as jnp
from jax.experimental import pallas as pl
from jax.experimental.pallas import tpu as pltpu


# ---------------------------------------------------------------------------
# In-kernel helpers
# ---------------------------------------------------------------------------

def _softmax_over_k(att):
    # att: (TN, K, C); softmax over the neighbour axis K (axis=1).
    m = jnp.max(att, axis=1, keepdims=True)
    e = jnp.exp(att - m)
    s = jnp.sum(e, axis=1, keepdims=True)
    return e * pl.reciprocal(s, approx=True)


def _att_two_half(a, b, wf, wm, shift):
    # Attention pooling over K for the implicit concat x = [a | b] (channel dim),
    # with the fc weight pre-split into quadrants wf[i, j] and the mlp weight
    # (BN-scale folded) pre-split into row-halves wm[i].  No concat needed.
    #   a: (TN, K, dh)   first-half channels  (f_neighbours)
    #   b: (TN, K, dh)   second-half channels (f_xyz)
    #   wf: (2, 2, dh, dh), wm: (2, dh, Cout), shift: (1, Cout)
    tn, k, dh = a.shape
    a2 = a.reshape(tn * k, dh)
    b2 = b.reshape(tn * k, dh)
    att_a = (jnp.dot(a2, wf[0, 0], preferred_element_type=jnp.float32) +
             jnp.dot(b2, wf[1, 0], preferred_element_type=jnp.float32)).reshape(tn, k, dh)
    att_b = (jnp.dot(a2, wf[0, 1], preferred_element_type=jnp.float32) +
             jnp.dot(b2, wf[1, 1], preferred_element_type=jnp.float32)).reshape(tn, k, dh)
    pa = _softmax_over_k(att_a)
    pb = _softmax_over_k(att_b)
    agg_a = jnp.sum(a * pa, axis=1)            # (TN, dh)
    agg_b = jnp.sum(b * pb, axis=1)            # (TN, dh)
    y = (jnp.dot(agg_a, wm[0], preferred_element_type=jnp.float32) +
         jnp.dot(agg_b, wm[1], preferred_element_type=jnp.float32))
    return jnp.maximum(y + shift, 0.0)         # (TN, Cout)


def _relpos_mlp1(c, nb, w1d, w1r, w1n, b1):
    # Relative position encoding + mlp1 (BN folded), entirely in VMEM.
    # xyz_tile is folded into the weights: tile = rel + neigh, so
    #   f = dis*w_d + rel@(w_r + w_t) + nb@(w_t + w_n) + b      (exact algebra)
    #   c: (TN, 3), nb: (TN, K, 3); returns relu(f) as (TN*K, dh).
    tn, k, _ = nb.shape
    ct = jnp.broadcast_to(c[:, None, :], nb.shape)       # xyz_tile
    rel = ct - nb                                         # relative_xyz
    dis = jnp.sqrt(jnp.sum(rel * rel, axis=-1, keepdims=True))   # (TN, K, 1)
    m = tn * k
    f1 = (dis.reshape(m, 1) * w1d
          + jnp.dot(rel.reshape(m, 3), w1r, preferred_element_type=jnp.float32)
          + jnp.dot(nb.reshape(m, 3), w1n, preferred_element_type=jnp.float32)
          + b1)
    return jnp.maximum(f1, 0.0), tn, k


# ---------------------------------------------------------------------------
# Pallas kernels
# ---------------------------------------------------------------------------

def _stage1_kernel(xyzc_ref, xyzn_ref, fn_ref,
                   w1d_ref, w1r_ref, w1n_ref, b1_ref,
                   wf1_ref, wm1_ref, ba1_ref,
                   agg_ref):
    # Blocks: xyzc (1,TN,3), xyzn (1,TN,K,3), fn (1,TN,K,dh) -> agg (1,TN,dh)
    dh = fn_ref.shape[-1]
    f1, tn, k = _relpos_mlp1(xyzc_ref[0], xyzn_ref[0],
                             w1d_ref[...], w1r_ref[...], w1n_ref[...], b1_ref[...])
    a = fn_ref[0]                                          # (TN, K, dh)
    b = f1.reshape(tn, k, dh)                              # f_xyz1
    agg_ref[0] = _att_two_half(a, b, wf1_ref[...], wm1_ref[...], ba1_ref[...])


def _stage2_kernel(xyzc_ref, xyzn_ref, fn2_ref,
                   w1d_ref, w1r_ref, w1n_ref, b1_ref,
                   w2_ref, b2_ref,
                   wf2_ref, wm2_ref, ba2_ref,
                   out_ref):
    # Recompute f_xyz1 / f_xyz2 in VMEM (cheaper than an HBM round trip of
    # the (B,N,K,dh) f_xyz2 tensor), then attention-pool over
    # [f_neighbours2 | f_xyz2].
    dh = fn2_ref.shape[-1]
    f1, tn, k = _relpos_mlp1(xyzc_ref[0], xyzn_ref[0],
                             w1d_ref[...], w1r_ref[...], w1n_ref[...], b1_ref[...])
    f2 = jnp.maximum(
        jnp.dot(f1, w2_ref[...], preferred_element_type=jnp.float32) + b2_ref[...],
        0.0)                                               # (M, dh) == f_xyz2
    a = fn2_ref[0]                                         # (TN, K, dh)
    b = f2.reshape(tn, k, dh)
    out_ref[0] = _att_two_half(a, b, wf2_ref[...], wm2_ref[...], ba2_ref[...])


# ---------------------------------------------------------------------------
# pallas_call wrappers
# ---------------------------------------------------------------------------

_VMEM_LIMIT = 32 * 1024 * 1024  # safe on v5e/v6e/v7x; tiles sized well below it


def _pick_tile_n(n, k, dh):
    # ~12 live f32 (tile, K, dh) slabs per grid step (double-buffered inputs,
    # f1/f2, att scores, softmax temps) -> keep them to ~20 MiB.
    per_point = 12 * k * max(dh, 8) * 4
    max_tile = max(8, min(512, (20 * 1024 * 1024) // per_point))
    if n <= max_tile:
        return n
    t = (max_tile // 8) * 8
    while t >= 8:
        if n % t == 0:
            return t
        t -= 8
    return n


def _full_spec(shape):
    zeros = (0,) * len(shape)
    return pl.BlockSpec(shape, lambda b, n: zeros)


def _stage1_call(xyz, neighbor_xyz, f_neigh, pp, tile_n):
    B, N, _ = xyz.shape
    K = neighbor_xyz.shape[2]
    dh = f_neigh.shape[-1]
    grid = (B, N // tile_n)
    return pl.pallas_call(
        _stage1_kernel,
        out_shape=jax.ShapeDtypeStruct((B, N, dh), jnp.float32),
        grid=grid,
        in_specs=[
            pl.BlockSpec((1, tile_n, 3), lambda b, n: (b, n, 0)),
            pl.BlockSpec((1, tile_n, K, 3), lambda b, n: (b, n, 0, 0)),
            pl.BlockSpec((1, tile_n, K, dh), lambda b, n: (b, n, 0, 0)),
            _full_spec((1, dh)), _full_spec((3, dh)), _full_spec((3, dh)),
            _full_spec((1, dh)),
            _full_spec((2, 2, dh, dh)), _full_spec((2, dh, dh)), _full_spec((1, dh)),
        ],
        out_specs=pl.BlockSpec((1, tile_n, dh), lambda b, n: (b, n, 0)),
        compiler_params=pltpu.CompilerParams(
            dimension_semantics=("parallel", "parallel"),
            vmem_limit_bytes=_VMEM_LIMIT),
    )(xyz, neighbor_xyz, f_neigh,
      pp["w1_dis"], pp["w1_rel"], pp["w1_nb"], pp["b1"],
      pp["att1_wf"], pp["att1_wm"], pp["att1_b"])


def _stage2_call(xyz, neighbor_xyz, f_neigh2, pp, tile_n):
    B, N, K, dh = f_neigh2.shape
    d_out = 2 * dh
    grid = (B, N // tile_n)
    return pl.pallas_call(
        _stage2_kernel,
        out_shape=jax.ShapeDtypeStruct((B, N, d_out), jnp.float32),
        grid=grid,
        in_specs=[
            pl.BlockSpec((1, tile_n, 3), lambda b, n: (b, n, 0)),
            pl.BlockSpec((1, tile_n, K, 3), lambda b, n: (b, n, 0, 0)),
            pl.BlockSpec((1, tile_n, K, dh), lambda b, n: (b, n, 0, 0)),
            _full_spec((1, dh)), _full_spec((3, dh)), _full_spec((3, dh)),
            _full_spec((1, dh)),
            _full_spec((dh, dh)), _full_spec((1, dh)),
            _full_spec((2, 2, dh, dh)), _full_spec((2, dh, d_out)),
            _full_spec((1, d_out)),
        ],
        out_specs=pl.BlockSpec((1, tile_n, d_out), lambda b, n: (b, n, 0)),
        compiler_params=pltpu.CompilerParams(
            dimension_semantics=("parallel", "parallel"),
            vmem_limit_bytes=_VMEM_LIMIT),
    )(xyz, neighbor_xyz, f_neigh2,
      pp["w1_dis"], pp["w1_rel"], pp["w1_nb"], pp["b1"],
      pp["w2"], pp["b2"],
      pp["att2_wf"], pp["att2_wm"], pp["att2_b"])


# ---------------------------------------------------------------------------
# JAX glue (gathers stay in XLA — see TODO at top)
# ---------------------------------------------------------------------------

def gather_neighbour(pc, neigh_idx):
    # pc: (B, N, d), neigh_idx: (B, N, K) -> (B, N, K, d)   (torch.gather equiv.)
    B, N, d = pc.shape
    K = neigh_idx.shape[-1]
    flat = neigh_idx.reshape(B, N * K)
    g = jnp.take_along_axis(pc, flat[:, :, None], axis=1)
    return g.reshape(B, N, K, d)


def building_block_forward(pp, xyz, feature, neigh_idx):
    # xyz: (B,N,3); feature: (B, d_out//2, N, 1) NCHW; neigh_idx: (B,N,K) int32
    B, N, _ = xyz.shape
    K = neigh_idx.shape[-1]
    dh = pp["w2"].shape[0]
    tile_n = _pick_tile_n(N, K, dh)

    neighbor_xyz = gather_neighbour(xyz, neigh_idx)              # (B,N,K,3)
    feat_cl = jnp.transpose(feature[..., 0], (0, 2, 1))          # (B,N,dh)
    f_neigh = gather_neighbour(feat_cl, neigh_idx)               # (B,N,K,dh)

    f_pc_agg = _stage1_call(xyz, neighbor_xyz, f_neigh, pp, tile_n)   # (B,N,dh)

    f_neigh2 = gather_neighbour(f_pc_agg, neigh_idx)             # (B,N,K,dh)
    out = _stage2_call(xyz, neighbor_xyz, f_neigh2, pp, tile_n)  # (B,N,d_out)

    return jnp.transpose(out, (0, 2, 1))[..., None]              # (B,d_out,N,1)


# ---------------------------------------------------------------------------
# Parameters: raw (like the PyTorch module, BN in eval mode) + Pallas-prepped
# ---------------------------------------------------------------------------

def init_params(key, d_out):
    d_half = d_out // 2
    ks = jax.random.split(key, 10)

    def w(k, shape):
        return 0.1 * jax.random.normal(k, shape, jnp.float32)

    def bn(k, c):
        k1, k2 = jax.random.split(k)
        scale = 0.5 + jnp.abs(0.2 * jax.random.normal(k1, (c,), jnp.float32))
        shift = 0.1 * jax.random.normal(k2, (c,), jnp.float32)
        return scale, shift

    p = {}
    p["mlp1_w"] = w(ks[0], (10, d_half))
    p["mlp1_scale"], p["mlp1_shift"] = bn(ks[1], d_half)
    p["att1_fc_w"] = w(ks[2], (d_out, d_out))
    p["att1_mlp_w"] = w(ks[3], (d_out, d_half))
    p["att1_scale"], p["att1_shift"] = bn(ks[4], d_half)
    p["mlp2_w"] = w(ks[5], (d_half, d_half))
    p["mlp2_scale"], p["mlp2_shift"] = bn(ks[6], d_half)
    p["att2_fc_w"] = w(ks[7], (d_out, d_out))
    p["att2_mlp_w"] = w(ks[8], (d_out, d_out))
    p["att2_scale"], p["att2_shift"] = bn(ks[9], d_out)
    return p


def prepare_pallas_params(raw, d_out):
    dh = d_out // 2

    def quad(wfc):  # (2dh, 2dh) -> (2, 2, dh, dh); quad[i, j] = wfc row/col block (i, j)
        return jnp.transpose(wfc.reshape(2, dh, 2, dh), (0, 2, 1, 3))

    p = {}
    w1 = raw["mlp1_w"] * raw["mlp1_scale"][None, :]        # fold BN scale
    # mlp1 input channels are [dis(1), rel(3), tile(3), neigh(3)]; tile = rel+neigh
    p["w1_dis"] = w1[0:1]                                  # (1, dh)
    p["w1_rel"] = w1[1:4] + w1[4:7]                        # (3, dh)
    p["w1_nb"] = w1[4:7] + w1[7:10]                        # (3, dh)
    p["b1"] = raw["mlp1_shift"].reshape(1, dh)

    p["w2"] = raw["mlp2_w"] * raw["mlp2_scale"][None, :]
    p["b2"] = raw["mlp2_shift"].reshape(1, dh)

    p["att1_wf"] = quad(raw["att1_fc_w"])
    p["att1_wm"] = (raw["att1_mlp_w"] * raw["att1_scale"][None, :]).reshape(2, dh, dh)
    p["att1_b"] = raw["att1_shift"].reshape(1, dh)

    p["att2_wf"] = quad(raw["att2_fc_w"])
    p["att2_wm"] = (raw["att2_mlp_w"] * raw["att2_scale"][None, :]).reshape(2, dh, d_out)
    p["att2_b"] = raw["att2_shift"].reshape(1, d_out)
    return p


# ---------------------------------------------------------------------------
# Pure-JAX reference (mirrors the PyTorch module, BN folded to scale/shift)
# ---------------------------------------------------------------------------

def _ref_forward(raw, xyz, feature, neigh_idx):
    B, N, _ = xyz.shape
    K = neigh_idx.shape[-1]

    def mlp(x, w, scale, shift):
        return jnp.maximum(x @ w * scale + shift, 0.0)

    def att_pool(x, wfc, wm, scale, shift):
        att = jnp.einsum("bnkc,cd->bnkd", x, wfc)
        p = jax.nn.softmax(att, axis=2)
        agg = jnp.sum(x * p, axis=2)
        return jnp.maximum(agg @ wm * scale + shift, 0.0)

    neighbor_xyz = gather_neighbour(xyz, neigh_idx)
    xyz_tile = jnp.broadcast_to(xyz[:, :, None, :], (B, N, K, 3))
    rel = xyz_tile - neighbor_xyz
    dis = jnp.sqrt(jnp.sum(rel * rel, axis=-1, keepdims=True))
    f_xyz = jnp.concatenate([dis, rel, xyz_tile, neighbor_xyz], axis=-1)

    f_xyz1 = mlp(f_xyz, raw["mlp1_w"], raw["mlp1_scale"], raw["mlp1_shift"])
    feat_cl = jnp.transpose(feature[..., 0], (0, 2, 1))
    f_neigh = gather_neighbour(feat_cl, neigh_idx)
    f_concat = jnp.concatenate([f_neigh, f_xyz1], axis=-1)
    f_pc_agg = att_pool(f_concat, raw["att1_fc_w"], raw["att1_mlp_w"],
                        raw["att1_scale"], raw["att1_shift"])

    f_xyz2 = mlp(f_xyz1, raw["mlp2_w"], raw["mlp2_scale"], raw["mlp2_shift"])
    f_neigh2 = gather_neighbour(f_pc_agg, neigh_idx)
    f_concat2 = jnp.concatenate([f_neigh2, f_xyz2], axis=-1)
    out = att_pool(f_concat2, raw["att2_fc_w"], raw["att2_mlp_w"],
                   raw["att2_scale"], raw["att2_shift"])
    return jnp.transpose(out, (0, 2, 1))[..., None]


# ---------------------------------------------------------------------------

if __name__ == "__main__":
    B, N, K, d_out = 2, 16, 8, 32

    key = jax.random.PRNGKey(0)
    k1, k2, k3, k4 = jax.random.split(key, 4)
    xyz = jax.random.normal(k1, (B, N, 3), jnp.float32)
    feature = jax.random.normal(k2, (B, d_out // 2, N, 1), jnp.float32)
    neigh_idx = jax.random.randint(k3, (B, N, K), 0, N, jnp.int32)

    raw = init_params(k4, d_out)
    pp = prepare_pallas_params(raw, d_out)

    out = jax.jit(building_block_forward)(pp, xyz, feature, neigh_idx)
    out = jax.block_until_ready(out)

    ref = jax.block_until_ready(_ref_forward(raw, xyz, feature, neigh_idx))

    assert out.shape == (B, d_out, N, 1), out.shape
    max_err = float(jnp.max(jnp.abs(out - ref)))
    # approx reciprocal in softmax + f32 reassociation -> allow a small tolerance
    assert max_err < 2e-3, f"mismatch vs reference, max abs err = {max_err}"
    print("KERNEL_OK")
</pallas_src>

<mosaic_0001>
module attributes {stable_mosaic.version = 11 : i64} {
  func.func @_stage1_kernel(%arg0: i32, %arg1: i32, %arg2: memref<1x16x3xf32, #tpu.memory_space<vmem>>, %arg3: memref<1x16x8x3xf32, #tpu.memory_space<vmem>>, %arg4: memref<1x16x8x16xf32, #tpu.memory_space<vmem>>, %arg5: memref<1x16xf32, #tpu.memory_space<vmem>>, %arg6: memref<3x16xf32, #tpu.memory_space<vmem>>, %arg7: memref<3x16xf32, #tpu.memory_space<vmem>>, %arg8: memref<1x16xf32, #tpu.memory_space<vmem>>, %arg9: memref<2x2x16x16xf32, #tpu.memory_space<vmem>>, %arg10: memref<2x16x16xf32, #tpu.memory_space<vmem>>, %arg11: memref<1x16xf32, #tpu.memory_space<vmem>>, %arg12: memref<1x16x16xf32, #tpu.memory_space<vmem>>) attributes {dimension_semantics = [#tpu.dimension_semantics<parallel>, #tpu.dimension_semantics<parallel>], iteration_bounds = array<i64: 2, 1>, scalar_prefetch = 0 : i64, scratch_operands = 0 : i64, tpu.core_type = #tpu.core_type<tc>, window_params = [{transform_indices = @transform_0, window_bounds = array<i64: 1, 16, 3>}, {transform_indices = @transform_1, window_bounds = array<i64: 1, 16, 8, 3>}, {transform_indices = @transform_2, window_bounds = array<i64: 1, 16, 8, 16>}, {pipeline_mode = #tpu.pipeline_mode<synchronous>, transform_indices = @transform_3, window_bounds = array<i64: 1, 16>}, {pipeline_mode = #tpu.pipeline_mode<synchronous>, transform_indices = @transform_4, window_bounds = array<i64: 3, 16>}, {pipeline_mode = #tpu.pipeline_mode<synchronous>, transform_indices = @transform_5, window_bounds = array<i64: 3, 16>}, {pipeline_mode = #tpu.pipeline_mode<synchronous>, transform_indices = @transform_6, window_bounds = array<i64: 1, 16>}, {pipeline_mode = #tpu.pipeline_mode<synchronous>, transform_indices = @transform_7, window_bounds = array<i64: 2, 2, 16, 16>}, {pipeline_mode = #tpu.pipeline_mode<synchronous>, transform_indices = @transform_8, window_bounds = array<i64: 2, 16, 16>}, {pipeline_mode = #tpu.pipeline_mode<synchronous>, transform_indices = @transform_9, window_bounds = array<i64: 1, 16>}, {transform_indices = @transform_10, window_bounds = array<i64: 1, 16, 16>}]} {
    %c0 = arith.constant 0 : index
    %c0_0 = arith.constant 0 : index
    %c0_1 = arith.constant 0 : index
    %0 = vector.load %arg2[%c0, %c0_0, %c0_1] : memref<1x16x3xf32, #tpu.memory_space<vmem>>, vector<1x16x3xf32>
    %1 = vector.shape_cast %0 : vector<1x16x3xf32> to vector<16x3xf32>
    %c0_2 = arith.constant 0 : index
    %c0_3 = arith.constant 0 : index
    %c0_4 = arith.constant 0 : index
    %c0_5 = arith.constant 0 : index
    %2 = vector.load %arg3[%c0_2, %c0_3, %c0_4, %c0_5] : memref<1x16x8x3xf32, #tpu.memory_space<vmem>>, vector<1x16x8x3xf32>
    %3 = vector.shape_cast %2 : vector<1x16x8x3xf32> to vector<16x8x3xf32>
    %c0_6 = arith.constant 0 : index
    %c0_7 = arith.constant 0 : index
    %4 = vector.load %arg5[%c0_6, %c0_7] : memref<1x16xf32, #tpu.memory_space<vmem>>, vector<1x16xf32>
    %c0_8 = arith.constant 0 : index
    %c0_9 = arith.constant 0 : index
    %5 = vector.load %arg6[%c0_8, %c0_9] : memref<3x16xf32, #tpu.memory_space<vmem>>, vector<3x16xf32>
    %c0_10 = arith.constant 0 : index
    %c0_11 = arith.constant 0 : index
    %6 = vector.load %arg7[%c0_10, %c0_11] : memref<3x16xf32, #tpu.memory_space<vmem>>, vector<3x16xf32>
    %c0_12 = arith.constant 0 : index
    %c0_13 = arith.constant 0 : index
    %7 = vector.load %arg8[%c0_12, %c0_13] : memref<1x16xf32, #tpu.memory_space<vmem>>, vector<1x16xf32>
    %8 = vector.shape_cast %1 : vector<16x3xf32> to vector<16x1x3xf32>
    %9 = vector.shape_cast %8 : vector<16x1x3xf32> to vector<16x1x3xf32>
    %10 = vector.broadcast %9 : vector<16x1x3xf32> to vector<16x8x3xf32>
    %11 = arith.subf %10, %3 : vector<16x8x3xf32>
    %12 = arith.mulf %11, %11 : vector<16x8x3xf32>
    %cst = arith.constant dense<0.000000e+00> : vector<16x8xf32>
    %13 = vector.multi_reduction <add>, %12, %cst [2] : vector<16x8x3xf32> to vector<16x8xf32>
    %14 = vector.shape_cast %13 : vector<16x8xf32> to vector<16x8x1xf32>
    %15 = math.sqrt %14 : vector<16x8x1xf32>
    %16 = vector.shape_cast %15 : vector<16x8x1xf32> to vector<128x1xf32>
    %17 = vector.broadcast %16 : vector<128x1xf32> to vector<128x16xf32>
    %18 = vector.broadcast %4 : vector<1x16xf32> to vector<128x16xf32>
    %19 = arith.mulf %17, %18 : vector<128x16xf32>
    %20 = vector.shape_cast %11 : vector<16x8x3xf32> to vector<128x3xf32>
    %cst_14 = arith.constant dense<0.000000e+00> : vector<128x16xf32>
    %21 = tpu.matmul %20, %5, %cst_14 {dimension_numbers = #tpu.dot_dimension_numbers<[1], [0], [0], [1], [0, 0, 1, 1], [], []>} : vector<128x3xf32>, vector<3x16xf32>, vector<128x16xf32> -> vector<128x16xf32>
    %22 = arith.addf %19, %21 : vector<128x16xf32>
    %23 = vector.shape_cast %3 : vector<16x8x3xf32> to vector<128x3xf32>
    %cst_15 = arith.constant dense<0.000000e+00> : vector<128x16xf32>
    %24 = tpu.matmul %23, %6, %cst_15 {dimension_numbers = #tpu.dot_dimension_numbers<[1], [0], [0], [1], [0, 0, 1, 1], [], []>} : vector<128x3xf32>, vector<3x16xf32>, vector<128x16xf32> -> vector<128x16xf32>
    %25 = arith.addf %22, %24 : vector<128x16xf32>
    %26 = vector.broadcast %7 : vector<1x16xf32> to vector<128x16xf32>
    %27 = arith.addf %25, %26 : vector<128x16xf32>
    %cst_16 = arith.constant 0.000000e+00 : f32
    %28 = vector.broadcast %cst_16 : f32 to vector<128x16xf32>
    %29 = arith.maximumf %27, %28 : vector<128x16xf32>
    %c0_17 = arith.constant 0 : index
    %c0_18 = arith.constant 0 : index
    %c0_19 = arith.constant 0 : index
    %c0_20 = arith.constant 0 : index
    %30 = vector.load %arg4[%c0_17, %c0_18, %c0_19, %c0_20] : memref<1x16x8x16xf32, #tpu.memory_space<vmem>>, vector<1x16x8x16xf32>
    %31 = vector.shape_cast %30 : vector<1x16x8x16xf32> to vector<16x8x16xf32>
    %32 = vector.shape_cast %29 : vector<128x16xf32> to vector<16x8x16xf32>
    %c0_21 = arith.constant 0 : index
    %c0_22 = arith.constant 0 : index
    %c0_23 = arith.constant 0 : index
    %c0_24 = arith.constant 0 : index
    %33 = vector.load %arg9[%c0_21, %c0_22, %c0_23, %c0_24] : memref<2x2x16x16xf32, #tpu.memory_space<vmem>>, vector<2x2x16x16xf32>
    %c0_25 = arith.constant 0 : index
    %c0_26 = arith.constant 0 : index
    %c0_27 = arith.constant 0 : index
    %34 = vector.load %arg10[%c0_25, %c0_26, %c0_27] : memref<2x16x16xf32, #tpu.memory_space<vmem>>, vector<2x16x16xf32>
    %c0_28 = arith.constant 0 : index
    %c0_29 = arith.constant 0 : index
    %35 = vector.load %arg11[%c0_28, %c0_29] : memref<1x16xf32, #tpu.memory_space<vmem>>, vector<1x16xf32>
    %36 = vector.shape_cast %31 : vector<16x8x16xf32> to vector<128x16xf32>
    %37 = vector.shape_cast %32 : vector<16x8x16xf32> to vector<128x16xf32>
    %38 = vector.extract_strided_slice %33 {offsets = [0, 0, 0, 0], sizes = [1, 1, 16, 16], strides = [1, 1, 1, 1]} : vector<2x2x16x16xf32> to vector<1x1x16x16xf32>
    %39 = vector.shape_cast %38 : vector<1x1x16x16xf32> to vector<16x16xf32>
    %cst_30 = arith.constant dense<0.000000e+00> : vector<128x16xf32>
    %40 = tpu.matmul %36, %39, %cst_30 {dimension_numbers = #tpu.dot_dimension_numbers<[1], [0], [0], [1], [0, 0, 1, 1], [], []>} : vector<128x16xf32>, vector<16x16xf32>, vector<128x16xf32> -> vector<128x16xf32>
    %41 = vector.extract_strided_slice %33 {offsets = [1, 0, 0, 0], sizes = [1, 1, 16, 16], strides = [1, 1, 1, 1]} : vector<2x2x16x16xf32> to vector<1x1x16x16xf32>
    %42 = vector.shape_cast %41 : vector<1x1x16x16xf32> to vector<16x16xf32>
    %cst_31 = arith.constant dense<0.000000e+00> : vector<128x16xf32>
    %43 = tpu.matmul %37, %42, %cst_31 {dimension_numbers = #tpu.dot_dimension_numbers<[1], [0], [0], [1], [0, 0, 1, 1], [], []>} : vector<128x16xf32>, vector<16x16xf32>, vector<128x16xf32> -> vector<128x16xf32>
    %44 = arith.addf %40, %43 : vector<128x16xf32>
    %45 = vector.shape_cast %44 : vector<128x16xf32> to vector<16x8x16xf32>
    %46 = vector.extract_strided_slice %33 {offsets = [0, 1, 0, 0], sizes = [1, 1, 16, 16], strides = [1, 1, 1, 1]} : vector<2x2x16x16xf32> to vector<1x1x16x16xf32>
    %47 = vector.shape_cast %46 : vector<1x1x16x16xf32> to vector<16x16xf32>
    %cst_32 = arith.constant dense<0.000000e+00> : vector<128x16xf32>
    %48 = tpu.matmul %36, %47, %cst_32 {dimension_numbers = #tpu.dot_dimension_numbers<[1], [0], [0], [1], [0, 0, 1, 1], [], []>} : vector<128x16xf32>, vector<16x16xf32>, vector<128x16xf32> -> vector<128x16xf32>
    %49 = vector.extract_strided_slice %33 {offsets = [1, 1, 0, 0], sizes = [1, 1, 16, 16], strides = [1, 1, 1, 1]} : vector<2x2x16x16xf32> to vector<1x1x16x16xf32>
    %50 = vector.shape_cast %49 : vector<1x1x16x16xf32> to vector<16x16xf32>
    %cst_33 = arith.constant dense<0.000000e+00> : vector<128x16xf32>
    %51 = tpu.matmul %37, %50, %cst_33 {dimension_numbers = #tpu.dot_dimension_numbers<[1], [0], [0], [1], [0, 0, 1, 1], [], []>} : vector<128x16xf32>, vector<16x16xf32>, vector<128x16xf32> -> vector<128x16xf32>
    %52 = arith.addf %48, %51 : vector<128x16xf32>
    %53 = vector.shape_cast %52 : vector<128x16xf32> to vector<16x8x16xf32>
    %cst_34 = arith.constant dense<0xFF800000> : vector<16x16xf32>
    %54 = vector.multi_reduction <maximumf>, %45, %cst_34 [1] : vector<16x8x16xf32> to vector<16x16xf32>
    %55 = vector.shape_cast %54 : vector<16x16xf32> to vector<16x1x16xf32>
    %56 = vector.broadcast %55 : vector<16x1x16xf32> to vector<16x8x16xf32>
    %57 = arith.subf %45, %56 : vector<16x8x16xf32>
    %58 = math.exp %57 : vector<16x8x16xf32>
    %cst_35 = arith.constant dense<0.000000e+00> : vector<16x16xf32>
    %59 = vector.multi_reduction <add>, %58, %cst_35 [1] : vector<16x8x16xf32> to vector<16x16xf32>
    %60 = vector.shape_cast %59 : vector<16x16xf32> to vector<16x1x16xf32>
    %61 = tpu.reciprocal %60 {approx = true} : vector<16x1x16xf32> -> vector<16x1x16xf32>
    %62 = vector.broadcast %61 : vector<16x1x16xf32> to vector<16x8x16xf32>
    %63 = arith.mulf %58, %62 : vector<16x8x16xf32>
    %cst_36 = arith.constant dense<0xFF800000> : vector<16x16xf32>
    %64 = vector.multi_reduction <maximumf>, %53, %cst_36 [1] : vector<16x8x16xf32> to vector<16x16xf32>
    %65 = vector.shape_cast %64 : vector<16x16xf32> to vector<16x1x16xf32>
    %66 = vector.broadcast %65 : vector<16x1x16xf32> to vector<16x8x16xf32>
    %67 = arith.subf %53, %66 : vector<16x8x16xf32>
    %68 = math.exp %67 : vector<16x8x16xf32>
    %cst_37 = arith.constant dense<0.000000e+00> : vector<16x16xf32>
    %69 = vector.multi_reduction <add>, %68, %cst_37 [1] : vector<16x8x16xf32> to vector<16x16xf32>
    %70 = vector.shape_cast %69 : vector<16x16xf32> to vector<16x1x16xf32>
    %71 = tpu.reciprocal %70 {approx = true} : vector<16x1x16xf32> -> vector<16x1x16xf32>
    %72 = vector.broadcast %71 : vector<16x1x16xf32> to vector<16x8x16xf32>
    %73 = arith.mulf %68, %72 : vector<16x8x16xf32>
    %74 = arith.mulf %31, %63 : vector<16x8x16xf32>
    %cst_38 = arith.constant dense<0.000000e+00> : vector<16x16xf32>
    %75 = vector.multi_reduction <add>, %74, %cst_38 [1] : vector<16x8x16xf32> to vector<16x16xf32>
    %76 = arith.mulf %32, %73 : vector<16x8x16xf32>
    %cst_39 = arith.constant dense<0.000000e+00> : vector<16x16xf32>
    %77 = vector.multi_reduction <add>, %76, %cst_39 [1] : vector<16x8x16xf32> to vector<16x16xf32>
    %78 = vector.extract_strided_slice %34 {offsets = [0, 0, 0], sizes = [1, 16, 16], strides = [1, 1, 1]} : vector<2x16x16xf32> to vector<1x16x16xf32>
    %79 = vector.shape_cast %78 : vector<1x16x16xf32> to vector<16x16xf32>
    %cst_40 = arith.constant dense<0.000000e+00> : vector<16x16xf32>
    %80 = tpu.matmul %75, %79, %cst_40 {dimension_numbers = #tpu.dot_dimension_numbers<[1], [0], [0], [1], [0, 0, 1, 1], [], []>} : vector<16x16xf32>, vector<16x16xf32>, vector<16x16xf32> -> vector<16x16xf32>
    %81 = vector.extract_strided_slice %34 {offsets = [1, 0, 0], sizes = [1, 16, 16], strides = [1, 1, 1]} : vector<2x16x16xf32> to vector<1x16x16xf32>
    %82 = vector.shape_cast %81 : vector<1x16x16xf32> to vector<16x16xf32>
    %cst_41 = arith.constant dense<0.000000e+00> : vector<16x16xf32>
    %83 = tpu.matmul %77, %82, %cst_41 {dimension_numbers = #tpu.dot_dimension_numbers<[1], [0], [0], [1], [0, 0, 1, 1], [], []>} : vector<16x16xf32>, vector<16x16xf32>, vector<16x16xf32> -> vector<16x16xf32>
    %84 = arith.addf %80, %83 : vector<16x16xf32>
    %85 = vector.broadcast %35 : vector<1x16xf32> to vector<16x16xf32>
    %86 = arith.addf %84, %85 : vector<16x16xf32>
    %cst_42 = arith.constant 0.000000e+00 : f32
    %87 = vector.broadcast %cst_42 : f32 to vector<16x16xf32>
    %88 = arith.maximumf %86, %87 : vector<16x16xf32>
    %c0_43 = arith.constant 0 : index
    %c0_44 = arith.constant 0 : index
    %c0_45 = arith.constant 0 : index
    %89 = vector.load %arg12[%c0_43, %c0_44, %c0_45] : memref<1x16x16xf32, #tpu.memory_space<vmem>>, vector<1x16x16xf32>
    %90 = vector.shape_cast %89 : vector<1x16x16xf32> to vector<16x16xf32>
    %91 = vector.shape_cast %88 : vector<16x16xf32> to vector<1x16x16xf32>
    tpu.vector_store %arg12[%c0_43, %c0_44, %c0_45], %91 {strides = array<i32>} : memref<1x16x16xf32, #tpu.memory_space<vmem>>, vector<1x16x16xf32>,
    return
  }
  func.func @transform_0(%arg0: i32, %arg1: i32) -> (i32, i32, i32) {
    %c0_i32 = arith.constant 0 : i32
    %c0_i32_0 = arith.constant 0 : i32
    return %arg0, %arg1, %c0_i32 : i32, i32, i32
  }
  func.func @transform_1(%arg0: i32, %arg1: i32) -> (i32, i32, i32, i32) {
    %c0_i32 = arith.constant 0 : i32
    %c0_i32_0 = arith.constant 0 : i32
    %c0_i32_1 = arith.constant 0 : i32
    return %arg0, %arg1, %c0_i32, %c0_i32_0 : i32, i32, i32, i32
  }
  func.func @transform_2(%arg0: i32, %arg1: i32) -> (i32, i32, i32, i32) {
    %c0_i32 = arith.constant 0 : i32
    %c0_i32_0 = arith.constant 0 : i32
    %c0_i32_1 = arith.constant 0 : i32
    return %arg0, %arg1, %c0_i32, %c0_i32_0 : i32, i32, i32, i32
  }
  func.func @transform_3(%arg0: i32, %arg1: i32) -> (i32, i32) {
    %c0_i32 = arith.constant 0 : i32
    %c0_i32_0 = arith.constant 0 : i32
    %c0_i32_1 = arith.constant 0 : i32
    return %c0_i32, %c0_i32_0 : i32, i32
  }
  func.func @transform_4(%arg0: i32, %arg1: i32) -> (i32, i32) {
    %c0_i32 = arith.constant 0 : i32
    %c0_i32_0 = arith.constant 0 : i32
    %c0_i32_1 = arith.constant 0 : i32
    return %c0_i32, %c0_i32_0 : i32, i32
  }
  func.func @transform_5(%arg0: i32, %arg1: i32) -> (i32, i32) {
    %c0_i32 = arith.constant 0 : i32
    %c0_i32_0 = arith.constant 0 : i32
    %c0_i32_1 = arith.constant 0 : i32
    return %c0_i32, %c0_i32_0 : i32, i32
  }
  func.func @transform_6(%arg0: i32, %arg1: i32) -> (i32, i32) {
    %c0_i32 = arith.constant 0 : i32
    %c0_i32_0 = arith.constant 0 : i32
    %c0_i32_1 = arith.constant 0 : i32
    return %c0_i32, %c0_i32_0 : i32, i32
  }
  func.func @transform_7(%arg0: i32, %arg1: i32) -> (i32, i32, i32, i32) {
    %c0_i32 = arith.constant 0 : i32
    %c0_i32_0 = arith.constant 0 : i32
    %c0_i32_1 = arith.constant 0 : i32
    %c0_i32_2 = arith.constant 0 : i32
    %c0_i32_3 = arith.constant 0 : i32
    return %c0_i32, %c0_i32_0, %c0_i32_1, %c0_i32_2 : i32, i32, i32, i32
  }
  func.func @transform_8(%arg0: i32, %arg1: i32) -> (i32, i32, i32) {
    %c0_i32 = arith.constant 0 : i32
    %c0_i32_0 = arith.constant 0 : i32
    %c0_i32_1 = arith.constant 0 : i32
    %c0_i32_2 = arith.constant 0 : i32
    return %c0_i32, %c0_i32_0, %c0_i32_1 : i32, i32, i32
  }
  func.func @transform_9(%arg0: i32, %arg1: i32) -> (i32, i32) {
    %c0_i32 = arith.constant 0 : i32
    %c0_i32_0 = arith.constant 0 : i32
    %c0_i32_1 = arith.constant 0 : i32
    return %c0_i32, %c0_i32_0 : i32, i32
  }
  func.func @transform_10(%arg0: i32, %arg1: i32) -> (i32, i32, i32) {
    %c0_i32 = arith.constant 0 : i32
    %c0_i32_0 = arith.constant 0 : i32
    return %arg0, %arg1, %c0_i32 : i32, i32, i32
  }
}

module attributes {stable_mosaic.version = 11 : i64} {
  func.func @_stage2_kernel(%arg0: i32, %arg1: i32, %arg2: memref<1x16x3xf32, #tpu.memory_space<vmem>>, %arg3: memref<1x16x8x3xf32, #tpu.memory_space<vmem>>, %arg4: memref<1x16x8x16xf32, #tpu.memory_space<vmem>>, %arg5: memref<1x16xf32, #tpu.memory_space<vmem>>, %arg6: memref<3x16xf32, #tpu.memory_space<vmem>>, %arg7: memref<3x16xf32, #tpu.memory_space<vmem>>, %arg8: memref<1x16xf32, #tpu.memory_space<vmem>>, %arg9: memref<16x16xf32, #tpu.memory_space<vmem>>, %arg10: memref<1x16xf32, #tpu.memory_space<vmem>>, %arg11: memref<2x2x16x16xf32, #tpu.memory_space<vmem>>, %arg12: memref<2x16x32xf32, #tpu.memory_space<vmem>>, %arg13: memref<1x32xf32, #tpu.memory_space<vmem>>, %arg14: memref<1x16x32xf32, #tpu.memory_space<vmem>>) attributes {dimension_semantics = [#tpu.dimension_semantics<parallel>, #tpu.dimension_semantics<parallel>], iteration_bounds = array<i64: 2, 1>, scalar_prefetch = 0 : i64, scratch_operands = 0 : i64, tpu.core_type = #tpu.core_type<tc>, window_params = [{transform_indices = @transform_0, window_bounds = array<i64: 1, 16, 3>}, {transform_indices = @transform_1, window_bounds = array<i64: 1, 16, 8, 3>}, {transform_indices = @transform_2, window_bounds = array<i64: 1, 16, 8, 16>}, {pipeline_mode = #tpu.pipeline_mode<synchronous>, transform_indices = @transform_3, window_bounds = array<i64: 1, 16>}, {pipeline_mode = #tpu.pipeline_mode<synchronous>, transform_indices = @transform_4, window_bounds = array<i64: 3, 16>}, {pipeline_mode = #tpu.pipeline_mode<synchronous>, transform_indices = @transform_5, window_bounds = array<i64: 3, 16>}, {pipeline_mode = #tpu.pipeline_mode<synchronous>, transform_indices = @transform_6, window_bounds = array<i64: 1, 16>}, {pipeline_mode = #tpu.pipeline_mode<synchronous>, transform_indices = @transform_7, window_bounds = array<i64: 16, 16>}, {pipeline_mode = #tpu.pipeline_mode<synchronous>, transform_indices = @transform_8, window_bounds = array<i64: 1, 16>}, {pipeline_mode = #tpu.pipeline_mode<synchronous>, transform_indices = @transform_9, window_bounds = array<i64: 2, 2, 16, 16>}, {pipeline_mode = #tpu.pipeline_mode<synchronous>, transform_indices = @transform_10, window_bounds = array<i64: 2, 16, 32>}, {pipeline_mode = #tpu.pipeline_mode<synchronous>, transform_indices = @transform_11, window_bounds = array<i64: 1, 32>}, {transform_indices = @transform_12, window_bounds = array<i64: 1, 16, 32>}]} {
    %c0 = arith.constant 0 : index
    %c0_0 = arith.constant 0 : index
    %c0_1 = arith.constant 0 : index
    %0 = vector.load %arg2[%c0, %c0_0, %c0_1] : memref<1x16x3xf32, #tpu.memory_space<vmem>>, vector<1x16x3xf32>
    %1 = vector.shape_cast %0 : vector<1x16x3xf32> to vector<16x3xf32>
    %c0_2 = arith.constant 0 : index
    %c0_3 = arith.constant 0 : index
    %c0_4 = arith.constant 0 : index
    %c0_5 = arith.constant 0 : index
    %2 = vector.load %arg3[%c0_2, %c0_3, %c0_4, %c0_5] : memref<1x16x8x3xf32, #tpu.memory_space<vmem>>, vector<1x16x8x3xf32>
    %3 = vector.shape_cast %2 : vector<1x16x8x3xf32> to vector<16x8x3xf32>
    %c0_6 = arith.constant 0 : index
    %c0_7 = arith.constant 0 : index
    %4 = vector.load %arg5[%c0_6, %c0_7] : memref<1x16xf32, #tpu.memory_space<vmem>>, vector<1x16xf32>
    %c0_8 = arith.constant 0 : index
    %c0_9 = arith.constant 0 : index
    %5 = vector.load %arg6[%c0_8, %c0_9] : memref<3x16xf32, #tpu.memory_space<vmem>>, vector<3x16xf32>
    %c0_10 = arith.constant 0 : index
    %c0_11 = arith.constant 0 : index
    %6 = vector.load %arg7[%c0_10, %c0_11] : memref<3x16xf32, #tpu.memory_space<vmem>>, vector<3x16xf32>
    %c0_12 = arith.constant 0 : index
    %c0_13 = arith.constant 0 : index
    %7 = vector.load %arg8[%c0_12, %c0_13] : memref<1x16xf32, #tpu.memory_space<vmem>>, vector<1x16xf32>
    %8 = vector.shape_cast %1 : vector<16x3xf32> to vector<16x1x3xf32>
    %9 = vector.shape_cast %8 : vector<16x1x3xf32> to vector<16x1x3xf32>
    %10 = vector.broadcast %9 : vector<16x1x3xf32> to vector<16x8x3xf32>
    %11 = arith.subf %10, %3 : vector<16x8x3xf32>
    %12 = arith.mulf %11, %11 : vector<16x8x3xf32>
    %cst = arith.constant dense<0.000000e+00> : vector<16x8xf32>
    %13 = vector.multi_reduction <add>, %12, %cst [2] : vector<16x8x3xf32> to vector<16x8xf32>
    %14 = vector.shape_cast %13 : vector<16x8xf32> to vector<16x8x1xf32>
    %15 = math.sqrt %14 : vector<16x8x1xf32>
    %16 = vector.shape_cast %15 : vector<16x8x1xf32> to vector<128x1xf32>
    %17 = vector.broadcast %16 : vector<128x1xf32> to vector<128x16xf32>
    %18 = vector.broadcast %4 : vector<1x16xf32> to vector<128x16xf32>
    %19 = arith.mulf %17, %18 : vector<128x16xf32>
    %20 = vector.shape_cast %11 : vector<16x8x3xf32> to vector<128x3xf32>
    %cst_14 = arith.constant dense<0.000000e+00> : vector<128x16xf32>
    %21 = tpu.matmul %20, %5, %cst_14 {dimension_numbers = #tpu.dot_dimension_numbers<[1], [0], [0], [1], [0, 0, 1, 1], [], []>} : vector<128x3xf32>, vector<3x16xf32>, vector<128x16xf32> -> vector<128x16xf32>
    %22 = arith.addf %19, %21 : vector<128x16xf32>
    %23 = vector.shape_cast %3 : vector<16x8x3xf32> to vector<128x3xf32>
    %cst_15 = arith.constant dense<0.000000e+00> : vector<128x16xf32>
    %24 = tpu.matmul %23, %6, %cst_15 {dimension_numbers = #tpu.dot_dimension_numbers<[1], [0], [0], [1], [0, 0, 1, 1], [], []>} : vector<128x3xf32>, vector<3x16xf32>, vector<128x16xf32> -> vector<128x16xf32>
    %25 = arith.addf %22, %24 : vector<128x16xf32>
    %26 = vector.broadcast %7 : vector<1x16xf32> to vector<128x16xf32>
    %27 = arith.addf %25, %26 : vector<128x16xf32>
    %cst_16 = arith.constant 0.000000e+00 : f32
    %28 = vector.broadcast %cst_16 : f32 to vector<128x16xf32>
    %29 = arith.maximumf %27, %28 : vector<128x16xf32>
    %c0_17 = arith.constant 0 : index
    %c0_18 = arith.constant 0 : index
    %30 = vector.load %arg9[%c0_17, %c0_18] : memref<16x16xf32, #tpu.memory_space<vmem>>, vector<16x16xf32>
    %cst_19 = arith.constant dense<0.000000e+00> : vector<128x16xf32>
    %31 = tpu.matmul %29, %30, %cst_19 {dimension_numbers = #tpu.dot_dimension_numbers<[1], [0], [0], [1], [0, 0, 1, 1], [], []>} : vector<128x16xf32>, vector<16x16xf32>, vector<128x16xf32> -> vector<128x16xf32>
    %c0_20 = arith.constant 0 : index
    %c0_21 = arith.constant 0 : index
    %32 = vector.load %arg10[%c0_20, %c0_21] : memref<1x16xf32, #tpu.memory_space<vmem>>, vector<1x16xf32>
    %33 = vector.broadcast %32 : vector<1x16xf32> to vector<128x16xf32>
    %34 = arith.addf %31, %33 : vector<128x16xf32>
    %cst_22 = arith.constant 0.000000e+00 : f32
    %35 = vector.broadcast %cst_22 : f32 to vector<128x16xf32>
    %36 = arith.maximumf %34, %35 : vector<128x16xf32>
    %c0_23 = arith.constant 0 : index
    %c0_24 = arith.constant 0 : index
    %c0_25 = arith.constant 0 : index
    %c0_26 = arith.constant 0 : index
    %37 = vector.load %arg4[%c0_23, %c0_24, %c0_25, %c0_26] : memref<1x16x8x16xf32, #tpu.memory_space<vmem>>, vector<1x16x8x16xf32>
    %38 = vector.shape_cast %37 : vector<1x16x8x16xf32> to vector<16x8x16xf32>
    %39 = vector.shape_cast %36 : vector<128x16xf32> to vector<16x8x16xf32>
    %c0_27 = arith.constant 0 : index
    %c0_28 = arith.constant 0 : index
    %c0_29 = arith.constant 0 : index
    %c0_30 = arith.constant 0 : index
    %40 = vector.load %arg11[%c0_27, %c0_28, %c0_29, %c0_30] : memref<2x2x16x16xf32, #tpu.memory_space<vmem>>, vector<2x2x16x16xf32>
    %c0_31 = arith.constant 0 : index
    %c0_32 = arith.constant 0 : index
    %c0_33 = arith.constant 0 : index
    %41 = vector.load %arg12[%c0_31, %c0_32, %c0_33] : memref<2x16x32xf32, #tpu.memory_space<vmem>>, vector<2x16x32xf32>
    %c0_34 = arith.constant 0 : index
    %c0_35 = arith.constant 0 : index
    %42 = vector.load %arg13[%c0_34, %c0_35] : memref<1x32xf32, #tpu.memory_space<vmem>>, vector<1x32xf32>
    %43 = vector.shape_cast %38 : vector<16x8x16xf32> to vector<128x16xf32>
    %44 = vector.shape_cast %39 : vector<16x8x16xf32> to vector<128x16xf32>
    %45 = vector.extract_strided_slice %40 {offsets = [0, 0, 0, 0], sizes = [1, 1, 16, 16], strides = [1, 1, 1, 1]} : vector<2x2x16x16xf32> to vector<1x1x16x16xf32>
    %46 = vector.shape_cast %45 : vector<1x1x16x16xf32> to vector<16x16xf32>
    %cst_36 = arith.constant dense<0.000000e+00> : vector<128x16xf32>
    %47 = tpu.matmul %43, %46, %cst_36 {dimension_numbers = #tpu.dot_dimension_numbers<[1], [0], [0], [1], [0, 0, 1, 1], [], []>} : vector<128x16xf32>, vector<16x16xf32>, vector<128x16xf32> -> vector<128x16xf32>
    %48 = vector.extract_strided_slice %40 {offsets = [1, 0, 0, 0], sizes = [1, 1, 16, 16], strides = [1, 1, 1, 1]} : vector<2x2x16x16xf32> to vector<1x1x16x16xf32>
    %49 = vector.shape_cast %48 : vector<1x1x16x16xf32> to vector<16x16xf32>
    %cst_37 = arith.constant dense<0.000000e+00> : vector<128x16xf32>
    %50 = tpu.matmul %44, %49, %cst_37 {dimension_numbers = #tpu.dot_dimension_numbers<[1], [0], [0], [1], [0, 0, 1, 1], [], []>} : vector<128x16xf32>, vector<16x16xf32>, vector<128x16xf32> -> vector<128x16xf32>
    %51 = arith.addf %47, %50 : vector<128x16xf32>
    %52 = vector.shape_cast %51 : vector<128x16xf32> to vector<16x8x16xf32>
    %53 = vector.extract_strided_slice %40 {offsets = [0, 1, 0, 0], sizes = [1, 1, 16, 16], strides = [1, 1, 1, 1]} : vector<2x2x16x16xf32> to vector<1x1x16x16xf32>
    %54 = vector.shape_cast %53 : vector<1x1x16x16xf32> to vector<16x16xf32>
    %cst_38 = arith.constant dense<0.000000e+00> : vector<128x16xf32>
    %55 = tpu.matmul %43, %54, %cst_38 {dimension_numbers = #tpu.dot_dimension_numbers<[1], [0], [0], [1], [0, 0, 1, 1], [], []>} : vector<128x16xf32>, vector<16x16xf32>, vector<128x16xf32> -> vector<128x16xf32>
    %56 = vector.extract_strided_slice %40 {offsets = [1, 1, 0, 0], sizes = [1, 1, 16, 16], strides = [1, 1, 1, 1]} : vector<2x2x16x16xf32> to vector<1x1x16x16xf32>
    %57 = vector.shape_cast %56 : vector<1x1x16x16xf32> to vector<16x16xf32>
    %cst_39 = arith.constant dense<0.000000e+00> : vector<128x16xf32>
    %58 = tpu.matmul %44, %57, %cst_39 {dimension_numbers = #tpu.dot_dimension_numbers<[1], [0], [0], [1], [0, 0, 1, 1], [], []>} : vector<128x16xf32>, vector<16x16xf32>, vector<128x16xf32> -> vector<128x16xf32>
    %59 = arith.addf %55, %58 : vector<128x16xf32>
    %60 = vector.shape_cast %59 : vector<128x16xf32> to vector<16x8x16xf32>
    %cst_40 = arith.constant dense<0xFF800000> : vector<16x16xf32>
    %61 = vector.multi_reduction <maximumf>, %52, %cst_40 [1] : vector<16x8x16xf32> to vector<16x16xf32>
    %62 = vector.shape_cast %61 : vector<16x16xf32> to vector<16x1x16xf32>
    %63 = vector.broadcast %62 : vector<16x1x16xf32> to vector<16x8x16xf32>
    %64 = arith.subf %52, %63 : vector<16x8x16xf32>
    %65 = math.exp %64 : vector<16x8x16xf32>
    %cst_41 = arith.constant dense<0.000000e+00> : vector<16x16xf32>
    %66 = vector.multi_reduction <add>, %65, %cst_41 [1] : vector<16x8x16xf32> to vector<16x16xf32>
    %67 = vector.shape_cast %66 : vector<16x16xf32> to vector<16x1x16xf32>
    %68 = tpu.reciprocal %67 {approx = true} : vector<16x1x16xf32> -> vector<16x1x16xf32>
    %69 = vector.broadcast %68 : vector<16x1x16xf32> to vector<16x8x16xf32>
    %70 = arith.mulf %65, %69 : vector<16x8x16xf32>
    %cst_42 = arith.constant dense<0xFF800000> : vector<16x16xf32>
    %71 = vector.multi_reduction <maximumf>, %60, %cst_42 [1] : vector<16x8x16xf32> to vector<16x16xf32>
    %72 = vector.shape_cast %71 : vector<16x16xf32> to vector<16x1x16xf32>
    %73 = vector.broadcast %72 : vector<16x1x16xf32> to vector<16x8x16xf32>
    %74 = arith.subf %60, %73 : vector<16x8x16xf32>
    %75 = math.exp %74 : vector<16x8x16xf32>
    %cst_43 = arith.constant dense<0.000000e+00> : vector<16x16xf32>
    %76 = vector.multi_reduction <add>, %75, %cst_43 [1] : vector<16x8x16xf32> to vector<16x16xf32>
    %77 = vector.shape_cast %76 : vector<16x16xf32> to vector<16x1x16xf32>
    %78 = tpu.reciprocal %77 {approx = true} : vector<16x1x16xf32> -> vector<16x1x16xf32>
    %79 = vector.broadcast %78 : vector<16x1x16xf32> to vector<16x8x16xf32>
    %80 = arith.mulf %75, %79 : vector<16x8x16xf32>
    %81 = arith.mulf %38, %70 : vector<16x8x16xf32>
    %cst_44 = arith.constant dense<0.000000e+00> : vector<16x16xf32>
    %82 = vector.multi_reduction <add>, %81, %cst_44 [1] : vector<16x8x16xf32> to vector<16x16xf32>
    %83 = arith.mulf %39, %80 : vector<16x8x16xf32>
    %cst_45 = arith.constant dense<0.000000e+00> : vector<16x16xf32>
    %84 = vector.multi_reduction <add>, %83, %cst_45 [1] : vector<16x8x16xf32> to vector<16x16xf32>
    %85 = vector.extract_strided_slice %41 {offsets = [0, 0, 0], sizes = [1, 16, 32], strides = [1, 1, 1]} : vector<2x16x32xf32> to vector<1x16x32xf32>
    %86 = vector.shape_cast %85 : vector<1x16x32xf32> to vector<16x32xf32>
    %cst_46 = arith.constant dense<0.000000e+00> : vector<16x32xf32>
    %87 = tpu.matmul %82, %86, %cst_46 {dimension_numbers = #tpu.dot_dimension_numbers<[1], [0], [0], [1], [0, 0, 1, 1], [], []>} : vector<16x16xf32>, vector<16x32xf32>, vector<16x32xf32> -> vector<16x32xf32>
    %88 = vector.extract_strided_slice %41 {offsets = [1, 0, 0], sizes = [1, 16, 32], strides = [1, 1, 1]} : vector<2x16x32xf32> to vector<1x16x32xf32>
    %89 = vector.shape_cast %88 : vector<1x16x32xf32> to vector<16x32xf32>
    %cst_47 = arith.constant dense<0.000000e+00> : vector<16x32xf32>
    %90 = tpu.matmul %84, %89, %cst_47 {dimension_numbers = #tpu.dot_dimension_numbers<[1], [0], [0], [1], [0, 0, 1, 1], [], []>} : vector<16x16xf32>, vector<16x32xf32>, vector<16x32xf32> -> vector<16x32xf32>
    %91 = arith.addf %87, %90 : vector<16x32xf32>
    %92 = vector.broadcast %42 : vector<1x32xf32> to vector<16x32xf32>
    %93 = arith.addf %91, %92 : vector<16x32xf32>
    %cst_48 = arith.constant 0.000000e+00 : f32
    %94 = vector.broadcast %cst_48 : f32 to vector<16x32xf32>
    %95 = arith.maximumf %93, %94 : vector<16x32xf32>
    %c0_49 = arith.constant 0 : index
    %c0_50 = arith.constant 0 : index
    %c0_51 = arith.constant 0 : index
    %96 = vector.load %arg14[%c0_49, %c0_50, %c0_51] : memref<1x16x32xf32, #tpu.memory_space<vmem>>, vector<1x16x32xf32>
    %97 = vector.shape_cast %96 : vector<1x16x32xf32> to vector<16x32xf32>
    %98 = vector.shape_cast %95 : vector<16x32xf32> to vector<1x16x32xf32>
    tpu.vector_store %arg14[%c0_49, %c0_50, %c0_51], %98 {strides = array<i32>} : memref<1x16x32xf32, #tpu.memory_space<vmem>>, vector<1x16x32xf32>,
    return
  }
  func.func @transform_0(%arg0: i32, %arg1: i32) -> (i32, i32, i32) {
    %c0_i32 = arith.constant 0 : i32
    %c0_i32_0 = arith.constant 0 : i32
    return %arg0, %arg1, %c0_i32 : i32, i32, i32
  }
  func.func @transform_1(%arg0: i32, %arg1: i32) -> (i32, i32, i32, i32) {
    %c0_i32 = arith.constant 0 : i32
    %c0_i32_0 = arith.constant 0 : i32
    %c0_i32_1 = arith.constant 0 : i32
    return %arg0, %arg1, %c0_i32, %c0_i32_0 : i32, i32, i32, i32
  }
  func.func @transform_2(%arg0: i32, %arg1: i32) -> (i32, i32, i32, i32) {
    %c0_i32 = arith.constant 0 : i32
    %c0_i32_0 = arith.constant 0 : i32
    %c0_i32_1 = arith.constant 0 : i32
    return %arg0, %arg1, %c0_i32, %c0_i32_0 : i32, i32, i32, i32
  }
  func.func @transform_3(%arg0: i32, %arg1: i32) -> (i32, i32) {
    %c0_i32 = arith.constant 0 : i32
    %c0_i32_0 = arith.constant 0 : i32
    %c0_i32_1 = arith.constant 0 : i32
    return %c0_i32, %c0_i32_0 : i32, i32
  }
  func.func @transform_4(%arg0: i32, %arg1: i32) -> (i32, i32) {
    %c0_i32 = arith.constant 0 : i32
    %c0_i32_0 = arith.constant 0 : i32
    %c0_i32_1 = arith.constant 0 : i32
    return %c0_i32, %c0_i32_0 : i32, i32
  }
  func.func @transform_5(%arg0: i32, %arg1: i32) -> (i32, i32) {
    %c0_i32 = arith.constant 0 : i32
    %c0_i32_0 = arith.constant 0 : i32
    %c0_i32_1 = arith.constant 0 : i32
    return %c0_i32, %c0_i32_0 : i32, i32
  }
  func.func @transform_6(%arg0: i32, %arg1: i32) -> (i32, i32) {
    %c0_i32 = arith.constant 0 : i32
    %c0_i32_0 = arith.constant 0 : i32
    %c0_i32_1 = arith.constant 0 : i32
    return %c0_i32, %c0_i32_0 : i32, i32
  }
  func.func @transform_7(%arg0: i32, %arg1: i32) -> (i32, i32) {
    %c0_i32 = arith.constant 0 : i32
    %c0_i32_0 = arith.constant 0 : i32
    %c0_i32_1 = arith.constant 0 : i32
    return %c0_i32, %c0_i32_0 : i32, i32
  }
  func.func @transform_8(%arg0: i32, %arg1: i32) -> (i32, i32) {
    %c0_i32 = arith.constant 0 : i32
    %c0_i32_0 = arith.constant 0 : i32
    %c0_i32_1 = arith.constant 0 : i32
    return %c0_i32, %c0_i32_0 : i32, i32
  }
  func.func @transform_9(%arg0: i32, %arg1: i32) -> (i32, i32, i32, i32) {
    %c0_i32 = arith.constant 0 : i32
    %c0_i32_0 = arith.constant 0 : i32
    %c0_i32_1 = arith.constant 0 : i32
    %c0_i32_2 = arith.constant 0 : i32
    %c0_i32_3 = arith.constant 0 : i32
    return %c0_i32, %c0_i32_0, %c0_i32_1, %c0_i32_2 : i32, i32, i32, i32
  }
  func.func @transform_10(%arg0: i32, %arg1: i32) -> (i32, i32, i32) {
    %c0_i32 = arith.constant 0 : i32
    %c0_i32_0 = arith.constant 0 : i32
    %c0_i32_1 = arith.constant 0 : i32
    %c0_i32_2 = arith.constant 0 : i32
    return %c0_i32, %c0_i32_0, %c0_i32_1 : i32, i32, i32
  }
  func.func @transform_11(%arg0: i32, %arg1: i32) -> (i32, i32) {
    %c0_i32 = arith.constant 0 : i32
    %c0_i32_0 = arith.constant 0 : i32
    %c0_i32_1 = arith.constant 0 : i32
    return %c0_i32, %c0_i32_0 : i32, i32
  }
  func.func @transform_12(%arg0: i32, %arg1: i32) -> (i32, i32, i32) {
    %c0_i32 = arith.constant 0 : i32
    %c0_i32_0 = arith.constant 0 : i32
    return %arg0, %arg1, %c0_i32 : i32, i32, i32
  }
}

</mosaic_0001>

<llo_original>
// kernel: building_block_forward.2
$region0: #{building_block_forward.2}
  #allocation0 [shape = 'u32[]', space=smem, size = 0x4, offset = 0x4, fixed_abs, tag = 'smem constant byte address 0x4 - core index']
  #allocation1 [shape = 'u32[144,128]{1,0:T(1,128)}', space=vmem, size = 0x12000, scoped, tag = 'internal scratch']
  %s0 = inlined_call_operand.vmem [shape: f32[2,16,3], index: 0, kind: input, shape index: {}]
  %s1 = inlined_call_operand.vmem [shape: f32[2,16,8,3], index: 1, kind: input, shape index: {}]
  %s2 = inlined_call_operand.vmem [shape: f32[2,16,8,16], index: 2, kind: input, shape index: {}]
  %s3 = inlined_call_operand.vmem [shape: f32[1,16], index: 3, kind: input, shape index: {}]
  %s4 = inlined_call_operand.vmem [shape: f32[3,16], index: 4, kind: input, shape index: {}]
  %s5 = inlined_call_operand.vmem [shape: f32[3,16], index: 5, kind: input, shape index: {}]
  %s6 = inlined_call_operand.vmem [shape: f32[1,16], index: 6, kind: input, shape index: {}]
  %s7 = inlined_call_operand.vmem [shape: f32[2,2,16,16], index: 7, kind: input, shape index: {}]
  %s8 = inlined_call_operand.vmem [shape: f32[2,16,16], index: 8, kind: input, shape index: {}]
  %s9 = inlined_call_operand.vmem [shape: f32[1,16], index: 9, kind: input, shape index: {}]
  %s10 = inlined_call_operand.vmem [shape: f32[2,16,16], index: 10, kind: output, shape index: {}]
  %s11 = sld [smem:[#allocation0]]
  $region73: #{building_block_forward.2} parent=0
    _
  %s13 = ssub.s32 1, %s11
  %s14 = scalar_select 0, %s13, %s11
  loop: start=0, step=1, limit=4
  $region2: #{building_block_forward.2} parent=0 // loop_pre_header
    _
  $region3: #{building_block_forward.2} parent=0 // loop_header
    %s16 = sphi 0, %s20
    %p17 = scmp.ge.s32.totalorder %s16, 4
    %s23 = sphi 0, %s35
    %s24 = sphi 0, %s31
    %s25 = sphi 0, %s23
    %s26 = sphi 0, %s24
    %s27 = sphi 0, %s25
    %s28 = sphi 0, %s26
    %s40 = sphi 0, %s42
    %s43 = sphi 0, %s40
    %s44 = sphi 0, %s43
    %s60 = sphi 0, %s44
    %s68 = sphi 0, %s70
    %s71 = sphi 0, %s68
    %s72 = sphi 0, %s71
    %s88 = sphi 0, %s72
    %s96 = sphi 0, %s98
    %s99 = sphi 0, %s96
    %s100 = sphi 0, %s99
    %s116 = sphi 0, %s100
    %s120 = sphi 0, %s120
    %s122 = sphi 0, %s120
    %s123 = sphi 0, %s122
    %s137 = sphi 0, %s123
    %s141 = sphi 0, %s141
    %s143 = sphi 0, %s141
    %s144 = sphi 0, %s143
    %s158 = sphi 0, %s144
    %s162 = sphi 0, %s162
    %s164 = sphi 0, %s162
    %s165 = sphi 0, %s164
    %s179 = sphi 0, %s165
    %s183 = sphi 0, %s183
    %s185 = sphi 0, %s183
    %s186 = sphi 0, %s185
    %s200 = sphi 0, %s186
    %s204 = sphi 0, %s204
    %s206 = sphi 0, %s204
    %s207 = sphi 0, %s206
    %s221 = sphi 0, %s207
    %s225 = sphi 0, %s225
    %s227 = sphi 0, %s225
    %s228 = sphi 0, %s227
    %s242 = sphi 0, %s228
    %s246 = sphi 0, %s246
    %s248 = sphi 0, %s246
    %s249 = sphi 0, %s248
    %s263 = sphi 0, %s249
    %s271 = sphi 0, %s273
    %s274 = sphi 0, %s271
    %s275 = sphi 0, %s274
    %s291 = sphi 0, %s275
  $region4: #{building_block_forward.2} parent=0 // loop_header_branch
    %19 = sbr.rel (%p17) target = $region8
  $region5: #{building_block_forward.2} parent=0 // loop_body
    %s21 = ssub.s32 %s16, 1
    %s22 = ssub.s32 %s16, 2
    %s29 = sadd.s32 1, %s24
    %p30 = scmp.ge.s32.totalorder %s29, 1
    %s31 = scalar_select %p30, 0, %s29
    %s32 = sadd.s32 1, %s23
    %s33 = scalar_select %p30, %s32, %s23
    %p34 = scmp.ge.s32.totalorder %s33, 2
    %s35 = scalar_select %p34, 0, %s33
    %s36 = ssub.s32 %s23, %s35
    %s37 = ssub.s32 %s24, %s31
    %s38 = sor.u32 %s36, %s37
    %p39 = scmp.eq.s32.totalorder %s38, 0
    %s41 = sadd.s32 %s40, 1
    %s42 = scalar_select %p39, %s40, %s41
    %p45 = pneg %p39
    %p46 = scmp.eq.s32.totalorder %s16, 1
    %p47 = por %p45, %p46
    %p48 = scmp.ne.s32.totalorder %s40, %s43
    %p49 = scmp.eq.s32.totalorder %s16, 0
    %p50 = por %p48, %p49
    %p51 = scmp.ne.s32.totalorder %s40, %s43
    %p52 = scmp.eq.s32.totalorder %s21, 1
    %p53 = por %p51, %p52
    %p54 = scmp.ne.s32.totalorder %s43, %s44
    %p55 = scmp.eq.s32.totalorder %s21, 0
    %p56 = por %p54, %p55
    %p57 = scmp.ne.s32.totalorder %s43, %s44
    %p58 = scmp.eq.s32.totalorder %s22, 1
    %p59 = por %p57, %p58
    %p61 = scmp.ne.s32.totalorder %s44, %s60
    %p62 = scmp.eq.s32.totalorder %s22, 0
    %p63 = por %p61, %p62
    %s64 = ssub.s32 %s23, %s35
    %s65 = ssub.s32 %s24, %s31
    %s66 = sor.u32 %s64, %s65
    %p67 = scmp.eq.s32.totalorder %s66, 0
    %s69 = sadd.s32 %s68, 1
    %s70 = scalar_select %p67, %s68, %s69
    %p73 = pneg %p67
    %p74 = scmp.eq.s32.totalorder %s16, 1
    %p75 = por %p73, %p74
    %p76 = scmp.ne.s32.totalorder %s68, %s71
    %p77 = scmp.eq.s32.totalorder %s16, 0
    %p78 = por %p76, %p77
    %p79 = scmp.ne.s32.totalorder %s68, %s71
    %p80 = scmp.eq.s32.totalorder %s21, 1
    %p81 = por %p79, %p80
    %p82 = scmp.ne.s32.totalorder %s71, %s72
    %p83 = scmp.eq.s32.totalorder %s21, 0
    %p84 = por %p82, %p83
    %p85 = scmp.ne.s32.totalorder %s71, %s72
    %p86 = scmp.eq.s32.totalorder %s22, 1
    %p87 = por %p85, %p86
    %p89 = scmp.ne.s32.totalorder %s72, %s88
    %p90 = scmp.eq.s32.totalorder %s22, 0
    %p91 = por %p89, %p90
    %s92 = ssub.s32 %s23, %s35
    %s93 = ssub.s32 %s24, %s31
    %s94 = sor.u32 %s92, %s93
    %p95 = scmp.eq.s32.totalorder %s94, 0
    %s97 = sadd.s32 %s96, 1
    %s98 = scalar_select %p95, %s96, %s97
    %p101 = pneg %p95
    %p102 = scmp.eq.s32.totalorder %s16, 1
    %p103 = por %p101, %p102
    %p104 = scmp.ne.s32.totalorder %s96, %s99
    %p105 = scmp.eq.s32.totalorder %s16, 0
    %p106 = por %p104, %p105
    %p107 = scmp.ne.s32.totalorder %s96, %s99
    %p108 = scmp.eq.s32.totalorder %s21, 1
    %p109 = por %p107, %p108
    %p110 = scmp.ne.s32.totalorder %s99, %s100
    %p111 = scmp.eq.s32.totalorder %s21, 0
    %p112 = por %p110, %p111
    %p113 = scmp.ne.s32.totalorder %s99, %s100
    %p114 = scmp.eq.s32.totalorder %s22, 1
    %p115 = por %p113, %p114
    %p117 = scmp.ne.s32.totalorder %s100, %s116
    %p118 = scmp.eq.s32.totalorder %s22, 0
    %p119 = por %p117, %p118
    %s121 = sadd.s32 %s120, 1
    %p124 = scmp.eq.s32.totalorder %s16, 1
    %p125 = scmp.ne.s32.totalorder %s120, %s122
    %p126 = scmp.eq.s32.totalorder %s16, 0
    %p127 = por %p125, %p126
    %p128 = scmp.ne.s32.totalorder %s120, %s122
    %p129 = scmp.eq.s32.totalorder %s21, 1
    %p130 = por %p128, %p129
    %p131 = scmp.ne.s32.totalorder %s122, %s123
    %p132 = scmp.eq.s32.totalorder %s21, 0
    %p133 = por %p131, %p132
    %p134 = scmp.ne.s32.totalorder %s122, %s123
    %p135 = scmp.eq.s32.totalorder %s22, 1
    %p136 = por %p134, %p135
    %p138 = scmp.ne.s32.totalorder %s123, %s137
    %p139 = scmp.eq.s32.totalorder %s22, 0
    %p140 = por %p138, %p139
    %s142 = sadd.s32 %s141, 1
    %p145 = scmp.eq.s32.totalorder %s16, 1
    %p146 = scmp.ne.s32.totalorder %s141, %s143
    %p147 = scmp.eq.s32.totalorder %s16, 0
    %p148 = por %p146, %p147
    %p149 = scmp.ne.s32.totalorder %s141, %s143
    %p150 = scmp.eq.s32.totalorder %s21, 1
    %p151 = por %p149, %p150
    %p152 = scmp.ne.s32.totalorder %s143, %s144
    %p153 = scmp.eq.s32.totalorder %s21, 0
    %p154 = por %p152, %p153
    %p155 = scmp.ne.s32.totalorder %s143, %s144
    %p156 = scmp.eq.s32.totalorder %s22, 1
    %p157 = por %p155, %p156
    %p159 = scmp.ne.s32.totalorder %s144, %s158
    %p160 = scmp.eq.s32.totalorder %s22, 0
    %p161 = por %p159, %p160
    %s163 = sadd.s32 %s162, 1
    %p166 = scmp.eq.s32.totalorder %s16, 1
    %p167 = scmp.ne.s32.totalorder %s162, %s164
    %p168 = scmp.eq.s32.totalorder %s16, 0
    %p169 = por %p167, %p168
    %p170 = scmp.ne.s32.totalorder %s162, %s164
    %p171 = scmp.eq.s32.totalorder %s21, 1
    %p172 = por %p170, %p171
    %p173 = scmp.ne.s32.totalorder %s164, %s165
    %p174 = scmp.eq.s32.totalorder %s21, 0
    %p175 = por %p173, %p174
    %p176 = scmp.ne.s32.totalorder %s164, %s165
    %p177 = scmp.eq.s32.totalorder %s22, 1
    %p178 = por %p176, %p177
    %p180 = scmp.ne.s32.totalorder %s165, %s179
    %p181 = scmp.eq.s32.totalorder %s22, 0
    %p182 = por %p180, %p181
    %s184 = sadd.s32 %s183, 1
    %p187 = scmp.eq.s32.totalorder %s16, 1
    %p188 = scmp.ne.s32.totalorder %s183, %s185
    %p189 = scmp.eq.s32.totalorder %s16, 0
    %p190 = por %p188, %p189
    %p191 = scmp.ne.s32.totalorder %s183, %s185
    %p192 = scmp.eq.s32.totalorder %s21, 1
    %p193 = por %p191, %p192
    %p194 = scmp.ne.s32.totalorder %s185, %s186
    %p195 = scmp.eq.s32.totalorder %s21, 0
    %p196 = por %p194, %p195
    %p197 = scmp.ne.s32.totalorder %s185, %s186
    %p198 = scmp.eq.s32.totalorder %s22, 1
    %p199 = por %p197, %p198
    %p201 = scmp.ne.s32.totalorder %s186, %s200
    %p202 = scmp.eq.s32.totalorder %s22, 0
    %p203 = por %p201, %p202
    %s205 = sadd.s32 %s204, 1
    %p208 = scmp.eq.s32.totalorder %s16, 1
    %p209 = scmp.ne.s32.totalorder %s204, %s206
    %p210 = scmp.eq.s32.totalorder %s16, 0
    %p211 = por %p209, %p210
    %p212 = scmp.ne.s32.totalorder %s204, %s206
    %p213 = scmp.eq.s32.totalorder %s21, 1
    %p214 = por %p212, %p213
    %p215 = scmp.ne.s32.totalorder %s206, %s207
    %p216 = scmp.eq.s32.totalorder %s21, 0
    %p217 = por %p215, %p216
    %p218 = scmp.ne.s32.totalorder %s206, %s207
    %p219 = scmp.eq.s32.totalorder %s22, 1
    %p220 = por %p218, %p219
    %p222 = scmp.ne.s32.totalorder %s207, %s221
    %p223 = scmp.eq.s32.totalorder %s22, 0
    %p224 = por %p222, %p223
    %s226 = sadd.s32 %s225, 1
    %p229 = scmp.eq.s32.totalorder %s16, 1
    %p230 = scmp.ne.s32.totalorder %s225, %s227
    %p231 = scmp.eq.s32.totalorder %s16, 0
    %p232 = por %p230, %p231
    %p233 = scmp.ne.s32.totalorder %s225, %s227
    %p234 = scmp.eq.s32.totalorder %s21, 1
    %p235 = por %p233, %p234
    %p236 = scmp.ne.s32.totalorder %s227, %s228
    %p237 = scmp.eq.s32.totalorder %s21, 0
    %p238 = por %p236, %p237
    %p239 = scmp.ne.s32.totalorder %s227, %s228
    %p240 = scmp.eq.s32.totalorder %s22, 1
    %p241 = por %p239, %p240
    %p243 = scmp.ne.s32.totalorder %s228, %s242
    %p244 = scmp.eq.s32.totalorder %s22, 0
    %p245 = por %p243, %p244
    %s247 = sadd.s32 %s246, 1
    %p250 = scmp.eq.s32.totalorder %s16, 1
    %p251 = scmp.ne.s32.totalorder %s246, %s248
    %p252 = scmp.eq.s32.totalorder %s16, 0
    %p253 = por %p251, %p252
    %p254 = scmp.ne.s32.totalorder %s246, %s248
    %p255 = scmp.eq.s32.totalorder %s21, 1
    %p256 = por %p254, %p255
    %p257 = scmp.ne.s32.totalorder %s248, %s249
    %p258 = scmp.eq.s32.totalorder %s21, 0
    %p259 = por %p257, %p258
    %p260 = scmp.ne.s32.totalorder %s248, %s249
    %p261 = scmp.eq.s32.totalorder %s22, 1
    %p262 = por %p260, %p261
    %p264 = scmp.ne.s32.totalorder %s249, %s263
    %p265 = scmp.eq.s32.totalorder %s22, 0
    %p266 = por %p264, %p265
    %s267 = ssub.s32 %s23, %s35
    %s268 = ssub.s32 %s24, %s31
    %s269 = sor.u32 %s267, %s268
    %p270 = scmp.eq.s32.totalorder %s269, 0
    %s272 = sadd.s32 %s271, 1
    %s273 = scalar_select %p270, %s271, %s272
    %p276 = pneg %p270
    %p277 = scmp.eq.s32.totalorder %s16, 1
    %p278 = por %p276, %p277
    %p279 = scmp.ne.s32.totalorder %s271, %s274
    %p280 = scmp.eq.s32.totalorder %s16, 0
    %p281 = por %p279, %p280
    %p282 = scmp.ne.s32.totalorder %s271, %s274
    %p283 = scmp.eq.s32.totalorder %s21, 1
    %p284 = por %p282, %p283
    %p285 = scmp.ne.s32.totalorder %s274, %s275
    %p286 = scmp.eq.s32.totalorder %s21, 0
    %p287 = por %p285, %p286
    %p288 = scmp.ne.s32.totalorder %s274, %s275
    %p289 = scmp.eq.s32.totalorder %s22, 1
    %p290 = por %p288, %p289
    %p292 = scmp.ne.s32.totalorder %s275, %s291
    %p293 = scmp.eq.s32.totalorder %s22, 0
    %p294 = por %p292, %p293
    %p295 = scmp.le.s32.totalorder 1, %s16
    %p296 = scmp.lt.s32.totalorder %s16, 3
    %p297 = pnand %p295, %p296
    %p298 = pneg %p297
    // Predicated region
    $region9: #{building_block_forward.2} parent=5 // pred_check
      _
    $region10: #{building_block_forward.2} parent=5 // pred_check_branch
      %300 = sbr.rel (%p297) target = $region12
    $region11: #{building_block_forward.2} parent=5 // pred_region
      %s301 = ssub.s32 %s16, 1
      // Predicated region
      $region13: #{building_block_forward.2} parent=11 // pred_check
        %p302 = pneg %p133
      $region14: #{building_block_forward.2} parent=11 // pred_check_branch
        %304 = sbr.rel (%p302) target = $region16
      $region15: #{building_block_forward.2} parent=11 // pred_region
        _
      $region16: #{building_block_forward.2} parent=11 // pred_fallthru
        _
      // Predicated region
      $region17: #{building_block_forward.2} parent=11 // pred_check
        %p305 = pneg %p154
      $region18: #{building_block_forward.2} parent=11 // pred_check_branch
        %307 = sbr.rel (%p305) target = $region20
      $region19: #{building_block_forward.2} parent=11 // pred_region
        _
      $region20: #{building_block_forward.2} parent=11 // pred_fallthru
        _
      // Predicated region
      $region21: #{building_block_forward.2} parent=11 // pred_check
        %p308 = pneg %p175
      $region22: #{building_block_forward.2} parent=11 // pred_check_branch
        %310 = sbr.rel (%p308) target = $region24
      $region23: #{building_block_forward.2} parent=11 // pred_region
        _
      $region24: #{building_block_forward.2} parent=11 // pred_fallthru
        _
      // Predicated region
      $region25: #{building_block_forward.2} parent=11 // pred_check
        %p311 = pneg %p196
      $region26: #{building_block_forward.2} parent=11 // pred_check_branch
        %313 = sbr.rel (%p311) target = $region28
      $region27: #{building_block_forward.2} parent=11 // pred_region
        _
      $region28: #{building_block_forward.2} parent=11 // pred_fallthru
        _
      // Predicated region
      $region29: #{building_block_forward.2} parent=11 // pred_check
        %p314 = pneg %p217
      $region30: #{building_block_forward.2} parent=11 // pred_check_branch
        %316 = sbr.rel (%p314) target = $region32
      $region31: #{building_block_forward.2} parent=11 // pred_region
        _
      $region32: #{building_block_forward.2} parent=11 // pred_fallthru
        _
      // Predicated region
      $region33: #{building_block_forward.2} parent=11 // pred_check
        %p317 = pneg %p238
      $region34: #{building_block_forward.2} parent=11 // pred_check_branch
        %319 = sbr.rel (%p317) target = $region36
      $region35: #{building_block_forward.2} parent=11 // pred_region
        _
      $region36: #{building_block_forward.2} parent=11 // pred_fallthru
        _
      // Predicated region
      $region37: #{building_block_forward.2} parent=11 // pred_check
        %p320 = pneg %p259
      $region38: #{building_block_forward.2} parent=11 // pred_check_branch
        %322 = sbr.rel (%p320) target = $region40
      $region39: #{building_block_forward.2} parent=11 // pred_region
        _
      $region40: #{building_block_forward.2} parent=11 // pred_fallthru
        _
    $region12: #{building_block_forward.2} parent=5 // pred_fallthru
      _
    %p323 = scmp.lt.s32.totalorder %s16, 2
    // Predicated region
    $region41: #{building_block_forward.2} parent=5 // pred_check
      %p324 = pneg %p323
    $region42: #{building_block_forward.2} parent=5 // pred_check_branch
      %326 = sbr.rel (%p324) target = $region44
    $region43: #{building_block_forward.2} parent=5 // pred_region
      // Predicated region
      $region45: #{building_block_forward.2} parent=43 // pred_check
        %p327 = pneg %p50
      $region46: #{building_block_forward.2} parent=43 // pred_check_branch
        %329 = sbr.rel (%p327) target = $region48
      $region47: #{building_block_forward.2} parent=43 // pred_region
        %s330 = smul.u32 2, %s24
        %p331 = scmp.lt.s32.totalorder %s23, 1
        %s332 = scalar_select %p331, %s23, 1
        %p333 = scmp.lt.s32.totalorder %s330, 1
        %s334 = scalar_select %p333, %s330, 1
        %s335 = smul.addr %s332, 2
        %s336 = sadd.s32 %s334, %s335
        %s337 = smul.addr %s336, 8
        %s338 = scalar_lea.vmem %s0, %s337
        %s339 = smul.u32 2, %s24
      $region48: #{building_block_forward.2} parent=43 // pred_fallthru
        _
      // Predicated region
      $region49: #{building_block_forward.2} parent=43 // pred_check
        %p340 = pneg %p78
      $region50: #{building_block_forward.2} parent=43 // pred_check_branch
        %342 = sbr.rel (%p340) target = $region52
      $region51: #{building_block_forward.2} parent=43 // pred_region
        %s343 = smul.u32 16, %s24
        %p344 = scmp.lt.s32.totalorder %s23, 1
        %s345 = scalar_select %p344, %s23, 1
        %p346 = scmp.lt.s32.totalorder %s343, 15
        %s347 = scalar_select %p346, %s343, 15
        %s348 = smul.addr %s345, 16
        %s349 = sadd.s32 %s347, %s348
        %s350 = smul.addr %s349, 8
        %s351 = scalar_lea.vmem %s1, %s350
        %s352 = smul.u32 16, %s24
      $region52: #{building_block_forward.2} parent=43 // pred_fallthru
        _
      // Predicated region
      $region53: #{building_block_forward.2} parent=43 // pred_check
        %p353 = pneg %p106
      $region54: #{building_block_forward.2} parent=43 // pred_check_branch
        %355 = sbr.rel (%p353) target = $region56
      $region55: #{building_block_forward.2} parent=43 // pred_region
        %s356 = smul.u32 16, %s24
        %p357 = scmp.lt.s32.totalorder %s23, 1
        %s358 = scalar_select %p357, %s23, 1
        %p359 = scmp.lt.s32.totalorder %s356, 15
        %s360 = scalar_select %p359, %s356, 15
        %s361 = smul.addr %s358, 16
        %s362 = sadd.s32 %s360, %s361
        %s363 = smul.addr %s362, 8
        %s364 = scalar_lea.vmem %s2, %s363
        %s365 = smul.u32 16, %s24
      $region56: #{building_block_forward.2} parent=43 // pred_fallthru
        _
    $region44: #{building_block_forward.2} parent=5 // pred_fallthru
      _
    %p366 = scmp.le.s32.totalorder 1, %s16
    %p367 = scmp.lt.s32.totalorder %s16, 3
    %p368 = pnand %p366, %p367
    %p369 = pneg %p368
    // Predicated region
    $region57: #{building_block_forward.2} parent=5 // pred_check
      _
    $region58: #{building_block_forward.2} parent=5 // pred_check_branch
      %371 = sbr.rel (%p368) target = $region60
    $region59: #{building_block_forward.2} parent=5 // pred_region
      %s372 = ssub.s32 %s16, 1
      %s373 = smul.u32 2, %s26
      %p374 = scmp.lt.s32.totalorder %s25, 1
      %s375 = scalar_select %p374, %s25, 1
      %p376 = scmp.lt.s32.totalorder %s373, 1
      %s377 = scalar_select %p376, %s373, 1
      %s378 = smul.addr %s375, 2
      %s379 = sadd.s32 %s377, %s378
      %s380 = smul.addr %s379, 8
      %s381 = scalar_lea.vmem %s0, %s380
      %p382 = pneg %p56
      %p383 = pneg %p53
      %s384 = smul.u32 16, %s26
      %p385 = scmp.lt.s32.totalorder %s25, 1
      %s386 = scalar_select %p385, %s25, 1
      %p387 = scmp.lt.s32.totalorder %s384, 15
      %s388 = scalar_select %p387, %s384, 15
      %s389 = smul.addr %s386, 16
      %s390 = sadd.s32 %s388, %s389
      %s391 = smul.addr %s390, 8
      %s392 = scalar_lea.vmem %s1, %s391
      %p393 = pneg %p84
      %p394 = pneg %p81
      %s395 = smul.u32 16, %s26
      %p396 = scmp.lt.s32.totalorder %s25, 1
      %s397 = scalar_select %p396, %s25, 1
      %p398 = scmp.lt.s32.totalorder %s395, 15
      %s399 = scalar_select %p398, %s395, 15
      %s400 = smul.addr %s397, 16
      %s401 = sadd.s32 %s399, %s400
      %s402 = smul.addr %s401, 8
      %s403 = scalar_lea.vmem %s2, %s402
      %p404 = pneg %p112
      %p405 = pneg %p109
      %p406 = pneg %p133
      %p407 = pneg %p130
      %p408 = pneg %p154
      %p409 = pneg %p151
      %p410 = pneg %p175
      %p411 = pneg %p172
      %p412 = pneg %p196
      %p413 = pneg %p193
      %p414 = pneg %p217
      %p415 = pneg %p214
      %p416 = pneg %p238
      %p417 = pneg %p235
      %p418 = pneg %p259
      %p419 = pneg %p256
      %p420 = pneg %p287
      %p421 = pneg %p284
      %s422 = smul.u32 2, %s26
      %p423 = scmp.lt.s32.totalorder %s25, 1
      %s424 = scalar_select %p423, %s25, 1
      %p425 = scmp.lt.s32.totalorder %s422, 1
      %s426 = scalar_select %p425, %s422, 1
      %s427 = smul.addr %s424, 2
      %s428 = sadd.s32 %s426, %s427
      %s429 = smul.addr %s428, 8
      %s430 = scalar_lea.vmem %s10, %s429
      %s431 = smul.u32 2, %s26
      %p432 = scmp.lt.s32.totalorder %s25, 1
      %s433 = scalar_select %p432, %s25, 1
      %p434 = scmp.lt.s32.totalorder %s431, 1
      %s435 = scalar_select %p434, %s431, 1
      %s436 = smul.addr %s433, 2
      %s437 = sadd.s32 %s435, %s436
      %s438 = smul.addr %s437, 8
      %s439 = scalar_lea.vmem %s0, %s438
      %s440 = smul.u32 2, %s26
      %s441 = smul.u32 16, %s26
      %p442 = scmp.lt.s32.totalorder %s25, 1
      %s443 = scalar_select %p442, %s25, 1
      %p444 = scmp.lt.s32.totalorder %s441, 15
      %s445 = scalar_select %p444, %s441, 15
      %s446 = smul.addr %s443, 16
      %s447 = sadd.s32 %s445, %s446
      %s448 = smul.addr %s447, 8
      %s449 = scalar_lea.vmem %s1, %s448
      %s450 = smul.u32 16, %s26
      %s451 = smul.u32 16, %s26
      %p452 = scmp.lt.s32.totalorder %s25, 1
      %s453 = scalar_select %p452, %s25, 1
      %p454 = scmp.lt.s32.totalorder %s451, 15
      %s455 = scalar_select %p454, %s451, 15
      %s456 = smul.addr %s453, 16
      %s457 = sadd.s32 %s455, %s456
      %s458 = smul.addr %s457, 8
      %s459 = scalar_lea.vmem %s2, %s458
      %s460 = smul.u32 16, %s26
      %s461 = smul.u32 2, %s26
      %p462 = scmp.lt.s32.totalorder %s25, 1
      %s463 = scalar_select %p462, %s25, 1
      %p464 = scmp.lt.s32.totalorder %s461, 1
      %s465 = scalar_select %p464, %s461, 1
      %s466 = smul.addr %s463, 2
      %s467 = sadd.s32 %s465, %s466
      %s468 = smul.addr %s467, 8
      %s469 = scalar_lea.vmem %s10, %s468
      %s470 = smul.u32 2, %s26
      %v471 = vld [vmem:[%s439] sm:$0xff]
      %v472 = vld [vmem:[%s439 + $0x8] sm:$0xff]
      %v473 = vld [vmem:[%s449] sm:$0xff]
      %v474 = vld [vmem:[%s449 + $0x8] sm:$0xff]
      %v475 = vld [vmem:[%s449 + $0x10] sm:$0xff]
      %v476 = vld [vmem:[%s449 + $0x18] sm:$0xff]
      %v477 = vld [vmem:[%s449 + $0x20] sm:$0xff]
      %v478 = vld [vmem:[%s449 + $0x28] sm:$0xff]
      %v479 = vld [vmem:[%s449 + $0x30] sm:$0xff]
      %v480 = vld [vmem:[%s449 + $0x38] sm:$0xff]
      %v481 = vld [vmem:[%s449 + $0x40] sm:$0xff]
      %v482 = vld [vmem:[%s449 + $0x48] sm:$0xff]
      %v483 = vld [vmem:[%s449 + $0x50] sm:$0xff]
      %v484 = vld [vmem:[%s449 + $0x58] sm:$0xff]
      %v485 = vld [vmem:[%s449 + $0x60] sm:$0xff]
      %v486 = vld [vmem:[%s449 + $0x68] sm:$0xff]
      %v487 = vld [vmem:[%s449 + $0x70] sm:$0xff]
      %v488 = vld [vmem:[%s449 + $0x78] sm:$0xff]
      %v489 = vld [vmem:[%s3] sm:$0x1]
      %v490 = vld [vmem:[%s4] sm:$0x7]
      %v491 = vld [vmem:[%s5] sm:$0x7]
      %v492 = vld [vmem:[%s6] sm:$0x1]
      %v495 = vcombine.high %v471, %v471
      %v497 = vunpack.c.l.s4 1966171168
      %v498 = vunpack.c.0.s8 %v497
      %v499 = vlaneseq
      %v500 = vshrl.u32 %v499, 7
      %v501 = vsub.s32 %v498, %v500
      %v502 = vrot.slane %v471, %v501
      %v504 = vunpack.c.l.s4 1966171168
      %v505 = vunpack.c.0.s8 %v504
      %v506 = vlaneseq
      %v507 = vshrl.u32 %v506, 7
      %v508 = vsub.s32 %v505, %v507
      %v509 = vrot.slane %v495, %v508
      %v510 = vcombine.high %v502, %v502
      %v511 = vcombine.high %v509, %v509
      %v513 = vunpack.c.l.s4 1966171168
      %v514 = vunpack.c.0.s8 %v513
      %v515 = vlaneseq
      %v516 = vshrl.u32 %v515, 7
      %v517 = vsub.s32 %v514, %v516
      %v518 = vrot.slane %v502, %v517
      %v520 = vunpack.c.l.s4 1966171168
      %v521 = vunpack.c.0.s8 %v520
      %v522 = vlaneseq
      %v523 = vshrl.u32 %v522, 7
      %v524 = vsub.s32 %v521, %v523
      %v525 = vrot.slane %v509, %v524
      %v527 = vunpack.c.l.s4 1966171168
      %v528 = vunpack.c.0.s8 %v527
      %v529 = vlaneseq
      %v530 = vshrl.u32 %v529, 7
      %v531 = vsub.s32 %v528, %v530
      %v532 = vrot.slane %v510, %v531
      %v534 = vunpack.c.l.s4 1966171168
      %v535 = vunpack.c.0.s8 %v534
      %v536 = vlaneseq
      %v537 = vshrl.u32 %v536, 7
      %v538 = vsub.s32 %v535, %v537
      %v539 = vrot.slane %v511, %v538
      %v540 = vcombine.high %v518, %v518
      %v541 = vcombine.high %v525, %v525
      %v542 = vcombine.high %v532, %v532
      %v543 = vcombine.high %v539, %v539
      %v544 = vcombine.high %v472, %v472
      %v546 = vunpack.c.l.s4 1966171168
      %v547 = vunpack.c.0.s8 %v546
      %v548 = vlaneseq
      %v549 = vshrl.u32 %v548, 7
      %v550 = vsub.s32 %v547, %v549
      %v551 = vrot.slane %v472, %v550
      %v553 = vunpack.c.l.s4 1966171168
      %v554 = vunpack.c.0.s8 %v553
      %v555 = vlaneseq
      %v556 = vshrl.u32 %v555, 7
      %v557 = vsub.s32 %v554, %v556
      %v558 = vrot.slane %v544, %v557
      %v559 = vcombine.high %v551, %v551
      %v560 = vcombine.high %v558, %v558
      %v562 = vunpack.c.l.s4 1966171168
      %v563 = vunpack.c.0.s8 %v562
      %v564 = vlaneseq
      %v565 = vshrl.u32 %v564, 7
      %v566 = vsub.s32 %v563, %v565
      %v567 = vrot.slane %v551, %v566
      %v569 = vunpack.c.l.s4 1966171168
      %v570 = vunpack.c.0.s8 %v569
      %v571 = vlaneseq
      %v572 = vshrl.u32 %v571, 7
      %v573 = vsub.s32 %v570, %v572
      %v574 = vrot.slane %v558, %v573
      %v576 = vunpack.c.l.s4 1966171168
      %v577 = vunpack.c.0.s8 %v576
      %v578 = vlaneseq
      %v579 = vshrl.u32 %v578, 7
      %v580 = vsub.s32 %v577, %v579
      %v581 = vrot.slane %v559, %v580
      %v583 = vunpack.c.l.s4 1966171168
      %v584 = vunpack.c.0.s8 %v583
      %v585 = vlaneseq
      %v586 = vshrl.u32 %v585, 7
      %v587 = vsub.s32 %v584, %v586
      %v588 = vrot.slane %v560, %v587
      %v589 = vcombine.high %v567, %v567
      %v590 = vcombine.high %v574, %v574
      %v591 = vcombine.high %v581, %v581
      %v592 = vcombine.high %v588, %v588
      %v593 = vlaneseq
      %v594 = vshrl.u32 %v593, 7
      %v595 = vsub.s32 0, %v594
      %v596 = vrot.slane %v518, %v595
      %v597 = vlaneseq
      %v598 = vshrl.u32 %v597, 7
      %v599 = vsub.s32 0, %v598
      %v600 = vrot.slane %v532, %v599
      %v601 = vlaneseq
      %v602 = vshrl.u32 %v601, 7
      %v603 = vsub.s32 0, %v602
      %v604 = vrot.slane %v540, %v603
      %v605 = vlaneseq
      %v606 = vshrl.u32 %v605, 7
      %v607 = vsub.s32 0, %v606
      %v608 = vrot.slane %v542, %v607
      %v609 = vlaneseq
      %v610 = vshrl.u32 %v609, 7
      %v611 = vsub.s32 0, %v610
      %v612 = vrot.slane %v525, %v611
      %v613 = vlaneseq
      %v614 = vshrl.u32 %v613, 7
      %v615 = vsub.s32 0, %v614
      %v616 = vrot.slane %v539, %v615
      %v617 = vlaneseq
      %v618 = vshrl.u32 %v617, 7
      %v619 = vsub.s32 0, %v618
      %v620 = vrot.slane %v541, %v619
      %v621 = vlaneseq
      %v622 = vshrl.u32 %v621, 7
      %v623 = vsub.s32 0, %v622
      %v624 = vrot.slane %v543, %v623
      %v625 = vlaneseq
      %v626 = vshrl.u32 %v625, 7
      %v627 = vsub.s32 0, %v626
      %v628 = vrot.slane %v567, %v627
      %v629 = vlaneseq
      %v630 = vshrl.u32 %v629, 7
      %v631 = vsub.s32 0, %v630
      %v632 = vrot.slane %v581, %v631
      %v633 = vlaneseq
      %v634 = vshrl.u32 %v633, 7
      %v635 = vsub.s32 0, %v634
      %v636 = vrot.slane %v589, %v635
      %v637 = vlaneseq
      %v638 = vshrl.u32 %v637, 7
      %v639 = vsub.s32 0, %v638
      %v640 = vrot.slane %v591, %v639
      %v641 = vlaneseq
      %v642 = vshrl.u32 %v641, 7
      %v643 = vsub.s32 0, %v642
      %v644 = vrot.slane %v574, %v643
      %v645 = vlaneseq
      %v646 = vshrl.u32 %v645, 7
      %v647 = vsub.s32 0, %v646
      %v648 = vrot.slane %v588, %v647
      %v649 = vlaneseq
      %v650 = vshrl.u32 %v649, 7
      %v651 = vsub.s32 0, %v650
      %v652 = vrot.slane %v590, %v651
      %v653 = vlaneseq
      %v654 = vshrl.u32 %v653, 7
      %v655 = vsub.s32 0, %v654
      %v656 = vrot.slane %v592, %v655
      %v673 = vsub.f32 %v596, %v473
      %v674 = vsub.f32 %v600, %v474
      %v675 = vsub.f32 %v604, %v475
      %v676 = vsub.f32 %v608, %v476
      %v677 = vsub.f32 %v612, %v477
      %v678 = vsub.f32 %v616, %v478
      %v679 = vsub.f32 %v620, %v479
      %v680 = vsub.f32 %v624, %v480
      %v681 = vsub.f32 %v628, %v481
      %v682 = vsub.f32 %v632, %v482
      %v683 = vsub.f32 %v636, %v483
      %v684 = vsub.f32 %v640, %v484
      %v685 = vsub.f32 %v644, %v485
      %v686 = vsub.f32 %v648, %v486
      %v687 = vsub.f32 %v652, %v487
      %v688 = vsub.f32 %v656, %v488
      %v689 = vmul.f32 %v673, %v673
      %v690 = vmul.f32 %v674, %v674
      %v691 = vmul.f32 %v675, %v675
      %v692 = vmul.f32 %v676, %v676
      %v693 = vmul.f32 %v677, %v677
      %v694 = vmul.f32 %v678, %v678
      %v695 = vmul.f32 %v679, %v679
      %v696 = vmul.f32 %v680, %v680
      %v697 = vmul.f32 %v681, %v681
      %v698 = vmul.f32 %v682, %v682
      %v699 = vmul.f32 %v683, %v683
      %v700 = vmul.f32 %v684, %v684
      %v701 = vmul.f32 %v685, %v685
      %v702 = vmul.f32 %v686, %v686
      %v703 = vmul.f32 %v687, %v687
      %v704 = vmul.f32 %v688, %v688
      %vm705 = vcmask 23552
      %v706 = vsel %vm705, %v689, 0.0
      %707 = vadd.xlane.f32.xlu0 %v706
      %v708 = vpop.xlane.xlu0 %707
      %v709 = vsel %vm705, %v690, 0.0
      %710 = vadd.xlane.f32.xlu0 %v709
      %v711 = vpop.xlane.xlu0 %710
      %v712 = vsel %vm705, %v691, 0.0
      %713 = vadd.xlane.f32.xlu0 %v712
      %v714 = vpop.xlane.xlu0 %713
      %v715 = vsel %vm705, %v692, 0.0
      %716 = vadd.xlane.f32.xlu0 %v715
      %v717 = vpop.xlane.xlu0 %716
      %v718 = vsel %vm705, %v693, 0.0
      %719 = vadd.xlane.f32.xlu0 %v718
      %v720 = vpop.xlane.xlu0 %719
      %v721 = vsel %vm705, %v694, 0.0
      %722 = vadd.xlane.f32.xlu0 %v721
      %v723 = vpop.xlane.xlu0 %722
      %v724 = vsel %vm705, %v695, 0.0
      %725 = vadd.xlane.f32.xlu0 %v724
      %v726 = vpop.xlane.xlu0 %725
      %v727 = vsel %vm705, %v696, 0.0
      %728 = vadd.xlane.f32.xlu0 %v727
      %v729 = vpop.xlane.xlu0 %728
      %v730 = vsel %vm705, %v697, 0.0
      %731 = vadd.xlane.f32.xlu0 %v730
      %v732 = vpop.xlane.xlu0 %731
      %v733 = vsel %vm705, %v698, 0.0
      %734 = vadd.xlane.f32.xlu0 %v733
      %v735 = vpop.xlane.xlu0 %734
      %v736 = vsel %vm705, %v699, 0.0
      %737 = vadd.xlane.f32.xlu0 %v736
      %v738 = vpop.xlane.xlu0 %737
      %v739 = vsel %vm705, %v700, 0.0
      %740 = vadd.xlane.f32.xlu0 %v739
      %v741 = vpop.xlane.xlu0 %740
      %v742 = vsel %vm705, %v701, 0.0
      %743 = vadd.xlane.f32.xlu0 %v742
      %v744 = vpop.xlane.xlu0 %743
      %v745 = vsel %vm705, %v702, 0.0
      %746 = vadd.xlane.f32.xlu0 %v745
      %v747 = vpop.xlane.xlu0 %746
      %v748 = vsel %vm705, %v703, 0.0
      %749 = vadd.xlane.f32.xlu0 %v748
      %v750 = vpop.xlane.xlu0 %749
      %v751 = vsel %vm705, %v704, 0.0
      %752 = vadd.xlane.f32.xlu0 %v751
      %v753 = vpop.xlane.xlu0 %752
      %v754 = vrsqrt.pop %v708
      %v755 = vmul.f32 %v708, %v754
      %vm756 = vcmp.eq.f32.partialorder %v708, inf
      %v757 = vsel %vm756, %v708, %v755
      %vm758 = vcmp.eq.f32.partialorder %v708, 0.0
      %v759 = vand.u32 %v708, 2147483648
      %v760 = vsel %vm758, %v759, %v757
      %v761 = vrsqrt.pop %v711
      %v762 = vmul.f32 %v711, %v761
      %vm763 = vcmp.eq.f32.partialorder %v711, inf
      %v764 = vsel %vm763, %v711, %v762
      %vm765 = vcmp.eq.f32.partialorder %v711, 0.0
      %v766 = vand.u32 %v711, 2147483648
      %v767 = vsel %vm765, %v766, %v764
      %v768 = vrsqrt.pop %v714
      %v769 = vmul.f32 %v714, %v768
      %vm770 = vcmp.eq.f32.partialorder %v714, inf
      %v771 = vsel %vm770, %v714, %v769
      %vm772 = vcmp.eq.f32.partialorder %v714, 0.0
      %v773 = vand.u32 %v714, 2147483648
      %v774 = vsel %vm772, %v773, %v771
      %v775 = vrsqrt.pop %v717
      %v776 = vmul.f32 %v717, %v775
      %vm777 = vcmp.eq.f32.partialorder %v717, inf
      %v778 = vsel %vm777, %v717, %v776
      %vm779 = vcmp.eq.f32.partialorder %v717, 0.0
      %v780 = vand.u32 %v717, 2147483648
      %v781 = vsel %vm779, %v780, %v778
      %v782 = vrsqrt.pop %v720
      %v783 = vmul.f32 %v720, %v782
      %vm784 = vcmp.eq.f32.partialorder %v720, inf
      %v785 = vsel %vm784, %v720, %v783
      %vm786 = vcmp.eq.f32.partialorder %v720, 0.0
      %v787 = vand.u32 %v720, 2147483648
      %v788 = vsel %vm786, %v787, %v785
      %v789 = vrsqrt.pop %v723
      %v790 = vmul.f32 %v723, %v789
      %vm791 = vcmp.eq.f32.partialorder %v723, inf
      %v792 = vsel %vm791, %v723, %v790
      %vm793 = vcmp.eq.f32.partialorder %v723, 0.0
      %v794 = vand.u32 %v723, 2147483648
      %v795 = vsel %vm793, %v794, %v792
      %v796 = vrsqrt.pop %v726
      %v797 = vmul.f32 %v726, %v796
      %vm798 = vcmp.eq.f32.partialorder %v726, inf
      %v799 = vsel %vm798, %v726, %v797
      %vm800 = vcmp.eq.f32.partialorder %v726, 0.0
      %v801 = vand.u32 %v726, 2147483648
      %v802 = vsel %vm800, %v801, %v799
      %v803 = vrsqrt.pop %v729
      %v804 = vmul.f32 %v729, %v803
      %vm805 = vcmp.eq.f32.partialorder %v729, inf
      %v806 = vsel %vm805, %v729, %v804
      %vm807 = vcmp.eq.f32.partialorder %v729, 0.0
      %v808 = vand.u32 %v729, 2147483648
      %v809 = vsel %vm807, %v808, %v806
      %v810 = vrsqrt.pop %v732
      %v811 = vmul.f32 %v732, %v810
      %vm812 = vcmp.eq.f32.partialorder %v732, inf
      %v813 = vsel %vm812, %v732, %v811
      %vm814 = vcmp.eq.f32.partialorder %v732, 0.0
      %v815 = vand.u32 %v732, 2147483648
      %v816 = vsel %vm814, %v815, %v813
      %v817 = vrsqrt.pop %v735
      %v818 = vmul.f32 %v735, %v817
      %vm819 = vcmp.eq.f32.partialorder %v735, inf
      %v820 = vsel %vm819, %v735, %v818
      %vm821 = vcmp.eq.f32.partialorder %v735, 0.0
      %v822 = vand.u32 %v735, 2147483648
      %v823 = vsel %vm821, %v822, %v820
      %v824 = vrsqrt.pop %v738
      %v825 = vmul.f32 %v738, %v824
      %vm826 = vcmp.eq.f32.partialorder %v738, inf
      %v827 = vsel %vm826, %v738, %v825
      %vm828 = vcmp.eq.f32.partialorder %v738, 0.0
      %v829 = vand.u32 %v738, 2147483648
      %v830 = vsel %vm828, %v829, %v827
      %v831 = vrsqrt.pop %v741
      %v832 = vmul.f32 %v741, %v831
      %vm833 = vcmp.eq.f32.partialorder %v741, inf
      %v834 = vsel %vm833, %v741, %v832
      %vm835 = vcmp.eq.f32.partialorder %v741, 0.0
      %v836 = vand.u32 %v741, 2147483648
      %v837 = vsel %vm835, %v836, %v834
      %v838 = vrsqrt.pop %v744
      %v839 = vmul.f32 %v744, %v838
      %vm840 = vcmp.eq.f32.partialorder %v744, inf
      %v841 = vsel %vm840, %v744, %v839
      %vm842 = vcmp.eq.f32.partialorder %v744, 0.0
      %v843 = vand.u32 %v744, 2147483648
      %v844 = vsel %vm842, %v843, %v841
      %v845 = vrsqrt.pop %v747
      %v846 = vmul.f32 %v747, %v845
      %vm847 = vcmp.eq.f32.partialorder %v747, inf
      %v848 = vsel %vm847, %v747, %v846
      %vm849 = vcmp.eq.f32.partialorder %v747, 0.0
      %v850 = vand.u32 %v747, 2147483648
      %v851 = vsel %vm849, %v850, %v848
      %v852 = vrsqrt.pop %v750
      %v853 = vmul.f32 %v750, %v852
      %vm854 = vcmp.eq.f32.partialorder %v750, inf
      %v855 = vsel %vm854, %v750, %v853
      %vm856 = vcmp.eq.f32.partialorder %v750, 0.0
      %v857 = vand.u32 %v750, 2147483648
      %v858 = vsel %vm856, %v857, %v855
      %v859 = vrsqrt.pop %v753
      %v860 = vmul.f32 %v753, %v859
      %vm861 = vcmp.eq.f32.partialorder %v753, inf
      %v862 = vsel %vm861, %v753, %v860
      %vm863 = vcmp.eq.f32.partialorder %v753, 0.0
      %v864 = vand.u32 %v753, 2147483648
      %v865 = vsel %vm863, %v864, %v862
      %v867 = vlaneseq
      %v868 = vshrl.u32 %v867, 7
      %v869 = vsub.s32 0, %v868
      %v870 = vrot.slane %v489, %v869
      %v872 = vmul.f32 %v760, %v870
      %v873 = vmul.f32 %v767, %v870
      %v874 = vmul.f32 %v774, %v870
      %v875 = vmul.f32 %v781, %v870
      %v876 = vmul.f32 %v788, %v870
      %v877 = vmul.f32 %v795, %v870
      %v878 = vmul.f32 %v802, %v870
      %v879 = vmul.f32 %v809, %v870
      %v880 = vmul.f32 %v816, %v870
      %v881 = vmul.f32 %v823, %v870
      %v882 = vmul.f32 %v830, %v870
      %v883 = vmul.f32 %v837, %v870
      %v884 = vmul.f32 %v844, %v870
      %v885 = vmul.f32 %v851, %v870
      %v886 = vmul.f32 %v858, %v870
      %v887 = vmul.f32 %v865, %v870
      %v889 = vsel %vm705, %v673, 0
      %v892 = vsel %vm705, %v674, 0
      %v895 = vsel %vm705, %v675, 0
      %v898 = vsel %vm705, %v676, 0
      %v901 = vsel %vm705, %v677, 0
      %v904 = vsel %vm705, %v678, 0
      %v907 = vsel %vm705, %v679, 0
      %v910 = vsel %vm705, %v680, 0
      %v913 = vsel %vm705, %v681, 0
      %v916 = vsel %vm705, %v682, 0
      %v919 = vsel %vm705, %v683, 0
      %v922 = vsel %vm705, %v684, 0
      %v925 = vsel %vm705, %v685, 0
      %v928 = vsel %vm705, %v686, 0
      %v931 = vsel %vm705, %v687, 0
      %v934 = vsel %vm705, %v688, 0
      %vm936 = vcmask 1042432
      %v938 = vsel %vm936, %v490, 0
      %940 = vmatprep.subr.mxu0 0.0
      %941 = vmatpush1.msra.mxu0 %v938
      %942 = vmatprep.subr.mxu0 0.0
      %943 = vmatpush1.msra.mxu0 0.0
      %944 = vmatprep.subr.mxu0 0.0
      %945 = vmatpush1.msra.mxu0 0.0
      %946 = vmatprep.subr.mxu0 0.0
      %947 = vmatpush1.msra.mxu0 0.0
      %948 = vmatprep.subr.mxu0 0.0
      %949 = vmatpush1.msra.mxu0 0.0
      %950 = vmatprep.subr.mxu0 0.0
      %951 = vmatpush1.msra.mxu0 0.0
      %952 = vmatprep.subr.mxu0 0.0
      %953 = vmatpush1.msra.mxu0 0.0
      %954 = vmatprep.subr.mxu0 0.0
      %955 = vmatpush1.msra.mxu0 0.0
      %956 = vmatprep.subr.mxu0 0.0
      %957 = vmatpush1.msra.mxu0 0.0
      %958 = vmatprep.subr.mxu0 0.0
      %959 = vmatpush1.msra.mxu0 0.0
      %960 = vmatprep.subr.mxu0 0.0
      %961 = vmatpush1.msra.mxu0 0.0
      %962 = vmatprep.subr.mxu0 0.0
      %963 = vmatpush1.msra.mxu0 0.0
      %964 = vmatprep.subr.mxu0 0.0
      %965 = vmatpush1.msra.mxu0 0.0
      %966 = vmatprep.subr.mxu0 0.0
      %967 = vmatpush1.msra.mxu0 0.0
      %968 = vmatprep.subr.mxu0 0.0
      %969 = vmatpush1.msra.mxu0 0.0
      %970 = vmatprep.subr.mxu0 0.0
      %971 = vmatpush1.msra.mxu0 0.0
      %972 = vmatprep.subr.mxu0 0.0
      %973 = vmatpush1.msra.mxu0 0.0
      %974 = vmatprep.subr.mxu0 0.0
      %975 = vmatpush1.msra.mxu0 0.0
      %976 = vmatprep.subr.mxu0 0.0
      %977 = vmatpush1.msra.mxu0 0.0
      %978 = vmatprep.subr.mxu0 0.0
      %979 = vmatpush1.msra.mxu0 0.0
      %980 = vmatprep.subr.mxu0 0.0
      %981 = vmatpush1.msra.mxu0 0.0
      %982 = vmatprep.subr.mxu0 0.0
      %983 = vmatpush1.msra.mxu0 0.0
      %984 = vmatprep.subr.mxu0 0.0
      %985 = vmatpush1.msra.mxu0 0.0
      %986 = vmatprep.subr.mxu0 0.0
      %987 = vmatpush1.msra.mxu0 0.0
      %988 = vmatprep.subr.mxu0 0.0
      %989 = vmatpush1.msra.mxu0 0.0
      %990 = vmatprep.subr.mxu0 0.0
      %991 = vmatpush1.msra.mxu0 0.0
      %992 = vmatprep.subr.mxu0 0.0
      %993 = vmatpush1.msra.mxu0 0.0
      %994 = vmatprep.subr.mxu0 0.0
      %995 = vmatpush1.msra.mxu0 0.0
      %996 = vmatprep.subr.mxu0 0.0
      %997 = vmatpush1.msra.mxu0 0.0
      %998 = vmatprep.subr.mxu0 0.0
      %999 = vmatpush1.msra.mxu0 0.0
      %1000 = vmatprep.subr.mxu0 0.0
      %1001 = vmatpush1.msra.mxu0 0.0
      %1002 = vmatprep.subr.mxu0 0.0
      %1003 = vmatpush1.msra.mxu0 0.0
      %1004 = vmatprep.mubr.f32.mxu0 0.0
      %1005 = vmatmul.mubr.f32.gmra.mrb[0].mxu0 %v889
      %v1006 = vpop.f32.mrb[0].mxu0
      %v1007 = vadd.f32 0.0, %v1006
      %v1008 = vpop.f32.mrb[0].mxu0
      %1009 = vmatprep.mubr.f32.mxu0 0.0
      %1010 = vmatmul.mubr.f32.gmra.mrb[0].mxu0 %v892
      %v1011 = vpop.f32.mrb[0].mxu0
      %v1012 = vadd.f32 0.0, %v1011
      %v1013 = vpop.f32.mrb[0].mxu0
      %1014 = vmatprep.mubr.f32.mxu0 0.0
      %1015 = vmatmul.mubr.f32.gmra.mrb[0].mxu0 %v895
      %v1016 = vpop.f32.mrb[0].mxu0
      %v1017 = vadd.f32 0.0, %v1016
      %v1018 = vpop.f32.mrb[0].mxu0
      %1019 = vmatprep.mubr.f32.mxu0 0.0
      %1020 = vmatmul.mubr.f32.gmra.mrb[0].mxu0 %v898
      %v1021 = vpop.f32.mrb[0].mxu0
      %v1022 = vadd.f32 0.0, %v1021
      %v1023 = vpop.f32.mrb[0].mxu0
      %1024 = vmatprep.mubr.f32.mxu0 0.0
      %1025 = vmatmul.mubr.f32.gmra.mrb[0].mxu0 %v901
      %v1026 = vpop.f32.mrb[0].mxu0
      %v1027 = vadd.f32 0.0, %v1026
      %v1028 = vpop.f32.mrb[0].mxu0
      %1029 = vmatprep.mubr.f32.mxu0 0.0
      %1030 = vmatmul.mubr.f32.gmra.mrb[0].mxu0 %v904
      %v1031 = vpop.f32.mrb[0].mxu0
      %v1032 = vadd.f32 0.0, %v1031
      %v1033 = vpop.f32.mrb[0].mxu0
      %1034 = vmatprep.mubr.f32.mxu0 0.0
      %1035 = vmatmul.mubr.f32.gmra.mrb[0].mxu0 %v907
      %v1036 = vpop.f32.mrb[0].mxu0
      %v1037 = vadd.f32 0.0, %v1036
      %v1038 = vpop.f32.mrb[0].mxu0
      %1039 = vmatprep.mubr.f32.mxu0 0.0
      %1040 = vmatmul.mubr.f32.gmra.mrb[0].mxu0 %v910
      %v1041 = vpop.f32.mrb[0].mxu0
      %v1042 = vadd.f32 0.0, %v1041
      %v1043 = vpop.f32.mrb[0].mxu0
      %1044 = vmatprep.mubr.f32.mxu0 0.0
      %1045 = vmatmul.mubr.f32.gmra.mrb[0].mxu0 %v913
      %v1046 = vpop.f32.mrb[0].mxu0
      %v1047 = vadd.f32 0.0, %v1046
      %v1048 = vpop.f32.mrb[0].mxu0
      %1049 = vmatprep.mubr.f32.mxu0 0.0
      %1050 = vmatmul.mubr.f32.gmra.mrb[0].mxu0 %v916
      %v1051 = vpop.f32.mrb[0].mxu0
      %v1052 = vadd.f32 0.0, %v1051
      %v1053 = vpop.f32.mrb[0].mxu0
      %1054 = vmatprep.mubr.f32.mxu0 0.0
      %1055 = vmatmul.mubr.f32.gmra.mrb[0].mxu0 %v919
      %v1056 = vpop.f32.mrb[0].mxu0
      %v1057 = vadd.f32 0.0, %v1056
      %v1058 = vpop.f32.mrb[0].mxu0
      %1059 = vmatprep.mubr.f32.mxu0 0.0
      %1060 = vmatmul.mubr.f32.gmra.mrb[0].mxu0 %v922
      %v1061 = vpop.f32.mrb[0].mxu0
      %v1062 = vadd.f32 0.0, %v1061
      %v1063 = vpop.f32.mrb[0].mxu0
      %1064 = vmatprep.mubr.f32.mxu0 0.0
      %1065 = vmatmul.mubr.f32.gmra.mrb[0].mxu0 %v925
      %v1066 = vpop.f32.mrb[0].mxu0
      %v1067 = vadd.f32 0.0, %v1066
      %v1068 = vpop.f32.mrb[0].mxu0
      %1069 = vmatprep.mubr.f32.mxu0 0.0
      %1070 = vmatmul.mubr.f32.gmra.mrb[0].mxu0 %v928
      %v1071 = vpop.f32.mrb[0].mxu0
      %v1072 = vadd.f32 0.0, %v1071
      %v1073 = vpop.f32.mrb[0].mxu0
      %1074 = vmatprep.mubr.f32.mxu0 0.0
      %1075 = vmatmul.mubr.f32.gmra.mrb[0].mxu0 %v931
      %v1076 = vpop.f32.mrb[0].mxu0
      %v1077 = vadd.f32 0.0, %v1076
      %v1078 = vpop.f32.mrb[0].mxu0
      %1079 = vmatprep.mubr.f32.mxu0 0.0
      %1080 = vmatmul.mubr.f32.gmra.mrb[0].mxu0 %v934
      %v1081 = vpop.f32.mrb[0].mxu0
      %v1082 = vadd.f32 0.0, %v1081
      %v1083 = vpop.f32.mrb[0].mxu0
      %1084 = vdwg.mxu0
      %v1085 = vadd.f32 %v872, %v1007
      %v1086 = vadd.f32 %v873, %v1012
      %v1087 = vadd.f32 %v874, %v1017
      %v1088 = vadd.f32 %v875, %v1022
      %v1089 = vadd.f32 %v876, %v1027
      %v1090 = vadd.f32 %v877, %v1032
      %v1091 = vadd.f32 %v878, %v1037
      %v1092 = vadd.f32 %v879, %v1042
      %v1093 = vadd.f32 %v880, %v1047
      %v1094 = vadd.f32 %v881, %v1052
      %v1095 = vadd.f32 %v882, %v1057
      %v1096 = vadd.f32 %v883, %v1062
      %v1097 = vadd.f32 %v884, %v1067
      %v1098 = vadd.f32 %v885, %v1072
      %v1099 = vadd.f32 %v886, %v1077
      %v1100 = vadd.f32 %v887, %v1082
      %v1102 = vsel %vm705, %v473, 0
      %v1105 = vsel %vm705, %v474, 0
      %v1108 = vsel %vm705, %v475, 0
      %v1111 = vsel %vm705, %v476, 0
      %v1114 = vsel %vm705, %v477, 0
      %v1117 = vsel %vm705, %v478, 0
      %v1120 = vsel %vm705, %v479, 0
      %v1123 = vsel %vm705, %v480, 0
      %v1126 = vsel %vm705, %v481, 0
      %v1129 = vsel %vm705, %v482, 0
      %v1132 = vsel %vm705, %v483, 0
      %v1135 = vsel %vm705, %v484, 0
      %v1138 = vsel %vm705, %v485, 0
      %v1141 = vsel %vm705, %v486, 0
      %v1144 = vsel %vm705, %v487, 0
      %v1147 = vsel %vm705, %v488, 0
      %v1150 = vsel %vm936, %v491, 0
      %1152 = vmatprep.subr.mxu0 0.0
      %1153 = vmatpush1.msra.mxu0 %v1150
      %1154 = vmatprep.subr.mxu0 0.0
      %1155 = vmatpush1.msra.mxu0 0.0
      %1156 = vmatprep.subr.mxu0 0.0
      %1157 = vmatpush1.msra.mxu0 0.0
      %1158 = vmatprep.subr.mxu0 0.0
      %1159 = vmatpush1.msra.mxu0 0.0
      %1160 = vmatprep.subr.mxu0 0.0
      %1161 = vmatpush1.msra.mxu0 0.0
      %1162 = vmatprep.subr.mxu0 0.0
      %1163 = vmatpush1.msra.mxu0 0.0
      %1164 = vmatprep.subr.mxu0 0.0
      %1165 = vmatpush1.msra.mxu0 0.0
      %1166 = vmatprep.subr.mxu0 0.0
      %1167 = vmatpush1.msra.mxu0 0.0
      %1168 = vmatprep.subr.mxu0 0.0
      %1169 = vmatpush1.msra.mxu0 0.0
      %1170 = vmatprep.subr.mxu0 0.0
      %1171 = vmatpush1.msra.mxu0 0.0
      %1172 = vmatprep.subr.mxu0 0.0
      %1173 = vmatpush1.msra.mxu0 0.0
      %1174 = vmatprep.subr.mxu0 0.0
      %1175 = vmatpush1.msra.mxu0 0.0
      %1176 = vmatprep.subr.mxu0 0.0
      %1177 = vmatpush1.msra.mxu0 0.0
      %1178 = vmatprep.subr.mxu0 0.0
      %1179 = vmatpush1.msra.mxu0 0.0
      %1180 = vmatprep.subr.mxu0 0.0
      %1181 = vmatpush1.msra.mxu0 0.0
      %1182 = vmatprep.subr.mxu0 0.0
      %1183 = vmatpush1.msra.mxu0 0.0
      %1184 = vmatprep.subr.mxu0 0.0
      %1185 = vmatpush1.msra.mxu0 0.0
      %1186 = vmatprep.subr.mxu0 0.0
      %1187 = vmatpush1.msra.mxu0 0.0
      %1188 = vmatprep.subr.mxu0 0.0
      %1189 = vmatpush1.msra.mxu0 0.0
      %1190 = vmatprep.subr.mxu0 0.0
      %1191 = vmatpush1.msra.mxu0 0.0
      %1192 = vmatprep.subr.mxu0 0.0
      %1193 = vmatpush1.msra.mxu0 0.0
      %1194 = vmatprep.subr.mxu0 0.0
      %1195 = vmatpush1.msra.mxu0 0.0
      %1196 = vmatprep.subr.mxu0 0.0
      %1197 = vmatpush1.msra.mxu0 0.0
      %1198 = vmatprep.subr.mxu0 0.0
      %1199 = vmatpush1.msra.mxu0 0.0
      %1200 = vmatprep.subr.mxu0 0.0
      %1201 = vmatpush1.msra.mxu0 0.0
      %1202 = vmatprep.subr.mxu0 0.0
      %1203 = vmatpush1.msra.mxu0 0.0
      %1204 = vmatprep.subr.mxu0 0.0
      %1205 = vmatpush1.msra.mxu0 0.0
      %1206 = vmatprep.subr.mxu0 0.0
      %1207 = vmatpush1.msra.mxu0 0.0
      %1208 = vmatprep.subr.mxu0 0.0
      %1209 = vmatpush1.msra.mxu0 0.0
      %1210 = vmatprep.subr.mxu0 0.0
      %1211 = vmatpush1.msra.mxu0 0.0
      %1212 = vmatprep.subr.mxu0 0.0
      %1213 = vmatpush1.msra.mxu0 0.0
      %1214 = vmatprep.subr.mxu0 0.0
      %1215 = vmatpush1.msra.mxu0 0.0
      %1216 = vmatprep.mubr.f32.mxu0 0.0
      %1217 = vmatmul.mubr.f32.gmra.mrb[0].mxu0 %v1102
      %v1218 = vpop.f32.mrb[0].mxu0
      %v1219 = vadd.f32 0.0, %v1218
      %v1220 = vpop.f32.mrb[0].mxu0
      %1221 = vmatprep.mubr.f32.mxu0 0.0
      %1222 = vmatmul.mubr.f32.gmra.mrb[0].mxu0 %v1105
      %v1223 = vpop.f32.mrb[0].mxu0
      %v1224 = vadd.f32 0.0, %v1223
      %v1225 = vpop.f32.mrb[0].mxu0
      %1226 = vmatprep.mubr.f32.mxu0 0.0
      %1227 = vmatmul.mubr.f32.gmra.mrb[0].mxu0 %v1108
      %v1228 = vpop.f32.mrb[0].mxu0
      %v1229 = vadd.f32 0.0, %v1228
      %v1230 = vpop.f32.mrb[0].mxu0
      %1231 = vmatprep.mubr.f32.mxu0 0.0
      %1232 = vmatmul.mubr.f32.gmra.mrb[0].mxu0 %v1111
      %v1233 = vpop.f32.mrb[0].mxu0
      %v1234 = vadd.f32 0.0, %v1233
      %v1235 = vpop.f32.mrb[0].mxu0
      %1236 = vmatprep.mubr.f32.mxu0 0.0
      %1237 = vmatmul.mubr.f32.gmra.mrb[0].mxu0 %v1114
      %v1238 = vpop.f32.mrb[0].mxu0
      %v1239 = vadd.f32 0.0, %v1238
      %v1240 = vpop.f32.mrb[0].mxu0
      %1241 = vmatprep.mubr.f32.mxu0 0.0
      %1242 = vmatmul.mubr.f32.gmra.mrb[0].mxu0 %v1117
      %v1243 = vpop.f32.mrb[0].mxu0
      %v1244 = vadd.f32 0.0, %v1243
      %v1245 = vpop.f32.mrb[0].mxu0
      %1246 = vmatprep.mubr.f32.mxu0 0.0
      %1247 = vmatmul.mubr.f32.gmra.mrb[0].mxu0 %v1120
      %v1248 = vpop.f32.mrb[0].mxu0
      %v1249 = vadd.f32 0.0, %v1248
      %v1250 = vpop.f32.mrb[0].mxu0
      %1251 = vmatprep.mubr.f32.mxu0 0.0
      %1252 = vmatmul.mubr.f32.gmra.mrb[0].mxu0 %v1123
      %v1253 = vpop.f32.mrb[0].mxu0
      %v1254 = vadd.f32 0.0, %v1253
      %v1255 = vpop.f32.mrb[0].mxu0
      %1256 = vmatprep.mubr.f32.mxu0 0.0
      %1257 = vmatmul.mubr.f32.gmra.mrb[0].mxu0 %v1126
      %v1258 = vpop.f32.mrb[0].mxu0
      %v1259 = vadd.f32 0.0, %v1258
      %v1260 = vpop.f32.mrb[0].mxu0
      %1261 = vmatprep.mubr.f32.mxu0 0.0
      %1262 = vmatmul.mubr.f32.gmra.mrb[0].mxu0 %v1129
      %v1263 = vpop.f32.mrb[0].mxu0
      %v1264 = vadd.f32 0.0, %v1263
      %v1265 = vpop.f32.mrb[0].mxu0
      %1266 = vmatprep.mubr.f32.mxu0 0.0
      %1267 = vmatmul.mubr.f32.gmra.mrb[0].mxu0 %v1132
      %v1268 = vpop.f32.mrb[0].mxu0
      %v1269 = vadd.f32 0.0, %v1268
      %v1270 = vpop.f32.mrb[0].mxu0
      %1271 = vmatprep.mubr.f32.mxu0 0.0
      %1272 = vmatmul.mubr.f32.gmra.mrb[0].mxu0 %v1135
      %v1273 = vpop.f32.mrb[0].mxu0
      %v1274 = vadd.f32 0.0, %v1273
      %v1275 = vpop.f32.mrb[0].mxu0
      %1276 = vmatprep.mubr.f32.mxu0 0.0
      %1277 = vmatmul.mubr.f32.gmra.mrb[0].mxu0 %v1138
      %v1278 = vpop.f32.mrb[0].mxu0
      %v1279 = vadd.f32 0.0, %v1278
      %v1280 = vpop.f32.mrb[0].mxu0
      %1281 = vmatprep.mubr.f32.mxu0 0.0
      %1282 = vmatmul.mubr.f32.gmra.mrb[0].mxu0 %v1141
      %v1283 = vpop.f32.mrb[0].mxu0
      %v1284 = vadd.f32 0.0, %v1283
      %v1285 = vpop.f32.mrb[0].mxu0
      %1286 = vmatprep.mubr.f32.mxu0 0.0
      %1287 = vmatmul.mubr.f32.gmra.mrb[0].mxu0 %v1144
      %v1288 = vpop.f32.mrb[0].mxu0
      %v1289 = vadd.f32 0.0, %v1288
      %v1290 = vpop.f32.mrb[0].mxu0
      %1291 = vmatprep.mubr.f32.mxu0 0.0
      %1292 = vmatmul.mubr.f32.gmra.mrb[0].mxu0 %v1147
      %v1293 = vpop.f32.mrb[0].mxu0
      %v1294 = vadd.f32 0.0, %v1293
      %v1295 = vpop.f32.mrb[0].mxu0
      %1296 = vdwg.mxu0
      %v1297 = vadd.f32 %v1085, %v1219
      %v1298 = vadd.f32 %v1086, %v1224
      %v1299 = vadd.f32 %v1087, %v1229
      %v1300 = vadd.f32 %v1088, %v1234
      %v1301 = vadd.f32 %v1089, %v1239
      %v1302 = vadd.f32 %v1090, %v1244
      %v1303 = vadd.f32 %v1091, %v1249
      %v1304 = vadd.f32 %v1092, %v1254
      %v1305 = vadd.f32 %v1093, %v1259
      %v1306 = vadd.f32 %v1094, %v1264
      %v1307 = vadd.f32 %v1095, %v1269
      %v1308 = vadd.f32 %v1096, %v1274
      %v1309 = vadd.f32 %v1097, %v1279
      %v1310 = vadd.f32 %v1098, %v1284
      %v1311 = vadd.f32 %v1099, %v1289
      %v1312 = vadd.f32 %v1100, %v1294
      %v1314 = vlaneseq
      %v1315 = vshrl.u32 %v1314, 7
      %v1316 = vsub.s32 0, %v1315
      %v1317 = vrot.slane %v492, %v1316
      %v1319 = vadd.f32 %v1297, %v1317
      %v1320 = vadd.f32 %v1298, %v1317
      %v1321 = vadd.f32 %v1299, %v1317
      %v1322 = vadd.f32 %v1300, %v1317
      %v1323 = vadd.f32 %v1301, %v1317
      %v1324 = vadd.f32 %v1302, %v1317
      %v1325 = vadd.f32 %v1303, %v1317
      %v1326 = vadd.f32 %v1304, %v1317
      %v1327 = vadd.f32 %v1305, %v1317
      %v1328 = vadd.f32 %v1306, %v1317
      %v1329 = vadd.f32 %v1307, %v1317
      %v1330 = vadd.f32 %v1308, %v1317
      %v1331 = vadd.f32 %v1309, %v1317
      %v1332 = vadd.f32 %v1310, %v1317
      %v1333 = vadd.f32 %v1311, %v1317
      %v1334 = vadd.f32 %v1312, %v1317
      %v1335 = vmax.f32 %v1319, 0.0
      %v1336 = vmax.f32 %v1320, 0.0
      %v1337 = vmax.f32 %v1321, 0.0
      %v1338 = vmax.f32 %v1322, 0.0
      %v1339 = vmax.f32 %v1323, 0.0
      %v1340 = vmax.f32 %v1324, 0.0
      %v1341 = vmax.f32 %v1325, 0.0
      %v1342 = vmax.f32 %v1326, 0.0
      %v1343 = vmax.f32 %v1327, 0.0
      %v1344 = vmax.f32 %v1328, 0.0
      %v1345 = vmax.f32 %v1329, 0.0
      %v1346 = vmax.f32 %v1330, 0.0
      %v1347 = vmax.f32 %v1331, 0.0
      %v1348 = vmax.f32 %v1332, 0.0
      %v1349 = vmax.f32 %v1333, 0.0
      %v1350 = vmax.f32 %v1334, 0.0
      %v1351 = vld [vmem:[%s459] sm:$0xff]
      %v1352 = vld [vmem:[%s459 + $0x8] sm:$0xff]
      %v1353 = vld [vmem:[%s459 + $0x10] sm:$0xff]
      %v1354 = vld [vmem:[%s459 + $0x18] sm:$0xff]
      %v1355 = vld [vmem:[%s459 + $0x20] sm:$0xff]
      %v1356 = vld [vmem:[%s459 + $0x28] sm:$0xff]
      %v1357 = vld [vmem:[%s459 + $0x30] sm:$0xff]
      %v1358 = vld [vmem:[%s459 + $0x38] sm:$0xff]
      %v1359 = vld [vmem:[%s459 + $0x40] sm:$0xff]
      %v1360 = vld [vmem:[%s459 + $0x48] sm:$0xff]
      %v1361 = vld [vmem:[%s459 + $0x50] sm:$0xff]
      %v1362 = vld [vmem:[%s459 + $0x58] sm:$0xff]
      %v1363 = vld [vmem:[%s459 + $0x60] sm:$0xff]
      %v1364 = vld [vmem:[%s459 + $0x68] sm:$0xff]
      %v1365 = vld [vmem:[%s459 + $0x70] sm:$0xff]
      %v1366 = vld [vmem:[%s459 + $0x78] sm:$0xff]
      %v1367 = vld [vmem:[%s7] sm:$0xff]
      %v1368 = vld [vmem:[%s7 + $0x8] sm:$0xff]
      %v1369 = vld [vmem:[%s7 + $0x10] sm:$0xff]
      %v1370 = vld [vmem:[%s7 + $0x18] sm:$0xff]
      %v1371 = vld [vmem:[%s7 + $0x20] sm:$0xff]
      %v1372 = vld [vmem:[%s7 + $0x28] sm:$0xff]
      %v1373 = vld [vmem:[%s7 + $0x30] sm:$0xff]
      %v1374 = vld [vmem:[%s7 + $0x38] sm:$0xff]
      %v1375 = vld [vmem:[%s8] sm:$0xff]
      %v1376 = vld [vmem:[%s8 + $0x8] sm:$0xff]
      %v1377 = vld [vmem:[%s8 + $0x10] sm:$0xff]
      %v1378 = vld [vmem:[%s8 + $0x18] sm:$0xff]
      %v1379 = vld [vmem:[%s9] sm:$0x1]
      %vm1380 = vcmask 130048
      %v1382 = vsel %vm1380, %v1335, 0
      %v1385 = vsel %vm1380, %v1336, 0
      %v1388 = vsel %vm1380, %v1337, 0
      %v1391 = vsel %vm1380, %v1338, 0
      %v1394 = vsel %vm1380, %v1339, 0
      %v1397 = vsel %vm1380, %v1340, 0
      %v1400 = vsel %vm1380, %v1341, 0
      %v1403 = vsel %vm1380, %v1342, 0
      %v1406 = vsel %vm1380, %v1343, 0
      %v1409 = vsel %vm1380, %v1344, 0
      %v1412 = vsel %vm1380, %v1345, 0
      %v1415 = vsel %vm1380, %v1346, 0
      %v1418 = vsel %vm1380, %v1347, 0
      %v1421 = vsel %vm1380, %v1348, 0
      %v1424 = vsel %vm1380, %v1349, 0
      %v1427 = vsel %vm1380, %v1350, 0
      %1429 = vmatprep.subr.mxu0 0.0
      %1430 = vmatpush1.msra.mxu0 %v1371
      %1431 = vmatprep.subr.mxu0 0.0
      %1432 = vmatpush1.msra.mxu0 %v1372
      %1433 = vmatprep.subr.mxu0 0.0
      %1434 = vmatpush1.msra.mxu0 0.0
      %1435 = vmatprep.subr.mxu0 0.0
      %1436 = vmatpush1.msra.mxu0 0.0
      %1437 = vmatprep.subr.mxu0 0.0
      %1438 = vmatpush1.msra.mxu0 0.0
      %1439 = vmatprep.subr.mxu0 0.0
      %1440 = vmatpush1.msra.mxu0 0.0
      %1441 = vmatprep.subr.mxu0 0.0
      %1442 = vmatpush1.msra.mxu0 0.0
      %1443 = vmatprep.subr.mxu0 0.0
      %1444 = vmatpush1.msra.mxu0 0.0
      %1445 = vmatprep.subr.mxu0 0.0
      %1446 = vmatpush1.msra.mxu0 0.0
      %1447 = vmatprep.subr.mxu0 0.0
      %1448 = vmatpush1.msra.mxu0 0.0
      %1449 = vmatprep.subr.mxu0 0.0
      %1450 = vmatpush1.msra.mxu0 0.0
      %1451 = vmatprep.subr.mxu0 0.0
      %1452 = vmatpush1.msra.mxu0 0.0
      %1453 = vmatprep.subr.mxu0 0.0
      %1454 = vmatpush1.msra.mxu0 0.0
      %1455 = vmatprep.subr.mxu0 0.0
      %1456 = vmatpush1.msra.mxu0 0.0
      %1457 = vmatprep.subr.mxu0 0.0
      %1458 = vmatpush1.msra.mxu0 0.0
      %1459 = vmatprep.subr.mxu0 0.0
      %1460 = vmatpush1.msra.mxu0 0.0
      %1461 = vmatprep.subr.mxu0 0.0
      %1462 = vmatpush1.msra.mxu0 0.0
      %1463 = vmatprep.subr.mxu0 0.0
      %1464 = vmatpush1.msra.mxu0 0.0
      %1465 = vmatprep.subr.mxu0 0.0
      %1466 = vmatpush1.msra.mxu0 0.0
      %1467 = vmatprep.subr.mxu0 0.0
      %1468 = vmatpush1.msra.mxu0 0.0
      %1469 = vmatprep.subr.mxu0 0.0
      %1470 = vmatpush1.msra.mxu0 0.0
      %1471 = vmatprep.subr.mxu0 0.0
      %1472 = vmatpush1.msra.mxu0 0.0
      %1473 = vmatprep.subr.mxu0 0.0
      %1474 = vmatpush1.msra.mxu0 0.0
      %1475 = vmatprep.subr.mxu0 0.0
      %1476 = vmatpush1.msra.mxu0 0.0
      %1477 = vmatprep.subr.mxu0 0.0
      %1478 = vmatpush1.msra.mxu0 0.0
      %1479 = vmatprep.subr.mxu0 0.0
      %1480 = vmatpush1.msra.mxu0 0.0
      %1481 = vmatprep.subr.mxu0 0.0
      %1482 = vmatpush1.msra.mxu0 0.0
      %1483 = vmatprep.subr.mxu0 0.0
      %1484 = vmatpush1.msra.mxu0 0.0
      %1485 = vmatprep.subr.mxu0 0.0
      %1486 = vmatpush1.msra.mxu0 0.0
      %1487 = vmatprep.subr.mxu0 0.0
      %1488 = vmatpush1.msra.mxu0 0.0
      %1489 = vmatprep.subr.mxu0 0.0
      %1490 = vmatpush1.msra.mxu0 0.0
      %1491 = vmatprep.subr.mxu0 0.0
      %1492 = vmatpush1.msra.mxu0 0.0
      %1493 = vmatprep.mubr.f32.mxu0 0.0
      %1494 = vmatmul.mubr.f32.gmra.mrb[0].mxu0 %v1382
      %v1495 = vpop.f32.mrb[0].mxu0
      %v1496 = vadd.f32 0.0, %v1495
      %v1497 = vpop.f32.mrb[0].mxu0
      %1498 = vmatprep.mubr.f32.mxu0 0.0
      %1499 = vmatmul.mubr.f32.gmra.mrb[0].mxu0 %v1385
      %v1500 = vpop.f32.mrb[0].mxu0
      %v1501 = vadd.f32 0.0, %v1500
      %v1502 = vpop.f32.mrb[0].mxu0
      %1503 = vmatprep.mubr.f32.mxu0 0.0
      %1504 = vmatmul.mubr.f32.gmra.mrb[0].mxu0 %v1388
      %v1505 = vpop.f32.mrb[0].mxu0
      %v1506 = vadd.f32 0.0, %v1505
      %v1507 = vpop.f32.mrb[0].mxu0
      %1508 = vmatprep.mubr.f32.mxu0 0.0
      %1509 = vmatmul.mubr.f32.gmra.mrb[0].mxu0 %v1391
      %v1510 = vpop.f32.mrb[0].mxu0
      %v1511 = vadd.f32 0.0, %v1510
      %v1512 = vpop.f32.mrb[0].mxu0
      %1513 = vmatprep.mubr.f32.mxu0 0.0
      %1514 = vmatmul.mubr.f32.gmra.mrb[0].mxu0 %v1394
      %v1515 = vpop.f32.mrb[0].mxu0
      %v1516 = vadd.f32 0.0, %v1515
      %v1517 = vpop.f32.mrb[0].mxu0
      %1518 = vmatprep.mubr.f32.mxu0 0.0
      %1519 = vmatmul.mubr.f32.gmra.mrb[0].mxu0 %v1397
      %v1520 = vpop.f32.mrb[0].mxu0
      %v1521 = vadd.f32 0.0, %v1520
      %v1522 = vpop.f32.mrb[0].mxu0
      %1523 = vmatprep.mubr.f32.mxu0 0.0
      %1524 = vmatmul.mubr.f32.gmra.mrb[0].mxu0 %v1400
      %v1525 = vpop.f32.mrb[0].mxu0
      %v1526 = vadd.f32 0.0, %v1525
      %v1527 = vpop.f32.mrb[0].mxu0
      %1528 = vmatprep.mubr.f32.mxu0 0.0
      %1529 = vmatmul.mubr.f32.gmra.mrb[0].mxu0 %v1403
      %v1530 = vpop.f32.mrb[0].mxu0
      %v1531 = vadd.f32 0.0, %v1530
      %v1532 = vpop.f32.mrb[0].mxu0
      %1533 = vmatprep.mubr.f32.mxu0 0.0
      %1534 = vmatmul.mubr.f32.gmra.mrb[0].mxu0 %v1406
      %v1535 = vpop.f32.mrb[0].mxu0
      %v1536 = vadd.f32 0.0, %v1535
      %v1537 = vpop.f32.mrb[0].mxu0
      %1538 = vmatprep.mubr.f32.mxu0 0.0
      %1539 = vmatmul.mubr.f32.gmra.mrb[0].mxu0 %v1409
      %v1540 = vpop.f32.mrb[0].mxu0
      %v1541 = vadd.f32 0.0, %v1540
      %v1542 = vpop.f32.mrb[0].mxu0
      %1543 = vmatprep.mubr.f32.mxu0 0.0
      %1544 = vmatmul.mubr.f32.gmra.mrb[0].mxu0 %v1412
      %v1545 = vpop.f32.mrb[0].mxu0
      %v1546 = vadd.f32 0.0, %v1545
      %v1547 = vpop.f32.mrb[0].mxu0
      %1548 = vmatprep.mubr.f32.mxu0 0.0
      %1549 = vmatmul.mubr.f32.gmra.mrb[0].mxu0 %v1415
      %v1550 = vpop.f32.mrb[0].mxu0
      %v1551 = vadd.f32 0.0, %v1550
      %v1552 = vpop.f32.mrb[0].mxu0
      %1553 = vmatprep.mubr.f32.mxu0 0.0
      %1554 = vmatmul.mubr.f32.gmra.mrb[0].mxu0 %v1418
      %v1555 = vpop.f32.mrb[0].mxu0
      %v1556 = vadd.f32 0.0, %v1555
      %v1557 = vpop.f32.mrb[0].mxu0
      %1558 = vmatprep.mubr.f32.mxu0 0.0
      %1559 = vmatmul.mubr.f32.gmra.mrb[0].mxu0 %v1421
      %v1560 = vpop.f32.mrb[0].mxu0
      %v1561 = vadd.f32 0.0, %v1560
      %v1562 = vpop.f32.mrb[0].mxu0
      %1563 = vmatprep.mubr.f32.mxu0 0.0
      %1564 = vmatmul.mubr.f32.gmra.mrb[0].mxu0 %v1424
      %v1565 = vpop.f32.mrb[0].mxu0
      %v1566 = vadd.f32 0.0, %v1565
      %v1567 = vpop.f32.mrb[0].mxu0
      %1568 = vmatprep.mubr.f32.mxu0 0.0
      %1569 = vmatmul.mubr.f32.gmra.mrb[0].mxu0 %v1427
      %v1570 = vpop.f32.mrb[0].mxu0
      %v1571 = vadd.f32 0.0, %v1570
      %v1572 = vpop.f32.mrb[0].mxu0
      %1573 = vdwg.mxu0
      %v1575 = vsel %vm1380, %v1351, 0
      %v1578 = vsel %vm1380, %v1352, 0
      %v1581 = vsel %vm1380, %v1353, 0
      %v1584 = vsel %vm1380, %v1354, 0
      %v1587 = vsel %vm1380, %v1355, 0
      %v1590 = vsel %vm1380, %v1356, 0
      %v1593 = vsel %vm1380, %v1357, 0
      %v1596 = vsel %vm1380, %v1358, 0
      %v1599 = vsel %vm1380, %v1359, 0
      %v1602 = vsel %vm1380, %v1360, 0
      %v1605 = vsel %vm1380, %v1361, 0
      %v1608 = vsel %vm1380, %v1362, 0
      %v1611 = vsel %vm1380, %v1363, 0
      %v1614 = vsel %vm1380, %v1364, 0
      %v1617 = vsel %vm1380, %v1365, 0
      %v1620 = vsel %vm1380, %v1366, 0
      %1622 = vmatprep.subr.mxu0 0.0
      %1623 = vmatpush1.msra.mxu0 %v1367
      %1624 = vmatprep.subr.mxu0 0.0
      %1625 = vmatpush1.msra.mxu0 %v1368
      %1626 = vmatprep.subr.mxu0 0.0
      %1627 = vmatpush1.msra.mxu0 0.0
      %1628 = vmatprep.subr.mxu0 0.0
      %1629 = vmatpush1.msra.mxu0 0.0
      %1630 = vmatprep.subr.mxu0 0.0
      %1631 = vmatpush1.msra.mxu0 0.0
      %1632 = vmatprep.subr.mxu0 0.0
      %1633 = vmatpush1.msra.mxu0 0.0
      %1634 = vmatprep.subr.mxu0 0.0
      %1635 = vmatpush1.msra.mxu0 0.0
      %1636 = vmatprep.subr.mxu0 0.0
      %1637 = vmatpush1.msra.mxu0 0.0
      %1638 = vmatprep.subr.mxu0 0.0
      %1639 = vmatpush1.msra.mxu0 0.0
      %1640 = vmatprep.subr.mxu0 0.0
      %1641 = vmatpush1.msra.mxu0 0.0
      %1642 = vmatprep.subr.mxu0 0.0
      %1643 = vmatpush1.msra.mxu0 0.0
      %1644 = vmatprep.subr.mxu0 0.0
      %1645 = vmatpush1.msra.mxu0 0.0
      %1646 = vmatprep.subr.mxu0 0.0
      %1647 = vmatpush1.msra.mxu0 0.0
      %1648 = vmatprep.subr.mxu0 0.0
      %1649 = vmatpush1.msra.mxu0 0.0
      %1650 = vmatprep.subr.mxu0 0.0
      %1651 = vmatpush1.msra.mxu0 0.0
      %1652 = vmatprep.subr.mxu0 0.0
      %1653 = vmatpush1.msra.mxu0 0.0
      %1654 = vmatprep.subr.mxu0 0.0
      %1655 = vmatpush1.msra.mxu0 0.0
      %1656 = vmatprep.subr.mxu0 0.0
      %1657 = vmatpush1.msra.mxu0 0.0
      %1658 = vmatprep.subr.mxu0 0.0
      %1659 = vmatpush1.msra.mxu0 0.0
      %1660 = vmatprep.subr.mxu0 0.0
      %1661 = vmatpush1.msra.mxu0 0.0
      %1662 = vmatprep.subr.mxu0 0.0
      %1663 = vmatpush1.msra.mxu0 0.0
      %1664 = vmatprep.subr.mxu0 0.0
      %1665 = vmatpush1.msra.mxu0 0.0
      %1666 = vmatprep.subr.mxu0 0.0
      %1667 = vmatpush1.msra.mxu0 0.0
      %1668 = vmatprep.subr.mxu0 0.0
      %1669 = vmatpush1.msra.mxu0 0.0
      %1670 = vmatprep.subr.mxu0 0.0
      %1671 = vmatpush1.msra.mxu0 0.0
      %1672 = vmatprep.subr.mxu0 0.0
      %1673 = vmatpush1.msra.mxu0 0.0
      %1674 = vmatprep.subr.mxu0 0.0
      %1675 = vmatpush1.msra.mxu0 0.0
      %1676 = vmatprep.subr.mxu0 0.0
      %1677 = vmatpush1.msra.mxu0 0.0
      %1678 = vmatprep.subr.mxu0 0.0
      %1679 = vmatpush1.msra.mxu0 0.0
      %1680 = vmatprep.subr.mxu0 0.0
      %1681 = vmatpush1.msra.mxu0 0.0
      %1682 = vmatprep.subr.mxu0 0.0
      %1683 = vmatpush1.msra.mxu0 0.0
      %1684 = vmatprep.subr.mxu0 0.0
      %1685 = vmatpush1.msra.mxu0 0.0
      %1686 = vmatprep.mubr.f32.mxu0 0.0
      %1687 = vmatmul.mubr.f32.gmra.mrb[0].mxu0 %v1575
      %v1688 = vpop.f32.mrb[0].mxu0
      %v1689 = vadd.f32 %v1496, %v1688
      %v1690 = vpop.f32.mrb[0].mxu0
      %1691 = vmatprep.mubr.f32.mxu0 0.0
      %1692 = vmatmul.mubr.f32.gmra.mrb[0].mxu0 %v1578
      %v1693 = vpop.f32.mrb[0].mxu0
      %v1694 = vadd.f32 %v1501, %v1693
      %v1695 = vpop.f32.mrb[0].mxu0
      %1696 = vmatprep.mubr.f32.mxu0 0.0
      %1697 = vmatmul.mubr.f32.gmra.mrb[0].mxu0 %v1581
      %v1698 = vpop.f32.mrb[0].mxu0
      %v1699 = vadd.f32 %v1506, %v1698
      %v1700 = vpop.f32.mrb[0].mxu0
      %1701 = vmatprep.mubr.f32.mxu0 0.0
      %1702 = vmatmul.mubr.f32.gmra.mrb[0].mxu0 %v1584
      %v1703 = vpop.f32.mrb[0].mxu0
      %v1704 = vadd.f32 %v1511, %v1703
      %v1705 = vpop.f32.mrb[0].mxu0
      %1706 = vmatprep.mubr.f32.mxu0 0.0
      %1707 = vmatmul.mubr.f32.gmra.mrb[0].mxu0 %v1587
      %v1708 = vpop.f32.mrb[0].mxu0
      %v1709 = vadd.f32 %v1516, %v1708
      %v1710 = vpop.f32.mrb[0].mxu0
      %1711 = vmatprep.mubr.f32.mxu0 0.0
      %1712 = vmatmul.mubr.f32.gmra.mrb[0].mxu0 %v1590
      %v1713 = vpop.f32.mrb[0].mxu0
      %v1714 = vadd.f32 %v1521, %v1713
      %v1715 = vpop.f32.mrb[0].mxu0
      %1716 = vmatprep.mubr.f32.mxu0 0.0
      %1717 = vmatmul.mubr.f32.gmra.mrb[0].mxu0 %v1593
      %v1718 = vpop.f32.mrb[0].mxu0
      %v1719 = vadd.f32 %v1526, %v1718
      %v1720 = vpop.f32.mrb[0].mxu0
      %1721 = vmatprep.mubr.f32.mxu0 0.0
      %1722 = vmatmul.mubr.f32.gmra.mrb[0].mxu0 %v1596
      %v1723 = vpop.f32.mrb[0].mxu0
      %v1724 = vadd.f32 %v1531, %v1723
      %v1725 = vpop.f32.mrb[0].mxu0
      %1726 = vmatprep.mubr.f32.mxu0 0.0
      %1727 = vmatmul.mubr.f32.gmra.mrb[0].mxu0 %v1599
      %v1728 = vpop.f32.mrb[0].mxu0
      %v1729 = vadd.f32 %v1536, %v1728
      %v1730 = vpop.f32.mrb[0].mxu0
      %1731 = vmatprep.mubr.f32.mxu0 0.0
      %1732 = vmatmul.mubr.f32.gmra.mrb[0].mxu0 %v1602
      %v1733 = vpop.f32.mrb[0].mxu0
      %v1734 = vadd.f32 %v1541, %v1733
      %v1735 = vpop.f32.mrb[0].mxu0
      %1736 = vmatprep.mubr.f32.mxu0 0.0
      %1737 = vmatmul.mubr.f32.gmra.mrb[0].mxu0 %v1605
      %v1738 = vpop.f32.mrb[0].mxu0
      %v1739 = vadd.f32 %v1546, %v1738
      %v1740 = vpop.f32.mrb[0].mxu0
      %1741 = vmatprep.mubr.f32.mxu0 0.0
      %1742 = vmatmul.mubr.f32.gmra.mrb[0].mxu0 %v1608
      %v1743 = vpop.f32.mrb[0].mxu0
      %v1744 = vadd.f32 %v1551, %v1743
      %v1745 = vpop.f32.mrb[0].mxu0
      %1746 = vmatprep.mubr.f32.mxu0 0.0
      %1747 = vmatmul.mubr.f32.gmra.mrb[0].mxu0 %v1611
      %v1748 = vpop.f32.mrb[0].mxu0
      %v1749 = vadd.f32 %v1556, %v1748
      %v1750 = vpop.f32.mrb[0].mxu0
      %1751 = vmatprep.mubr.f32.mxu0 0.0
      %1752 = vmatmul.mubr.f32.gmra.mrb[0].mxu0 %v1614
      %v1753 = vpop.f32.mrb[0].mxu0
      %v1754 = vadd.f32 %v1561, %v1753
      %v1755 = vpop.f32.mrb[0].mxu0
      %1756 = vmatprep.mubr.f32.mxu0 0.0
      %1757 = vmatmul.mubr.f32.gmra.mrb[0].mxu0 %v1617
      %v1758 = vpop.f32.mrb[0].mxu0
      %v1759 = vadd.f32 %v1566, %v1758
      %v1760 = vpop.f32.mrb[0].mxu0
      %1761 = vmatprep.mubr.f32.mxu0 0.0
      %1762 = vmatmul.mubr.f32.gmra.mrb[0].mxu0 %v1620
      %v1763 = vpop.f32.mrb[0].mxu0
      %v1764 = vadd.f32 %v1571, %v1763
      %v1765 = vpop.f32.mrb[0].mxu0
      %1766 = vdwg.mxu0
      %1767 = vmatprep.subr.mxu0 0.0
      %1768 = vmatpush1.msra.mxu0 %v1373
      %1769 = vmatprep.subr.mxu0 0.0
      %1770 = vmatpush1.msra.mxu0 %v1374
      %1771 = vmatprep.subr.mxu0 0.0
      %1772 = vmatpush1.msra.mxu0 0.0
      %1773 = vmatprep.subr.mxu0 0.0
      %1774 = vmatpush1.msra.mxu0 0.0
      %1775 = vmatprep.subr.mxu0 0.0
      %1776 = vmatpush1.msra.mxu0 0.0
      %1777 = vmatprep.subr.mxu0 0.0
      %1778 = vmatpush1.msra.mxu0 0.0
      %1779 = vmatprep.subr.mxu0 0.0
      %1780 = vmatpush1.msra.mxu0 0.0
      %1781 = vmatprep.subr.mxu0 0.0
      %1782 = vmatpush1.msra.mxu0 0.0
      %1783 = vmatprep.subr.mxu0 0.0
      %1784 = vmatpush1.msra.mxu0 0.0
      %1785 = vmatprep.subr.mxu0 0.0
      %1786 = vmatpush1.msra.mxu0 0.0
      %1787 = vmatprep.subr.mxu0 0.0
      %1788 = vmatpush1.msra.mxu0 0.0
      %1789 = vmatprep.subr.mxu0 0.0
      %1790 = vmatpush1.msra.mxu0 0.0
      %1791 = vmatprep.subr.mxu0 0.0
      %1792 = vmatpush1.msra.mxu0 0.0
      %1793 = vmatprep.subr.mxu0 0.0
      %1794 = vmatpush1.msra.mxu0 0.0
      %1795 = vmatprep.subr.mxu0 0.0
      %1796 = vmatpush1.msra.mxu0 0.0
      %1797 = vmatprep.subr.mxu0 0.0
      %1798 = vmatpush1.msra.mxu0 0.0
      %1799 = vmatprep.subr.mxu0 0.0
      %1800 = vmatpush1.msra.mxu0 0.0
      %1801 = vmatprep.subr.mxu0 0.0
      %1802 = vmatpush1.msra.mxu0 0.0
      %1803 = vmatprep.subr.mxu0 0.0
      %1804 = vmatpush1.msra.mxu0 0.0
      %1805 = vmatprep.subr.mxu0 0.0
      %1806 = vmatpush1.msra.mxu0 0.0
      %1807 = vmatprep.subr.mxu0 0.0
      %1808 = vmatpush1.msra.mxu0 0.0
      %1809 = vmatprep.subr.mxu0 0.0
      %1810 = vmatpush1.msra.mxu0 0.0
      %1811 = vmatprep.subr.mxu0 0.0
      %1812 = vmatpush1.msra.mxu0 0.0
      %1813 = vmatprep.subr.mxu0 0.0
      %1814 = vmatpush1.msra.mxu0 0.0
      %1815 = vmatprep.subr.mxu0 0.0
      %1816 = vmatpush1.msra.mxu0 0.0
      %1817 = vmatprep.subr.mxu0 0.0
      %1818 = vmatpush1.msra.mxu0 0.0
      %1819 = vmatprep.subr.mxu0 0.0
      %1820 = vmatpush1.msra.mxu0 0.0
      %1821 = vmatprep.subr.mxu0 0.0
      %1822 = vmatpush1.msra.mxu0 0.0
      %1823 = vmatprep.subr.mxu0 0.0
      %1824 = vmatpush1.msra.mxu0 0.0
      %1825 = vmatprep.subr.mxu0 0.0
      %1826 = vmatpush1.msra.mxu0 0.0
      %1827 = vmatprep.subr.mxu0 0.0
      %1828 = vmatpush1.msra.mxu0 0.0
      %1829 = vmatprep.subr.mxu0 0.0
      %1830 = vmatpush1.msra.mxu0 0.0
      %1831 = vmatprep.mubr.f32.mxu0 0.0
      %1832 = vmatmul.mubr.f32.gmra.mrb[0].mxu0 %v1382
      %v1833 = vpop.f32.mrb[0].mxu0
      %v1834 = vadd.f32 0.0, %v1833
      %v1835 = vpop.f32.mrb[0].mxu0
      %1836 = vmatprep.mubr.f32.mxu0 0.0
      %1837 = vmatmul.mubr.f32.gmra.mrb[0].mxu0 %v1385
      %v1838 = vpop.f32.mrb[0].mxu0
      %v1839 = vadd.f32 0.0, %v1838
      %v1840 = vpop.f32.mrb[0].mxu0
      %1841 = vmatprep.mubr.f32.mxu0 0.0
      %1842 = vmatmul.mubr.f32.gmra.mrb[0].mxu0 %v1388
      %v1843 = vpop.f32.mrb[0].mxu0
      %v1844 = vadd.f32 0.0, %v1843
      %v1845 = vpop.f32.mrb[0].mxu0
      %1846 = vmatprep.mubr.f32.mxu0 0.0
      %1847 = vmatmul.mubr.f32.gmra.mrb[0].mxu0 %v1391
      %v1848 = vpop.f32.mrb[0].mxu0
      %v1849 = vadd.f32 0.0, %v1848
      %v1850 = vpop.f32.mrb[0].mxu0
      %1851 = vmatprep.mubr.f32.mxu0 0.0
      %1852 = vmatmul.mubr.f32.gmra.mrb[0].mxu0 %v1394
      %v1853 = vpop.f32.mrb[0].mxu0
      %v1854 = vadd.f32 0.0, %v1853
      %v1855 = vpop.f32.mrb[0].mxu0
      %1856 = vmatprep.mubr.f32.mxu0 0.0
      %1857 = vmatmul.mubr.f32.gmra.mrb[0].mxu0 %v1397
      %v1858 = vpop.f32.mrb[0].mxu0
      %v1859 = vadd.f32 0.0, %v1858
      %v1860 = vpop.f32.mrb[0].mxu0
      %1861 = vmatprep.mubr.f32.mxu0 0.0
      %1862 = vmatmul.mubr.f32.gmra.mrb[0].mxu0 %v1400
      %v1863 = vpop.f32.mrb[0].mxu0
      %v1864 = vadd.f32 0.0, %v1863
      %v1865 = vpop.f32.mrb[0].mxu0
      %1866 = vmatprep.mubr.f32.mxu0 0.0
      %1867 = vmatmul.mubr.f32.gmra.mrb[0].mxu0 %v1403
      %v1868 = vpop.f32.mrb[0].mxu0
      %v1869 = vadd.f32 0.0, %v1868
      %v1870 = vpop.f32.mrb[0].mxu0
      %1871 = vmatprep.mubr.f32.mxu0 0.0
      %1872 = vmatmul.mubr.f32.gmra.mrb[0].mxu0 %v1406
      %v1873 = vpop.f32.mrb[0].mxu0
      %v1874 = vadd.f32 0.0, %v1873
      %v1875 = vpop.f32.mrb[0].mxu0
      %1876 = vmatprep.mubr.f32.mxu0 0.0
      %1877 = vmatmul.mubr.f32.gmra.mrb[0].mxu0 %v1409
      %v1878 = vpop.f32.mrb[0].mxu0
      %v1879 = vadd.f32 0.0, %v1878
      %v1880 = vpop.f32.mrb[0].mxu0
      %1881 = vmatprep.mubr.f32.mxu0 0.0
      %1882 = vmatmul.mubr.f32.gmra.mrb[0].mxu0 %v1412
      %v1883 = vpop.f32.mrb[0].mxu0
      %v1884 = vadd.f32 0.0, %v1883
      %v1885 = vpop.f32.mrb[0].mxu0
      %1886 = vmatprep.mubr.f32.mxu0 0.0
      %1887 = vmatmul.mubr.f32.gmra.mrb[0].mxu0 %v1415
      %v1888 = vpop.f32.mrb[0].mxu0
      %v1889 = vadd.f32 0.0, %v1888
      %v1890 = vpop.f32.mrb[0].mxu0
      %1891 = vmatprep.mubr.f32.mxu0 0.0
      %1892 = vmatmul.mubr.f32.gmra.mrb[0].mxu0 %v1418
      %v1893 = vpop.f32.mrb[0].mxu0
      %v1894 = vadd.f32 0.0, %v1893
      %v1895 = vpop.f32.mrb[0].mxu0
      %1896 = vmatprep.mubr.f32.mxu0 0.0
      %1897 = vmatmul.mubr.f32.gmra.mrb[0].mxu0 %v1421
      %v1898 = vpop.f32.mrb[0].mxu0
      %v1899 = vadd.f32 0.0, %v1898
      %v1900 = vpop.f32.mrb[0].mxu0
      %1901 = vmatprep.mubr.f32.mxu0 0.0
      %1902 = vmatmul.mubr.f32.gmra.mrb[0].mxu0 %v1424
      %v1903 = vpop.f32.mrb[0].mxu0
      %v1904 = vadd.f32 0.0, %v1903
      %v1905 = vpop.f32.mrb[0].mxu0
      %1906 = vmatprep.mubr.f32.mxu0 0.0
      %1907 = vmatmul.mubr.f32.gmra.mrb[0].mxu0 %v1427
      %v1908 = vpop.f32.mrb[0].mxu0
      %v1909 = vadd.f32 0.0, %v1908
      %v1910 = vpop.f32.mrb[0].mxu0
      %1911 = vdwg.mxu0
      %1912 = vmatprep.subr.mxu0 0.0
      %1913 = vmatpush1.msra.mxu0 %v1369
      %1914 = vmatprep.subr.mxu0 0.0
      %1915 = vmatpush1.msra.mxu0 %v1370
      %1916 = vmatprep.subr.mxu0 0.0
      %1917 = vmatpush1.msra.mxu0 0.0
      %1918 = vmatprep.subr.mxu0 0.0
      %1919 = vmatpush1.msra.mxu0 0.0
      %1920 = vmatprep.subr.mxu0 0.0
      %1921 = vmatpush1.msra.mxu0 0.0
      %1922 = vmatprep.subr.mxu0 0.0
      %1923 = vmatpush1.msra.mxu0 0.0
      %1924 = vmatprep.subr.mxu0 0.0
      %1925 = vmatpush1.msra.mxu0 0.0
      %1926 = vmatprep.subr.mxu0 0.0
      %1927 = vmatpush1.msra.mxu0 0.0
      %1928 = vmatprep.subr.mxu0 0.0
      %1929 = vmatpush1.msra.mxu0 0.0
      %1930 = vmatprep.subr.mxu0 0.0
      %1931 = vmatpush1.msra.mxu0 0.0
      %1932 = vmatprep.subr.mxu0 0.0
      %1933 = vmatpush1.msra.mxu0 0.0
      %1934 = vmatprep.subr.mxu0 0.0
      %1935 = vmatpush1.msra.mxu0 0.0
      %1936 = vmatprep.subr.mxu0 0.0
      %1937 = vmatpush1.msra.mxu0 0.0
      %1938 = vmatprep.subr.mxu0 0.0
      %1939 = vmatpush1.msra.mxu0 0.0
      %1940 = vmatprep.subr.mxu0 0.0
      %1941 = vmatpush1.msra.mxu0 0.0
      %1942 = vmatprep.subr.mxu0 0.0
      %1943 = vmatpush1.msra.mxu0 0.0
      %1944 = vmatprep.subr.mxu0 0.0
      %1945 = vmatpush1.msra.mxu0 0.0
      %1946 = vmatprep.subr.mxu0 0.0
      %1947 = vmatpush1.msra.mxu0 0.0
      %1948 = vmatprep.subr.mxu0 0.0
      %1949 = vmatpush1.msra.mxu0 0.0
      %1950 = vmatprep.subr.mxu0 0.0
      %1951 = vmatpush1.msra.mxu0 0.0
      %1952 = vmatprep.subr.mxu0 0.0
      %1953 = vmatpush1.msra.mxu0 0.0
      %1954 = vmatprep.subr.mxu0 0.0
      %1955 = vmatpush1.msra.mxu0 0.0
      %1956 = vmatprep.subr.mxu0 0.0
      %1957 = vmatpush1.msra.mxu0 0.0
      %1958 = vmatprep.subr.mxu0 0.0
      %1959 = vmatpush1.msra.mxu0 0.0
      %1960 = vmatprep.subr.mxu0 0.0
      %1961 = vmatpush1.msra.mxu0 0.0
      %1962 = vmatprep.subr.mxu0 0.0
      %1963 = vmatpush1.msra.mxu0 0.0
      %1964 = vmatprep.subr.mxu0 0.0
      %1965 = vmatpush1.msra.mxu0 0.0
      %1966 = vmatprep.subr.mxu0 0.0
      %1967 = vmatpush1.msra.mxu0 0.0
      %1968 = vmatprep.subr.mxu0 0.0
      %1969 = vmatpush1.msra.mxu0 0.0
      %1970 = vmatprep.subr.mxu0 0.0
      %1971 = vmatpush1.msra.mxu0 0.0
      %1972 = vmatprep.subr.mxu0 0.0
      %1973 = vmatpush1.msra.mxu0 0.0
      %1974 = vmatprep.subr.mxu0 0.0
      %1975 = vmatpush1.msra.mxu0 0.0
      %1976 = vmatprep.mubr.f32.mxu0 0.0
      %1977 = vmatmul.mubr.f32.gmra.mrb[0].mxu0 %v1575
      %v1978 = vpop.f32.mrb[0].mxu0
      %v1979 = vadd.f32 %v1834, %v1978
      %v1980 = vpop.f32.mrb[0].mxu0
      %1981 = vmatprep.mubr.f32.mxu0 0.0
      %1982 = vmatmul.mubr.f32.gmra.mrb[0].mxu0 %v1578
      %v1983 = vpop.f32.mrb[0].mxu0
      %v1984 = vadd.f32 %v1839, %v1983
      %v1985 = vpop.f32.mrb[0].mxu0
      %1986 = vmatprep.mubr.f32.mxu0 0.0
      %1987 = vmatmul.mubr.f32.gmra.mrb[0].mxu0 %v1581
      %v1988 = vpop.f32.mrb[0].mxu0
      %v1989 = vadd.f32 %v1844, %v1988
      %v1990 = vpop.f32.mrb[0].mxu0
      %1991 = vmatprep.mubr.f32.mxu0 0.0
      %1992 = vmatmul.mubr.f32.gmra.mrb[0].mxu0 %v1584
      %v1993 = vpop.f32.mrb[0].mxu0
      %v1994 = vadd.f32 %v1849, %v1993
      %v1995 = vpop.f32.mrb[0].mxu0
      %1996 = vmatprep.mubr.f32.mxu0 0.0
      %1997 = vmatmul.mubr.f32.gmra.mrb[0].mxu0 %v1587
      %v1998 = vpop.f32.mrb[0].mxu0
      %v1999 = vadd.f32 %v1854, %v1998
      %v2000 = vpop.f32.mrb[0].mxu0
      %2001 = vmatprep.mubr.f32.mxu0 0.0
      %2002 = vmatmul.mubr.f32.gmra.mrb[0].mxu0 %v1590
      %v2003 = vpop.f32.mrb[0].mxu0
      %v2004 = vadd.f32 %v1859, %v2003
      %v2005 = vpop.f32.mrb[0].mxu0
      %2006 = vmatprep.mubr.f32.mxu0 0.0
      %2007 = vmatmul.mubr.f32.gmra.mrb[0].mxu0 %v1593
      %v2008 = vpop.f32.mrb[0].mxu0
      %v2009 = vadd.f32 %v1864, %v2008
      %v2010 = vpop.f32.mrb[0].mxu0
      %2011 = vmatprep.mubr.f32.mxu0 0.0
      %2012 = vmatmul.mubr.f32.gmra.mrb[0].mxu0 %v1596
      %v2013 = vpop.f32.mrb[0].mxu0
      %v2014 = vadd.f32 %v1869, %v2013
      %v2015 = vpop.f32.mrb[0].mxu0
      %2016 = vmatprep.mubr.f32.mxu0 0.0
      %2017 = vmatmul.mubr.f32.gmra.mrb[0].mxu0 %v1599
      %v2018 = vpop.f32.mrb[0].mxu0
      %v2019 = vadd.f32 %v1874, %v2018
      %v2020 = vpop.f32.mrb[0].mxu0
      %2021 = vmatprep.mubr.f32.mxu0 0.0
      %2022 = vmatmul.mubr.f32.gmra.mrb[0].mxu0 %v1602
      %v2023 = vpop.f32.mrb[0].mxu0
      %v2024 = vadd.f32 %v1879, %v2023
      %v2025 = vpop.f32.mrb[0].mxu0
      %2026 = vmatprep.mubr.f32.mxu0 0.0
      %2027 = vmatmul.mubr.f32.gmra.mrb[0].mxu0 %v1605
      %v2028 = vpop.f32.mrb[0].mxu0
      %v2029 = vadd.f32 %v1884, %v2028
      %v2030 = vpop.f32.mrb[0].mxu0
      %2031 = vmatprep.mubr.f32.mxu0 0.0
      %2032 = vmatmul.mubr.f32.gmra.mrb[0].mxu0 %v1608
      %v2033 = vpop.f32.mrb[0].mxu0
      %v2034 = vadd.f32 %v1889, %v2033
      %v2035 = vpop.f32.mrb[0].mxu0
      %2036 = vmatprep.mubr.f32.mxu0 0.0
      %2037 = vmatmul.mubr.f32.gmra.mrb[0].mxu0 %v1611
      %v2038 = vpop.f32.mrb[0].mxu0
      %v2039 = vadd.f32 %v1894, %v2038
      %v2040 = vpop.f32.mrb[0].mxu0
      %2041 = vmatprep.mubr.f32.mxu0 0.0
      %2042 = vmatmul.mubr.f32.gmra.mrb[0].mxu0 %v1614
      %v2043 = vpop.f32.mrb[0].mxu0
      %v2044 = vadd.f32 %v1899, %v2043
      %v2045 = vpop.f32.mrb[0].mxu0
      %2046 = vmatprep.mubr.f32.mxu0 0.0
      %2047 = vmatmul.mubr.f32.gmra.mrb[0].mxu0 %v1617
      %v2048 = vpop.f32.mrb[0].mxu0
      %v2049 = vadd.f32 %v1904, %v2048
      %v2050 = vpop.f32.mrb[0].mxu0
      %2051 = vmatprep.mubr.f32.mxu0 0.0
      %2052 = vmatmul.mubr.f32.gmra.mrb[0].mxu0 %v1620
      %v2053 = vpop.f32.mrb[0].mxu0
      %v2054 = vadd.f32 %v1909, %v2053
      %v2055 = vpop.f32.mrb[0].mxu0
      %2056 = vdwg.mxu0
      %v2057 = vsel %vm1380, %v1689, -inf
      %v2058 = vrot.slane %v2057, 4
      %v2059 = vmax.f32 %v2057, %v2058
      %v2060 = vrot.slane %v2059, 2
      %v2061 = vmax.f32 %v2059, %v2060
      %v2062 = vrot.slane %v2061, 1
      %v2063 = vmax.f32 %v2061, %v2062
      %v2064 = vsel %vm1380, %v1694, -inf
      %v2065 = vrot.slane %v2064, 4
      %v2066 = vmax.f32 %v2064, %v2065
      %v2067 = vrot.slane %v2066, 2
      %v2068 = vmax.f32 %v2066, %v2067
      %v2069 = vrot.slane %v2068, 1
      %v2070 = vmax.f32 %v2068, %v2069
      %v2071 = vsel %vm1380, %v1699, -inf
      %v2072 = vrot.slane %v2071, 4
      %v2073 = vmax.f32 %v2071, %v2072
      %v2074 = vrot.slane %v2073, 2
      %v2075 = vmax.f32 %v2073, %v2074
      %v2076 = vrot.slane %v2075, 1
      %v2077 = vmax.f32 %v2075, %v2076
      %v2078 = vsel %vm1380, %v1704, -inf
      %v2079 = vrot.slane %v2078, 4
      %v2080 = vmax.f32 %v2078, %v2079
      %v2081 = vrot.slane %v2080, 2
      %v2082 = vmax.f32 %v2080, %v2081
      %v2083 = vrot.slane %v2082, 1
      %v2084 = vmax.f32 %v2082, %v2083
      %v2085 = vsel %vm1380, %v1709, -inf
      %v2086 = vrot.slane %v2085, 4
      %v2087 = vmax.f32 %v2085, %v2086
      %v2088 = vrot.slane %v2087, 2
      %v2089 = vmax.f32 %v2087, %v2088
      %v2090 = vrot.slane %v2089, 1
      %v2091 = vmax.f32 %v2089, %v2090
      %v2092 = vsel %vm1380, %v1714, -inf
      %v2093 = vrot.slane %v2092, 4
      %v2094 = vmax.f32 %v2092, %v2093
      %v2095 = vrot.slane %v2094, 2
      %v2096 = vmax.f32 %v2094, %v2095
      %v2097 = vrot.slane %v2096, 1
      %v2098 = vmax.f32 %v2096, %v2097
      %v2099 = vsel %vm1380, %v1719, -inf
      %v2100 = vrot.slane %v2099, 4
      %v2101 = vmax.f32 %v2099, %v2100
      %v2102 = vrot.slane %v2101, 2
      %v2103 = vmax.f32 %v2101, %v2102
      %v2104 = vrot.slane %v2103, 1
      %v2105 = vmax.f32 %v2103, %v2104
      %v2106 = vsel %vm1380, %v1724, -inf
      %v2107 = vrot.slane %v2106, 4
      %v2108 = vmax.f32 %v2106, %v2107
      %v2109 = vrot.slane %v2108, 2
      %v2110 = vmax.f32 %v2108, %v2109
      %v2111 = vrot.slane %v2110, 1
      %v2112 = vmax.f32 %v2110, %v2111
      %v2113 = vsel %vm1380, %v1729, -inf
      %v2114 = vrot.slane %v2113, 4
      %v2115 = vmax.f32 %v2113, %v2114
      %v2116 = vrot.slane %v2115, 2
      %v2117 = vmax.f32 %v2115, %v2116
      %v2118 = vrot.slane %v2117, 1
      %v2119 = vmax.f32 %v2117, %v2118
      %v2120 = vsel %vm1380, %v1734, -inf
      %v2121 = vrot.slane %v2120, 4
      %v2122 = vmax.f32 %v2120, %v2121
      %v2123 = vrot.slane %v2122, 2
      %v2124 = vmax.f32 %v2122, %v2123
      %v2125 = vrot.slane %v2124, 1
      %v2126 = vmax.f32 %v2124, %v2125
      %v2127 = vsel %vm1380, %v1739, -inf
      %v2128 = vrot.slane %v2127, 4
      %v2129 = vmax.f32 %v2127, %v2128
      %v2130 = vrot.slane %v2129, 2
      %v2131 = vmax.f32 %v2129, %v2130
      %v2132 = vrot.slane %v2131, 1
      %v2133 = vmax.f32 %v2131, %v2132
      %v2134 = vsel %vm1380, %v1744, -inf
      %v2135 = vrot.slane %v2134, 4
      %v2136 = vmax.f32 %v2134, %v2135
      %v2137 = vrot.slane %v2136, 2
      %v2138 = vmax.f32 %v2136, %v2137
      %v2139 = vrot.slane %v2138, 1
      %v2140 = vmax.f32 %v2138, %v2139
      %v2141 = vsel %vm1380, %v1749, -inf
      %v2142 = vrot.slane %v2141, 4
      %v2143 = vmax.f32 %v2141, %v2142
      %v2144 = vrot.slane %v2143, 2
      %v2145 = vmax.f32 %v2143, %v2144
      %v2146 = vrot.slane %v2145, 1
      %v2147 = vmax.f32 %v2145, %v2146
      %v2148 = vsel %vm1380, %v1754, -inf
      %v2149 = vrot.slane %v2148, 4
      %v2150 = vmax.f32 %v2148, %v2149
      %v2151 = vrot.slane %v2150, 2
      %v2152 = vmax.f32 %v2150, %v2151
      %v2153 = vrot.slane %v2152, 1
      %v2154 = vmax.f32 %v2152, %v2153
      %v2155 = vsel %vm1380, %v1759, -inf
      %v2156 = vrot.slane %v2155, 4
      %v2157 = vmax.f32 %v2155, %v2156
      %v2158 = vrot.slane %v2157, 2
      %v2159 = vmax.f32 %v2157, %v2158
      %v2160 = vrot.slane %v2159, 1
      %v2161 = vmax.f32 %v2159, %v2160
      %v2162 = vsel %vm1380, %v1764, -inf
      %v2163 = vrot.slane %v2162, 4
      %v2164 = vmax.f32 %v2162, %v2163
      %v2165 = vrot.slane %v2164, 2
      %v2166 = vmax.f32 %v2164, %v2165
      %v2167 = vrot.slane %v2166, 1
      %v2168 = vmax.f32 %v2166, %v2167
      %v2169 = vsub.f32 %v1689, %v2063
      %v2170 = vsub.f32 %v1694, %v2070
      %v2171 = vsub.f32 %v1699, %v2077
      %v2172 = vsub.f32 %v1704, %v2084
      %v2173 = vsub.f32 %v1709, %v2091
      %v2174 = vsub.f32 %v1714, %v2098
      %v2175 = vsub.f32 %v1719, %v2105
      %v2176 = vsub.f32 %v1724, %v2112
      %v2177 = vsub.f32 %v1729, %v2119
      %v2178 = vsub.f32 %v1734, %v2126
      %v2179 = vsub.f32 %v1739, %v2133
      %v2180 = vsub.f32 %v1744, %v2140
      %v2181 = vsub.f32 %v1749, %v2147
      %v2182 = vsub.f32 %v1754, %v2154
      %v2183 = vsub.f32 %v1759, %v2161
      %v2184 = vsub.f32 %v1764, %v2168
      %v2185 = vmul.f32 %v2169, 1.442695
      %v2186 = vpow.pop %v2185
      %v2187 = vmul.f32 %v2170, 1.442695
      %v2188 = vpow.pop %v2187
      %v2189 = vmul.f32 %v2171, 1.442695
      %v2190 = vpow.pop %v2189
      %v2191 = vmul.f32 %v2172, 1.442695
      %v2192 = vpow.pop %v2191
      %v2193 = vmul.f32 %v2173, 1.442695
      %v2194 = vpow.pop %v2193
      %v2195 = vmul.f32 %v2174, 1.442695
      %v2196 = vpow.pop %v2195
      %v2197 = vmul.f32 %v2175, 1.442695
      %v2198 = vpow.pop %v2197
      %v2199 = vmul.f32 %v2176, 1.442695
      %v2200 = vpow.pop %v2199
      %v2201 = vmul.f32 %v2177, 1.442695
      %v2202 = vpow.pop %v2201
      %v2203 = vmul.f32 %v2178, 1.442695
      %v2204 = vpow.pop %v2203
      %v2205 = vmul.f32 %v2179, 1.442695
      %v2206 = vpow.pop %v2205
      %v2207 = vmul.f32 %v2180, 1.442695
      %v2208 = vpow.pop %v2207
      %v2209 = vmul.f32 %v2181, 1.442695
      %v2210 = vpow.pop %v2209
      %v2211 = vmul.f32 %v2182, 1.442695
      %v2212 = vpow.pop %v2211
      %v2213 = vmul.f32 %v2183, 1.442695
      %v2214 = vpow.pop %v2213
      %v2215 = vmul.f32 %v2184, 1.442695
      %v2216 = vpow.pop %v2215
      %v2217 = vsel %vm1380, %v2186, 0.0
      %v2218 = vrot.slane %v2217, 4
      %v2219 = vadd.f32 %v2217, %v2218
      %v2220 = vrot.slane %v2219, 2
      %v2221 = vadd.f32 %v2219, %v2220
      %v2222 = vrot.slane %v2221, 1
      %v2223 = vadd.f32 %v2221, %v2222
      %v2224 = vsel %vm1380, %v2188, 0.0
      %v2225 = vrot.slane %v2224, 4
      %v2226 = vadd.f32 %v2224, %v2225
      %v2227 = vrot.slane %v2226, 2
      %v2228 = vadd.f32 %v2226, %v2227
      %v2229 = vrot.slane %v2228, 1
      %v2230 = vadd.f32 %v2228, %v2229
      %v2231 = vsel %vm1380, %v2190, 0.0
      %v2232 = vrot.slane %v2231, 4
      %v2233 = vadd.f32 %v2231, %v2232
      %v2234 = vrot.slane %v2233, 2
      %v2235 = vadd.f32 %v2233, %v2234
      %v2236 = vrot.slane %v2235, 1
      %v2237 = vadd.f32 %v2235, %v2236
      %v2238 = vsel %vm1380, %v2192, 0.0
      %v2239 = vrot.slane %v2238, 4
      %v2240 = vadd.f32 %v2238, %v2239
      %v2241 = vrot.slane %v2240, 2
      %v2242 = vadd.f32 %v2240, %v2241
      %v2243 = vrot.slane %v2242, 1
      %v2244 = vadd.f32 %v2242, %v2243
      %v2245 = vsel %vm1380, %v2194, 0.0
      %v2246 = vrot.slane %v2245, 4
      %v2247 = vadd.f32 %v2245, %v2246
      %v2248 = vrot.slane %v2247, 2
      %v2249 = vadd.f32 %v2247, %v2248
      %v2250 = vrot.slane %v2249, 1
      %v2251 = vadd.f32 %v2249, %v2250
      %v2252 = vsel %vm1380, %v2196, 0.0
      %v2253 = vrot.slane %v2252, 4
      %v2254 = vadd.f32 %v2252, %v2253
      %v2255 = vrot.slane %v2254, 2
      %v2256 = vadd.f32 %v2254, %v2255
      %v2257 = vrot.slane %v2256, 1
      %v2258 = vadd.f32 %v2256, %v2257
      %v2259 = vsel %vm1380, %v2198, 0.0
      %v2260 = vrot.slane %v2259, 4
      %v2261 = vadd.f32 %v2259, %v2260
      %v2262 = vrot.slane %v2261, 2
      %v2263 = vadd.f32 %v2261, %v2262
      %v2264 = vrot.slane %v2263, 1
      %v2265 = vadd.f32 %v2263, %v2264
      %v2266 = vsel %vm1380, %v2200, 0.0
      %v2267 = vrot.slane %v2266, 4
      %v2268 = vadd.f32 %v2266, %v2267
      %v2269 = vrot.slane %v2268, 2
      %v2270 = vadd.f32 %v2268, %v2269
      %v2271 = vrot.slane %v2270, 1
      %v2272 = vadd.f32 %v2270, %v2271
      %v2273 = vsel %vm1380, %v2202, 0.0
      %v2274 = vrot.slane %v2273, 4
      %v2275 = vadd.f32 %v2273, %v2274
      %v2276 = vrot.slane %v2275, 2
      %v2277 = vadd.f32 %v2275, %v2276
      %v2278 = vrot.slane %v2277, 1
      %v2279 = vadd.f32 %v2277, %v2278
      %v2280 = vsel %vm1380, %v2204, 0.0
      %v2281 = vrot.slane %v2280, 4
      %v2282 = vadd.f32 %v2280, %v2281
      %v2283 = vrot.slane %v2282, 2
      %v2284 = vadd.f32 %v2282, %v2283
      %v2285 = vrot.slane %v2284, 1
      %v2286 = vadd.f32 %v2284, %v2285
      %v2287 = vsel %vm1380, %v2206, 0.0
      %v2288 = vrot.slane %v2287, 4
      %v2289 = vadd.f32 %v2287, %v2288
      %v2290 = vrot.slane %v2289, 2
      %v2291 = vadd.f32 %v2289, %v2290
      %v2292 = vrot.slane %v2291, 1
      %v2293 = vadd.f32 %v2291, %v2292
      %v2294 = vsel %vm1380, %v2208, 0.0
      %v2295 = vrot.slane %v2294, 4
      %v2296 = vadd.f32 %v2294, %v2295
      %v2297 = vrot.slane %v2296, 2
      %v2298 = vadd.f32 %v2296, %v2297
      %v2299 = vrot.slane %v2298, 1
      %v2300 = vadd.f32 %v2298, %v2299
      %v2301 = vsel %vm1380, %v2210, 0.0
      %v2302 = vrot.slane %v2301, 4
      %v2303 = vadd.f32 %v2301, %v2302
      %v2304 = vrot.slane %v2303, 2
      %v2305 = vadd.f32 %v2303, %v2304
      %v2306 = vrot.slane %v2305, 1
      %v2307 = vadd.f32 %v2305, %v2306
      %v2308 = vsel %vm1380, %v2212, 0.0
      %v2309 = vrot.slane %v2308, 4
      %v2310 = vadd.f32 %v2308, %v2309
      %v2311 = vrot.slane %v2310, 2
      %v2312 = vadd.f32 %v2310, %v2311
      %v2313 = vrot.slane %v2312, 1
      %v2314 = vadd.f32 %v2312, %v2313
      %v2315 = vsel %vm1380, %v2214, 0.0
      %v2316 = vrot.slane %v2315, 4
      %v2317 = vadd.f32 %v2315, %v2316
      %v2318 = vrot.slane %v2317, 2
      %v2319 = vadd.f32 %v2317, %v2318
      %v2320 = vrot.slane %v2319, 1
      %v2321 = vadd.f32 %v2319, %v2320
      %v2322 = vsel %vm1380, %v2216, 0.0
      %v2323 = vrot.slane %v2322, 4
      %v2324 = vadd.f32 %v2322, %v2323
      %v2325 = vrot.slane %v2324, 2
      %v2326 = vadd.f32 %v2324, %v2325
      %v2327 = vrot.slane %v2326, 1
      %v2328 = vadd.f32 %v2326, %v2327
      %v2329 = vrcp.pop %v2223
      %v2330 = vrcp.pop %v2230
      %v2331 = vrcp.pop %v2237
      %v2332 = vrcp.pop %v2244
      %v2333 = vrcp.pop %v2251
      %v2334 = vrcp.pop %v2258
      %v2335 = vrcp.pop %v2265
      %v2336 = vrcp.pop %v2272
      %v2337 = vrcp.pop %v2279
      %v2338 = vrcp.pop %v2286
      %v2339 = vrcp.pop %v2293
      %v2340 = vrcp.pop %v2300
      %v2341 = vrcp.pop %v2307
      %v2342 = vrcp.pop %v2314
      %v2343 = vrcp.pop %v2321
      %v2344 = vrcp.pop %v2328
      %v2345 = vmul.f32 %v2186, %v2329
      %v2346 = vmul.f32 %v2188, %v2330
      %v2347 = vmul.f32 %v2190, %v2331
      %v2348 = vmul.f32 %v2192, %v2332
      %v2349 = vmul.f32 %v2194, %v2333
      %v2350 = vmul.f32 %v2196, %v2334
      %v2351 = vmul.f32 %v2198, %v2335
      %v2352 = vmul.f32 %v2200, %v2336
      %v2353 = vmul.f32 %v2202, %v2337
      %v2354 = vmul.f32 %v2204, %v2338
      %v2355 = vmul.f32 %v2206, %v2339
      %v2356 = vmul.f32 %v2208, %v2340
      %v2357 = vmul.f32 %v2210, %v2341
      %v2358 = vmul.f32 %v2212, %v2342
      %v2359 = vmul.f32 %v2214, %v2343
      %v2360 = vmul.f32 %v2216, %v2344
      %v2361 = vsel %vm1380, %v1979, -inf
      %v2362 = vrot.slane %v2361, 4
      %v2363 = vmax.f32 %v2361, %v2362
      %v2364 = vrot.slane %v2363, 2
      %v2365 = vmax.f32 %v2363, %v2364
      %v2366 = vrot.slane %v2365, 1
      %v2367 = vmax.f32 %v2365, %v2366
      %v2368 = vsel %vm1380, %v1984, -inf
      %v2369 = vrot.slane %v2368, 4
      %v2370 = vmax.f32 %v2368, %v2369
      %v2371 = vrot.slane %v2370, 2
      %v2372 = vmax.f32 %v2370, %v2371
      %v2373 = vrot.slane %v2372, 1
      %v2374 = vmax.f32 %v2372, %v2373
      %v2375 = vsel %vm1380, %v1989, -inf
      %v2376 = vrot.slane %v2375, 4
      %v2377 = vmax.f32 %v2375, %v2376
      %v2378 = vrot.slane %v2377, 2
      %v2379 = vmax.f32 %v2377, %v2378
      %v2380 = vrot.slane %v2379, 1
      %v2381 = vmax.f32 %v2379, %v2380
      %v2382 = vsel %vm1380, %v1994, -inf
      %v2383 = vrot.slane %v2382, 4
      %v2384 = vmax.f32 %v2382, %v2383
      %v2385 = vrot.slane %v2384, 2
      %v2386 = vmax.f32 %v2384, %v2385
      %v2387 = vrot.slane %v2386, 1
      %v2388 = vmax.f32 %v2386, %v2387
      %v2389 = vsel %vm1380, %v1999, -inf
      %v2390 = vrot.slane %v2389, 4
      %v2391 = vmax.f32 %v2389, %v2390
      %v2392 = vrot.slane %v2391, 2
      %v2393 = vmax.f32 %v2391, %v2392
      %v2394 = vrot.slane %v2393, 1
      %v2395 = vmax.f32 %v2393, %v2394
      %v2396 = vsel %vm1380, %v2004, -inf
      %v2397 = vrot.slane %v2396, 4
      %v2398 = vmax.f32 %v2396, %v2397
      %v2399 = vrot.slane %v2398, 2
      %v2400 = vmax.f32 %v2398, %v2399
      %v2401 = vrot.slane %v2400, 1
      %v2402 = vmax.f32 %v2400, %v2401
      %v2403 = vsel %vm1380, %v2009, -inf
      %v2404 = vrot.slane %v2403, 4
      %v2405 = vmax.f32 %v2403, %v2404
      %v2406 = vrot.slane %v2405, 2
      %v2407 = vmax.f32 %v2405, %v2406
      %v2408 = vrot.slane %v2407, 1
      %v2409 = vmax.f32 %v2407, %v2408
      %v2410 = vsel %vm1380, %v2014, -inf
      %v2411 = vrot.slane %v2410, 4
      %v2412 = vmax.f32 %v2410, %v2411
      %v2413 = vrot.slane %v2412, 2
      %v2414 = vmax.f32 %v2412, %v2413
      %v2415 = vrot.slane %v2414, 1
      %v2416 = vmax.f32 %v2414, %v2415
      %v2417 = vsel %vm1380, %v2019, -inf
      %v2418 = vrot.slane %v2417, 4
      %v2419 = vmax.f32 %v2417, %v2418
      %v2420 = vrot.slane %v2419, 2
      %v2421 = vmax.f32 %v2419, %v2420
      %v2422 = vrot.slane %v2421, 1
      %v2423 = vmax.f32 %v2421, %v2422
      %v2424 = vsel %vm1380, %v2024, -inf
      %v2425 = vrot.slane %v2424, 4
      %v2426 = vmax.f32 %v2424, %v2425
      %v2427 = vrot.slane %v2426, 2
      %v2428 = vmax.f32 %v2426, %v2427
      %v2429 = vrot.slane %v2428, 1
      %v2430 = vmax.f32 %v2428, %v2429
      %v2431 = vsel %vm1380, %v2029, -inf
      %v2432 = vrot.slane %v2431, 4
      %v2433 = vmax.f32 %v2431, %v2432
      %v2434 = vrot.slane %v2433, 2
      %v2435 = vmax.f32 %v2433, %v2434
      %v2436 = vrot.slane %v2435, 1
      %v2437 = vmax.f32 %v2435, %v2436
      %v2438 = vsel %vm1380, %v2034, -inf
      %v2439 = vrot.slane %v2438, 4
      %v2440 = vmax.f32 %v2438, %v2439
      %v2441 = vrot.slane %v2440, 2
      %v2442 = vmax.f32 %v2440, %v2441
      %v2443 = vrot.slane %v2442, 1
      %v2444 = vmax.f32 %v2442, %v2443
      %v2445 = vsel %vm1380, %v2039, -inf
      %v2446 = vrot.slane %v2445, 4
      %v2447 = vmax.f32 %v2445, %v2446
      %v2448 = vrot.slane %v2447, 2
      %v2449 = vmax.f32 %v2447, %v2448
      %v2450 = vrot.slane %v2449, 1
      %v2451 = vmax.f32 %v2449, %v2450
      %v2452 = vsel %vm1380, %v2044, -inf
      %v2453 = vrot.slane %v2452, 4
      %v2454 = vmax.f32 %v2452, %v2453
      %v2455 = vrot.slane %v2454, 2
      %v2456 = vmax.f32 %v2454, %v2455
      %v2457 = vrot.slane %v2456, 1
      %v2458 = vmax.f32 %v2456, %v2457
      %v2459 = vsel %vm1380, %v2049, -inf
      %v2460 = vrot.slane %v2459, 4
      %v2461 = vmax.f32 %v2459, %v2460
      %v2462 = vrot.slane %v2461, 2
      %v2463 = vmax.f32 %v2461, %v2462
      %v2464 = vrot.slane %v2463, 1
      %v2465 = vmax.f32 %v2463, %v2464
      %v2466 = vsel %vm1380, %v2054, -inf
      %v2467 = vrot.slane %v2466, 4
      %v2468 = vmax.f32 %v2466, %v2467
      %v2469 = vrot.slane %v2468, 2
      %v2470 = vmax.f32 %v2468, %v2469
      %v2471 = vrot.slane %v2470, 1
      %v2472 = vmax.f32 %v2470, %v2471
      %v2473 = vsub.f32 %v1979, %v2367
      %v2474 = vsub.f32 %v1984, %v2374
      %v2475 = vsub.f32 %v1989, %v2381
      %v2476 = vsub.f32 %v1994, %v2388
      %v2477 = vsub.f32 %v1999, %v2395
      %v2478 = vsub.f32 %v2004, %v2402
      %v2479 = vsub.f32 %v2009, %v2409
      %v2480 = vsub.f32 %v2014, %v2416
      %v2481 = vsub.f32 %v2019, %v2423
      %v2482 = vsub.f32 %v2024, %v2430
      %v2483 = vsub.f32 %v2029, %v2437
      %v2484 = vsub.f32 %v2034, %v2444
      %v2485 = vsub.f32 %v2039, %v2451
      %v2486 = vsub.f32 %v2044, %v2458
      %v2487 = vsub.f32 %v2049, %v2465
      %v2488 = vsub.f32 %v2054, %v2472
      %v2489 = vmul.f32 %v2473, 1.442695
      %v2490 = vpow.pop %v2489
      %v2491 = vmul.f32 %v2474, 1.442695
      %v2492 = vpow.pop %v2491
      %v2493 = vmul.f32 %v2475, 1.442695
      %v2494 = vpow.pop %v2493
      %v2495 = vmul.f32 %v2476, 1.442695
      %v2496 = vpow.pop %v2495
      %v2497 = vmul.f32 %v2477, 1.442695
      %v2498 = vpow.pop %v2497
      %v2499 = vmul.f32 %v2478, 1.442695
      %v2500 = vpow.pop %v2499
      %v2501 = vmul.f32 %v2479, 1.442695
      %v2502 = vpow.pop %v2501
      %v2503 = vmul.f32 %v2480, 1.442695
      %v2504 = vpow.pop %v2503
      %v2505 = vmul.f32 %v2481, 1.442695
      %v2506 = vpow.pop %v2505
      %v2507 = vmul.f32 %v2482, 1.442695
      %v2508 = vpow.pop %v2507
      %v2509 = vmul.f32 %v2483, 1.442695
      %v2510 = vpow.pop %v2509
      %v2511 = vmul.f32 %v2484, 1.442695
      %v2512 = vpow.pop %v2511
      %v2513 = vmul.f32 %v2485, 1.442695
      %v2514 = vpow.pop %v2513
      %v2515 = vmul.f32 %v2486, 1.442695
      %v2516 = vpow.pop %v2515
      %v2517 = vmul.f32 %v2487, 1.442695
      %v2518 = vpow.pop %v2517
      %v2519 = vmul.f32 %v2488, 1.442695
      %v2520 = vpow.pop %v2519
      %v2521 = vsel %vm1380, %v2490, 0.0
      %v2522 = vrot.slane %v2521, 4
      %v2523 = vadd.f32 %v2521, %v2522
      %v2524 = vrot.slane %v2523, 2
      %v2525 = vadd.f32 %v2523, %v2524
      %v2526 = vrot.slane %v2525, 1
      %v2527 = vadd.f32 %v2525, %v2526
      %v2528 = vsel %vm1380, %v2492, 0.0
      %v2529 = vrot.slane %v2528, 4
      %v2530 = vadd.f32 %v2528, %v2529
      %v2531 = vrot.slane %v2530, 2
      %v2532 = vadd.f32 %v2530, %v2531
      %v2533 = vrot.slane %v2532, 1
      %v2534 = vadd.f32 %v2532, %v2533
      %v2535 = vsel %vm1380, %v2494, 0.0
      %v2536 = vrot.slane %v2535, 4
      %v2537 = vadd.f32 %v2535, %v2536
      %v2538 = vrot.slane %v2537, 2
      %v2539 = vadd.f32 %v2537, %v2538
      %v2540 = vrot.slane %v2539, 1
      %v2541 = vadd.f32 %v2539, %v2540
      %v2542 = vsel %vm1380, %v2496, 0.0
      %v2543 = vrot.slane %v2542, 4
      %v2544 = vadd.f32 %v2542, %v2543
      %v2545 = vrot.slane %v2544, 2
      %v2546 = vadd.f32 %v2544, %v2545
      %v2547 = vrot.slane %v2546, 1
      %v2548 = vadd.f32 %v2546, %v2547
      %v2549 = vsel %vm1380, %v2498, 0.0
      %v2550 = vrot.slane %v2549, 4
      %v2551 = vadd.f32 %v2549, %v2550
      %v2552 = vrot.slane %v2551, 2
      %v2553 = vadd.f32 %v2551, %v2552
      %v2554 = vrot.slane %v2553, 1
      %v2555 = vadd.f32 %v2553, %v2554
      %v2556 = vsel %vm1380, %v2500, 0.0
      %v2557 = vrot.slane %v2556, 4
      %v2558 = vadd.f32 %v2556, %v2557
      %v2559 = vrot.slane %v2558, 2
      %v2560 = vadd.f32 %v2558, %v2559
      %v2561 = vrot.slane %v2560, 1
      %v2562 = vadd.f32 %v2560, %v2561
      %v2563 = vsel %vm1380, %v2502, 0.0
      %v2564 = vrot.slane %v2563, 4
      %v2565 = vadd.f32 %v2563, %v2564
      %v2566 = vrot.slane %v2565, 2
      %v2567 = vadd.f32 %v2565, %v2566
      %v2568 = vrot.slane %v2567, 1
      %v2569 = vadd.f32 %v2567, %v2568
      %v2570 = vsel %vm1380, %v2504, 0.0
      %v2571 = vrot.slane %v2570, 4
      %v2572 = vadd.f32 %v2570, %v2571
      %v2573 = vrot.slane %v2572, 2
      %v2574 = vadd.f32 %v2572, %v2573
      %v2575 = vrot.slane %v2574, 1
      %v2576 = vadd.f32 %v2574, %v2575
      %v2577 = vsel %vm1380, %v2506, 0.0
      %v2578 = vrot.slane %v2577, 4
      %v2579 = vadd.f32 %v2577, %v2578
      %v2580 = vrot.slane %v2579, 2
      %v2581 = vadd.f32 %v2579, %v2580
      %v2582 = vrot.slane %v2581, 1
      %v2583 = vadd.f32 %v2581, %v2582
      %v2584 = vsel %vm1380, %v2508, 0.0
      %v2585 = vrot.slane %v2584, 4
      %v2586 = vadd.f32 %v2584, %v2585
      %v2587 = vrot.slane %v2586, 2
      %v2588 = vadd.f32 %v2586, %v2587
      %v2589 = vrot.slane %v2588, 1
      %v2590 = vadd.f32 %v2588, %v2589
      %v2591 = vsel %vm1380, %v2510, 0.0
      %v2592 = vrot.slane %v2591, 4
      %v2593 = vadd.f32 %v2591, %v2592
      %v2594 = vrot.slane %v2593, 2
      %v2595 = vadd.f32 %v2593, %v2594
      %v2596 = vrot.slane %v2595, 1
      %v2597 = vadd.f32 %v2595, %v2596
      %v2598 = vsel %vm1380, %v2512, 0.0
      %v2599 = vrot.slane %v2598, 4
      %v2600 = vadd.f32 %v2598, %v2599
      %v2601 = vrot.slane %v2600, 2
      %v2602 = vadd.f32 %v2600, %v2601
      %v2603 = vrot.slane %v2602, 1
      %v2604 = vadd.f32 %v2602, %v2603
      %v2605 = vsel %vm1380, %v2514, 0.0
      %v2606 = vrot.slane %v2605, 4
      %v2607 = vadd.f32 %v2605, %v2606
      %v2608 = vrot.slane %v2607, 2
      %v2609 = vadd.f32 %v2607, %v2608
      %v2610 = vrot.slane %v2609, 1
      %v2611 = vadd.f32 %v2609, %v2610
      %v2612 = vsel %vm1380, %v2516, 0.0
      %v2613 = vrot.slane %v2612, 4
      %v2614 = vadd.f32 %v2612, %v2613
      %v2615 = vrot.slane %v2614, 2
      %v2616 = vadd.f32 %v2614, %v2615
      %v2617 = vrot.slane %v2616, 1
      %v2618 = vadd.f32 %v2616, %v2617
      %v2619 = vsel %vm1380, %v2518, 0.0
      %v2620 = vrot.slane %v2619, 4
      %v2621 = vadd.f32 %v2619, %v2620
      %v2622 = vrot.slane %v2621, 2
      %v2623 = vadd.f32 %v2621, %v2622
      %v2624 = vrot.slane %v2623, 1
      %v2625 = vadd.f32 %v2623, %v2624
      %v2626 = vsel %vm1380, %v2520, 0.0
      %v2627 = vrot.slane %v2626, 4
      %v2628 = vadd.f32 %v2626, %v2627
      %v2629 = vrot.slane %v2628, 2
      %v2630 = vadd.f32 %v2628, %v2629
      %v2631 = vrot.slane %v2630, 1
      %v2632 = vadd.f32 %v2630, %v2631
      %v2633 = vrcp.pop %v2527
      %v2634 = vrcp.pop %v2534
      %v2635 = vrcp.pop %v2541
      %v2636 = vrcp.pop %v2548
      %v2637 = vrcp.pop %v2555
      %v2638 = vrcp.pop %v2562
      %v2639 = vrcp.pop %v2569
      %v2640 = vrcp.pop %v2576
      %v2641 = vrcp.pop %v2583
      %v2642 = vrcp.pop %v2590
      %v2643 = vrcp.pop %v2597
      %v2644 = vrcp.pop %v2604
      %v2645 = vrcp.pop %v2611
      %v2646 = vrcp.pop %v2618
      %v2647 = vrcp.pop %v2625
      %v2648 = vrcp.pop %v2632
      %v2649 = vmul.f32 %v2490, %v2633
      %v2650 = vmul.f32 %v2492, %v2634
      %v2651 = vmul.f32 %v2494, %v2635
      %v2652 = vmul.f32 %v2496, %v2636
      %v2653 = vmul.f32 %v2498, %v2637
      %v2654 = vmul.f32 %v2500, %v2638
      %v2655 = vmul.f32 %v2502, %v2639
      %v2656 = vmul.f32 %v2504, %v2640
      %v2657 = vmul.f32 %v2506, %v2641
      %v2658 = vmul.f32 %v2508, %v2642
      %v2659 = vmul.f32 %v2510, %v2643
      %v2660 = vmul.f32 %v2512, %v2644
      %v2661 = vmul.f32 %v2514, %v2645
      %v2662 = vmul.f32 %v2516, %v2646
      %v2663 = vmul.f32 %v2518, %v2647
      %v2664 = vmul.f32 %v2520, %v2648
      %v2665 = vmul.f32 %v1351, %v2345
      %v2666 = vmul.f32 %v1352, %v2346
      %v2667 = vmul.f32 %v1353, %v2347
      %v2668 = vmul.f32 %v1354, %v2348
      %v2669 = vmul.f32 %v1355, %v2349
      %v2670 = vmul.f32 %v1356, %v2350
      %v2671 = vmul.f32 %v1357, %v2351
      %v2672 = vmul.f32 %v1358, %v2352
      %v2673 = vmul.f32 %v1359, %v2353
      %v2674 = vmul.f32 %v1360, %v2354
      %v2675 = vmul.f32 %v1361, %v2355
      %v2676 = vmul.f32 %v1362, %v2356
      %v2677 = vmul.f32 %v1363, %v2357
      %v2678 = vmul.f32 %v1364, %v2358
      %v2679 = vmul.f32 %v1365, %v2359
      %v2680 = vmul.f32 %v1366, %v2360
      %v2681 = vsel %vm1380, %v2665, 0.0
      %v2682 = vrot.slane %v2681, 4
      %v2683 = vadd.f32 %v2681, %v2682
      %v2684 = vrot.slane %v2683, 2
      %v2685 = vadd.f32 %v2683, %v2684
      %v2686 = vrot.slane %v2685, 1
      %v2687 = vadd.f32 %v2685, %v2686
      %v2688 = vsel %vm1380, %v2666, 0.0
      %v2689 = vrot.slane %v2688, 4
      %v2690 = vadd.f32 %v2688, %v2689
      %v2691 = vrot.slane %v2690, 2
      %v2692 = vadd.f32 %v2690, %v2691
      %v2693 = vrot.slane %v2692, 1
      %v2694 = vadd.f32 %v2692, %v2693
      %v2695 = vsel %vm1380, %v2667, 0.0
      %v2696 = vrot.slane %v2695, 4
      %v2697 = vadd.f32 %v2695, %v2696
      %v2698 = vrot.slane %v2697, 2
      %v2699 = vadd.f32 %v2697, %v2698
      %v2700 = vrot.slane %v2699, 1
      %v2701 = vadd.f32 %v2699, %v2700
      %v2702 = vsel %vm1380, %v2668, 0.0
      %v2703 = vrot.slane %v2702, 4
      %v2704 = vadd.f32 %v2702, %v2703
      %v2705 = vrot.slane %v2704, 2
      %v2706 = vadd.f32 %v2704, %v2705
      %v2707 = vrot.slane %v2706, 1
      %v2708 = vadd.f32 %v2706, %v2707
      %v2709 = vsel %vm1380, %v2669, 0.0
      %v2710 = vrot.slane %v2709, 4
      %v2711 = vadd.f32 %v2709, %v2710
      %v2712 = vrot.slane %v2711, 2
      %v2713 = vadd.f32 %v2711, %v2712
      %v2714 = vrot.slane %v2713, 1
      %v2715 = vadd.f32 %v2713, %v2714
      %v2716 = vsel %vm1380, %v2670, 0.0
      %v2717 = vrot.slane %v2716, 4
      %v2718 = vadd.f32 %v2716, %v2717
      %v2719 = vrot.slane %v2718, 2
      %v2720 = vadd.f32 %v2718, %v2719
      %v2721 = vrot.slane %v2720, 1
      %v2722 = vadd.f32 %v2720, %v2721
      %v2723 = vsel %vm1380, %v2671, 0.0
      %v2724 = vrot.slane %v2723, 4
      %v2725 = vadd.f32 %v2723, %v2724
      %v2726 = vrot.slane %v2725, 2
      %v2727 = vadd.f32 %v2725, %v2726
      %v2728 = vrot.slane %v2727, 1
      %v2729 = vadd.f32 %v2727, %v2728
      %v2730 = vsel %vm1380, %v2672, 0.0
      %v2731 = vrot.slane %v2730, 4
      %v2732 = vadd.f32 %v2730, %v2731
      %v2733 = vrot.slane %v2732, 2
      %v2734 = vadd.f32 %v2732, %v2733
      %v2735 = vrot.slane %v2734, 1
      %v2736 = vadd.f32 %v2734, %v2735
      %v2737 = vsel %vm1380, %v2673, 0.0
      %v2738 = vrot.slane %v2737, 4
      %v2739 = vadd.f32 %v2737, %v2738
      %v2740 = vrot.slane %v2739, 2
      %v2741 = vadd.f32 %v2739, %v2740
      %v2742 = vrot.slane %v2741, 1
      %v2743 = vadd.f32 %v2741, %v2742
      %v2744 = vsel %vm1380, %v2674, 0.0
      %v2745 = vrot.slane %v2744, 4
      %v2746 = vadd.f32 %v2744, %v2745
      %v2747 = vrot.slane %v2746, 2
      %v2748 = vadd.f32 %v2746, %v2747
      %v2749 = vrot.slane %v2748, 1
      %v2750 = vadd.f32 %v2748, %v2749
      %v2751 = vsel %vm1380, %v2675, 0.0
      %v2752 = vrot.slane %v2751, 4
      %v2753 = vadd.f32 %v2751, %v2752
      %v2754 = vrot.slane %v2753, 2
      %v2755 = vadd.f32 %v2753, %v2754
      %v2756 = vrot.slane %v2755, 1
      %v2757 = vadd.f32 %v2755, %v2756
      %v2758 = vsel %vm1380, %v2676, 0.0
      %v2759 = vrot.slane %v2758, 4
      %v2760 = vadd.f32 %v2758, %v2759
      %v2761 = vrot.slane %v2760, 2
      %v2762 = vadd.f32 %v2760, %v2761
      %v2763 = vrot.slane %v2762, 1
      %v2764 = vadd.f32 %v2762, %v2763
      %v2765 = vsel %vm1380, %v2677, 0.0
      %v2766 = vrot.slane %v2765, 4
      %v2767 = vadd.f32 %v2765, %v2766
      %v2768 = vrot.slane %v2767, 2
      %v2769 = vadd.f32 %v2767, %v2768
      %v2770 = vrot.slane %v2769, 1
      %v2771 = vadd.f32 %v2769, %v2770
      %v2772 = vsel %vm1380, %v2678, 0.0
      %v2773 = vrot.slane %v2772, 4
      %v2774 = vadd.f32 %v2772, %v2773
      %v2775 = vrot.slane %v2774, 2
      %v2776 = vadd.f32 %v2774, %v2775
      %v2777 = vrot.slane %v2776, 1
      %v2778 = vadd.f32 %v2776, %v2777
      %v2779 = vsel %vm1380, %v2679, 0.0
      %v2780 = vrot.slane %v2779, 4
      %v2781 = vadd.f32 %v2779, %v2780
      %v2782 = vrot.slane %v2781, 2
      %v2783 = vadd.f32 %v2781, %v2782
      %v2784 = vrot.slane %v2783, 1
      %v2785 = vadd.f32 %v2783, %v2784
      %v2786 = vsel %vm1380, %v2680, 0.0
      %v2787 = vrot.slane %v2786, 4
      %v2788 = vadd.f32 %v2786, %v2787
      %v2789 = vrot.slane %v2788, 2
      %v2790 = vadd.f32 %v2788, %v2789
      %v2791 = vrot.slane %v2790, 1
      %v2792 = vadd.f32 %v2790, %v2791
      %v2793 = vmul.f32 %v1335, %v2649
      %v2794 = vmul.f32 %v1336, %v2650
      %v2795 = vmul.f32 %v1337, %v2651
      %v2796 = vmul.f32 %v1338, %v2652
      %v2797 = vmul.f32 %v1339, %v2653
      %v2798 = vmul.f32 %v1340, %v2654
      %v2799 = vmul.f32 %v1341, %v2655
      %v2800 = vmul.f32 %v1342, %v2656
      %v2801 = vmul.f32 %v1343, %v2657
      %v2802 = vmul.f32 %v1344, %v2658
      %v2803 = vmul.f32 %v1345, %v2659
      %v2804 = vmul.f32 %v1346, %v2660
      %v2805 = vmul.f32 %v1347, %v2661
      %v2806 = vmul.f32 %v1348, %v2662
      %v2807 = vmul.f32 %v1349, %v2663
      %v2808 = vmul.f32 %v1350, %v2664
      %v2809 = vsel %vm1380, %v2793, 0.0
      %v2810 = vrot.slane %v2809, 4
      %v2811 = vadd.f32 %v2809, %v2810
      %v2812 = vrot.slane %v2811, 2
      %v2813 = vadd.f32 %v2811, %v2812
      %v2814 = vrot.slane %v2813, 1
      %v2815 = vadd.f32 %v2813, %v2814
      %v2816 = vsel %vm1380, %v2794, 0.0
      %v2817 = vrot.slane %v2816, 4
      %v2818 = vadd.f32 %v2816, %v2817
      %v2819 = vrot.slane %v2818, 2
      %v2820 = vadd.f32 %v2818, %v2819
      %v2821 = vrot.slane %v2820, 1
      %v2822 = vadd.f32 %v2820, %v2821
      %v2823 = vsel %vm1380, %v2795, 0.0
      %v2824 = vrot.slane %v2823, 4
      %v2825 = vadd.f32 %v2823, %v2824
      %v2826 = vrot.slane %v2825, 2
      %v2827 = vadd.f32 %v2825, %v2826
      %v2828 = vrot.slane %v2827, 1
      %v2829 = vadd.f32 %v2827, %v2828
      %v2830 = vsel %vm1380, %v2796, 0.0
      %v2831 = vrot.slane %v2830, 4
      %v2832 = vadd.f32 %v2830, %v2831
      %v2833 = vrot.slane %v2832, 2
      %v2834 = vadd.f32 %v2832, %v2833
      %v2835 = vrot.slane %v2834, 1
      %v2836 = vadd.f32 %v2834, %v2835
      %v2837 = vsel %vm1380, %v2797, 0.0
      %v2838 = vrot.slane %v2837, 4
      %v2839 = vadd.f32 %v2837, %v2838
      %v2840 = vrot.slane %v2839, 2
      %v2841 = vadd.f32 %v2839, %v2840
      %v2842 = vrot.slane %v2841, 1
      %v2843 = vadd.f32 %v2841, %v2842
      %v2844 = vsel %vm1380, %v2798, 0.0
      %v2845 = vrot.slane %v2844, 4
      %v2846 = vadd.f32 %v2844, %v2845
      %v2847 = vrot.slane %v2846, 2
      %v2848 = vadd.f32 %v2846, %v2847
      %v2849 = vrot.slane %v2848, 1
      %v2850 = vadd.f32 %v2848, %v2849
      %v2851 = vsel %vm1380, %v2799, 0.0
      %v2852 = vrot.slane %v2851, 4
      %v2853 = vadd.f32 %v2851, %v2852
      %v2854 = vrot.slane %v2853, 2
      %v2855 = vadd.f32 %v2853, %v2854
      %v2856 = vrot.slane %v2855, 1
      %v2857 = vadd.f32 %v2855, %v2856
      %v2858 = vsel %vm1380, %v2800, 0.0
      %v2859 = vrot.slane %v2858, 4
      %v2860 = vadd.f32 %v2858, %v2859
      %v2861 = vrot.slane %v2860, 2
      %v2862 = vadd.f32 %v2860, %v2861
      %v2863 = vrot.slane %v2862, 1
      %v2864 = vadd.f32 %v2862, %v2863
      %v2865 = vsel %vm1380, %v2801, 0.0
      %v2866 = vrot.slane %v2865, 4
      %v2867 = vadd.f32 %v2865, %v2866
      %v2868 = vrot.slane %v2867, 2
      %v2869 = vadd.f32 %v2867, %v2868
      %v2870 = vrot.slane %v2869, 1
      %v2871 = vadd.f32 %v2869, %v2870
      %v2872 = vsel %vm1380, %v2802, 0.0
      %v2873 = vrot.slane %v2872, 4
      %v2874 = vadd.f32 %v2872, %v2873
      %v2875 = vrot.slane %v2874, 2
      %v2876 = vadd.f32 %v2874, %v2875
      %v2877 = vrot.slane %v2876, 1
      %v2878 = vadd.f32 %v2876, %v2877
      %v2879 = vsel %vm1380, %v2803, 0.0
      %v2880 = vrot.slane %v2879, 4
      %v2881 = vadd.f32 %v2879, %v2880
      %v2882 = vrot.slane %v2881, 2
      %v2883 = vadd.f32 %v2881, %v2882
      %v2884 = vrot.slane %v2883, 1
      %v2885 = vadd.f32 %v2883, %v2884
      %v2886 = vsel %vm1380, %v2804, 0.0
      %v2887 = vrot.slane %v2886, 4
      %v2888 = vadd.f32 %v2886, %v2887
      %v2889 = vrot.slane %v2888, 2
      %v2890 = vadd.f32 %v2888, %v2889
      %v2891 = vrot.slane %v2890, 1
      %v2892 = vadd.f32 %v2890, %v2891
      %v2893 = vsel %vm1380, %v2805, 0.0
      %v2894 = vrot.slane %v2893, 4
      %v2895 = vadd.f32 %v2893, %v2894
      %v2896 = vrot.slane %v2895, 2
      %v2897 = vadd.f32 %v2895, %v2896
      %v2898 = vrot.slane %v2897, 1
      %v2899 = vadd.f32 %v2897, %v2898
      %v2900 = vsel %vm1380, %v2806, 0.0
      %v2901 = vrot.slane %v2900, 4
      %v2902 = vadd.f32 %v2900, %v2901
      %v2903 = vrot.slane %v2902, 2
      %v2904 = vadd.f32 %v2902, %v2903
      %v2905 = vrot.slane %v2904, 1
      %v2906 = vadd.f32 %v2904, %v2905
      %v2907 = vsel %vm1380, %v2807, 0.0
      %v2908 = vrot.slane %v2907, 4
      %v2909 = vadd.f32 %v2907, %v2908
      %v2910 = vrot.slane %v2909, 2
      %v2911 = vadd.f32 %v2909, %v2910
      %v2912 = vrot.slane %v2911, 1
      %v2913 = vadd.f32 %v2911, %v2912
      %v2914 = vsel %vm1380, %v2808, 0.0
      %v2915 = vrot.slane %v2914, 4
      %v2916 = vadd.f32 %v2914, %v2915
      %v2917 = vrot.slane %v2916, 2
      %v2918 = vadd.f32 %v2916, %v2917
      %v2919 = vrot.slane %v2918, 1
      %v2920 = vadd.f32 %v2918, %v2919
      %vm2937 = vcmask 1041409
      %v2938 = vsel %vm2937, %v2822, %v2815
      %vm2939 = vcmask 1042434
      %v2940 = vsel %vm2939, %v2829, %v2938
      %vm2941 = vcmask 1043459
      %v2942 = vsel %vm2941, %v2836, %v2940
      %vm2943 = vcmask 1044484
      %v2944 = vsel %vm2943, %v2843, %v2942
      %vm2945 = vcmask 1045509
      %v2946 = vsel %vm2945, %v2850, %v2944
      %vm2947 = vcmask 1046534
      %v2948 = vsel %vm2947, %v2857, %v2946
      %vm2949 = vcmask 1047559
      %v2950 = vsel %vm2949, %v2864, %v2948
      %v2951 = vsel %vm2937, %v2878, %v2871
      %v2952 = vsel %vm2939, %v2885, %v2951
      %v2953 = vsel %vm2941, %v2892, %v2952
      %v2954 = vsel %vm2943, %v2899, %v2953
      %v2955 = vsel %vm2945, %v2906, %v2954
      %v2956 = vsel %vm2947, %v2913, %v2955
      %v2957 = vsel %vm2949, %v2920, %v2956
      %v2958 = vsel %vm1380, %v2950, 0
      %v2960 = vsel %vm1380, %v2957, 0
      %2962 = vmatprep.subr.mxu0 0.0
      %2963 = vmatpush1.msra.mxu0 %v1377
      %2964 = vmatprep.subr.mxu0 0.0
      %2965 = vmatpush1.msra.mxu0 %v1378
      %2966 = vmatprep.subr.mxu0 0.0
      %2967 = vmatpush1.msra.mxu0 0.0
      %2968 = vmatprep.subr.mxu0 0.0
      %2969 = vmatpush1.msra.mxu0 0.0
      %2970 = vmatprep.subr.mxu0 0.0
      %2971 = vmatpush1.msra.mxu0 0.0
      %2972 = vmatprep.subr.mxu0 0.0
      %2973 = vmatpush1.msra.mxu0 0.0
      %2974 = vmatprep.subr.mxu0 0.0
      %2975 = vmatpush1.msra.mxu0 0.0
      %2976 = vmatprep.subr.mxu0 0.0
      %2977 = vmatpush1.msra.mxu0 0.0
      %2978 = vmatprep.subr.mxu0 0.0
      %2979 = vmatpush1.msra.mxu0 0.0
      %2980 = vmatprep.subr.mxu0 0.0
      %2981 = vmatpush1.msra.mxu0 0.0
      %2982 = vmatprep.subr.mxu0 0.0
      %2983 = vmatpush1.msra.mxu0 0.0
      %2984 = vmatprep.subr.mxu0 0.0
      %2985 = vmatpush1.msra.mxu0 0.0
      %2986 = vmatprep.subr.mxu0 0.0
      %2987 = vmatpush1.msra.mxu0 0.0
      %2988 = vmatprep.subr.mxu0 0.0
      %2989 = vmatpush1.msra.mxu0 0.0
      %2990 = vmatprep.subr.mxu0 0.0
      %2991 = vmatpush1.msra.mxu0 0.0
      %2992 = vmatprep.subr.mxu0 0.0
      %2993 = vmatpush1.msra.mxu0 0.0
      %2994 = vmatprep.subr.mxu0 0.0
      %2995 = vmatpush1.msra.mxu0 0.0
      %2996 = vmatprep.subr.mxu0 0.0
      %2997 = vmatpush1.msra.mxu0 0.0
      %2998 = vmatprep.subr.mxu0 0.0
      %2999 = vmatpush1.msra.mxu0 0.0
      %3000 = vmatprep.subr.mxu0 0.0
      %3001 = vmatpush1.msra.mxu0 0.0
      %3002 = vmatprep.subr.mxu0 0.0
      %3003 = vmatpush1.msra.mxu0 0.0
      %3004 = vmatprep.subr.mxu0 0.0
      %3005 = vmatpush1.msra.mxu0 0.0
      %3006 = vmatprep.subr.mxu0 0.0
      %3007 = vmatpush1.msra.mxu0 0.0
      %3008 = vmatprep.subr.mxu0 0.0
      %3009 = vmatpush1.msra.mxu0 0.0
      %3010 = vmatprep.subr.mxu0 0.0
      %3011 = vmatpush1.msra.mxu0 0.0
      %3012 = vmatprep.subr.mxu0 0.0
      %3013 = vmatpush1.msra.mxu0 0.0
      %3014 = vmatprep.subr.mxu0 0.0
      %3015 = vmatpush1.msra.mxu0 0.0
      %3016 = vmatprep.subr.mxu0 0.0
      %3017 = vmatpush1.msra.mxu0 0.0
      %3018 = vmatprep.subr.mxu0 0.0
      %3019 = vmatpush1.msra.mxu0 0.0
      %3020 = vmatprep.subr.mxu0 0.0
      %3021 = vmatpush1.msra.mxu0 0.0
      %3022 = vmatprep.subr.mxu0 0.0
      %3023 = vmatpush1.msra.mxu0 0.0
      %3024 = vmatprep.subr.mxu0 0.0
      %3025 = vmatpush1.msra.mxu0 0.0
      %3026 = vmatprep.mubr.f32.mxu0 0.0
      %3027 = vmatmul.mubr.f32.gmra.mrb[0].mxu0 %v2958
      %v3028 = vpop.f32.mrb[0].mxu0
      %v3029 = vadd.f32 0.0, %v3028
      %v3030 = vpop.f32.mrb[0].mxu0
      %3031 = vmatprep.mubr.f32.mxu0 0.0
      %3032 = vmatmul.mubr.f32.gmra.mrb[0].mxu0 %v2960
      %v3033 = vpop.f32.mrb[0].mxu0
      %v3034 = vadd.f32 0.0, %v3033
      %v3035 = vpop.f32.mrb[0].mxu0
      %3036 = vdwg.mxu0
      %v3053 = vsel %vm2937, %v2694, %v2687
      %v3054 = vsel %vm2939, %v2701, %v3053
      %v3055 = vsel %vm2941, %v2708, %v3054
      %v3056 = vsel %vm2943, %v2715, %v3055
      %v3057 = vsel %vm2945, %v2722, %v3056
      %v3058 = vsel %vm2947, %v2729, %v3057
      %v3059 = vsel %vm2949, %v2736, %v3058
      %v3060 = vsel %vm2937, %v2750, %v2743
      %v3061 = vsel %vm2939, %v2757, %v3060
      %v3062 = vsel %vm2941, %v2764, %v3061
      %v3063 = vsel %vm2943, %v2771, %v3062
      %v3064 = vsel %vm2945, %v2778, %v3063
      %v3065 = vsel %vm2947, %v2785, %v3064
      %v3066 = vsel %vm2949, %v2792, %v3065
      %v3067 = vsel %vm1380, %v3059, 0
      %v3069 = vsel %vm1380, %v3066, 0
      %3071 = vmatprep.subr.mxu0 0.0
      %3072 = vmatpush1.msra.mxu0 %v1375
      %3073 = vmatprep.subr.mxu0 0.0
      %3074 = vmatpush1.msra.mxu0 %v1376
      %3075 = vmatprep.subr.mxu0 0.0
      %3076 = vmatpush1.msra.mxu0 0.0
      %3077 = vmatprep.subr.mxu0 0.0
      %3078 = vmatpush1.msra.mxu0 0.0
      %3079 = vmatprep.subr.mxu0 0.0
      %3080 = vmatpush1.msra.mxu0 0.0
      %3081 = vmatprep.subr.mxu0 0.0
      %3082 = vmatpush1.msra.mxu0 0.0
      %3083 = vmatprep.subr.mxu0 0.0
      %3084 = vmatpush1.msra.mxu0 0.0
      %3085 = vmatprep.subr.mxu0 0.0
      %3086 = vmatpush1.msra.mxu0 0.0
      %3087 = vmatprep.subr.mxu0 0.0
      %3088 = vmatpush1.msra.mxu0 0.0
      %3089 = vmatprep.subr.mxu0 0.0
      %3090 = vmatpush1.msra.mxu0 0.0
      %3091 = vmatprep.subr.mxu0 0.0
      %3092 = vmatpush1.msra.mxu0 0.0
      %3093 = vmatprep.subr.mxu0 0.0
      %3094 = vmatpush1.msra.mxu0 0.0
      %3095 = vmatprep.subr.mxu0 0.0
      %3096 = vmatpush1.msra.mxu0 0.0
      %3097 = vmatprep.subr.mxu0 0.0
      %3098 = vmatpush1.msra.mxu0 0.0
      %3099 = vmatprep.subr.mxu0 0.0
      %3100 = vmatpush1.msra.mxu0 0.0
      %3101 = vmatprep.subr.mxu0 0.0
      %3102 = vmatpush1.msra.mxu0 0.0
      %3103 = vmatprep.subr.mxu0 0.0
      %3104 = vmatpush1.msra.mxu0 0.0
      %3105 = vmatprep.subr.mxu0 0.0
      %3106 = vmatpush1.msra.mxu0 0.0
      %3107 = vmatprep.subr.mxu0 0.0
      %3108 = vmatpush1.msra.mxu0 0.0
      %3109 = vmatprep.subr.mxu0 0.0
      %3110 = vmatpush1.msra.mxu0 0.0
      %3111 = vmatprep.subr.mxu0 0.0
      %3112 = vmatpush1.msra.mxu0 0.0
      %3113 = vmatprep.subr.mxu0 0.0
      %3114 = vmatpush1.msra.mxu0 0.0
      %3115 = vmatprep.subr.mxu0 0.0
      %3116 = vmatpush1.msra.mxu0 0.0
      %3117 = vmatprep.subr.mxu0 0.0
      %3118 = vmatpush1.msra.mxu0 0.0
      %3119 = vmatprep.subr.mxu0 0.0
      %3120 = vmatpush1.msra.mxu0 0.0
      %3121 = vmatprep.subr.mxu0 0.0
      %3122 = vmatpush1.msra.mxu0 0.0
      %3123 = vmatprep.subr.mxu0 0.0
      %3124 = vmatpush1.msra.mxu0 0.0
      %3125 = vmatprep.subr.mxu0 0.0
      %3126 = vmatpush1.msra.mxu0 0.0
      %3127 = vmatprep.subr.mxu0 0.0
      %3128 = vmatpush1.msra.mxu0 0.0
      %3129 = vmatprep.subr.mxu0 0.0
      %3130 = vmatpush1.msra.mxu0 0.0
      %3131 = vmatprep.subr.mxu0 0.0
      %3132 = vmatpush1.msra.mxu0 0.0
      %3133 = vmatprep.subr.mxu0 0.0
      %3134 = vmatpush1.msra.mxu0 0.0
      %3135 = vmatprep.mubr.f32.mxu0 0.0
      %3136 = vmatmul.mubr.f32.gmra.mrb[0].mxu0 %v3067
      %v3137 = vpop.f32.mrb[0].mxu0
      %v3138 = vadd.f32 %v3029, %v3137
      %v3139 = vpop.f32.mrb[0].mxu0
      %3140 = vmatprep.mubr.f32.mxu0 0.0
      %3141 = vmatmul.mubr.f32.gmra.mrb[0].mxu0 %v3069
      %v3142 = vpop.f32.mrb[0].mxu0
      %v3143 = vadd.f32 %v3034, %v3142
      %v3144 = vpop.f32.mrb[0].mxu0
      %3145 = vdwg.mxu0
      %v3147 = vlaneseq
      %v3148 = vshrl.u32 %v3147, 7
      %v3149 = vsub.s32 0, %v3148
      %v3150 = vrot.slane %v1379, %v3149
      %v3152 = vadd.f32 %v3138, %v3150
      %v3153 = vadd.f32 %v3143, %v3150
      %v3154 = vmax.f32 %v3152, 0.0
      %v3155 = vmax.f32 %v3153, 0.0
      %3156 = vst.msk [vmem:[%s469] sm:$0xff] %vm1380, %v3154
      %3157 = vst.msk [vmem:[%s469 + $0x8] sm:$0xff] %vm1380, %v3155
      %s3158 = smul.u32 2, %s26
      %p3159 = scmp.lt.s32.totalorder %s25, 1
      %s3160 = scalar_select %p3159, %s25, 1
      %p3161 = scmp.lt.s32.totalorder %s3158, 1
      %s3162 = scalar_select %p3161, %s3158, 1
      %s3163 = smul.addr %s3160, 2
      %s3164 = sadd.s32 %s3162, %s3163
      %s3165 = smul.addr %s3164, 8
      %s3166 = scalar_lea.vmem %s10, %s3165
      // Predicated region
      $region61: #{building_block_forward.2} parent=59 // pred_check
        %p3167 = pneg %p284
      $region62: #{building_block_forward.2} parent=59 // pred_check_branch
        %3169 = sbr.rel (%p3167) target = $region64
      $region63: #{building_block_forward.2} parent=59 // pred_region
        %s3170 = smul.u32 2, %s26
      $region64: #{building_block_forward.2} parent=59 // pred_fallthru
        _
    $region60: #{building_block_forward.2} parent=5 // pred_fallthru
      _
    %p3171 = scmp.le.s32.totalorder 2, %s16
    // Predicated region
    $region65: #{building_block_forward.2} parent=5 // pred_check
      %p3172 = pneg %p3171
    $region66: #{building_block_forward.2} parent=5 // pred_check_branch
      %3174 = sbr.rel (%p3172) target = $region68
    $region67: #{building_block_forward.2} parent=5 // pred_region
      %s3175 = ssub.s32 %s16, 2
      // Predicated region
      $region69: #{building_block_forward.2} parent=67 // pred_check
        %p3176 = pneg %p290
      $region70: #{building_block_forward.2} parent=67 // pred_check_branch
        %3178 = sbr.rel (%p3176) target = $region72
      $region71: #{building_block_forward.2} parent=67 // pred_region
        %s3179 = smul.u32 2, %s28
        %p3180 = scmp.lt.s32.totalorder %s27, 1
        %s3181 = scalar_select %p3180, %s27, 1
        %p3182 = scmp.lt.s32.totalorder %s3179, 1
        %s3183 = scalar_select %p3182, %s3179, 1
        %s3184 = smul.addr %s3181, 2
        %s3185 = sadd.s32 %s3183, %s3184
        %s3186 = smul.addr %s3185, 8
        %s3187 = scalar_lea.vmem %s10, %s3186
      $region72: #{building_block_forward.2} parent=67 // pred_fallthru
        _
    $region68: #{building_block_forward.2} parent=5 // pred_fallthru
      _
  $region6: #{building_block_forward.2} parent=0 // loop_footer
    %s20 = sadd.s32 1, %s16
  $region7: #{building_block_forward.2} parent=0 // loop_footer_branch
    %15 = sbr.rel target = $region3
  $region8: #{building_block_forward.2} parent=0 // loop_exit
    _

// kernel: building_block_forward.3
$region0: #{building_block_forward.3}
  #allocation0 [shape = 'u32[]', space=smem, size = 0x4, offset = 0x4, fixed_abs, tag = 'smem constant byte address 0x4 - core index']
  #allocation1 [shape = 'u32[144,128]{1,0:T(1,128)}', space=vmem, size = 0x12000, scoped, tag = 'internal scratch']
  %s0 = inlined_call_operand.vmem [shape: f32[2,16,3], index: 0, kind: input, shape index: {}]
  %s1 = inlined_call_operand.vmem [shape: f32[2,16,8,3], index: 1, kind: input, shape index: {}]
  %s2 = inlined_call_operand.vmem [shape: f32[2,16,8,16], index: 2, kind: input, shape index: {}]
  %s3 = inlined_call_operand.vmem [shape: f32[1,16], index: 3, kind: input, shape index: {}]
  %s4 = inlined_call_operand.vmem [shape: f32[3,16], index: 4, kind: input, shape index: {}]
  %s5 = inlined_call_operand.vmem [shape: f32[3,16], index: 5, kind: input, shape index: {}]
  %s6 = inlined_call_operand.vmem [shape: f32[1,16], index: 6, kind: input, shape index: {}]
  %s7 = inlined_call_operand.vmem [shape: f32[16,16], index: 7, kind: input, shape index: {}]
  %s8 = inlined_call_operand.vmem [shape: f32[1,16], index: 8, kind: input, shape index: {}]
  %s9 = inlined_call_operand.vmem [shape: f32[2,2,16,16], index: 9, kind: input, shape index: {}]
  %s10 = inlined_call_operand.vmem [shape: f32[2,16,32], index: 10, kind: input, shape index: {}]
  %s11 = inlined_call_operand.vmem [shape: f32[1,32], index: 11, kind: input, shape index: {}]
  %s12 = inlined_call_operand.hbm [shape: f32[2,16,32], index: 12, kind: output, shape index: {}]
  %s13 = sld [smem:[#allocation0]]
  $region81: #{building_block_forward.3} parent=0
    _
  %s15 = ssub.s32 1, %s13
  %s16 = scalar_select 0, %s15, %s13
  $region1: #{building_block_forward.3} parent=0
    #allocation2 [shape = 'u8[16384]{0}', space=vmem, size = 0x4000, scoped, tag = 'output window, operand 0']
    #allocation3 [shape = 's32[2]{0}', space=sflag, size = 0x8, scoped, tag = 'scoped memory for building_block_forward.3']
    %17 = vsyncpa [#allocation3], 0
    %s18 = scalar_lea.sflag [#allocation3], 1
    %19 = vsyncpa %s18, 0
    loop: start=0, step=1, limit=4
    $region2: #{building_block_forward.3} parent=1 // loop_pre_header
      _
    $region3: #{building_block_forward.3} parent=1 // loop_header
      %s21 = sphi 0, %s25
      %p22 = scmp.ge.s32.totalorder %s21, 4
      %s28 = sphi 0, %s40
      %s29 = sphi 0, %s36
      %s30 = sphi 0, %s28
      %s31 = sphi 0, %s29
      %s32 = sphi 0, %s30
      %s33 = sphi 0, %s31
      %s45 = sphi 0, %s47
      %s48 = sphi 0, %s45
      %s49 = sphi 0, %s48
      %s65 = sphi 0, %s49
      %s73 = sphi 0, %s75
      %s76 = sphi 0, %s73
      %s77 = sphi 0, %s76
      %s93 = sphi 0, %s77
      %s101 = sphi 0, %s103
      %s104 = sphi 0, %s101
      %s105 = sphi 0, %s104
      %s121 = sphi 0, %s105
      %s125 = sphi 0, %s125
      %s127 = sphi 0, %s125
      %s128 = sphi 0, %s127
      %s142 = sphi 0, %s128
      %s146 = sphi 0, %s146
      %s148 = sphi 0, %s146
      %s149 = sphi 0, %s148
      %s163 = sphi 0, %s149
      %s167 = sphi 0, %s167
      %s169 = sphi 0, %s167
      %s170 = sphi 0, %s169
      %s184 = sphi 0, %s170
      %s188 = sphi 0, %s188
      %s190 = sphi 0, %s188
      %s191 = sphi 0, %s190
      %s205 = sphi 0, %s191
      %s209 = sphi 0, %s209
      %s211 = sphi 0, %s209
      %s212 = sphi 0, %s211
      %s226 = sphi 0, %s212
      %s230 = sphi 0, %s230
      %s232 = sphi 0, %s230
      %s233 = sphi 0, %s232
      %s247 = sphi 0, %s233
      %s251 = sphi 0, %s251
      %s253 = sphi 0, %s251
      %s254 = sphi 0, %s253
      %s268 = sphi 0, %s254
      %s272 = sphi 0, %s272
      %s274 = sphi 0, %s272
      %s275 = sphi 0, %s274
      %s289 = sphi 0, %s275
      %s293 = sphi 0, %s293
      %s295 = sphi 0, %s293
      %s296 = sphi 0, %s295
      %s310 = sphi 0, %s296
      %s318 = sphi 0, %s320
      %s321 = sphi 0, %s318
      %s322 = sphi 0, %s321
      %s338 = sphi 0, %s322
    $region4: #{building_block_forward.3} parent=1 // loop_header_branch
      %24 = sbr.rel (%p22) target = $region8
    $region5: #{building_block_forward.3} parent=1 // loop_body
      %s26 = ssub.s32 %s21, 1
      %s27 = ssub.s32 %s21, 2
      %s34 = sadd.s32 1, %s29
      %p35 = scmp.ge.s32.totalorder %s34, 1
      %s36 = scalar_select %p35, 0, %s34
      %s37 = sadd.s32 1, %s28
      %s38 = scalar_select %p35, %s37, %s28
      %p39 = scmp.ge.s32.totalorder %s38, 2
      %s40 = scalar_select %p39, 0, %s38
      %s41 = ssub.s32 %s28, %s40
      %s42 = ssub.s32 %s29, %s36
      %s43 = sor.u32 %s41, %s42
      %p44 = scmp.eq.s32.totalorder %s43, 0
      %s46 = sadd.s32 %s45, 1
      %s47 = scalar_select %p44, %s45, %s46
      %p50 = pneg %p44
      %p51 = scmp.eq.s32.totalorder %s21, 1
      %p52 = por %p50, %p51
      %p53 = scmp.ne.s32.totalorder %s45, %s48
      %p54 = scmp.eq.s32.totalorder %s21, 0
      %p55 = por %p53, %p54
      %p56 = scmp.ne.s32.totalorder %s45, %s48
      %p57 = scmp.eq.s32.totalorder %s26, 1
      %p58 = por %p56, %p57
      %p59 = scmp.ne.s32.totalorder %s48, %s49
      %p60 = scmp.eq.s32.totalorder %s26, 0
      %p61 = por %p59, %p60
      %p62 = scmp.ne.s32.totalorder %s48, %s49
      %p63 = scmp.eq.s32.totalorder %s27, 1
      %p64 = por %p62, %p63
      %p66 = scmp.ne.s32.totalorder %s49, %s65
      %p67 = scmp.eq.s32.totalorder %s27, 0
      %p68 = por %p66, %p67
      %s69 = ssub.s32 %s28, %s40
      %s70 = ssub.s32 %s29, %s36
      %s71 = sor.u32 %s69, %s70
      %p72 = scmp.eq.s32.totalorder %s71, 0
      %s74 = sadd.s32 %s73, 1
      %s75 = scalar_select %p72, %s73, %s74
      %p78 = pneg %p72
      %p79 = scmp.eq.s32.totalorder %s21, 1
      %p80 = por %p78, %p79
      %p81 = scmp.ne.s32.totalorder %s73, %s76
      %p82 = scmp.eq.s32.totalorder %s21, 0
      %p83 = por %p81, %p82
      %p84 = scmp.ne.s32.totalorder %s73, %s76
      %p85 = scmp.eq.s32.totalorder %s26, 1
      %p86 = por %p84, %p85
      %p87 = scmp.ne.s32.totalorder %s76, %s77
      %p88 = scmp.eq.s32.totalorder %s26, 0
      %p89 = por %p87, %p88
      %p90 = scmp.ne.s32.totalorder %s76, %s77
      %p91 = scmp.eq.s32.totalorder %s27, 1
      %p92 = por %p90, %p91
      %p94 = scmp.ne.s32.totalorder %s77, %s93
      %p95 = scmp.eq.s32.totalorder %s27, 0
      %p96 = por %p94, %p95
      %s97 = ssub.s32 %s28, %s40
      %s98 = ssub.s32 %s29, %s36
      %s99 = sor.u32 %s97, %s98
      %p100 = scmp.eq.s32.totalorder %s99, 0
      %s102 = sadd.s32 %s101, 1
      %s103 = scalar_select %p100, %s101, %s102
      %p106 = pneg %p100
      %p107 = scmp.eq.s32.totalorder %s21, 1
      %p108 = por %p106, %p107
      %p109 = scmp.ne.s32.totalorder %s101, %s104
      %p110 = scmp.eq.s32.totalorder %s21, 0
      %p111 = por %p109, %p110
      %p112 = scmp.ne.s32.totalorder %s101, %s104
      %p113 = scmp.eq.s32.totalorder %s26, 1
      %p114 = por %p112, %p113
      %p115 = scmp.ne.s32.totalorder %s104, %s105
      %p116 = scmp.eq.s32.totalorder %s26, 0
      %p117 = por %p115, %p116
      %p118 = scmp.ne.s32.totalorder %s104, %s105
      %p119 = scmp.eq.s32.totalorder %s27, 1
      %p120 = por %p118, %p119
      %p122 = scmp.ne.s32.totalorder %s105, %s121
      %p123 = scmp.eq.s32.totalorder %s27, 0
      %p124 = por %p122, %p123
      %s126 = sadd.s32 %s125, 1
      %p129 = scmp.eq.s32.totalorder %s21, 1
      %p130 = scmp.ne.s32.totalorder %s125, %s127
      %p131 = scmp.eq.s32.totalorder %s21, 0
      %p132 = por %p130, %p131
      %p133 = scmp.ne.s32.totalorder %s125, %s127
      %p134 = scmp.eq.s32.totalorder %s26, 1
      %p135 = por %p133, %p134
      %p136 = scmp.ne.s32.totalorder %s127, %s128
      %p137 = scmp.eq.s32.totalorder %s26, 0
      %p138 = por %p136, %p137
      %p139 = scmp.ne.s32.totalorder %s127, %s128
      %p140 = scmp.eq.s32.totalorder %s27, 1
      %p141 = por %p139, %p140
      %p143 = scmp.ne.s32.totalorder %s128, %s142
      %p144 = scmp.eq.s32.totalorder %s27, 0
      %p145 = por %p143, %p144
      %s147 = sadd.s32 %s146, 1
      %p150 = scmp.eq.s32.totalorder %s21, 1
      %p151 = scmp.ne.s32.totalorder %s146, %s148
      %p152 = scmp.eq.s32.totalorder %s21, 0
      %p153 = por %p151, %p152
      %p154 = scmp.ne.s32.totalorder %s146, %s148
      %p155 = scmp.eq.s32.totalorder %s26, 1
      %p156 = por %p154, %p155
      %p157 = scmp.ne.s32.totalorder %s148, %s149
      %p158 = scmp.eq.s32.totalorder %s26, 0
      %p159 = por %p157, %p158
      %p160 = scmp.ne.s32.totalorder %s148, %s149
      %p161 = scmp.eq.s32.totalorder %s27, 1
      %p162 = por %p160, %p161
      %p164 = scmp.ne.s32.totalorder %s149, %s163
      %p165 = scmp.eq.s32.totalorder %s27, 0
      %p166 = por %p164, %p165
      %s168 = sadd.s32 %s167, 1
      %p171 = scmp.eq.s32.totalorder %s21, 1
      %p172 = scmp.ne.s32.totalorder %s167, %s169
      %p173 = scmp.eq.s32.totalorder %s21, 0
      %p174 = por %p172, %p173
      %p175 = scmp.ne.s32.totalorder %s167, %s169
      %p176 = scmp.eq.s32.totalorder %s26, 1
      %p177 = por %p175, %p176
      %p178 = scmp.ne.s32.totalorder %s169, %s170
      %p179 = scmp.eq.s32.totalorder %s26, 0
      %p180 = por %p178, %p179
      %p181 = scmp.ne.s32.totalorder %s169, %s170
      %p182 = scmp.eq.s32.totalorder %s27, 1
      %p183 = por %p181, %p182
      %p185 = scmp.ne.s32.totalorder %s170, %s184
      %p186 = scmp.eq.s32.totalorder %s27, 0
      %p187 = por %p185, %p186
      %s189 = sadd.s32 %s188, 1
      %p192 = scmp.eq.s32.totalorder %s21, 1
      %p193 = scmp.ne.s32.totalorder %s188, %s190
      %p194 = scmp.eq.s32.totalorder %s21, 0
      %p195 = por %p193, %p194
      %p196 = scmp.ne.s32.totalorder %s188, %s190
      %p197 = scmp.eq.s32.totalorder %s26, 1
      %p198 = por %p196, %p197
      %p199 = scmp.ne.s32.totalorder %s190, %s191
      %p200 = scmp.eq.s32.totalorder %s26, 0
      %p201 = por %p199, %p200
      %p202 = scmp.ne.s32.totalorder %s190, %s191
      %p203 = scmp.eq.s32.totalorder %s27, 1
      %p204 = por %p202, %p203
      %p206 = scmp.ne.s32.totalorder %s191, %s205
      %p207 = scmp.eq.s32.totalorder %s27, 0
      %p208 = por %p206, %p207
      %s210 = sadd.s32 %s209, 1
      %p213 = scmp.eq.s32.totalorder %s21, 1
      %p214 = scmp.ne.s32.totalorder %s209, %s211
      %p215 = scmp.eq.s32.totalorder %s21, 0
      %p216 = por %p214, %p215
      %p217 = scmp.ne.s32.totalorder %s209, %s211
      %p218 = scmp.eq.s32.totalorder %s26, 1
      %p219 = por %p217, %p218
      %p220 = scmp.ne.s32.totalorder %s211, %s212
      %p221 = scmp.eq.s32.totalorder %s26, 0
      %p222 = por %p220, %p221
      %p223 = scmp.ne.s32.totalorder %s211, %s212
      %p224 = scmp.eq.s32.totalorder %s27, 1
      %p225 = por %p223, %p224
      %p227 = scmp.ne.s32.totalorder %s212, %s226
      %p228 = scmp.eq.s32.totalorder %s27, 0
      %p229 = por %p227, %p228
      %s231 = sadd.s32 %s230, 1
      %p234 = scmp.eq.s32.totalorder %s21, 1
      %p235 = scmp.ne.s32.totalorder %s230, %s232
      %p236 = scmp.eq.s32.totalorder %s21, 0
      %p237 = por %p235, %p236
      %p238 = scmp.ne.s32.totalorder %s230, %s232
      %p239 = scmp.eq.s32.totalorder %s26, 1
      %p240 = por %p238, %p239
      %p241 = scmp.ne.s32.totalorder %s232, %s233
      %p242 = scmp.eq.s32.totalorder %s26, 0
      %p243 = por %p241, %p242
      %p244 = scmp.ne.s32.totalorder %s232, %s233
      %p245 = scmp.eq.s32.totalorder %s27, 1
      %p246 = por %p244, %p245
      %p248 = scmp.ne.s32.totalorder %s233, %s247
      %p249 = scmp.eq.s32.totalorder %s27, 0
      %p250 = por %p248, %p249
      %s252 = sadd.s32 %s251, 1
      %p255 = scmp.eq.s32.totalorder %s21, 1
      %p256 = scmp.ne.s32.totalorder %s251, %s253
      %p257 = scmp.eq.s32.totalorder %s21, 0
      %p258 = por %p256, %p257
      %p259 = scmp.ne.s32.totalorder %s251, %s253
      %p260 = scmp.eq.s32.totalorder %s26, 1
      %p261 = por %p259, %p260
      %p262 = scmp.ne.s32.totalorder %s253, %s254
      %p263 = scmp.eq.s32.totalorder %s26, 0
      %p264 = por %p262, %p263
      %p265 = scmp.ne.s32.totalorder %s253, %s254
      %p266 = scmp.eq.s32.totalorder %s27, 1
      %p267 = por %p265, %p266
      %p269 = scmp.ne.s32.totalorder %s254, %s268
      %p270 = scmp.eq.s32.totalorder %s27, 0
      %p271 = por %p269, %p270
      %s273 = sadd.s32 %s272, 1
      %p276 = scmp.eq.s32.totalorder %s21, 1
      %p277 = scmp.ne.s32.totalorder %s272, %s274
      %p278 = scmp.eq.s32.totalorder %s21, 0
      %p279 = por %p277, %p278
      %p280 = scmp.ne.s32.totalorder %s272, %s274
      %p281 = scmp.eq.s32.totalorder %s26, 1
      %p282 = por %p280, %p281
      %p283 = scmp.ne.s32.totalorder %s274, %s275
      %p284 = scmp.eq.s32.totalorder %s26, 0
      %p285 = por %p283, %p284
      %p286 = scmp.ne.s32.totalorder %s274, %s275
      %p287 = scmp.eq.s32.totalorder %s27, 1
      %p288 = por %p286, %p287
      %p290 = scmp.ne.s32.totalorder %s275, %s289
      %p291 = scmp.eq.s32.totalorder %s27, 0
      %p292 = por %p290, %p291
      %s294 = sadd.s32 %s293, 1
      %p297 = scmp.eq.s32.totalorder %s21, 1
      %p298 = scmp.ne.s32.totalorder %s293, %s295
      %p299 = scmp.eq.s32.totalorder %s21, 0
      %p300 = por %p298, %p299
      %p301 = scmp.ne.s32.totalorder %s293, %s295
      %p302 = scmp.eq.s32.totalorder %s26, 1
      %p303 = por %p301, %p302
      %p304 = scmp.ne.s32.totalorder %s295, %s296
      %p305 = scmp.eq.s32.totalorder %s26, 0
      %p306 = por %p304, %p305
      %p307 = scmp.ne.s32.totalorder %s295, %s296
      %p308 = scmp.eq.s32.totalorder %s27, 1
      %p309 = por %p307, %p308
      %p311 = scmp.ne.s32.totalorder %s296, %s310
      %p312 = scmp.eq.s32.totalorder %s27, 0
      %p313 = por %p311, %p312
      %s314 = ssub.s32 %s28, %s40
      %s315 = ssub.s32 %s29, %s36
      %s316 = sor.u32 %s314, %s315
      %p317 = scmp.eq.s32.totalorder %s316, 0
      %s319 = sadd.s32 %s318, 1
      %s320 = scalar_select %p317, %s318, %s319
      %p323 = pneg %p317
      %p324 = scmp.eq.s32.totalorder %s21, 1
      %p325 = por %p323, %p324
      %p326 = scmp.ne.s32.totalorder %s318, %s321
      %p327 = scmp.eq.s32.totalorder %s21, 0
      %p328 = por %p326, %p327
      %p329 = scmp.ne.s32.totalorder %s318, %s321
      %p330 = scmp.eq.s32.totalorder %s26, 1
      %p331 = por %p329, %p330
      %p332 = scmp.ne.s32.totalorder %s321, %s322
      %p333 = scmp.eq.s32.totalorder %s26, 0
      %p334 = por %p332, %p333
      %p335 = scmp.ne.s32.totalorder %s321, %s322
      %p336 = scmp.eq.s32.totalorder %s27, 1
      %p337 = por %p335, %p336
      %p339 = scmp.ne.s32.totalorder %s322, %s338
      %p340 = scmp.eq.s32.totalorder %s27, 0
      %p341 = por %p339, %p340
      %p342 = scmp.le.s32.totalorder 1, %s21
      %p343 = scmp.lt.s32.totalorder %s21, 3
      %p344 = pnand %p342, %p343
      %p345 = pneg %p344
      // Predicated region
      $region9: #{building_block_forward.3} parent=5 // pred_check
        _
      $region10: #{building_block_forward.3} parent=5 // pred_check_branch
        %347 = sbr.rel (%p344) target = $region12
      $region11: #{building_block_forward.3} parent=5 // pred_region
        %s348 = ssub.s32 %s21, 1
        // Predicated region
        $region13: #{building_block_forward.3} parent=11 // pred_check
          %p349 = pneg %p138
        $region14: #{building_block_forward.3} parent=11 // pred_check_branch
          %351 = sbr.rel (%p349) target = $region16
        $region15: #{building_block_forward.3} parent=11 // pred_region
          _
        $region16: #{building_block_forward.3} parent=11 // pred_fallthru
          _
        // Predicated region
        $region17: #{building_block_forward.3} parent=11 // pred_check
          %p352 = pneg %p159
        $region18: #{building_block_forward.3} parent=11 // pred_check_branch
          %354 = sbr.rel (%p352) target = $region20
        $region19: #{building_block_forward.3} parent=11 // pred_region
          _
        $region20: #{building_block_forward.3} parent=11 // pred_fallthru
          _
        // Predicated region
        $region21: #{building_block_forward.3} parent=11 // pred_check
          %p355 = pneg %p180
        $region22: #{building_block_forward.3} parent=11 // pred_check_branch
          %357 = sbr.rel (%p355) target = $region24
        $region23: #{building_block_forward.3} parent=11 // pred_region
          _
        $region24: #{building_block_forward.3} parent=11 // pred_fallthru
          _
        // Predicated region
        $region25: #{building_block_forward.3} parent=11 // pred_check
          %p358 = pneg %p201
        $region26: #{building_block_forward.3} parent=11 // pred_check_branch
          %360 = sbr.rel (%p358) target = $region28
        $region27: #{building_block_forward.3} parent=11 // pred_region
          _
        $region28: #{building_block_forward.3} parent=11 // pred_fallthru
          _
        // Predicated region
        $region29: #{building_block_forward.3} parent=11 // pred_check
          %p361 = pneg %p222
        $region30: #{building_block_forward.3} parent=11 // pred_check_branch
          %363 = sbr.rel (%p361) target = $region32
        $region31: #{building_block_forward.3} parent=11 // pred_region
          _
        $region32: #{building_block_forward.3} parent=11 // pred_fallthru
          _
        // Predicated region
        $region33: #{building_block_forward.3} parent=11 // pred_check
          %p364 = pneg %p243
        $region34: #{building_block_forward.3} parent=11 // pred_check_branch
          %366 = sbr.rel (%p364) target = $region36
        $region35: #{building_block_forward.3} parent=11 // pred_region
          _
        $region36: #{building_block_forward.3} parent=11 // pred_fallthru
          _
        // Predicated region
        $region37: #{building_block_forward.3} parent=11 // pred_check
          %p367 = pneg %p264
        $region38: #{building_block_forward.3} parent=11 // pred_check_branch
          %369 = sbr.rel (%p367) target = $region40
        $region39: #{building_block_forward.3} parent=11 // pred_region
          _
        $region40: #{building_block_forward.3} parent=11 // pred_fallthru
          _
        // Predicated region
        $region41: #{building_block_forward.3} parent=11 // pred_check
          %p370 = pneg %p285
        $region42: #{building_block_forward.3} parent=11 // pred_check_branch
          %372 = sbr.rel (%p370) target = $region44
        $region43: #{building_block_forward.3} parent=11 // pred_region
          _
        $region44: #{building_block_forward.3} parent=11 // pred_fallthru
          _
        // Predicated region
        $region45: #{building_block_forward.3} parent=11 // pred_check
          %p373 = pneg %p306
        $region46: #{building_block_forward.3} parent=11 // pred_check_branch
          %375 = sbr.rel (%p373) target = $region48
        $region47: #{building_block_forward.3} parent=11 // pred_region
          _
        $region48: #{building_block_forward.3} parent=11 // pred_fallthru
          _
      $region12: #{building_block_forward.3} parent=5 // pred_fallthru
        _
      %p376 = scmp.lt.s32.totalorder %s21, 2
      // Predicated region
      $region49: #{building_block_forward.3} parent=5 // pred_check
        %p377 = pneg %p376
      $region50: #{building_block_forward.3} parent=5 // pred_check_branch
        %379 = sbr.rel (%p377) target = $region52
      $region51: #{building_block_forward.3} parent=5 // pred_region
        // Predicated region
        $region53: #{building_block_forward.3} parent=51 // pred_check
          %p380 = pneg %p55
        $region54: #{building_block_forward.3} parent=51 // pred_check_branch
          %382 = sbr.rel (%p380) target = $region56
        $region55: #{building_block_forward.3} parent=51 // pred_region
          %s383 = smul.u32 2, %s29
          %p384 = scmp.lt.s32.totalorder %s28, 1
          %s385 = scalar_select %p384, %s28, 1
          %p386 = scmp.lt.s32.totalorder %s383, 1
          %s387 = scalar_select %p386, %s383, 1
          %s388 = smul.addr %s385, 2
          %s389 = sadd.s32 %s387, %s388
          %s390 = smul.addr %s389, 8
          %s391 = scalar_lea.vmem %s0, %s390
          %s392 = smul.u32 2, %s29
        $region56: #{building_block_forward.3} parent=51 // pred_fallthru
          _
        // Predicated region
        $region57: #{building_block_forward.3} parent=51 // pred_check
          %p393 = pneg %p83
        $region58: #{building_block_forward.3} parent=51 // pred_check_branch
          %395 = sbr.rel (%p393) target = $region60
        $region59: #{building_block_forward.3} parent=51 // pred_region
          %s396 = smul.u32 16, %s29
          %p397 = scmp.lt.s32.totalorder %s28, 1
          %s398 = scalar_select %p397, %s28, 1
          %p399 = scmp.lt.s32.totalorder %s396, 15
          %s400 = scalar_select %p399, %s396, 15
          %s401 = smul.addr %s398, 16
          %s402 = sadd.s32 %s400, %s401
          %s403 = smul.addr %s402, 8
          %s404 = scalar_lea.vmem %s1, %s403
          %s405 = smul.u32 16, %s29
        $region60: #{building_block_forward.3} parent=51 // pred_fallthru
          _
        // Predicated region
        $region61: #{building_block_forward.3} parent=51 // pred_check
          %p406 = pneg %p111
        $region62: #{building_block_forward.3} parent=51 // pred_check_branch
          %408 = sbr.rel (%p406) target = $region64
        $region63: #{building_block_forward.3} parent=51 // pred_region
          %s409 = smul.u32 16, %s29
          %p410 = scmp.lt.s32.totalorder %s28, 1
          %s411 = scalar_select %p410, %s28, 1
          %p412 = scmp.lt.s32.totalorder %s409, 15
          %s413 = scalar_select %p412, %s409, 15
          %s414 = smul.addr %s411, 16
          %s415 = sadd.s32 %s413, %s414
          %s416 = smul.addr %s415, 8
          %s417 = scalar_lea.vmem %s2, %s416
          %s418 = smul.u32 16, %s29
        $region64: #{building_block_forward.3} parent=51 // pred_fallthru
          _
      $region52: #{building_block_forward.3} parent=5 // pred_fallthru
        _
      %p419 = scmp.le.s32.totalorder 1, %s21
      %p420 = scmp.lt.s32.totalorder %s21, 3
      %p421 = pnand %p419, %p420
      %p422 = pneg %p421
      // Predicated region
      $region65: #{building_block_forward.3} parent=5 // pred_check
        _
      $region66: #{building_block_forward.3} parent=5 // pred_check_branch
        %424 = sbr.rel (%p421) target = $region68
      $region67: #{building_block_forward.3} parent=5 // pred_region
        %s425 = ssub.s32 %s21, 1
        %s426 = smul.u32 2, %s31
        %p427 = scmp.lt.s32.totalorder %s30, 1
        %s428 = scalar_select %p427, %s30, 1
        %p429 = scmp.lt.s32.totalorder %s426, 1
        %s430 = scalar_select %p429, %s426, 1
        %s431 = smul.addr %s428, 2
        %s432 = sadd.s32 %s430, %s431
        %s433 = smul.addr %s432, 8
        %s434 = scalar_lea.vmem %s0, %s433
        %p435 = pneg %p61
        %p436 = pneg %p58
        %s437 = smul.u32 16, %s31
        %p438 = scmp.lt.s32.totalorder %s30, 1
        %s439 = scalar_select %p438, %s30, 1
        %p440 = scmp.lt.s32.totalorder %s437, 15
        %s441 = scalar_select %p440, %s437, 15
        %s442 = smul.addr %s439, 16
        %s443 = sadd.s32 %s441, %s442
        %s444 = smul.addr %s443, 8
        %s445 = scalar_lea.vmem %s1, %s444
        %p446 = pneg %p89
        %p447 = pneg %p86
        %s448 = smul.u32 16, %s31
        %p449 = scmp.lt.s32.totalorder %s30, 1
        %s450 = scalar_select %p449, %s30, 1
        %p451 = scmp.lt.s32.totalorder %s448, 15
        %s452 = scalar_select %p451, %s448, 15
        %s453 = smul.addr %s450, 16
        %s454 = sadd.s32 %s452, %s453
        %s455 = smul.addr %s454, 8
        %s456 = scalar_lea.vmem %s2, %s455
        %p457 = pneg %p117
        %p458 = pneg %p114
        %p459 = pneg %p138
        %p460 = pneg %p135
        %p461 = pneg %p159
        %p462 = pneg %p156
        %p463 = pneg %p180
        %p464 = pneg %p177
        %p465 = pneg %p201
        %p466 = pneg %p198
        %p467 = pneg %p222
        %p468 = pneg %p219
        %p469 = pneg %p243
        %p470 = pneg %p240
        %p471 = pneg %p264
        %p472 = pneg %p261
        %p473 = pneg %p285
        %p474 = pneg %p282
        %p475 = pneg %p306
        %p476 = pneg %p303
        %p477 = pneg %p334
        %p478 = pneg %p331
        %s479 = sand.u32 %s321, 1
        %s480 = scalar_lea.sflag [#allocation3], %s479
        %s481 = sand.u32 %s321, 1
        %s482 = smul.addr %s481, 16
        %s483 = scalar_lea.vmem [#allocation2], %s482
        %s484 = smul.u32 2, %s31
        %p485 = scmp.lt.s32.totalorder %s30, 1
        %s486 = scalar_select %p485, %s30, 1
        %p487 = scmp.lt.s32.totalorder %s484, 1
        %s488 = scalar_select %p487, %s484, 1
        %s489 = smul.addr %s486, 2
        %s490 = sadd.s32 %s488, %s489
        %s491 = smul.addr %s490, 8
        %s492 = scalar_lea.vmem %s0, %s491
        %s493 = smul.u32 2, %s31
        %s494 = smul.u32 16, %s31
        %p495 = scmp.lt.s32.totalorder %s30, 1
        %s496 = scalar_select %p495, %s30, 1
        %p497 = scmp.lt.s32.totalorder %s494, 15
        %s498 = scalar_select %p497, %s494, 15
        %s499 = smul.addr %s496, 16
        %s500 = sadd.s32 %s498, %s499
        %s501 = smul.addr %s500, 8
        %s502 = scalar_lea.vmem %s1, %s501
        %s503 = smul.u32 16, %s31
        %s504 = smul.u32 16, %s31
        %p505 = scmp.lt.s32.totalorder %s30, 1
        %s506 = scalar_select %p505, %s30, 1
        %p507 = scmp.lt.s32.totalorder %s504, 15
        %s508 = scalar_select %p507, %s504, 15
        %s509 = smul.addr %s506, 16
        %s510 = sadd.s32 %s508, %s509
        %s511 = smul.addr %s510, 8
        %s512 = scalar_lea.vmem %s2, %s511
        %s513 = smul.u32 16, %s31
        %s514 = smul.u32 2, %s31
        %v515 = vld [vmem:[%s492] sm:$0xff]
        %v516 = vld [vmem:[%s492 + $0x8] sm:$0xff]
        %v517 = vld [vmem:[%s502] sm:$0xff]
        %v518 = vld [vmem:[%s502 + $0x8] sm:$0xff]
        %v519 = vld [vmem:[%s502 + $0x10] sm:$0xff]
        %v520 = vld [vmem:[%s502 + $0x18] sm:$0xff]
        %v521 = vld [vmem:[%s502 + $0x20] sm:$0xff]
        %v522 = vld [vmem:[%s502 + $0x28] sm:$0xff]
        %v523 = vld [vmem:[%s502 + $0x30] sm:$0xff]
        %v524 = vld [vmem:[%s502 + $0x38] sm:$0xff]
        %v525 = vld [vmem:[%s502 + $0x40] sm:$0xff]
        %v526 = vld [vmem:[%s502 + $0x48] sm:$0xff]
        %v527 = vld [vmem:[%s502 + $0x50] sm:$0xff]
        %v528 = vld [vmem:[%s502 + $0x58] sm:$0xff]
        %v529 = vld [vmem:[%s502 + $0x60] sm:$0xff]
        %v530 = vld [vmem:[%s502 + $0x68] sm:$0xff]
        %v531 = vld [vmem:[%s502 + $0x70] sm:$0xff]
        %v532 = vld [vmem:[%s502 + $0x78] sm:$0xff]
        %v533 = vld [vmem:[%s3] sm:$0x1]
        %v534 = vld [vmem:[%s4] sm:$0x7]
        %v535 = vld [vmem:[%s5] sm:$0x7]
        %v536 = vld [vmem:[%s6] sm:$0x1]
        %v539 = vcombine.high %v515, %v515
        %v541 = vunpack.c.l.s4 1966171168
        %v542 = vunpack.c.0.s8 %v541
        %v543 = vlaneseq
        %v544 = vshrl.u32 %v543, 7
        %v545 = vsub.s32 %v542, %v544
        %v546 = vrot.slane %v515, %v545
        %v548 = vunpack.c.l.s4 1966171168
        %v549 = vunpack.c.0.s8 %v548
        %v550 = vlaneseq
        %v551 = vshrl.u32 %v550, 7
        %v552 = vsub.s32 %v549, %v551
        %v553 = vrot.slane %v539, %v552
        %v554 = vcombine.high %v546, %v546
        %v555 = vcombine.high %v553, %v553
        %v557 = vunpack.c.l.s4 1966171168
        %v558 = vunpack.c.0.s8 %v557
        %v559 = vlaneseq
        %v560 = vshrl.u32 %v559, 7
        %v561 = vsub.s32 %v558, %v560
        %v562 = vrot.slane %v546, %v561
        %v564 = vunpack.c.l.s4 1966171168
        %v565 = vunpack.c.0.s8 %v564
        %v566 = vlaneseq
        %v567 = vshrl.u32 %v566, 7
        %v568 = vsub.s32 %v565, %v567
        %v569 = vrot.slane %v553, %v568
        %v571 = vunpack.c.l.s4 1966171168
        %v572 = vunpack.c.0.s8 %v571
        %v573 = vlaneseq
        %v574 = vshrl.u32 %v573, 7
        %v575 = vsub.s32 %v572, %v574
        %v576 = vrot.slane %v554, %v575
        %v578 = vunpack.c.l.s4 1966171168
        %v579 = vunpack.c.0.s8 %v578
        %v580 = vlaneseq
        %v581 = vshrl.u32 %v580, 7
        %v582 = vsub.s32 %v579, %v581
        %v583 = vrot.slane %v555, %v582
        %v584 = vcombine.high %v562, %v562
        %v585 = vcombine.high %v569, %v569
        %v586 = vcombine.high %v576, %v576
        %v587 = vcombine.high %v583, %v583
        %v588 = vcombine.high %v516, %v516
        %v590 = vunpack.c.l.s4 1966171168
        %v591 = vunpack.c.0.s8 %v590
        %v592 = vlaneseq
        %v593 = vshrl.u32 %v592, 7
        %v594 = vsub.s32 %v591, %v593
        %v595 = vrot.slane %v516, %v594
        %v597 = vunpack.c.l.s4 1966171168
        %v598 = vunpack.c.0.s8 %v597
        %v599 = vlaneseq
        %v600 = vshrl.u32 %v599, 7
        %v601 = vsub.s32 %v598, %v600
        %v602 = vrot.slane %v588, %v601
        %v603 = vcombine.high %v595, %v595
        %v604 = vcombine.high %v602, %v602
        %v606 = vunpack.c.l.s4 1966171168
        %v607 = vunpack.c.0.s8 %v606
        %v608 = vlaneseq
        %v609 = vshrl.u32 %v608, 7
        %v610 = vsub.s32 %v607, %v609
        %v611 = vrot.slane %v595, %v610
        %v613 = vunpack.c.l.s4 1966171168
        %v614 = vunpack.c.0.s8 %v613
        %v615 = vlaneseq
        %v616 = vshrl.u32 %v615, 7
        %v617 = vsub.s32 %v614, %v616
        %v618 = vrot.slane %v602, %v617
        %v620 = vunpack.c.l.s4 1966171168
        %v621 = vunpack.c.0.s8 %v620
        %v622 = vlaneseq
        %v623 = vshrl.u32 %v622, 7
        %v624 = vsub.s32 %v621, %v623
        %v625 = vrot.slane %v603, %v624
        %v627 = vunpack.c.l.s4 1966171168
        %v628 = vunpack.c.0.s8 %v627
        %v629 = vlaneseq
        %v630 = vshrl.u32 %v629, 7
        %v631 = vsub.s32 %v628, %v630
        %v632 = vrot.slane %v604, %v631
        %v633 = vcombine.high %v611, %v611
        %v634 = vcombine.high %v618, %v618
        %v635 = vcombine.high %v625, %v625
        %v636 = vcombine.high %v632, %v632
        %v637 = vlaneseq
        %v638 = vshrl.u32 %v637, 7
        %v639 = vsub.s32 0, %v638
        %v640 = vrot.slane %v562, %v639
        %v641 = vlaneseq
        %v642 = vshrl.u32 %v641, 7
        %v643 = vsub.s32 0, %v642
        %v644 = vrot.slane %v576, %v643
        %v645 = vlaneseq
        %v646 = vshrl.u32 %v645, 7
        %v647 = vsub.s32 0, %v646
        %v648 = vrot.slane %v584, %v647
        %v649 = vlaneseq
        %v650 = vshrl.u32 %v649, 7
        %v651 = vsub.s32 0, %v650
        %v652 = vrot.slane %v586, %v651
        %v653 = vlaneseq
        %v654 = vshrl.u32 %v653, 7
        %v655 = vsub.s32 0, %v654
        %v656 = vrot.slane %v569, %v655
        %v657 = vlaneseq
        %v658 = vshrl.u32 %v657, 7
        %v659 = vsub.s32 0, %v658
        %v660 = vrot.slane %v583, %v659
        %v661 = vlaneseq
        %v662 = vshrl.u32 %v661, 7
        %v663 = vsub.s32 0, %v662
        %v664 = vrot.slane %v585, %v663
        %v665 = vlaneseq
        %v666 = vshrl.u32 %v665, 7
        %v667 = vsub.s32 0, %v666
        %v668 = vrot.slane %v587, %v667
        %v669 = vlaneseq
        %v670 = vshrl.u32 %v669, 7
        %v671 = vsub.s32 0, %v670
        %v672 = vrot.slane %v611, %v671
        %v673 = vlaneseq
        %v674 = vshrl.u32 %v673, 7
        %v675 = vsub.s32 0, %v674
        %v676 = vrot.slane %v625, %v675
        %v677 = vlaneseq
        %v678 = vshrl.u32 %v677, 7
        %v679 = vsub.s32 0, %v678
        %v680 = vrot.slane %v633, %v679
        %v681 = vlaneseq
        %v682 = vshrl.u32 %v681, 7
        %v683 = vsub.s32 0, %v682
        %v684 = vrot.slane %v635, %v683
        %v685 = vlaneseq
        %v686 = vshrl.u32 %v685, 7
        %v687 = vsub.s32 0, %v686
        %v688 = vrot.slane %v618, %v687
        %v689 = vlaneseq
        %v690 = vshrl.u32 %v689, 7
        %v691 = vsub.s32 0, %v690
        %v692 = vrot.slane %v632, %v691
        %v693 = vlaneseq
        %v694 = vshrl.u32 %v693, 7
        %v695 = vsub.s32 0, %v694
        %v696 = vrot.slane %v634, %v695
        %v697 = vlaneseq
        %v698 = vshrl.u32 %v697, 7
        %v699 = vsub.s32 0, %v698
        %v700 = vrot.slane %v636, %v699
        %v717 = vsub.f32 %v640, %v517
        %v718 = vsub.f32 %v644, %v518
        %v719 = vsub.f32 %v648, %v519
        %v720 = vsub.f32 %v652, %v520
        %v721 = vsub.f32 %v656, %v521
        %v722 = vsub.f32 %v660, %v522
        %v723 = vsub.f32 %v664, %v523
        %v724 = vsub.f32 %v668, %v524
        %v725 = vsub.f32 %v672, %v525
        %v726 = vsub.f32 %v676, %v526
        %v727 = vsub.f32 %v680, %v527
        %v728 = vsub.f32 %v684, %v528
        %v729 = vsub.f32 %v688, %v529
        %v730 = vsub.f32 %v692, %v530
        %v731 = vsub.f32 %v696, %v531
        %v732 = vsub.f32 %v700, %v532
        %v733 = vmul.f32 %v717, %v717
        %v734 = vmul.f32 %v718, %v718
        %v735 = vmul.f32 %v719, %v719
        %v736 = vmul.f32 %v720, %v720
        %v737 = vmul.f32 %v721, %v721
        %v738 = vmul.f32 %v722, %v722
        %v739 = vmul.f32 %v723, %v723
        %v740 = vmul.f32 %v724, %v724
        %v741 = vmul.f32 %v725, %v725
        %v742 = vmul.f32 %v726, %v726
        %v743 = vmul.f32 %v727, %v727
        %v744 = vmul.f32 %v728, %v728
        %v745 = vmul.f32 %v729, %v729
        %v746 = vmul.f32 %v730, %v730
        %v747 = vmul.f32 %v731, %v731
        %v748 = vmul.f32 %v732, %v732
        %vm749 = vcmask 23552
        %v750 = vsel %vm749, %v733, 0.0
        %751 = vadd.xlane.f32.xlu0 %v750
        %v752 = vpop.xlane.xlu0 %751
        %v753 = vsel %vm749, %v734, 0.0
        %754 = vadd.xlane.f32.xlu0 %v753
        %v755 = vpop.xlane.xlu0 %754
        %v756 = vsel %vm749, %v735, 0.0
        %757 = vadd.xlane.f32.xlu0 %v756
        %v758 = vpop.xlane.xlu0 %757
        %v759 = vsel %vm749, %v736, 0.0
        %760 = vadd.xlane.f32.xlu0 %v759
        %v761 = vpop.xlane.xlu0 %760
        %v762 = vsel %vm749, %v737, 0.0
        %763 = vadd.xlane.f32.xlu0 %v762
        %v764 = vpop.xlane.xlu0 %763
        %v765 = vsel %vm749, %v738, 0.0
        %766 = vadd.xlane.f32.xlu0 %v765
        %v767 = vpop.xlane.xlu0 %766
        %v768 = vsel %vm749, %v739, 0.0
        %769 = vadd.xlane.f32.xlu0 %v768
        %v770 = vpop.xlane.xlu0 %769
        %v771 = vsel %vm749, %v740, 0.0
        %772 = vadd.xlane.f32.xlu0 %v771
        %v773 = vpop.xlane.xlu0 %772
        %v774 = vsel %vm749, %v741, 0.0
        %775 = vadd.xlane.f32.xlu0 %v774
        %v776 = vpop.xlane.xlu0 %775
        %v777 = vsel %vm749, %v742, 0.0
        %778 = vadd.xlane.f32.xlu0 %v777
        %v779 = vpop.xlane.xlu0 %778
        %v780 = vsel %vm749, %v743, 0.0
        %781 = vadd.xlane.f32.xlu0 %v780
        %v782 = vpop.xlane.xlu0 %781
        %v783 = vsel %vm749, %v744, 0.0
        %784 = vadd.xlane.f32.xlu0 %v783
        %v785 = vpop.xlane.xlu0 %784
        %v786 = vsel %vm749, %v745, 0.0
        %787 = vadd.xlane.f32.xlu0 %v786
        %v788 = vpop.xlane.xlu0 %787
        %v789 = vsel %vm749, %v746, 0.0
        %790 = vadd.xlane.f32.xlu0 %v789
        %v791 = vpop.xlane.xlu0 %790
        %v792 = vsel %vm749, %v747, 0.0
        %793 = vadd.xlane.f32.xlu0 %v792
        %v794 = vpop.xlane.xlu0 %793
        %v795 = vsel %vm749, %v748, 0.0
        %796 = vadd.xlane.f32.xlu0 %v795
        %v797 = vpop.xlane.xlu0 %796
        %v798 = vrsqrt.pop %v752
        %v799 = vmul.f32 %v752, %v798
        %vm800 = vcmp.eq.f32.partialorder %v752, inf
        %v801 = vsel %vm800, %v752, %v799
        %vm802 = vcmp.eq.f32.partialorder %v752, 0.0
        %v803 = vand.u32 %v752, 2147483648
        %v804 = vsel %vm802, %v803, %v801
        %v805 = vrsqrt.pop %v755
        %v806 = vmul.f32 %v755, %v805
        %vm807 = vcmp.eq.f32.partialorder %v755, inf
        %v808 = vsel %vm807, %v755, %v806
        %vm809 = vcmp.eq.f32.partialorder %v755, 0.0
        %v810 = vand.u32 %v755, 2147483648
        %v811 = vsel %vm809, %v810, %v808
        %v812 = vrsqrt.pop %v758
        %v813 = vmul.f32 %v758, %v812
        %vm814 = vcmp.eq.f32.partialorder %v758, inf
        %v815 = vsel %vm814, %v758, %v813
        %vm816 = vcmp.eq.f32.partialorder %v758, 0.0
        %v817 = vand.u32 %v758, 2147483648
        %v818 = vsel %vm816, %v817, %v815
        %v819 = vrsqrt.pop %v761
        %v820 = vmul.f32 %v761, %v819
        %vm821 = vcmp.eq.f32.partialorder %v761, inf
        %v822 = vsel %vm821, %v761, %v820
        %vm823 = vcmp.eq.f32.partialorder %v761, 0.0
        %v824 = vand.u32 %v761, 2147483648
        %v825 = vsel %vm823, %v824, %v822
        %v826 = vrsqrt.pop %v764
        %v827 = vmul.f32 %v764, %v826
        %vm828 = vcmp.eq.f32.partialorder %v764, inf
        %v829 = vsel %vm828, %v764, %v827
        %vm830 = vcmp.eq.f32.partialorder %v764, 0.0
        %v831 = vand.u32 %v764, 2147483648
        %v832 = vsel %vm830, %v831, %v829
        %v833 = vrsqrt.pop %v767
        %v834 = vmul.f32 %v767, %v833
        %vm835 = vcmp.eq.f32.partialorder %v767, inf
        %v836 = vsel %vm835, %v767, %v834
        %vm837 = vcmp.eq.f32.partialorder %v767, 0.0
        %v838 = vand.u32 %v767, 2147483648
        %v839 = vsel %vm837, %v838, %v836
        %v840 = vrsqrt.pop %v770
        %v841 = vmul.f32 %v770, %v840
        %vm842 = vcmp.eq.f32.partialorder %v770, inf
        %v843 = vsel %vm842, %v770, %v841
        %vm844 = vcmp.eq.f32.partialorder %v770, 0.0
        %v845 = vand.u32 %v770, 2147483648
        %v846 = vsel %vm844, %v845, %v843
        %v847 = vrsqrt.pop %v773
        %v848 = vmul.f32 %v773, %v847
        %vm849 = vcmp.eq.f32.partialorder %v773, inf
        %v850 = vsel %vm849, %v773, %v848
        %vm851 = vcmp.eq.f32.partialorder %v773, 0.0
        %v852 = vand.u32 %v773, 2147483648
        %v853 = vsel %vm851, %v852, %v850
        %v854 = vrsqrt.pop %v776
        %v855 = vmul.f32 %v776, %v854
        %vm856 = vcmp.eq.f32.partialorder %v776, inf
        %v857 = vsel %vm856, %v776, %v855
        %vm858 = vcmp.eq.f32.partialorder %v776, 0.0
        %v859 = vand.u32 %v776, 2147483648
        %v860 = vsel %vm858, %v859, %v857
        %v861 = vrsqrt.pop %v779
        %v862 = vmul.f32 %v779, %v861
        %vm863 = vcmp.eq.f32.partialorder %v779, inf
        %v864 = vsel %vm863, %v779, %v862
        %vm865 = vcmp.eq.f32.partialorder %v779, 0.0
        %v866 = vand.u32 %v779, 2147483648
        %v867 = vsel %vm865, %v866, %v864
        %v868 = vrsqrt.pop %v782
        %v869 = vmul.f32 %v782, %v868
        %vm870 = vcmp.eq.f32.partialorder %v782, inf
        %v871 = vsel %vm870, %v782, %v869
        %vm872 = vcmp.eq.f32.partialorder %v782, 0.0
        %v873 = vand.u32 %v782, 2147483648
        %v874 = vsel %vm872, %v873, %v871
        %v875 = vrsqrt.pop %v785
        %v876 = vmul.f32 %v785, %v875
        %vm877 = vcmp.eq.f32.partialorder %v785, inf
        %v878 = vsel %vm877, %v785, %v876
        %vm879 = vcmp.eq.f32.partialorder %v785, 0.0
        %v880 = vand.u32 %v785, 2147483648
        %v881 = vsel %vm879, %v880, %v878
        %v882 = vrsqrt.pop %v788
        %v883 = vmul.f32 %v788, %v882
        %vm884 = vcmp.eq.f32.partialorder %v788, inf
        %v885 = vsel %vm884, %v788, %v883
        %vm886 = vcmp.eq.f32.partialorder %v788, 0.0
        %v887 = vand.u32 %v788, 2147483648
        %v888 = vsel %vm886, %v887, %v885
        %v889 = vrsqrt.pop %v791
        %v890 = vmul.f32 %v791, %v889
        %vm891 = vcmp.eq.f32.partialorder %v791, inf
        %v892 = vsel %vm891, %v791, %v890
        %vm893 = vcmp.eq.f32.partialorder %v791, 0.0
        %v894 = vand.u32 %v791, 2147483648
        %v895 = vsel %vm893, %v894, %v892
        %v896 = vrsqrt.pop %v794
        %v897 = vmul.f32 %v794, %v896
        %vm898 = vcmp.eq.f32.partialorder %v794, inf
        %v899 = vsel %vm898, %v794, %v897
        %vm900 = vcmp.eq.f32.partialorder %v794, 0.0
        %v901 = vand.u32 %v794, 2147483648
        %v902 = vsel %vm900, %v901, %v899
        %v903 = vrsqrt.pop %v797
        %v904 = vmul.f32 %v797, %v903
        %vm905 = vcmp.eq.f32.partialorder %v797, inf
        %v906 = vsel %vm905, %v797, %v904
        %vm907 = vcmp.eq.f32.partialorder %v797, 0.0
        %v908 = vand.u32 %v797, 2147483648
        %v909 = vsel %vm907, %v908, %v906
        %v911 = vlaneseq
        %v912 = vshrl.u32 %v911, 7
        %v913 = vsub.s32 0, %v912
        %v914 = vrot.slane %v533, %v913
        %v916 = vmul.f32 %v804, %v914
        %v917 = vmul.f32 %v811, %v914
        %v918 = vmul.f32 %v818, %v914
        %v919 = vmul.f32 %v825, %v914
        %v920 = vmul.f32 %v832, %v914
        %v921 = vmul.f32 %v839, %v914
        %v922 = vmul.f32 %v846, %v914
        %v923 = vmul.f32 %v853, %v914
        %v924 = vmul.f32 %v860, %v914
        %v925 = vmul.f32 %v867, %v914
        %v926 = vmul.f32 %v874, %v914
        %v927 = vmul.f32 %v881, %v914
        %v928 = vmul.f32 %v888, %v914
        %v929 = vmul.f32 %v895, %v914
        %v930 = vmul.f32 %v902, %v914
        %v931 = vmul.f32 %v909, %v914
        %v933 = vsel %vm749, %v717, 0
        %v936 = vsel %vm749, %v718, 0
        %v939 = vsel %vm749, %v719, 0
        %v942 = vsel %vm749, %v720, 0
        %v945 = vsel %vm749, %v721, 0
        %v948 = vsel %vm749, %v722, 0
        %v951 = vsel %vm749, %v723, 0
        %v954 = vsel %vm749, %v724, 0
        %v957 = vsel %vm749, %v725, 0
        %v960 = vsel %vm749, %v726, 0
        %v963 = vsel %vm749, %v727, 0
        %v966 = vsel %vm749, %v728, 0
        %v969 = vsel %vm749, %v729, 0
        %v972 = vsel %vm749, %v730, 0
        %v975 = vsel %vm749, %v731, 0
        %v978 = vsel %vm749, %v732, 0
        %vm980 = vcmask 1042432
        %v982 = vsel %vm980, %v534, 0
        %984 = vmatprep.subr.mxu0 0.0
        %985 = vmatpush1.msra.mxu0 %v982
        %986 = vmatprep.subr.mxu0 0.0
        %987 = vmatpush1.msra.mxu0 0.0
        %988 = vmatprep.subr.mxu0 0.0
        %989 = vmatpush1.msra.mxu0 0.0
        %990 = vmatprep.subr.mxu0 0.0
        %991 = vmatpush1.msra.mxu0 0.0
        %992 = vmatprep.subr.mxu0 0.0
        %993 = vmatpush1.msra.mxu0 0.0
        %994 = vmatprep.subr.mxu0 0.0
        %995 = vmatpush1.msra.mxu0 0.0
        %996 = vmatprep.subr.mxu0 0.0
        %997 = vmatpush1.msra.mxu0 0.0
        %998 = vmatprep.subr.mxu0 0.0
        %999 = vmatpush1.msra.mxu0 0.0
        %1000 = vmatprep.subr.mxu0 0.0
        %1001 = vmatpush1.msra.mxu0 0.0
        %1002 = vmatprep.subr.mxu0 0.0
        %1003 = vmatpush1.msra.mxu0 0.0
        %1004 = vmatprep.subr.mxu0 0.0
        %1005 = vmatpush1.msra.mxu0 0.0
        %1006 = vmatprep.subr.mxu0 0.0
        %1007 = vmatpush1.msra.mxu0 0.0
        %1008 = vmatprep.subr.mxu0 0.0
        %1009 = vmatpush1.msra.mxu0 0.0
        %1010 = vmatprep.subr.mxu0 0.0
        %1011 = vmatpush1.msra.mxu0 0.0
        %1012 = vmatprep.subr.mxu0 0.0
        %1013 = vmatpush1.msra.mxu0 0.0
        %1014 = vmatprep.subr.mxu0 0.0
        %1015 = vmatpush1.msra.mxu0 0.0
        %1016 = vmatprep.subr.mxu0 0.0
        %1017 = vmatpush1.msra.mxu0 0.0
        %1018 = vmatprep.subr.mxu0 0.0
        %1019 = vmatpush1.msra.mxu0 0.0
        %1020 = vmatprep.subr.mxu0 0.0
        %1021 = vmatpush1.msra.mxu0 0.0
        %1022 = vmatprep.subr.mxu0 0.0
        %1023 = vmatpush1.msra.mxu0 0.0
        %1024 = vmatprep.subr.mxu0 0.0
        %1025 = vmatpush1.msra.mxu0 0.0
        %1026 = vmatprep.subr.mxu0 0.0
        %1027 = vmatpush1.msra.mxu0 0.0
        %1028 = vmatprep.subr.mxu0 0.0
        %1029 = vmatpush1.msra.mxu0 0.0
        %1030 = vmatprep.subr.mxu0 0.0
        %1031 = vmatpush1.msra.mxu0 0.0
        %1032 = vmatprep.subr.mxu0 0.0
        %1033 = vmatpush1.msra.mxu0 0.0
        %1034 = vmatprep.subr.mxu0 0.0
        %1035 = vmatpush1.msra.mxu0 0.0
        %1036 = vmatprep.subr.mxu0 0.0
        %1037 = vmatpush1.msra.mxu0 0.0
        %1038 = vmatprep.subr.mxu0 0.0
        %1039 = vmatpush1.msra.mxu0 0.0
        %1040 = vmatprep.subr.mxu0 0.0
        %1041 = vmatpush1.msra.mxu0 0.0
        %1042 = vmatprep.subr.mxu0 0.0
        %1043 = vmatpush1.msra.mxu0 0.0
        %1044 = vmatprep.subr.mxu0 0.0
        %1045 = vmatpush1.msra.mxu0 0.0
        %1046 = vmatprep.subr.mxu0 0.0
        %1047 = vmatpush1.msra.mxu0 0.0
        %1048 = vmatprep.mubr.f32.mxu0 0.0
        %1049 = vmatmul.mubr.f32.gmra.mrb[0].mxu0 %v933
        %v1050 = vpop.f32.mrb[0].mxu0
        %v1051 = vadd.f32 0.0, %v1050
        %v1052 = vpop.f32.mrb[0].mxu0
        %1053 = vmatprep.mubr.f32.mxu0 0.0
        %1054 = vmatmul.mubr.f32.gmra.mrb[0].mxu0 %v936
        %v1055 = vpop.f32.mrb[0].mxu0
        %v1056 = vadd.f32 0.0, %v1055
        %v1057 = vpop.f32.mrb[0].mxu0
        %1058 = vmatprep.mubr.f32.mxu0 0.0
        %1059 = vmatmul.mubr.f32.gmra.mrb[0].mxu0 %v939
        %v1060 = vpop.f32.mrb[0].mxu0
        %v1061 = vadd.f32 0.0, %v1060
        %v1062 = vpop.f32.mrb[0].mxu0
        %1063 = vmatprep.mubr.f32.mxu0 0.0
        %1064 = vmatmul.mubr.f32.gmra.mrb[0].mxu0 %v942
        %v1065 = vpop.f32.mrb[0].mxu0
        %v1066 = vadd.f32 0.0, %v1065
        %v1067 = vpop.f32.mrb[0].mxu0
        %1068 = vmatprep.mubr.f32.mxu0 0.0
        %1069 = vmatmul.mubr.f32.gmra.mrb[0].mxu0 %v945
        %v1070 = vpop.f32.mrb[0].mxu0
        %v1071 = vadd.f32 0.0, %v1070
        %v1072 = vpop.f32.mrb[0].mxu0
        %1073 = vmatprep.mubr.f32.mxu0 0.0
        %1074 = vmatmul.mubr.f32.gmra.mrb[0].mxu0 %v948
        %v1075 = vpop.f32.mrb[0].mxu0
        %v1076 = vadd.f32 0.0, %v1075
        %v1077 = vpop.f32.mrb[0].mxu0
        %1078 = vmatprep.mubr.f32.mxu0 0.0
        %1079 = vmatmul.mubr.f32.gmra.mrb[0].mxu0 %v951
        %v1080 = vpop.f32.mrb[0].mxu0
        %v1081 = vadd.f32 0.0, %v1080
        %v1082 = vpop.f32.mrb[0].mxu0
        %1083 = vmatprep.mubr.f32.mxu0 0.0
        %1084 = vmatmul.mubr.f32.gmra.mrb[0].mxu0 %v954
        %v1085 = vpop.f32.mrb[0].mxu0
        %v1086 = vadd.f32 0.0, %v1085
        %v1087 = vpop.f32.mrb[0].mxu0
        %1088 = vmatprep.mubr.f32.mxu0 0.0
        %1089 = vmatmul.mubr.f32.gmra.mrb[0].mxu0 %v957
        %v1090 = vpop.f32.mrb[0].mxu0
        %v1091 = vadd.f32 0.0, %v1090
        %v1092 = vpop.f32.mrb[0].mxu0
        %1093 = vmatprep.mubr.f32.mxu0 0.0
        %1094 = vmatmul.mubr.f32.gmra.mrb[0].mxu0 %v960
        %v1095 = vpop.f32.mrb[0].mxu0
        %v1096 = vadd.f32 0.0, %v1095
        %v1097 = vpop.f32.mrb[0].mxu0
        %1098 = vmatprep.mubr.f32.mxu0 0.0
        %1099 = vmatmul.mubr.f32.gmra.mrb[0].mxu0 %v963
        %v1100 = vpop.f32.mrb[0].mxu0
        %v1101 = vadd.f32 0.0, %v1100
        %v1102 = vpop.f32.mrb[0].mxu0
        %1103 = vmatprep.mubr.f32.mxu0 0.0
        %1104 = vmatmul.mubr.f32.gmra.mrb[0].mxu0 %v966
        %v1105 = vpop.f32.mrb[0].mxu0
        %v1106 = vadd.f32 0.0, %v1105
        %v1107 = vpop.f32.mrb[0].mxu0
        %1108 = vmatprep.mubr.f32.mxu0 0.0
        %1109 = vmatmul.mubr.f32.gmra.mrb[0].mxu0 %v969
        %v1110 = vpop.f32.mrb[0].mxu0
        %v1111 = vadd.f32 0.0, %v1110
        %v1112 = vpop.f32.mrb[0].mxu0
        %1113 = vmatprep.mubr.f32.mxu0 0.0
        %1114 = vmatmul.mubr.f32.gmra.mrb[0].mxu0 %v972
        %v1115 = vpop.f32.mrb[0].mxu0
        %v1116 = vadd.f32 0.0, %v1115
        %v1117 = vpop.f32.mrb[0].mxu0
        %1118 = vmatprep.mubr.f32.mxu0 0.0
        %1119 = vmatmul.mubr.f32.gmra.mrb[0].mxu0 %v975
        %v1120 = vpop.f32.mrb[0].mxu0
        %v1121 = vadd.f32 0.0, %v1120
        %v1122 = vpop.f32.mrb[0].mxu0
        %1123 = vmatprep.mubr.f32.mxu0 0.0
        %1124 = vmatmul.mubr.f32.gmra.mrb[0].mxu0 %v978
        %v1125 = vpop.f32.mrb[0].mxu0
        %v1126 = vadd.f32 0.0, %v1125
        %v1127 = vpop.f32.mrb[0].mxu0
        %1128 = vdwg.mxu0
        %v1129 = vadd.f32 %v916, %v1051
        %v1130 = vadd.f32 %v917, %v1056
        %v1131 = vadd.f32 %v918, %v1061
        %v1132 = vadd.f32 %v919, %v1066
        %v1133 = vadd.f32 %v920, %v1071
        %v1134 = vadd.f32 %v921, %v1076
        %v1135 = vadd.f32 %v922, %v1081
        %v1136 = vadd.f32 %v923, %v1086
        %v1137 = vadd.f32 %v924, %v1091
        %v1138 = vadd.f32 %v925, %v1096
        %v1139 = vadd.f32 %v926, %v1101
        %v1140 = vadd.f32 %v927, %v1106
        %v1141 = vadd.f32 %v928, %v1111
        %v1142 = vadd.f32 %v929, %v1116
        %v1143 = vadd.f32 %v930, %v1121
        %v1144 = vadd.f32 %v931, %v1126
        %v1146 = vsel %vm749, %v517, 0
        %v1149 = vsel %vm749, %v518, 0
        %v1152 = vsel %vm749, %v519, 0
        %v1155 = vsel %vm749, %v520, 0
        %v1158 = vsel %vm749, %v521, 0
        %v1161 = vsel %vm749, %v522, 0
        %v1164 = vsel %vm749, %v523, 0
        %v1167 = vsel %vm749, %v524, 0
        %v1170 = vsel %vm749, %v525, 0
        %v1173 = vsel %vm749, %v526, 0
        %v1176 = vsel %vm749, %v527, 0
        %v1179 = vsel %vm749, %v528, 0
        %v1182 = vsel %vm749, %v529, 0
        %v1185 = vsel %vm749, %v530, 0
        %v1188 = vsel %vm749, %v531, 0
        %v1191 = vsel %vm749, %v532, 0
        %v1194 = vsel %vm980, %v535, 0
        %1196 = vmatprep.subr.mxu0 0.0
        %1197 = vmatpush1.msra.mxu0 %v1194
        %1198 = vmatprep.subr.mxu0 0.0
        %1199 = vmatpush1.msra.mxu0 0.0
        %1200 = vmatprep.subr.mxu0 0.0
        %1201 = vmatpush1.msra.mxu0 0.0
        %1202 = vmatprep.subr.mxu0 0.0
        %1203 = vmatpush1.msra.mxu0 0.0
        %1204 = vmatprep.subr.mxu0 0.0
        %1205 = vmatpush1.msra.mxu0 0.0
        %1206 = vmatprep.subr.mxu0 0.0
        %1207 = vmatpush1.msra.mxu0 0.0
        %1208 = vmatprep.subr.mxu0 0.0
        %1209 = vmatpush1.msra.mxu0 0.0
        %1210 = vmatprep.subr.mxu0 0.0
        %1211 = vmatpush1.msra.mxu0 0.0
        %1212 = vmatprep.subr.mxu0 0.0
        %1213 = vmatpush1.msra.mxu0 0.0
        %1214 = vmatprep.subr.mxu0 0.0
        %1215 = vmatpush1.msra.mxu0 0.0
        %1216 = vmatprep.subr.mxu0 0.0
        %1217 = vmatpush1.msra.mxu0 0.0
        %1218 = vmatprep.subr.mxu0 0.0
        %1219 = vmatpush1.msra.mxu0 0.0
        %1220 = vmatprep.subr.mxu0 0.0
        %1221 = vmatpush1.msra.mxu0 0.0
        %1222 = vmatprep.subr.mxu0 0.0
        %1223 = vmatpush1.msra.mxu0 0.0
        %1224 = vmatprep.subr.mxu0 0.0
        %1225 = vmatpush1.msra.mxu0 0.0
        %1226 = vmatprep.subr.mxu0 0.0
        %1227 = vmatpush1.msra.mxu0 0.0
        %1228 = vmatprep.subr.mxu0 0.0
        %1229 = vmatpush1.msra.mxu0 0.0
        %1230 = vmatprep.subr.mxu0 0.0
        %1231 = vmatpush1.msra.mxu0 0.0
        %1232 = vmatprep.subr.mxu0 0.0
        %1233 = vmatpush1.msra.mxu0 0.0
        %1234 = vmatprep.subr.mxu0 0.0
        %1235 = vmatpush1.msra.mxu0 0.0
        %1236 = vmatprep.subr.mxu0 0.0
        %1237 = vmatpush1.msra.mxu0 0.0
        %1238 = vmatprep.subr.mxu0 0.0
        %1239 = vmatpush1.msra.mxu0 0.0
        %1240 = vmatprep.subr.mxu0 0.0
        %1241 = vmatpush1.msra.mxu0 0.0
        %1242 = vmatprep.subr.mxu0 0.0
        %1243 = vmatpush1.msra.mxu0 0.0
        %1244 = vmatprep.subr.mxu0 0.0
        %1245 = vmatpush1.msra.mxu0 0.0
        %1246 = vmatprep.subr.mxu0 0.0
        %1247 = vmatpush1.msra.mxu0 0.0
        %1248 = vmatprep.subr.mxu0 0.0
        %1249 = vmatpush1.msra.mxu0 0.0
        %1250 = vmatprep.subr.mxu0 0.0
        %1251 = vmatpush1.msra.mxu0 0.0
        %1252 = vmatprep.subr.mxu0 0.0
        %1253 = vmatpush1.msra.mxu0 0.0
        %1254 = vmatprep.subr.mxu0 0.0
        %1255 = vmatpush1.msra.mxu0 0.0
        %1256 = vmatprep.subr.mxu0 0.0
        %1257 = vmatpush1.msra.mxu0 0.0
        %1258 = vmatprep.subr.mxu0 0.0
        %1259 = vmatpush1.msra.mxu0 0.0
        %1260 = vmatprep.mubr.f32.mxu0 0.0
        %1261 = vmatmul.mubr.f32.gmra.mrb[0].mxu0 %v1146
        %v1262 = vpop.f32.mrb[0].mxu0
        %v1263 = vadd.f32 0.0, %v1262
        %v1264 = vpop.f32.mrb[0].mxu0
        %1265 = vmatprep.mubr.f32.mxu0 0.0
        %1266 = vmatmul.mubr.f32.gmra.mrb[0].mxu0 %v1149
        %v1267 = vpop.f32.mrb[0].mxu0
        %v1268 = vadd.f32 0.0, %v1267
        %v1269 = vpop.f32.mrb[0].mxu0
        %1270 = vmatprep.mubr.f32.mxu0 0.0
        %1271 = vmatmul.mubr.f32.gmra.mrb[0].mxu0 %v1152
        %v1272 = vpop.f32.mrb[0].mxu0
        %v1273 = vadd.f32 0.0, %v1272
        %v1274 = vpop.f32.mrb[0].mxu0
        %1275 = vmatprep.mubr.f32.mxu0 0.0
        %1276 = vmatmul.mubr.f32.gmra.mrb[0].mxu0 %v1155
        %v1277 = vpop.f32.mrb[0].mxu0
        %v1278 = vadd.f32 0.0, %v1277
        %v1279 = vpop.f32.mrb[0].mxu0
        %1280 = vmatprep.mubr.f32.mxu0 0.0
        %1281 = vmatmul.mubr.f32.gmra.mrb[0].mxu0 %v1158
        %v1282 = vpop.f32.mrb[0].mxu0
        %v1283 = vadd.f32 0.0, %v1282
        %v1284 = vpop.f32.mrb[0].mxu0
        %1285 = vmatprep.mubr.f32.mxu0 0.0
        %1286 = vmatmul.mubr.f32.gmra.mrb[0].mxu0 %v1161
        %v1287 = vpop.f32.mrb[0].mxu0
        %v1288 = vadd.f32 0.0, %v1287
        %v1289 = vpop.f32.mrb[0].mxu0
        %1290 = vmatprep.mubr.f32.mxu0 0.0
        %1291 = vmatmul.mubr.f32.gmra.mrb[0].mxu0 %v1164
        %v1292 = vpop.f32.mrb[0].mxu0
        %v1293 = vadd.f32 0.0, %v1292
        %v1294 = vpop.f32.mrb[0].mxu0
        %1295 = vmatprep.mubr.f32.mxu0 0.0
        %1296 = vmatmul.mubr.f32.gmra.mrb[0].mxu0 %v1167
        %v1297 = vpop.f32.mrb[0].mxu0
        %v1298 = vadd.f32 0.0, %v1297
        %v1299 = vpop.f32.mrb[0].mxu0
        %1300 = vmatprep.mubr.f32.mxu0 0.0
        %1301 = vmatmul.mubr.f32.gmra.mrb[0].mxu0 %v1170
        %v1302 = vpop.f32.mrb[0].mxu0
        %v1303 = vadd.f32 0.0, %v1302
        %v1304 = vpop.f32.mrb[0].mxu0
        %1305 = vmatprep.mubr.f32.mxu0 0.0
        %1306 = vmatmul.mubr.f32.gmra.mrb[0].mxu0 %v1173
        %v1307 = vpop.f32.mrb[0].mxu0
        %v1308 = vadd.f32 0.0, %v1307
        %v1309 = vpop.f32.mrb[0].mxu0
        %1310 = vmatprep.mubr.f32.mxu0 0.0
        %1311 = vmatmul.mubr.f32.gmra.mrb[0].mxu0 %v1176
        %v1312 = vpop.f32.mrb[0].mxu0
        %v1313 = vadd.f32 0.0, %v1312
        %v1314 = vpop.f32.mrb[0].mxu0
        %1315 = vmatprep.mubr.f32.mxu0 0.0
        %1316 = vmatmul.mubr.f32.gmra.mrb[0].mxu0 %v1179
        %v1317 = vpop.f32.mrb[0].mxu0
        %v1318 = vadd.f32 0.0, %v1317
        %v1319 = vpop.f32.mrb[0].mxu0
        %1320 = vmatprep.mubr.f32.mxu0 0.0
        %1321 = vmatmul.mubr.f32.gmra.mrb[0].mxu0 %v1182
        %v1322 = vpop.f32.mrb[0].mxu0
        %v1323 = vadd.f32 0.0, %v1322
        %v1324 = vpop.f32.mrb[0].mxu0
        %1325 = vmatprep.mubr.f32.mxu0 0.0
        %1326 = vmatmul.mubr.f32.gmra.mrb[0].mxu0 %v1185
        %v1327 = vpop.f32.mrb[0].mxu0
        %v1328 = vadd.f32 0.0, %v1327
        %v1329 = vpop.f32.mrb[0].mxu0
        %1330 = vmatprep.mubr.f32.mxu0 0.0
        %1331 = vmatmul.mubr.f32.gmra.mrb[0].mxu0 %v1188
        %v1332 = vpop.f32.mrb[0].mxu0
        %v1333 = vadd.f32 0.0, %v1332
        %v1334 = vpop.f32.mrb[0].mxu0
        %1335 = vmatprep.mubr.f32.mxu0 0.0
        %1336 = vmatmul.mubr.f32.gmra.mrb[0].mxu0 %v1191
        %v1337 = vpop.f32.mrb[0].mxu0
        %v1338 = vadd.f32 0.0, %v1337
        %v1339 = vpop.f32.mrb[0].mxu0
        %1340 = vdwg.mxu0
        %v1341 = vadd.f32 %v1129, %v1263
        %v1342 = vadd.f32 %v1130, %v1268
        %v1343 = vadd.f32 %v1131, %v1273
        %v1344 = vadd.f32 %v1132, %v1278
        %v1345 = vadd.f32 %v1133, %v1283
        %v1346 = vadd.f32 %v1134, %v1288
        %v1347 = vadd.f32 %v1135, %v1293
        %v1348 = vadd.f32 %v1136, %v1298
        %v1349 = vadd.f32 %v1137, %v1303
        %v1350 = vadd.f32 %v1138, %v1308
        %v1351 = vadd.f32 %v1139, %v1313
        %v1352 = vadd.f32 %v1140, %v1318
        %v1353 = vadd.f32 %v1141, %v1323
        %v1354 = vadd.f32 %v1142, %v1328
        %v1355 = vadd.f32 %v1143, %v1333
        %v1356 = vadd.f32 %v1144, %v1338
        %v1358 = vlaneseq
        %v1359 = vshrl.u32 %v1358, 7
        %v1360 = vsub.s32 0, %v1359
        %v1361 = vrot.slane %v536, %v1360
        %v1363 = vadd.f32 %v1341, %v1361
        %v1364 = vadd.f32 %v1342, %v1361
        %v1365 = vadd.f32 %v1343, %v1361
        %v1366 = vadd.f32 %v1344, %v1361
        %v1367 = vadd.f32 %v1345, %v1361
        %v1368 = vadd.f32 %v1346, %v1361
        %v1369 = vadd.f32 %v1347, %v1361
        %v1370 = vadd.f32 %v1348, %v1361
        %v1371 = vadd.f32 %v1349, %v1361
        %v1372 = vadd.f32 %v1350, %v1361
        %v1373 = vadd.f32 %v1351, %v1361
        %v1374 = vadd.f32 %v1352, %v1361
        %v1375 = vadd.f32 %v1353, %v1361
        %v1376 = vadd.f32 %v1354, %v1361
        %v1377 = vadd.f32 %v1355, %v1361
        %v1378 = vadd.f32 %v1356, %v1361
        %v1379 = vmax.f32 %v1363, 0.0
        %v1380 = vmax.f32 %v1364, 0.0
        %v1381 = vmax.f32 %v1365, 0.0
        %v1382 = vmax.f32 %v1366, 0.0
        %v1383 = vmax.f32 %v1367, 0.0
        %v1384 = vmax.f32 %v1368, 0.0
        %v1385 = vmax.f32 %v1369, 0.0
        %v1386 = vmax.f32 %v1370, 0.0
        %v1387 = vmax.f32 %v1371, 0.0
        %v1388 = vmax.f32 %v1372, 0.0
        %v1389 = vmax.f32 %v1373, 0.0
        %v1390 = vmax.f32 %v1374, 0.0
        %v1391 = vmax.f32 %v1375, 0.0
        %v1392 = vmax.f32 %v1376, 0.0
        %v1393 = vmax.f32 %v1377, 0.0
        %v1394 = vmax.f32 %v1378, 0.0
        %v1395 = vld [vmem:[%s7] sm:$0xff]
        %v1396 = vld [vmem:[%s7 + $0x8] sm:$0xff]
        %v1397 = vld [vmem:[%s8] sm:$0x1]
        %v1399 = vlaneseq
        %v1400 = vshrl.u32 %v1399, 7
        %v1401 = vsub.s32 0, %v1400
        %v1402 = vrot.slane %v1397, %v1401
        %vm1404 = vcmask 130048
        %v1406 = vsel %vm1404, %v1379, 0
        %v1409 = vsel %vm1404, %v1380, 0
        %v1412 = vsel %vm1404, %v1381, 0
        %v1415 = vsel %vm1404, %v1382, 0
        %v1418 = vsel %vm1404, %v1383, 0
        %v1421 = vsel %vm1404, %v1384, 0
        %v1424 = vsel %vm1404, %v1385, 0
        %v1427 = vsel %vm1404, %v1386, 0
        %v1430 = vsel %vm1404, %v1387, 0
        %v1433 = vsel %vm1404, %v1388, 0
        %v1436 = vsel %vm1404, %v1389, 0
        %v1439 = vsel %vm1404, %v1390, 0
        %v1442 = vsel %vm1404, %v1391, 0
        %v1445 = vsel %vm1404, %v1392, 0
        %v1448 = vsel %vm1404, %v1393, 0
        %v1451 = vsel %vm1404, %v1394, 0
        %1453 = vmatprep.subr.mxu0 0.0
        %1454 = vmatpush1.msra.mxu0 %v1395
        %1455 = vmatprep.subr.mxu0 0.0
        %1456 = vmatpush1.msra.mxu0 %v1396
        %1457 = vmatprep.subr.mxu0 0.0
        %1458 = vmatpush1.msra.mxu0 0.0
        %1459 = vmatprep.subr.mxu0 0.0
        %1460 = vmatpush1.msra.mxu0 0.0
        %1461 = vmatprep.subr.mxu0 0.0
        %1462 = vmatpush1.msra.mxu0 0.0
        %1463 = vmatprep.subr.mxu0 0.0
        %1464 = vmatpush1.msra.mxu0 0.0
        %1465 = vmatprep.subr.mxu0 0.0
        %1466 = vmatpush1.msra.mxu0 0.0
        %1467 = vmatprep.subr.mxu0 0.0
        %1468 = vmatpush1.msra.mxu0 0.0
        %1469 = vmatprep.subr.mxu0 0.0
        %1470 = vmatpush1.msra.mxu0 0.0
        %1471 = vmatprep.subr.mxu0 0.0
        %1472 = vmatpush1.msra.mxu0 0.0
        %1473 = vmatprep.subr.mxu0 0.0
        %1474 = vmatpush1.msra.mxu0 0.0
        %1475 = vmatprep.subr.mxu0 0.0
        %1476 = vmatpush1.msra.mxu0 0.0
        %1477 = vmatprep.subr.mxu0 0.0
        %1478 = vmatpush1.msra.mxu0 0.0
        %1479 = vmatprep.subr.mxu0 0.0
        %1480 = vmatpush1.msra.mxu0 0.0
        %1481 = vmatprep.subr.mxu0 0.0
        %1482 = vmatpush1.msra.mxu0 0.0
        %1483 = vmatprep.subr.mxu0 0.0
        %1484 = vmatpush1.msra.mxu0 0.0
        %1485 = vmatprep.subr.mxu0 0.0
        %1486 = vmatpush1.msra.mxu0 0.0
        %1487 = vmatprep.subr.mxu0 0.0
        %1488 = vmatpush1.msra.mxu0 0.0
        %1489 = vmatprep.subr.mxu0 0.0
        %1490 = vmatpush1.msra.mxu0 0.0
        %1491 = vmatprep.subr.mxu0 0.0
        %1492 = vmatpush1.msra.mxu0 0.0
        %1493 = vmatprep.subr.mxu0 0.0
        %1494 = vmatpush1.msra.mxu0 0.0
        %1495 = vmatprep.subr.mxu0 0.0
        %1496 = vmatpush1.msra.mxu0 0.0
        %1497 = vmatprep.subr.mxu0 0.0
        %1498 = vmatpush1.msra.mxu0 0.0
        %1499 = vmatprep.subr.mxu0 0.0
        %1500 = vmatpush1.msra.mxu0 0.0
        %1501 = vmatprep.subr.mxu0 0.0
        %1502 = vmatpush1.msra.mxu0 0.0
        %1503 = vmatprep.subr.mxu0 0.0
        %1504 = vmatpush1.msra.mxu0 0.0
        %1505 = vmatprep.subr.mxu0 0.0
        %1506 = vmatpush1.msra.mxu0 0.0
        %1507 = vmatprep.subr.mxu0 0.0
        %1508 = vmatpush1.msra.mxu0 0.0
        %1509 = vmatprep.subr.mxu0 0.0
        %1510 = vmatpush1.msra.mxu0 0.0
        %1511 = vmatprep.subr.mxu0 0.0
        %1512 = vmatpush1.msra.mxu0 0.0
        %1513 = vmatprep.subr.mxu0 0.0
        %1514 = vmatpush1.msra.mxu0 0.0
        %1515 = vmatprep.subr.mxu0 0.0
        %1516 = vmatpush1.msra.mxu0 0.0
        %1517 = vmatprep.mubr.f32.mxu0 0.0
        %1518 = vmatmul.mubr.f32.gmra.mrb[0].mxu0 %v1406
        %v1519 = vpop.f32.mrb[0].mxu0
        %v1520 = vadd.f32 %v1402, %v1519
        %v1521 = vpop.f32.mrb[0].mxu0
        %1522 = vmatprep.mubr.f32.mxu0 0.0
        %1523 = vmatmul.mubr.f32.gmra.mrb[0].mxu0 %v1409
        %v1524 = vpop.f32.mrb[0].mxu0
        %v1525 = vadd.f32 %v1402, %v1524
        %v1526 = vpop.f32.mrb[0].mxu0
        %1527 = vmatprep.mubr.f32.mxu0 0.0
        %1528 = vmatmul.mubr.f32.gmra.mrb[0].mxu0 %v1412
        %v1529 = vpop.f32.mrb[0].mxu0
        %v1530 = vadd.f32 %v1402, %v1529
        %v1531 = vpop.f32.mrb[0].mxu0
        %1532 = vmatprep.mubr.f32.mxu0 0.0
        %1533 = vmatmul.mubr.f32.gmra.mrb[0].mxu0 %v1415
        %v1534 = vpop.f32.mrb[0].mxu0
        %v1535 = vadd.f32 %v1402, %v1534
        %v1536 = vpop.f32.mrb[0].mxu0
        %1537 = vmatprep.mubr.f32.mxu0 0.0
        %1538 = vmatmul.mubr.f32.gmra.mrb[0].mxu0 %v1418
        %v1539 = vpop.f32.mrb[0].mxu0
        %v1540 = vadd.f32 %v1402, %v1539
        %v1541 = vpop.f32.mrb[0].mxu0
        %1542 = vmatprep.mubr.f32.mxu0 0.0
        %1543 = vmatmul.mubr.f32.gmra.mrb[0].mxu0 %v1421
        %v1544 = vpop.f32.mrb[0].mxu0
        %v1545 = vadd.f32 %v1402, %v1544
        %v1546 = vpop.f32.mrb[0].mxu0
        %1547 = vmatprep.mubr.f32.mxu0 0.0
        %1548 = vmatmul.mubr.f32.gmra.mrb[0].mxu0 %v1424
        %v1549 = vpop.f32.mrb[0].mxu0
        %v1550 = vadd.f32 %v1402, %v1549
        %v1551 = vpop.f32.mrb[0].mxu0
        %1552 = vmatprep.mubr.f32.mxu0 0.0
        %1553 = vmatmul.mubr.f32.gmra.mrb[0].mxu0 %v1427
        %v1554 = vpop.f32.mrb[0].mxu0
        %v1555 = vadd.f32 %v1402, %v1554
        %v1556 = vpop.f32.mrb[0].mxu0
        %1557 = vmatprep.mubr.f32.mxu0 0.0
        %1558 = vmatmul.mubr.f32.gmra.mrb[0].mxu0 %v1430
        %v1559 = vpop.f32.mrb[0].mxu0
        %v1560 = vadd.f32 %v1402, %v1559
        %v1561 = vpop.f32.mrb[0].mxu0
        %1562 = vmatprep.mubr.f32.mxu0 0.0
        %1563 = vmatmul.mubr.f32.gmra.mrb[0].mxu0 %v1433
        %v1564 = vpop.f32.mrb[0].mxu0
        %v1565 = vadd.f32 %v1402, %v1564
        %v1566 = vpop.f32.mrb[0].mxu0
        %1567 = vmatprep.mubr.f32.mxu0 0.0
        %1568 = vmatmul.mubr.f32.gmra.mrb[0].mxu0 %v1436
        %v1569 = vpop.f32.mrb[0].mxu0
        %v1570 = vadd.f32 %v1402, %v1569
        %v1571 = vpop.f32.mrb[0].mxu0
        %1572 = vmatprep.mubr.f32.mxu0 0.0
        %1573 = vmatmul.mubr.f32.gmra.mrb[0].mxu0 %v1439
        %v1574 = vpop.f32.mrb[0].mxu0
        %v1575 = vadd.f32 %v1402, %v1574
        %v1576 = vpop.f32.mrb[0].mxu0
        %1577 = vmatprep.mubr.f32.mxu0 0.0
        %1578 = vmatmul.mubr.f32.gmra.mrb[0].mxu0 %v1442
        %v1579 = vpop.f32.mrb[0].mxu0
        %v1580 = vadd.f32 %v1402, %v1579
        %v1581 = vpop.f32.mrb[0].mxu0
        %1582 = vmatprep.mubr.f32.mxu0 0.0
        %1583 = vmatmul.mubr.f32.gmra.mrb[0].mxu0 %v1445
        %v1584 = vpop.f32.mrb[0].mxu0
        %v1585 = vadd.f32 %v1402, %v1584
        %v1586 = vpop.f32.mrb[0].mxu0
        %1587 = vmatprep.mubr.f32.mxu0 0.0
        %1588 = vmatmul.mubr.f32.gmra.mrb[0].mxu0 %v1448
        %v1589 = vpop.f32.mrb[0].mxu0
        %v1590 = vadd.f32 %v1402, %v1589
        %v1591 = vpop.f32.mrb[0].mxu0
        %1592 = vmatprep.mubr.f32.mxu0 0.0
        %1593 = vmatmul.mubr.f32.gmra.mrb[0].mxu0 %v1451
        %v1594 = vpop.f32.mrb[0].mxu0
        %v1595 = vadd.f32 %v1402, %v1594
        %v1596 = vpop.f32.mrb[0].mxu0
        %1597 = vdwg.mxu0
        %v1598 = vmax.f32 %v1520, 0.0
        %v1599 = vmax.f32 %v1525, 0.0
        %v1600 = vmax.f32 %v1530, 0.0
        %v1601 = vmax.f32 %v1535, 0.0
        %v1602 = vmax.f32 %v1540, 0.0
        %v1603 = vmax.f32 %v1545, 0.0
        %v1604 = vmax.f32 %v1550, 0.0
        %v1605 = vmax.f32 %v1555, 0.0
        %v1606 = vmax.f32 %v1560, 0.0
        %v1607 = vmax.f32 %v1565, 0.0
        %v1608 = vmax.f32 %v1570, 0.0
        %v1609 = vmax.f32 %v1575, 0.0
        %v1610 = vmax.f32 %v1580, 0.0
        %v1611 = vmax.f32 %v1585, 0.0
        %v1612 = vmax.f32 %v1590, 0.0
        %v1613 = vmax.f32 %v1595, 0.0
        %v1614 = vld [vmem:[%s512] sm:$0xff]
        %v1615 = vld [vmem:[%s512 + $0x8] sm:$0xff]
        %v1616 = vld [vmem:[%s512 + $0x10] sm:$0xff]
        %v1617 = vld [vmem:[%s512 + $0x18] sm:$0xff]
        %v1618 = vld [vmem:[%s512 + $0x20] sm:$0xff]
        %v1619 = vld [vmem:[%s512 + $0x28] sm:$0xff]
        %v1620 = vld [vmem:[%s512 + $0x30] sm:$0xff]
        %v1621 = vld [vmem:[%s512 + $0x38] sm:$0xff]
        %v1622 = vld [vmem:[%s512 + $0x40] sm:$0xff]
        %v1623 = vld [vmem:[%s512 + $0x48] sm:$0xff]
        %v1624 = vld [vmem:[%s512 + $0x50] sm:$0xff]
        %v1625 = vld [vmem:[%s512 + $0x58] sm:$0xff]
        %v1626 = vld [vmem:[%s512 + $0x60] sm:$0xff]
        %v1627 = vld [vmem:[%s512 + $0x68] sm:$0xff]
        %v1628 = vld [vmem:[%s512 + $0x70] sm:$0xff]
        %v1629 = vld [vmem:[%s512 + $0x78] sm:$0xff]
        %v1630 = vld [vmem:[%s9] sm:$0xff]
        %v1631 = vld [vmem:[%s9 + $0x8] sm:$0xff]
        %v1632 = vld [vmem:[%s9 + $0x10] sm:$0xff]
        %v1633 = vld [vmem:[%s9 + $0x18] sm:$0xff]
        %v1634 = vld [vmem:[%s9 + $0x20] sm:$0xff]
        %v1635 = vld [vmem:[%s9 + $0x28] sm:$0xff]
        %v1636 = vld [vmem:[%s9 + $0x30] sm:$0xff]
        %v1637 = vld [vmem:[%s9 + $0x38] sm:$0xff]
        %v1638 = vld [vmem:[%s10] sm:$0xff]
        %v1639 = vld [vmem:[%s10 + $0x8] sm:$0xff]
        %v1640 = vld [vmem:[%s10 + $0x10] sm:$0xff]
        %v1641 = vld [vmem:[%s10 + $0x18] sm:$0xff]
        %v1642 = vld [vmem:[%s11] sm:$0x1]
        %v1644 = vsel %vm1404, %v1598, 0
        %v1647 = vsel %vm1404, %v1599, 0
        %v1650 = vsel %vm1404, %v1600, 0
        %v1653 = vsel %vm1404, %v1601, 0
        %v1656 = vsel %vm1404, %v1602, 0
        %v1659 = vsel %vm1404, %v1603, 0
        %v1662 = vsel %vm1404, %v1604, 0
        %v1665 = vsel %vm1404, %v1605, 0
        %v1668 = vsel %vm1404, %v1606, 0
        %v1671 = vsel %vm1404, %v1607, 0
        %v1674 = vsel %vm1404, %v1608, 0
        %v1677 = vsel %vm1404, %v1609, 0
        %v1680 = vsel %vm1404, %v1610, 0
        %v1683 = vsel %vm1404, %v1611, 0
        %v1686 = vsel %vm1404, %v1612, 0
        %v1689 = vsel %vm1404, %v1613, 0
        %1691 = vmatprep.subr.mxu0 0.0
        %1692 = vmatpush1.msra.mxu0 %v1634
        %1693 = vmatprep.subr.mxu0 0.0
        %1694 = vmatpush1.msra.mxu0 %v1635
        %1695 = vmatprep.subr.mxu0 0.0
        %1696 = vmatpush1.msra.mxu0 0.0
        %1697 = vmatprep.subr.mxu0 0.0
        %1698 = vmatpush1.msra.mxu0 0.0
        %1699 = vmatprep.subr.mxu0 0.0
        %1700 = vmatpush1.msra.mxu0 0.0
        %1701 = vmatprep.subr.mxu0 0.0
        %1702 = vmatpush1.msra.mxu0 0.0
        %1703 = vmatprep.subr.mxu0 0.0
        %1704 = vmatpush1.msra.mxu0 0.0
        %1705 = vmatprep.subr.mxu0 0.0
        %1706 = vmatpush1.msra.mxu0 0.0
        %1707 = vmatprep.subr.mxu0 0.0
        %1708 = vmatpush1.msra.mxu0 0.0
        %1709 = vmatprep.subr.mxu0 0.0
        %1710 = vmatpush1.msra.mxu0 0.0
        %1711 = vmatprep.subr.mxu0 0.0
        %1712 = vmatpush1.msra.mxu0 0.0
        %1713 = vmatprep.subr.mxu0 0.0
        %1714 = vmatpush1.msra.mxu0 0.0
        %1715 = vmatprep.subr.mxu0 0.0
        %1716 = vmatpush1.msra.mxu0 0.0
        %1717 = vmatprep.subr.mxu0 0.0
        %1718 = vmatpush1.msra.mxu0 0.0
        %1719 = vmatprep.subr.mxu0 0.0
        %1720 = vmatpush1.msra.mxu0 0.0
        %1721 = vmatprep.subr.mxu0 0.0
        %1722 = vmatpush1.msra.mxu0 0.0
        %1723 = vmatprep.subr.mxu0 0.0
        %1724 = vmatpush1.msra.mxu0 0.0
        %1725 = vmatprep.subr.mxu0 0.0
        %1726 = vmatpush1.msra.mxu0 0.0
        %1727 = vmatprep.subr.mxu0 0.0
        %1728 = vmatpush1.msra.mxu0 0.0
        %1729 = vmatprep.subr.mxu0 0.0
        %1730 = vmatpush1.msra.mxu0 0.0
        %1731 = vmatprep.subr.mxu0 0.0
        %1732 = vmatpush1.msra.mxu0 0.0
        %1733 = vmatprep.subr.mxu0 0.0
        %1734 = vmatpush1.msra.mxu0 0.0
        %1735 = vmatprep.subr.mxu0 0.0
        %1736 = vmatpush1.msra.mxu0 0.0
        %1737 = vmatprep.subr.mxu0 0.0
        %1738 = vmatpush1.msra.mxu0 0.0
        %1739 = vmatprep.subr.mxu0 0.0
        %1740 = vmatpush1.msra.mxu0 0.0
        %1741 = vmatprep.subr.mxu0 0.0
        %1742 = vmatpush1.msra.mxu0 0.0
        %1743 = vmatprep.subr.mxu0 0.0
        %1744 = vmatpush1.msra.mxu0 0.0
        %1745 = vmatprep.subr.mxu0 0.0
        %1746 = vmatpush1.msra.mxu0 0.0
        %1747 = vmatprep.subr.mxu0 0.0
        %1748 = vmatpush1.msra.mxu0 0.0
        %1749 = vmatprep.subr.mxu0 0.0
        %1750 = vmatpush1.msra.mxu0 0.0
        %1751 = vmatprep.subr.mxu0 0.0
        %1752 = vmatpush1.msra.mxu0 0.0
        %1753 = vmatprep.subr.mxu0 0.0
        %1754 = vmatpush1.msra.mxu0 0.0
        %1755 = vmatprep.mubr.f32.mxu0 0.0
        %1756 = vmatmul.mubr.f32.gmra.mrb[0].mxu0 %v1644
        %v1757 = vpop.f32.mrb[0].mxu0
        %v1758 = vadd.f32 0.0, %v1757
        %v1759 = vpop.f32.mrb[0].mxu0
        %1760 = vmatprep.mubr.f32.mxu0 0.0
        %1761 = vmatmul.mubr.f32.gmra.mrb[0].mxu0 %v1647
        %v1762 = vpop.f32.mrb[0].mxu0
        %v1763 = vadd.f32 0.0, %v1762
        %v1764 = vpop.f32.mrb[0].mxu0
        %1765 = vmatprep.mubr.f32.mxu0 0.0
        %1766 = vmatmul.mubr.f32.gmra.mrb[0].mxu0 %v1650
        %v1767 = vpop.f32.mrb[0].mxu0
        %v1768 = vadd.f32 0.0, %v1767
        %v1769 = vpop.f32.mrb[0].mxu0
        %1770 = vmatprep.mubr.f32.mxu0 0.0
        %1771 = vmatmul.mubr.f32.gmra.mrb[0].mxu0 %v1653
        %v1772 = vpop.f32.mrb[0].mxu0
        %v1773 = vadd.f32 0.0, %v1772
        %v1774 = vpop.f32.mrb[0].mxu0
        %1775 = vmatprep.mubr.f32.mxu0 0.0
        %1776 = vmatmul.mubr.f32.gmra.mrb[0].mxu0 %v1656
        %v1777 = vpop.f32.mrb[0].mxu0
        %v1778 = vadd.f32 0.0, %v1777
        %v1779 = vpop.f32.mrb[0].mxu0
        %1780 = vmatprep.mubr.f32.mxu0 0.0
        %1781 = vmatmul.mubr.f32.gmra.mrb[0].mxu0 %v1659
        %v1782 = vpop.f32.mrb[0].mxu0
        %v1783 = vadd.f32 0.0, %v1782
        %v1784 = vpop.f32.mrb[0].mxu0
        %1785 = vmatprep.mubr.f32.mxu0 0.0
        %1786 = vmatmul.mubr.f32.gmra.mrb[0].mxu0 %v1662
        %v1787 = vpop.f32.mrb[0].mxu0
        %v1788 = vadd.f32 0.0, %v1787
        %v1789 = vpop.f32.mrb[0].mxu0
        %1790 = vmatprep.mubr.f32.mxu0 0.0
        %1791 = vmatmul.mubr.f32.gmra.mrb[0].mxu0 %v1665
        %v1792 = vpop.f32.mrb[0].mxu0
        %v1793 = vadd.f32 0.0, %v1792
        %v1794 = vpop.f32.mrb[0].mxu0
        %1795 = vmatprep.mubr.f32.mxu0 0.0
        %1796 = vmatmul.mubr.f32.gmra.mrb[0].mxu0 %v1668
        %v1797 = vpop.f32.mrb[0].mxu0
        %v1798 = vadd.f32 0.0, %v1797
        %v1799 = vpop.f32.mrb[0].mxu0
        %1800 = vmatprep.mubr.f32.mxu0 0.0
        %1801 = vmatmul.mubr.f32.gmra.mrb[0].mxu0 %v1671
        %v1802 = vpop.f32.mrb[0].mxu0
        %v1803 = vadd.f32 0.0, %v1802
        %v1804 = vpop.f32.mrb[0].mxu0
        %1805 = vmatprep.mubr.f32.mxu0 0.0
        %1806 = vmatmul.mubr.f32.gmra.mrb[0].mxu0 %v1674
        %v1807 = vpop.f32.mrb[0].mxu0
        %v1808 = vadd.f32 0.0, %v1807
        %v1809 = vpop.f32.mrb[0].mxu0
        %1810 = vmatprep.mubr.f32.mxu0 0.0
        %1811 = vmatmul.mubr.f32.gmra.mrb[0].mxu0 %v1677
        %v1812 = vpop.f32.mrb[0].mxu0
        %v1813 = vadd.f32 0.0, %v1812
        %v1814 = vpop.f32.mrb[0].mxu0
        %1815 = vmatprep.mubr.f32.mxu0 0.0
        %1816 = vmatmul.mubr.f32.gmra.mrb[0].mxu0 %v1680
        %v1817 = vpop.f32.mrb[0].mxu0
        %v1818 = vadd.f32 0.0, %v1817
        %v1819 = vpop.f32.mrb[0].mxu0
        %1820 = vmatprep.mubr.f32.mxu0 0.0
        %1821 = vmatmul.mubr.f32.gmra.mrb[0].mxu0 %v1683
        %v1822 = vpop.f32.mrb[0].mxu0
        %v1823 = vadd.f32 0.0, %v1822
        %v1824 = vpop.f32.mrb[0].mxu0
        %1825 = vmatprep.mubr.f32.mxu0 0.0
        %1826 = vmatmul.mubr.f32.gmra.mrb[0].mxu0 %v1686
        %v1827 = vpop.f32.mrb[0].mxu0
        %v1828 = vadd.f32 0.0, %v1827
        %v1829 = vpop.f32.mrb[0].mxu0
        %1830 = vmatprep.mubr.f32.mxu0 0.0
        %1831 = vmatmul.mubr.f32.gmra.mrb[0].mxu0 %v1689
        %v1832 = vpop.f32.mrb[0].mxu0
        %v1833 = vadd.f32 0.0, %v1832
        %v1834 = vpop.f32.mrb[0].mxu0
        %1835 = vdwg.mxu0
        %v1837 = vsel %vm1404, %v1614, 0
        %v1840 = vsel %vm1404, %v1615, 0
        %v1843 = vsel %vm1404, %v1616, 0
        %v1846 = vsel %vm1404, %v1617, 0
        %v1849 = vsel %vm1404, %v1618, 0
        %v1852 = vsel %vm1404, %v1619, 0
        %v1855 = vsel %vm1404, %v1620, 0
        %v1858 = vsel %vm1404, %v1621, 0
        %v1861 = vsel %vm1404, %v1622, 0
        %v1864 = vsel %vm1404, %v1623, 0
        %v1867 = vsel %vm1404, %v1624, 0
        %v1870 = vsel %vm1404, %v1625, 0
        %v1873 = vsel %vm1404, %v1626, 0
        %v1876 = vsel %vm1404, %v1627, 0
        %v1879 = vsel %vm1404, %v1628, 0
        %v1882 = vsel %vm1404, %v1629, 0
        %1884 = vmatprep.subr.mxu0 0.0
        %1885 = vmatpush1.msra.mxu0 %v1630
        %1886 = vmatprep.subr.mxu0 0.0
        %1887 = vmatpush1.msra.mxu0 %v1631
        %1888 = vmatprep.subr.mxu0 0.0
        %1889 = vmatpush1.msra.mxu0 0.0
        %1890 = vmatprep.subr.mxu0 0.0
        %1891 = vmatpush1.msra.mxu0 0.0
        %1892 = vmatprep.subr.mxu0 0.0
        %1893 = vmatpush1.msra.mxu0 0.0
        %1894 = vmatprep.subr.mxu0 0.0
        %1895 = vmatpush1.msra.mxu0 0.0
        %1896 = vmatprep.subr.mxu0 0.0
        %1897 = vmatpush1.msra.mxu0 0.0
        %1898 = vmatprep.subr.mxu0 0.0
        %1899 = vmatpush1.msra.mxu0 0.0
        %1900 = vmatprep.subr.mxu0 0.0
        %1901 = vmatpush1.msra.mxu0 0.0
        %1902 = vmatprep.subr.mxu0 0.0
        %1903 = vmatpush1.msra.mxu0 0.0
        %1904 = vmatprep.subr.mxu0 0.0
        %1905 = vmatpush1.msra.mxu0 0.0
        %1906 = vmatprep.subr.mxu0 0.0
        %1907 = vmatpush1.msra.mxu0 0.0
        %1908 = vmatprep.subr.mxu0 0.0
        %1909 = vmatpush1.msra.mxu0 0.0
        %1910 = vmatprep.subr.mxu0 0.0
        %1911 = vmatpush1.msra.mxu0 0.0
        %1912 = vmatprep.subr.mxu0 0.0
        %1913 = vmatpush1.msra.mxu0 0.0
        %1914 = vmatprep.subr.mxu0 0.0
        %1915 = vmatpush1.msra.mxu0 0.0
        %1916 = vmatprep.subr.mxu0 0.0
        %1917 = vmatpush1.msra.mxu0 0.0
        %1918 = vmatprep.subr.mxu0 0.0
        %1919 = vmatpush1.msra.mxu0 0.0
        %1920 = vmatprep.subr.mxu0 0.0
        %1921 = vmatpush1.msra.mxu0 0.0
        %1922 = vmatprep.subr.mxu0 0.0
        %1923 = vmatpush1.msra.mxu0 0.0
        %1924 = vmatprep.subr.mxu0 0.0
        %1925 = vmatpush1.msra.mxu0 0.0
        %1926 = vmatprep.subr.mxu0 0.0
        %1927 = vmatpush1.msra.mxu0 0.0
        %1928 = vmatprep.subr.mxu0 0.0
        %1929 = vmatpush1.msra.mxu0 0.0
        %1930 = vmatprep.subr.mxu0 0.0
        %1931 = vmatpush1.msra.mxu0 0.0
        %1932 = vmatprep.subr.mxu0 0.0
        %1933 = vmatpush1.msra.mxu0 0.0
        %1934 = vmatprep.subr.mxu0 0.0
        %1935 = vmatpush1.msra.mxu0 0.0
        %1936 = vmatprep.subr.mxu0 0.0
        %1937 = vmatpush1.msra.mxu0 0.0
        %1938 = vmatprep.subr.mxu0 0.0
        %1939 = vmatpush1.msra.mxu0 0.0
        %1940 = vmatprep.subr.mxu0 0.0
        %1941 = vmatpush1.msra.mxu0 0.0
        %1942 = vmatprep.subr.mxu0 0.0
        %1943 = vmatpush1.msra.mxu0 0.0
        %1944 = vmatprep.subr.mxu0 0.0
        %1945 = vmatpush1.msra.mxu0 0.0
        %1946 = vmatprep.subr.mxu0 0.0
        %1947 = vmatpush1.msra.mxu0 0.0
        %1948 = vmatprep.mubr.f32.mxu0 0.0
        %1949 = vmatmul.mubr.f32.gmra.mrb[0].mxu0 %v1837
        %v1950 = vpop.f32.mrb[0].mxu0
        %v1951 = vadd.f32 %v1758, %v1950
        %v1952 = vpop.f32.mrb[0].mxu0
        %1953 = vmatprep.mubr.f32.mxu0 0.0
        %1954 = vmatmul.mubr.f32.gmra.mrb[0].mxu0 %v1840
        %v1955 = vpop.f32.mrb[0].mxu0
        %v1956 = vadd.f32 %v1763, %v1955
        %v1957 = vpop.f32.mrb[0].mxu0
        %1958 = vmatprep.mubr.f32.mxu0 0.0
        %1959 = vmatmul.mubr.f32.gmra.mrb[0].mxu0 %v1843
        %v1960 = vpop.f32.mrb[0].mxu0
        %v1961 = vadd.f32 %v1768, %v1960
        %v1962 = vpop.f32.mrb[0].mxu0
        %1963 = vmatprep.mubr.f32.mxu0 0.0
        %1964 = vmatmul.mubr.f32.gmra.mrb[0].mxu0 %v1846
        %v1965 = vpop.f32.mrb[0].mxu0
        %v1966 = vadd.f32 %v1773, %v1965
        %v1967 = vpop.f32.mrb[0].mxu0
        %1968 = vmatprep.mubr.f32.mxu0 0.0
        %1969 = vmatmul.mubr.f32.gmra.mrb[0].mxu0 %v1849
        %v1970 = vpop.f32.mrb[0].mxu0
        %v1971 = vadd.f32 %v1778, %v1970
        %v1972 = vpop.f32.mrb[0].mxu0
        %1973 = vmatprep.mubr.f32.mxu0 0.0
        %1974 = vmatmul.mubr.f32.gmra.mrb[0].mxu0 %v1852
        %v1975 = vpop.f32.mrb[0].mxu0
        %v1976 = vadd.f32 %v1783, %v1975
        %v1977 = vpop.f32.mrb[0].mxu0
        %1978 = vmatprep.mubr.f32.mxu0 0.0
        %1979 = vmatmul.mubr.f32.gmra.mrb[0].mxu0 %v1855
        %v1980 = vpop.f32.mrb[0].mxu0
        %v1981 = vadd.f32 %v1788, %v1980
        %v1982 = vpop.f32.mrb[0].mxu0
        %1983 = vmatprep.mubr.f32.mxu0 0.0
        %1984 = vmatmul.mubr.f32.gmra.mrb[0].mxu0 %v1858
        %v1985 = vpop.f32.mrb[0].mxu0
        %v1986 = vadd.f32 %v1793, %v1985
        %v1987 = vpop.f32.mrb[0].mxu0
        %1988 = vmatprep.mubr.f32.mxu0 0.0
        %1989 = vmatmul.mubr.f32.gmra.mrb[0].mxu0 %v1861
        %v1990 = vpop.f32.mrb[0].mxu0
        %v1991 = vadd.f32 %v1798, %v1990
        %v1992 = vpop.f32.mrb[0].mxu0
        %1993 = vmatprep.mubr.f32.mxu0 0.0
        %1994 = vmatmul.mubr.f32.gmra.mrb[0].mxu0 %v1864
        %v1995 = vpop.f32.mrb[0].mxu0
        %v1996 = vadd.f32 %v1803, %v1995
        %v1997 = vpop.f32.mrb[0].mxu0
        %1998 = vmatprep.mubr.f32.mxu0 0.0
        %1999 = vmatmul.mubr.f32.gmra.mrb[0].mxu0 %v1867
        %v2000 = vpop.f32.mrb[0].mxu0
        %v2001 = vadd.f32 %v1808, %v2000
        %v2002 = vpop.f32.mrb[0].mxu0
        %2003 = vmatprep.mubr.f32.mxu0 0.0
        %2004 = vmatmul.mubr.f32.gmra.mrb[0].mxu0 %v1870
        %v2005 = vpop.f32.mrb[0].mxu0
        %v2006 = vadd.f32 %v1813, %v2005
        %v2007 = vpop.f32.mrb[0].mxu0
        %2008 = vmatprep.mubr.f32.mxu0 0.0
        %2009 = vmatmul.mubr.f32.gmra.mrb[0].mxu0 %v1873
        %v2010 = vpop.f32.mrb[0].mxu0
        %v2011 = vadd.f32 %v1818, %v2010
        %v2012 = vpop.f32.mrb[0].mxu0
        %2013 = vmatprep.mubr.f32.mxu0 0.0
        %2014 = vmatmul.mubr.f32.gmra.mrb[0].mxu0 %v1876
        %v2015 = vpop.f32.mrb[0].mxu0
        %v2016 = vadd.f32 %v1823, %v2015
        %v2017 = vpop.f32.mrb[0].mxu0
        %2018 = vmatprep.mubr.f32.mxu0 0.0
        %2019 = vmatmul.mubr.f32.gmra.mrb[0].mxu0 %v1879
        %v2020 = vpop.f32.mrb[0].mxu0
        %v2021 = vadd.f32 %v1828, %v2020
        %v2022 = vpop.f32.mrb[0].mxu0
        %2023 = vmatprep.mubr.f32.mxu0 0.0
        %2024 = vmatmul.mubr.f32.gmra.mrb[0].mxu0 %v1882
        %v2025 = vpop.f32.mrb[0].mxu0
        %v2026 = vadd.f32 %v1833, %v2025
        %v2027 = vpop.f32.mrb[0].mxu0
        %2028 = vdwg.mxu0
        %2029 = vmatprep.subr.mxu0 0.0
        %2030 = vmatpush1.msra.mxu0 %v1636
        %2031 = vmatprep.subr.mxu0 0.0
        %2032 = vmatpush1.msra.mxu0 %v1637
        %2033 = vmatprep.subr.mxu0 0.0
        %2034 = vmatpush1.msra.mxu0 0.0
        %2035 = vmatprep.subr.mxu0 0.0
        %2036 = vmatpush1.msra.mxu0 0.0
        %2037 = vmatprep.subr.mxu0 0.0
        %2038 = vmatpush1.msra.mxu0 0.0
        %2039 = vmatprep.subr.mxu0 0.0
        %2040 = vmatpush1.msra.mxu0 0.0
        %2041 = vmatprep.subr.mxu0 0.0
        %2042 = vmatpush1.msra.mxu0 0.0
        %2043 = vmatprep.subr.mxu0 0.0
        %2044 = vmatpush1.msra.mxu0 0.0
        %2045 = vmatprep.subr.mxu0 0.0
        %2046 = vmatpush1.msra.mxu0 0.0
        %2047 = vmatprep.subr.mxu0 0.0
        %2048 = vmatpush1.msra.mxu0 0.0
        %2049 = vmatprep.subr.mxu0 0.0
        %2050 = vmatpush1.msra.mxu0 0.0
        %2051 = vmatprep.subr.mxu0 0.0
        %2052 = vmatpush1.msra.mxu0 0.0
        %2053 = vmatprep.subr.mxu0 0.0
        %2054 = vmatpush1.msra.mxu0 0.0
        %2055 = vmatprep.subr.mxu0 0.0
        %2056 = vmatpush1.msra.mxu0 0.0
        %2057 = vmatprep.subr.mxu0 0.0
        %2058 = vmatpush1.msra.mxu0 0.0
        %2059 = vmatprep.subr.mxu0 0.0
        %2060 = vmatpush1.msra.mxu0 0.0
        %2061 = vmatprep.subr.mxu0 0.0
        %2062 = vmatpush1.msra.mxu0 0.0
        %2063 = vmatprep.subr.mxu0 0.0
        %2064 = vmatpush1.msra.mxu0 0.0
        %2065 = vmatprep.subr.mxu0 0.0
        %2066 = vmatpush1.msra.mxu0 0.0
        %2067 = vmatprep.subr.mxu0 0.0
        %2068 = vmatpush1.msra.mxu0 0.0
        %2069 = vmatprep.subr.mxu0 0.0
        %2070 = vmatpush1.msra.mxu0 0.0
        %2071 = vmatprep.subr.mxu0 0.0
        %2072 = vmatpush1.msra.mxu0 0.0
        %2073 = vmatprep.subr.mxu0 0.0
        %2074 = vmatpush1.msra.mxu0 0.0
        %2075 = vmatprep.subr.mxu0 0.0
        %2076 = vmatpush1.msra.mxu0 0.0
        %2077 = vmatprep.subr.mxu0 0.0
        %2078 = vmatpush1.msra.mxu0 0.0
        %2079 = vmatprep.subr.mxu0 0.0
        %2080 = vmatpush1.msra.mxu0 0.0
        %2081 = vmatprep.subr.mxu0 0.0
        %2082 = vmatpush1.msra.mxu0 0.0
        %2083 = vmatprep.subr.mxu0 0.0
        %2084 = vmatpush1.msra.mxu0 0.0
        %2085 = vmatprep.subr.mxu0 0.0
        %2086 = vmatpush1.msra.mxu0 0.0
        %2087 = vmatprep.subr.mxu0 0.0
        %2088 = vmatpush1.msra.mxu0 0.0
        %2089 = vmatprep.subr.mxu0 0.0
        %2090 = vmatpush1.msra.mxu0 0.0
        %2091 = vmatprep.subr.mxu0 0.0
        %2092 = vmatpush1.msra.mxu0 0.0
        %2093 = vmatprep.mubr.f32.mxu0 0.0
        %2094 = vmatmul.mubr.f32.gmra.mrb[0].mxu0 %v1644
        %v2095 = vpop.f32.mrb[0].mxu0
        %v2096 = vadd.f32 0.0, %v2095
        %v2097 = vpop.f32.mrb[0].mxu0
        %2098 = vmatprep.mubr.f32.mxu0 0.0
        %2099 = vmatmul.mubr.f32.gmra.mrb[0].mxu0 %v1647
        %v2100 = vpop.f32.mrb[0].mxu0
        %v2101 = vadd.f32 0.0, %v2100
        %v2102 = vpop.f32.mrb[0].mxu0
        %2103 = vmatprep.mubr.f32.mxu0 0.0
        %2104 = vmatmul.mubr.f32.gmra.mrb[0].mxu0 %v1650
        %v2105 = vpop.f32.mrb[0].mxu0
        %v2106 = vadd.f32 0.0, %v2105
        %v2107 = vpop.f32.mrb[0].mxu0
        %2108 = vmatprep.mubr.f32.mxu0 0.0
        %2109 = vmatmul.mubr.f32.gmra.mrb[0].mxu0 %v1653
        %v2110 = vpop.f32.mrb[0].mxu0
        %v2111 = vadd.f32 0.0, %v2110
        %v2112 = vpop.f32.mrb[0].mxu0
        %2113 = vmatprep.mubr.f32.mxu0 0.0
        %2114 = vmatmul.mubr.f32.gmra.mrb[0].mxu0 %v1656
        %v2115 = vpop.f32.mrb[0].mxu0
        %v2116 = vadd.f32 0.0, %v2115
        %v2117 = vpop.f32.mrb[0].mxu0
        %2118 = vmatprep.mubr.f32.mxu0 0.0
        %2119 = vmatmul.mubr.f32.gmra.mrb[0].mxu0 %v1659
        %v2120 = vpop.f32.mrb[0].mxu0
        %v2121 = vadd.f32 0.0, %v2120
        %v2122 = vpop.f32.mrb[0].mxu0
        %2123 = vmatprep.mubr.f32.mxu0 0.0
        %2124 = vmatmul.mubr.f32.gmra.mrb[0].mxu0 %v1662
        %v2125 = vpop.f32.mrb[0].mxu0
        %v2126 = vadd.f32 0.0, %v2125
        %v2127 = vpop.f32.mrb[0].mxu0
        %2128 = vmatprep.mubr.f32.mxu0 0.0
        %2129 = vmatmul.mubr.f32.gmra.mrb[0].mxu0 %v1665
        %v2130 = vpop.f32.mrb[0].mxu0
        %v2131 = vadd.f32 0.0, %v2130
        %v2132 = vpop.f32.mrb[0].mxu0
        %2133 = vmatprep.mubr.f32.mxu0 0.0
        %2134 = vmatmul.mubr.f32.gmra.mrb[0].mxu0 %v1668
        %v2135 = vpop.f32.mrb[0].mxu0
        %v2136 = vadd.f32 0.0, %v2135
        %v2137 = vpop.f32.mrb[0].mxu0
        %2138 = vmatprep.mubr.f32.mxu0 0.0
        %2139 = vmatmul.mubr.f32.gmra.mrb[0].mxu0 %v1671
        %v2140 = vpop.f32.mrb[0].mxu0
        %v2141 = vadd.f32 0.0, %v2140
        %v2142 = vpop.f32.mrb[0].mxu0
        %2143 = vmatprep.mubr.f32.mxu0 0.0
        %2144 = vmatmul.mubr.f32.gmra.mrb[0].mxu0 %v1674
        %v2145 = vpop.f32.mrb[0].mxu0
        %v2146 = vadd.f32 0.0, %v2145
        %v2147 = vpop.f32.mrb[0].mxu0
        %2148 = vmatprep.mubr.f32.mxu0 0.0
        %2149 = vmatmul.mubr.f32.gmra.mrb[0].mxu0 %v1677
        %v2150 = vpop.f32.mrb[0].mxu0
        %v2151 = vadd.f32 0.0, %v2150
        %v2152 = vpop.f32.mrb[0].mxu0
        %2153 = vmatprep.mubr.f32.mxu0 0.0
        %2154 = vmatmul.mubr.f32.gmra.mrb[0].mxu0 %v1680
        %v2155 = vpop.f32.mrb[0].mxu0
        %v2156 = vadd.f32 0.0, %v2155
        %v2157 = vpop.f32.mrb[0].mxu0
        %2158 = vmatprep.mubr.f32.mxu0 0.0
        %2159 = vmatmul.mubr.f32.gmra.mrb[0].mxu0 %v1683
        %v2160 = vpop.f32.mrb[0].mxu0
        %v2161 = vadd.f32 0.0, %v2160
        %v2162 = vpop.f32.mrb[0].mxu0
        %2163 = vmatprep.mubr.f32.mxu0 0.0
        %2164 = vmatmul.mubr.f32.gmra.mrb[0].mxu0 %v1686
        %v2165 = vpop.f32.mrb[0].mxu0
        %v2166 = vadd.f32 0.0, %v2165
        %v2167 = vpop.f32.mrb[0].mxu0
        %2168 = vmatprep.mubr.f32.mxu0 0.0
        %2169 = vmatmul.mubr.f32.gmra.mrb[0].mxu0 %v1689
        %v2170 = vpop.f32.mrb[0].mxu0
        %v2171 = vadd.f32 0.0, %v2170
        %v2172 = vpop.f32.mrb[0].mxu0
        %2173 = vdwg.mxu0
        %2174 = vmatprep.subr.mxu0 0.0
        %2175 = vmatpush1.msra.mxu0 %v1632
        %2176 = vmatprep.subr.mxu0 0.0
        %2177 = vmatpush1.msra.mxu0 %v1633
        %2178 = vmatprep.subr.mxu0 0.0
        %2179 = vmatpush1.msra.mxu0 0.0
        %2180 = vmatprep.subr.mxu0 0.0
        %2181 = vmatpush1.msra.mxu0 0.0
        %2182 = vmatprep.subr.mxu0 0.0
        %2183 = vmatpush1.msra.mxu0 0.0
        %2184 = vmatprep.subr.mxu0 0.0
        %2185 = vmatpush1.msra.mxu0 0.0
        %2186 = vmatprep.subr.mxu0 0.0
        %2187 = vmatpush1.msra.mxu0 0.0
        %2188 = vmatprep.subr.mxu0 0.0
        %2189 = vmatpush1.msra.mxu0 0.0
        %2190 = vmatprep.subr.mxu0 0.0
        %2191 = vmatpush1.msra.mxu0 0.0
        %2192 = vmatprep.subr.mxu0 0.0
        %2193 = vmatpush1.msra.mxu0 0.0
        %2194 = vmatprep.subr.mxu0 0.0
        %2195 = vmatpush1.msra.mxu0 0.0
        %2196 = vmatprep.subr.mxu0 0.0
        %2197 = vmatpush1.msra.mxu0 0.0
        %2198 = vmatprep.subr.mxu0 0.0
        %2199 = vmatpush1.msra.mxu0 0.0
        %2200 = vmatprep.subr.mxu0 0.0
        %2201 = vmatpush1.msra.mxu0 0.0
        %2202 = vmatprep.subr.mxu0 0.0
        %2203 = vmatpush1.msra.mxu0 0.0
        %2204 = vmatprep.subr.mxu0 0.0
        %2205 = vmatpush1.msra.mxu0 0.0
        %2206 = vmatprep.subr.mxu0 0.0
        %2207 = vmatpush1.msra.mxu0 0.0
        %2208 = vmatprep.subr.mxu0 0.0
        %2209 = vmatpush1.msra.mxu0 0.0
        %2210 = vmatprep.subr.mxu0 0.0
        %2211 = vmatpush1.msra.mxu0 0.0
        %2212 = vmatprep.subr.mxu0 0.0
        %2213 = vmatpush1.msra.mxu0 0.0
        %2214 = vmatprep.subr.mxu0 0.0
        %2215 = vmatpush1.msra.mxu0 0.0
        %2216 = vmatprep.subr.mxu0 0.0
        %2217 = vmatpush1.msra.mxu0 0.0
        %2218 = vmatprep.subr.mxu0 0.0
        %2219 = vmatpush1.msra.mxu0 0.0
        %2220 = vmatprep.subr.mxu0 0.0
        %2221 = vmatpush1.msra.mxu0 0.0
        %2222 = vmatprep.subr.mxu0 0.0
        %2223 = vmatpush1.msra.mxu0 0.0
        %2224 = vmatprep.subr.mxu0 0.0
        %2225 = vmatpush1.msra.mxu0 0.0
        %2226 = vmatprep.subr.mxu0 0.0
        %2227 = vmatpush1.msra.mxu0 0.0
        %2228 = vmatprep.subr.mxu0 0.0
        %2229 = vmatpush1.msra.mxu0 0.0
        %2230 = vmatprep.subr.mxu0 0.0
        %2231 = vmatpush1.msra.mxu0 0.0
        %2232 = vmatprep.subr.mxu0 0.0
        %2233 = vmatpush1.msra.mxu0 0.0
        %2234 = vmatprep.subr.mxu0 0.0
        %2235 = vmatpush1.msra.mxu0 0.0
        %2236 = vmatprep.subr.mxu0 0.0
        %2237 = vmatpush1.msra.mxu0 0.0
        %2238 = vmatprep.mubr.f32.mxu0 0.0
        %2239 = vmatmul.mubr.f32.gmra.mrb[0].mxu0 %v1837
        %v2240 = vpop.f32.mrb[0].mxu0
        %v2241 = vadd.f32 %v2096, %v2240
        %v2242 = vpop.f32.mrb[0].mxu0
        %2243 = vmatprep.mubr.f32.mxu0 0.0
        %2244 = vmatmul.mubr.f32.gmra.mrb[0].mxu0 %v1840
        %v2245 = vpop.f32.mrb[0].mxu0
        %v2246 = vadd.f32 %v2101, %v2245
        %v2247 = vpop.f32.mrb[0].mxu0
        %2248 = vmatprep.mubr.f32.mxu0 0.0
        %2249 = vmatmul.mubr.f32.gmra.mrb[0].mxu0 %v1843
        %v2250 = vpop.f32.mrb[0].mxu0
        %v2251 = vadd.f32 %v2106, %v2250
        %v2252 = vpop.f32.mrb[0].mxu0
        %2253 = vmatprep.mubr.f32.mxu0 0.0
        %2254 = vmatmul.mubr.f32.gmra.mrb[0].mxu0 %v1846
        %v2255 = vpop.f32.mrb[0].mxu0
        %v2256 = vadd.f32 %v2111, %v2255
        %v2257 = vpop.f32.mrb[0].mxu0
        %2258 = vmatprep.mubr.f32.mxu0 0.0
        %2259 = vmatmul.mubr.f32.gmra.mrb[0].mxu0 %v1849
        %v2260 = vpop.f32.mrb[0].mxu0
        %v2261 = vadd.f32 %v2116, %v2260
        %v2262 = vpop.f32.mrb[0].mxu0
        %2263 = vmatprep.mubr.f32.mxu0 0.0
        %2264 = vmatmul.mubr.f32.gmra.mrb[0].mxu0 %v1852
        %v2265 = vpop.f32.mrb[0].mxu0
        %v2266 = vadd.f32 %v2121, %v2265
        %v2267 = vpop.f32.mrb[0].mxu0
        %2268 = vmatprep.mubr.f32.mxu0 0.0
        %2269 = vmatmul.mubr.f32.gmra.mrb[0].mxu0 %v1855
        %v2270 = vpop.f32.mrb[0].mxu0
        %v2271 = vadd.f32 %v2126, %v2270
        %v2272 = vpop.f32.mrb[0].mxu0
        %2273 = vmatprep.mubr.f32.mxu0 0.0
        %2274 = vmatmul.mubr.f32.gmra.mrb[0].mxu0 %v1858
        %v2275 = vpop.f32.mrb[0].mxu0
        %v2276 = vadd.f32 %v2131, %v2275
        %v2277 = vpop.f32.mrb[0].mxu0
        %2278 = vmatprep.mubr.f32.mxu0 0.0
        %2279 = vmatmul.mubr.f32.gmra.mrb[0].mxu0 %v1861
        %v2280 = vpop.f32.mrb[0].mxu0
        %v2281 = vadd.f32 %v2136, %v2280
        %v2282 = vpop.f32.mrb[0].mxu0
        %2283 = vmatprep.mubr.f32.mxu0 0.0
        %2284 = vmatmul.mubr.f32.gmra.mrb[0].mxu0 %v1864
        %v2285 = vpop.f32.mrb[0].mxu0
        %v2286 = vadd.f32 %v2141, %v2285
        %v2287 = vpop.f32.mrb[0].mxu0
        %2288 = vmatprep.mubr.f32.mxu0 0.0
        %2289 = vmatmul.mubr.f32.gmra.mrb[0].mxu0 %v1867
        %v2290 = vpop.f32.mrb[0].mxu0
        %v2291 = vadd.f32 %v2146, %v2290
        %v2292 = vpop.f32.mrb[0].mxu0
        %2293 = vmatprep.mubr.f32.mxu0 0.0
        %2294 = vmatmul.mubr.f32.gmra.mrb[0].mxu0 %v1870
        %v2295 = vpop.f32.mrb[0].mxu0
        %v2296 = vadd.f32 %v2151, %v2295
        %v2297 = vpop.f32.mrb[0].mxu0
        %2298 = vmatprep.mubr.f32.mxu0 0.0
        %2299 = vmatmul.mubr.f32.gmra.mrb[0].mxu0 %v1873
        %v2300 = vpop.f32.mrb[0].mxu0
        %v2301 = vadd.f32 %v2156, %v2300
        %v2302 = vpop.f32.mrb[0].mxu0
        %2303 = vmatprep.mubr.f32.mxu0 0.0
        %2304 = vmatmul.mubr.f32.gmra.mrb[0].mxu0 %v1876
        %v2305 = vpop.f32.mrb[0].mxu0
        %v2306 = vadd.f32 %v2161, %v2305
        %v2307 = vpop.f32.mrb[0].mxu0
        %2308 = vmatprep.mubr.f32.mxu0 0.0
        %2309 = vmatmul.mubr.f32.gmra.mrb[0].mxu0 %v1879
        %v2310 = vpop.f32.mrb[0].mxu0
        %v2311 = vadd.f32 %v2166, %v2310
        %v2312 = vpop.f32.mrb[0].mxu0
        %2313 = vmatprep.mubr.f32.mxu0 0.0
        %2314 = vmatmul.mubr.f32.gmra.mrb[0].mxu0 %v1882
        %v2315 = vpop.f32.mrb[0].mxu0
        %v2316 = vadd.f32 %v2171, %v2315
        %v2317 = vpop.f32.mrb[0].mxu0
        %2318 = vdwg.mxu0
        %v2319 = vsel %vm1404, %v1951, -inf
        %v2320 = vrot.slane %v2319, 4
        %v2321 = vmax.f32 %v2319, %v2320
        %v2322 = vrot.slane %v2321, 2
        %v2323 = vmax.f32 %v2321, %v2322
        %v2324 = vrot.slane %v2323, 1
        %v2325 = vmax.f32 %v2323, %v2324
        %v2326 = vsel %vm1404, %v1956, -inf
        %v2327 = vrot.slane %v2326, 4
        %v2328 = vmax.f32 %v2326, %v2327
        %v2329 = vrot.slane %v2328, 2
        %v2330 = vmax.f32 %v2328, %v2329
        %v2331 = vrot.slane %v2330, 1
        %v2332 = vmax.f32 %v2330, %v2331
        %v2333 = vsel %vm1404, %v1961, -inf
        %v2334 = vrot.slane %v2333, 4
        %v2335 = vmax.f32 %v2333, %v2334
        %v2336 = vrot.slane %v2335, 2
        %v2337 = vmax.f32 %v2335, %v2336
        %v2338 = vrot.slane %v2337, 1
        %v2339 = vmax.f32 %v2337, %v2338
        %v2340 = vsel %vm1404, %v1966, -inf
        %v2341 = vrot.slane %v2340, 4
        %v2342 = vmax.f32 %v2340, %v2341
        %v2343 = vrot.slane %v2342, 2
        %v2344 = vmax.f32 %v2342, %v2343
        %v2345 = vrot.slane %v2344, 1
        %v2346 = vmax.f32 %v2344, %v2345
        %v2347 = vsel %vm1404, %v1971, -inf
        %v2348 = vrot.slane %v2347, 4
        %v2349 = vmax.f32 %v2347, %v2348
        %v2350 = vrot.slane %v2349, 2
        %v2351 = vmax.f32 %v2349, %v2350
        %v2352 = vrot.slane %v2351, 1
        %v2353 = vmax.f32 %v2351, %v2352
        %v2354 = vsel %vm1404, %v1976, -inf
        %v2355 = vrot.slane %v2354, 4
        %v2356 = vmax.f32 %v2354, %v2355
        %v2357 = vrot.slane %v2356, 2
        %v2358 = vmax.f32 %v2356, %v2357
        %v2359 = vrot.slane %v2358, 1
        %v2360 = vmax.f32 %v2358, %v2359
        %v2361 = vsel %vm1404, %v1981, -inf
        %v2362 = vrot.slane %v2361, 4
        %v2363 = vmax.f32 %v2361, %v2362
        %v2364 = vrot.slane %v2363, 2
        %v2365 = vmax.f32 %v2363, %v2364
        %v2366 = vrot.slane %v2365, 1
        %v2367 = vmax.f32 %v2365, %v2366
        %v2368 = vsel %vm1404, %v1986, -inf
        %v2369 = vrot.slane %v2368, 4
        %v2370 = vmax.f32 %v2368, %v2369
        %v2371 = vrot.slane %v2370, 2
        %v2372 = vmax.f32 %v2370, %v2371
        %v2373 = vrot.slane %v2372, 1
        %v2374 = vmax.f32 %v2372, %v2373
        %v2375 = vsel %vm1404, %v1991, -inf
        %v2376 = vrot.slane %v2375, 4
        %v2377 = vmax.f32 %v2375, %v2376
        %v2378 = vrot.slane %v2377, 2
        %v2379 = vmax.f32 %v2377, %v2378
        %v2380 = vrot.slane %v2379, 1
        %v2381 = vmax.f32 %v2379, %v2380
        %v2382 = vsel %vm1404, %v1996, -inf
        %v2383 = vrot.slane %v2382, 4
        %v2384 = vmax.f32 %v2382, %v2383
        %v2385 = vrot.slane %v2384, 2
        %v2386 = vmax.f32 %v2384, %v2385
        %v2387 = vrot.slane %v2386, 1
        %v2388 = vmax.f32 %v2386, %v2387
        %v2389 = vsel %vm1404, %v2001, -inf
        %v2390 = vrot.slane %v2389, 4
        %v2391 = vmax.f32 %v2389, %v2390
        %v2392 = vrot.slane %v2391, 2
        %v2393 = vmax.f32 %v2391, %v2392
        %v2394 = vrot.slane %v2393, 1
        %v2395 = vmax.f32 %v2393, %v2394
        %v2396 = vsel %vm1404, %v2006, -inf
        %v2397 = vrot.slane %v2396, 4
        %v2398 = vmax.f32 %v2396, %v2397
        %v2399 = vrot.slane %v2398, 2
        %v2400 = vmax.f32 %v2398, %v2399
        %v2401 = vrot.slane %v2400, 1
        %v2402 = vmax.f32 %v2400, %v2401
        %v2403 = vsel %vm1404, %v2011, -inf
        %v2404 = vrot.slane %v2403, 4
        %v2405 = vmax.f32 %v2403, %v2404
        %v2406 = vrot.slane %v2405, 2
        %v2407 = vmax.f32 %v2405, %v2406
        %v2408 = vrot.slane %v2407, 1
        %v2409 = vmax.f32 %v2407, %v2408
        %v2410 = vsel %vm1404, %v2016, -inf
        %v2411 = vrot.slane %v2410, 4
        %v2412 = vmax.f32 %v2410, %v2411
        %v2413 = vrot.slane %v2412, 2
        %v2414 = vmax.f32 %v2412, %v2413
        %v2415 = vrot.slane %v2414, 1
        %v2416 = vmax.f32 %v2414, %v2415
        %v2417 = vsel %vm1404, %v2021, -inf
        %v2418 = vrot.slane %v2417, 4
        %v2419 = vmax.f32 %v2417, %v2418
        %v2420 = vrot.slane %v2419, 2
        %v2421 = vmax.f32 %v2419, %v2420
        %v2422 = vrot.slane %v2421, 1
        %v2423 = vmax.f32 %v2421, %v2422
        %v2424 = vsel %vm1404, %v2026, -inf
        %v2425 = vrot.slane %v2424, 4
        %v2426 = vmax.f32 %v2424, %v2425
        %v2427 = vrot.slane %v2426, 2
        %v2428 = vmax.f32 %v2426, %v2427
        %v2429 = vrot.slane %v2428, 1
        %v2430 = vmax.f32 %v2428, %v2429
        %v2431 = vsub.f32 %v1951, %v2325
        %v2432 = vsub.f32 %v1956, %v2332
        %v2433 = vsub.f32 %v1961, %v2339
        %v2434 = vsub.f32 %v1966, %v2346
        %v2435 = vsub.f32 %v1971, %v2353
        %v2436 = vsub.f32 %v1976, %v2360
        %v2437 = vsub.f32 %v1981, %v2367
        %v2438 = vsub.f32 %v1986, %v2374
        %v2439 = vsub.f32 %v1991, %v2381
        %v2440 = vsub.f32 %v1996, %v2388
        %v2441 = vsub.f32 %v2001, %v2395
        %v2442 = vsub.f32 %v2006, %v2402
        %v2443 = vsub.f32 %v2011, %v2409
        %v2444 = vsub.f32 %v2016, %v2416
        %v2445 = vsub.f32 %v2021, %v2423
        %v2446 = vsub.f32 %v2026, %v2430
        %v2447 = vmul.f32 %v2431, 1.442695
        %v2448 = vpow.pop %v2447
        %v2449 = vmul.f32 %v2432, 1.442695
        %v2450 = vpow.pop %v2449
        %v2451 = vmul.f32 %v2433, 1.442695
        %v2452 = vpow.pop %v2451
        %v2453 = vmul.f32 %v2434, 1.442695
        %v2454 = vpow.pop %v2453
        %v2455 = vmul.f32 %v2435, 1.442695
        %v2456 = vpow.pop %v2455
        %v2457 = vmul.f32 %v2436, 1.442695
        %v2458 = vpow.pop %v2457
        %v2459 = vmul.f32 %v2437, 1.442695
        %v2460 = vpow.pop %v2459
        %v2461 = vmul.f32 %v2438, 1.442695
        %v2462 = vpow.pop %v2461
        %v2463 = vmul.f32 %v2439, 1.442695
        %v2464 = vpow.pop %v2463
        %v2465 = vmul.f32 %v2440, 1.442695
        %v2466 = vpow.pop %v2465
        %v2467 = vmul.f32 %v2441, 1.442695
        %v2468 = vpow.pop %v2467
        %v2469 = vmul.f32 %v2442, 1.442695
        %v2470 = vpow.pop %v2469
        %v2471 = vmul.f32 %v2443, 1.442695
        %v2472 = vpow.pop %v2471
        %v2473 = vmul.f32 %v2444, 1.442695
        %v2474 = vpow.pop %v2473
        %v2475 = vmul.f32 %v2445, 1.442695
        %v2476 = vpow.pop %v2475
        %v2477 = vmul.f32 %v2446, 1.442695
        %v2478 = vpow.pop %v2477
        %v2479 = vsel %vm1404, %v2448, 0.0
        %v2480 = vrot.slane %v2479, 4
        %v2481 = vadd.f32 %v2479, %v2480
        %v2482 = vrot.slane %v2481, 2
        %v2483 = vadd.f32 %v2481, %v2482
        %v2484 = vrot.slane %v2483, 1
        %v2485 = vadd.f32 %v2483, %v2484
        %v2486 = vsel %vm1404, %v2450, 0.0
        %v2487 = vrot.slane %v2486, 4
        %v2488 = vadd.f32 %v2486, %v2487
        %v2489 = vrot.slane %v2488, 2
        %v2490 = vadd.f32 %v2488, %v2489
        %v2491 = vrot.slane %v2490, 1
        %v2492 = vadd.f32 %v2490, %v2491
        %v2493 = vsel %vm1404, %v2452, 0.0
        %v2494 = vrot.slane %v2493, 4
        %v2495 = vadd.f32 %v2493, %v2494
        %v2496 = vrot.slane %v2495, 2
        %v2497 = vadd.f32 %v2495, %v2496
        %v2498 = vrot.slane %v2497, 1
        %v2499 = vadd.f32 %v2497, %v2498
        %v2500 = vsel %vm1404, %v2454, 0.0
        %v2501 = vrot.slane %v2500, 4
        %v2502 = vadd.f32 %v2500, %v2501
        %v2503 = vrot.slane %v2502, 2
        %v2504 = vadd.f32 %v2502, %v2503
        %v2505 = vrot.slane %v2504, 1
        %v2506 = vadd.f32 %v2504, %v2505
        %v2507 = vsel %vm1404, %v2456, 0.0
        %v2508 = vrot.slane %v2507, 4
        %v2509 = vadd.f32 %v2507, %v2508
        %v2510 = vrot.slane %v2509, 2
        %v2511 = vadd.f32 %v2509, %v2510
        %v2512 = vrot.slane %v2511, 1
        %v2513 = vadd.f32 %v2511, %v2512
        %v2514 = vsel %vm1404, %v2458, 0.0
        %v2515 = vrot.slane %v2514, 4
        %v2516 = vadd.f32 %v2514, %v2515
        %v2517 = vrot.slane %v2516, 2
        %v2518 = vadd.f32 %v2516, %v2517
        %v2519 = vrot.slane %v2518, 1
        %v2520 = vadd.f32 %v2518, %v2519
        %v2521 = vsel %vm1404, %v2460, 0.0
        %v2522 = vrot.slane %v2521, 4
        %v2523 = vadd.f32 %v2521, %v2522
        %v2524 = vrot.slane %v2523, 2
        %v2525 = vadd.f32 %v2523, %v2524
        %v2526 = vrot.slane %v2525, 1
        %v2527 = vadd.f32 %v2525, %v2526
        %v2528 = vsel %vm1404, %v2462, 0.0
        %v2529 = vrot.slane %v2528, 4
        %v2530 = vadd.f32 %v2528, %v2529
        %v2531 = vrot.slane %v2530, 2
        %v2532 = vadd.f32 %v2530, %v2531
        %v2533 = vrot.slane %v2532, 1
        %v2534 = vadd.f32 %v2532, %v2533
        %v2535 = vsel %vm1404, %v2464, 0.0
        %v2536 = vrot.slane %v2535, 4
        %v2537 = vadd.f32 %v2535, %v2536
        %v2538 = vrot.slane %v2537, 2
        %v2539 = vadd.f32 %v2537, %v2538
        %v2540 = vrot.slane %v2539, 1
        %v2541 = vadd.f32 %v2539, %v2540
        %v2542 = vsel %vm1404, %v2466, 0.0
        %v2543 = vrot.slane %v2542, 4
        %v2544 = vadd.f32 %v2542, %v2543
        %v2545 = vrot.slane %v2544, 2
        %v2546 = vadd.f32 %v2544, %v2545
        %v2547 = vrot.slane %v2546, 1
        %v2548 = vadd.f32 %v2546, %v2547
        %v2549 = vsel %vm1404, %v2468, 0.0
        %v2550 = vrot.slane %v2549, 4
        %v2551 = vadd.f32 %v2549, %v2550
        %v2552 = vrot.slane %v2551, 2
        %v2553 = vadd.f32 %v2551, %v2552
        %v2554 = vrot.slane %v2553, 1
        %v2555 = vadd.f32 %v2553, %v2554
        %v2556 = vsel %vm1404, %v2470, 0.0
        %v2557 = vrot.slane %v2556, 4
        %v2558 = vadd.f32 %v2556, %v2557
        %v2559 = vrot.slane %v2558, 2
        %v2560 = vadd.f32 %v2558, %v2559
        %v2561 = vrot.slane %v2560, 1
        %v2562 = vadd.f32 %v2560, %v2561
        %v2563 = vsel %vm1404, %v2472, 0.0
        %v2564 = vrot.slane %v2563, 4
        %v2565 = vadd.f32 %v2563, %v2564
        %v2566 = vrot.slane %v2565, 2
        %v2567 = vadd.f32 %v2565, %v2566
        %v2568 = vrot.slane %v2567, 1
        %v2569 = vadd.f32 %v2567, %v2568
        %v2570 = vsel %vm1404, %v2474, 0.0
        %v2571 = vrot.slane %v2570, 4
        %v2572 = vadd.f32 %v2570, %v2571
        %v2573 = vrot.slane %v2572, 2
        %v2574 = vadd.f32 %v2572, %v2573
        %v2575 = vrot.slane %v2574, 1
        %v2576 = vadd.f32 %v2574, %v2575
        %v2577 = vsel %vm1404, %v2476, 0.0
        %v2578 = vrot.slane %v2577, 4
        %v2579 = vadd.f32 %v2577, %v2578
        %v2580 = vrot.slane %v2579, 2
        %v2581 = vadd.f32 %v2579, %v2580
        %v2582 = vrot.slane %v2581, 1
        %v2583 = vadd.f32 %v2581, %v2582
        %v2584 = vsel %vm1404, %v2478, 0.0
        %v2585 = vrot.slane %v2584, 4
        %v2586 = vadd.f32 %v2584, %v2585
        %v2587 = vrot.slane %v2586, 2
        %v2588 = vadd.f32 %v2586, %v2587
        %v2589 = vrot.slane %v2588, 1
        %v2590 = vadd.f32 %v2588, %v2589
        %v2591 = vrcp.pop %v2485
        %v2592 = vrcp.pop %v2492
        %v2593 = vrcp.pop %v2499
        %v2594 = vrcp.pop %v2506
        %v2595 = vrcp.pop %v2513
        %v2596 = vrcp.pop %v2520
        %v2597 = vrcp.pop %v2527
        %v2598 = vrcp.pop %v2534
        %v2599 = vrcp.pop %v2541
        %v2600 = vrcp.pop %v2548
        %v2601 = vrcp.pop %v2555
        %v2602 = vrcp.pop %v2562
        %v2603 = vrcp.pop %v2569
        %v2604 = vrcp.pop %v2576
        %v2605 = vrcp.pop %v2583
        %v2606 = vrcp.pop %v2590
        %v2607 = vmul.f32 %v2448, %v2591
        %v2608 = vmul.f32 %v2450, %v2592
        %v2609 = vmul.f32 %v2452, %v2593
        %v2610 = vmul.f32 %v2454, %v2594
        %v2611 = vmul.f32 %v2456, %v2595
        %v2612 = vmul.f32 %v2458, %v2596
        %v2613 = vmul.f32 %v2460, %v2597
        %v2614 = vmul.f32 %v2462, %v2598
        %v2615 = vmul.f32 %v2464, %v2599
        %v2616 = vmul.f32 %v2466, %v2600
        %v2617 = vmul.f32 %v2468, %v2601
        %v2618 = vmul.f32 %v2470, %v2602
        %v2619 = vmul.f32 %v2472, %v2603
        %v2620 = vmul.f32 %v2474, %v2604
        %v2621 = vmul.f32 %v2476, %v2605
        %v2622 = vmul.f32 %v2478, %v2606
        %v2623 = vsel %vm1404, %v2241, -inf
        %v2624 = vrot.slane %v2623, 4
        %v2625 = vmax.f32 %v2623, %v2624
        %v2626 = vrot.slane %v2625, 2
        %v2627 = vmax.f32 %v2625, %v2626
        %v2628 = vrot.slane %v2627, 1
        %v2629 = vmax.f32 %v2627, %v2628
        %v2630 = vsel %vm1404, %v2246, -inf
        %v2631 = vrot.slane %v2630, 4
        %v2632 = vmax.f32 %v2630, %v2631
        %v2633 = vrot.slane %v2632, 2
        %v2634 = vmax.f32 %v2632, %v2633
        %v2635 = vrot.slane %v2634, 1
        %v2636 = vmax.f32 %v2634, %v2635
        %v2637 = vsel %vm1404, %v2251, -inf
        %v2638 = vrot.slane %v2637, 4
        %v2639 = vmax.f32 %v2637, %v2638
        %v2640 = vrot.slane %v2639, 2
        %v2641 = vmax.f32 %v2639, %v2640
        %v2642 = vrot.slane %v2641, 1
        %v2643 = vmax.f32 %v2641, %v2642
        %v2644 = vsel %vm1404, %v2256, -inf
        %v2645 = vrot.slane %v2644, 4
        %v2646 = vmax.f32 %v2644, %v2645
        %v2647 = vrot.slane %v2646, 2
        %v2648 = vmax.f32 %v2646, %v2647
        %v2649 = vrot.slane %v2648, 1
        %v2650 = vmax.f32 %v2648, %v2649
        %v2651 = vsel %vm1404, %v2261, -inf
        %v2652 = vrot.slane %v2651, 4
        %v2653 = vmax.f32 %v2651, %v2652
        %v2654 = vrot.slane %v2653, 2
        %v2655 = vmax.f32 %v2653, %v2654
        %v2656 = vrot.slane %v2655, 1
        %v2657 = vmax.f32 %v2655, %v2656
        %v2658 = vsel %vm1404, %v2266, -inf
        %v2659 = vrot.slane %v2658, 4
        %v2660 = vmax.f32 %v2658, %v2659
        %v2661 = vrot.slane %v2660, 2
        %v2662 = vmax.f32 %v2660, %v2661
        %v2663 = vrot.slane %v2662, 1
        %v2664 = vmax.f32 %v2662, %v2663
        %v2665 = vsel %vm1404, %v2271, -inf
        %v2666 = vrot.slane %v2665, 4
        %v2667 = vmax.f32 %v2665, %v2666
        %v2668 = vrot.slane %v2667, 2
        %v2669 = vmax.f32 %v2667, %v2668
        %v2670 = vrot.slane %v2669, 1
        %v2671 = vmax.f32 %v2669, %v2670
        %v2672 = vsel %vm1404, %v2276, -inf
        %v2673 = vrot.slane %v2672, 4
        %v2674 = vmax.f32 %v2672, %v2673
        %v2675 = vrot.slane %v2674, 2
        %v2676 = vmax.f32 %v2674, %v2675
        %v2677 = vrot.slane %v2676, 1
        %v2678 = vmax.f32 %v2676, %v2677
        %v2679 = vsel %vm1404, %v2281, -inf
        %v2680 = vrot.slane %v2679, 4
        %v2681 = vmax.f32 %v2679, %v2680
        %v2682 = vrot.slane %v2681, 2
        %v2683 = vmax.f32 %v2681, %v2682
        %v2684 = vrot.slane %v2683, 1
        %v2685 = vmax.f32 %v2683, %v2684
        %v2686 = vsel %vm1404, %v2286, -inf
        %v2687 = vrot.slane %v2686, 4
        %v2688 = vmax.f32 %v2686, %v2687
        %v2689 = vrot.slane %v2688, 2
        %v2690 = vmax.f32 %v2688, %v2689
        %v2691 = vrot.slane %v2690, 1
        %v2692 = vmax.f32 %v2690, %v2691
        %v2693 = vsel %vm1404, %v2291, -inf
        %v2694 = vrot.slane %v2693, 4
        %v2695 = vmax.f32 %v2693, %v2694
        %v2696 = vrot.slane %v2695, 2
        %v2697 = vmax.f32 %v2695, %v2696
        %v2698 = vrot.slane %v2697, 1
        %v2699 = vmax.f32 %v2697, %v2698
        %v2700 = vsel %vm1404, %v2296, -inf
        %v2701 = vrot.slane %v2700, 4
        %v2702 = vmax.f32 %v2700, %v2701
        %v2703 = vrot.slane %v2702, 2
        %v2704 = vmax.f32 %v2702, %v2703
        %v2705 = vrot.slane %v2704, 1
        %v2706 = vmax.f32 %v2704, %v2705
        %v2707 = vsel %vm1404, %v2301, -inf
        %v2708 = vrot.slane %v2707, 4
        %v2709 = vmax.f32 %v2707, %v2708
        %v2710 = vrot.slane %v2709, 2
        %v2711 = vmax.f32 %v2709, %v2710
        %v2712 = vrot.slane %v2711, 1
        %v2713 = vmax.f32 %v2711, %v2712
        %v2714 = vsel %vm1404, %v2306, -inf
        %v2715 = vrot.slane %v2714, 4
        %v2716 = vmax.f32 %v2714, %v2715
        %v2717 = vrot.slane %v2716, 2
        %v2718 = vmax.f32 %v2716, %v2717
        %v2719 = vrot.slane %v2718, 1
        %v2720 = vmax.f32 %v2718, %v2719
        %v2721 = vsel %vm1404, %v2311, -inf
        %v2722 = vrot.slane %v2721, 4
        %v2723 = vmax.f32 %v2721, %v2722
        %v2724 = vrot.slane %v2723, 2
        %v2725 = vmax.f32 %v2723, %v2724
        %v2726 = vrot.slane %v2725, 1
        %v2727 = vmax.f32 %v2725, %v2726
        %v2728 = vsel %vm1404, %v2316, -inf
        %v2729 = vrot.slane %v2728, 4
        %v2730 = vmax.f32 %v2728, %v2729
        %v2731 = vrot.slane %v2730, 2
        %v2732 = vmax.f32 %v2730, %v2731
        %v2733 = vrot.slane %v2732, 1
        %v2734 = vmax.f32 %v2732, %v2733
        %v2735 = vsub.f32 %v2241, %v2629
        %v2736 = vsub.f32 %v2246, %v2636
        %v2737 = vsub.f32 %v2251, %v2643
        %v2738 = vsub.f32 %v2256, %v2650
        %v2739 = vsub.f32 %v2261, %v2657
        %v2740 = vsub.f32 %v2266, %v2664
        %v2741 = vsub.f32 %v2271, %v2671
        %v2742 = vsub.f32 %v2276, %v2678
        %v2743 = vsub.f32 %v2281, %v2685
        %v2744 = vsub.f32 %v2286, %v2692
        %v2745 = vsub.f32 %v2291, %v2699
        %v2746 = vsub.f32 %v2296, %v2706
        %v2747 = vsub.f32 %v2301, %v2713
        %v2748 = vsub.f32 %v2306, %v2720
        %v2749 = vsub.f32 %v2311, %v2727
        %v2750 = vsub.f32 %v2316, %v2734
        %v2751 = vmul.f32 %v2735, 1.442695
        %v2752 = vpow.pop %v2751
        %v2753 = vmul.f32 %v2736, 1.442695
        %v2754 = vpow.pop %v2753
        %v2755 = vmul.f32 %v2737, 1.442695
        %v2756 = vpow.pop %v2755
        %v2757 = vmul.f32 %v2738, 1.442695
        %v2758 = vpow.pop %v2757
        %v2759 = vmul.f32 %v2739, 1.442695
        %v2760 = vpow.pop %v2759
        %v2761 = vmul.f32 %v2740, 1.442695
        %v2762 = vpow.pop %v2761
        %v2763 = vmul.f32 %v2741, 1.442695
        %v2764 = vpow.pop %v2763
        %v2765 = vmul.f32 %v2742, 1.442695
        %v2766 = vpow.pop %v2765
        %v2767 = vmul.f32 %v2743, 1.442695
        %v2768 = vpow.pop %v2767
        %v2769 = vmul.f32 %v2744, 1.442695
        %v2770 = vpow.pop %v2769
        %v2771 = vmul.f32 %v2745, 1.442695
        %v2772 = vpow.pop %v2771
        %v2773 = vmul.f32 %v2746, 1.442695
        %v2774 = vpow.pop %v2773
        %v2775 = vmul.f32 %v2747, 1.442695
        %v2776 = vpow.pop %v2775
        %v2777 = vmul.f32 %v2748, 1.442695
        %v2778 = vpow.pop %v2777
        %v2779 = vmul.f32 %v2749, 1.442695
        %v2780 = vpow.pop %v2779
        %v2781 = vmul.f32 %v2750, 1.442695
        %v2782 = vpow.pop %v2781
        %v2783 = vsel %vm1404, %v2752, 0.0
        %v2784 = vrot.slane %v2783, 4
        %v2785 = vadd.f32 %v2783, %v2784
        %v2786 = vrot.slane %v2785, 2
        %v2787 = vadd.f32 %v2785, %v2786
        %v2788 = vrot.slane %v2787, 1
        %v2789 = vadd.f32 %v2787, %v2788
        %v2790 = vsel %vm1404, %v2754, 0.0
        %v2791 = vrot.slane %v2790, 4
        %v2792 = vadd.f32 %v2790, %v2791
        %v2793 = vrot.slane %v2792, 2
        %v2794 = vadd.f32 %v2792, %v2793
        %v2795 = vrot.slane %v2794, 1
        %v2796 = vadd.f32 %v2794, %v2795
        %v2797 = vsel %vm1404, %v2756, 0.0
        %v2798 = vrot.slane %v2797, 4
        %v2799 = vadd.f32 %v2797, %v2798
        %v2800 = vrot.slane %v2799, 2
        %v2801 = vadd.f32 %v2799, %v2800
        %v2802 = vrot.slane %v2801, 1
        %v2803 = vadd.f32 %v2801, %v2802
        %v2804 = vsel %vm1404, %v2758, 0.0
        %v2805 = vrot.slane %v2804, 4
        %v2806 = vadd.f32 %v2804, %v2805
        %v2807 = vrot.slane %v2806, 2
        %v2808 = vadd.f32 %v2806, %v2807
        %v2809 = vrot.slane %v2808, 1
        %v2810 = vadd.f32 %v2808, %v2809
        %v2811 = vsel %vm1404, %v2760, 0.0
        %v2812 = vrot.slane %v2811, 4
        %v2813 = vadd.f32 %v2811, %v2812
        %v2814 = vrot.slane %v2813, 2
        %v2815 = vadd.f32 %v2813, %v2814
        %v2816 = vrot.slane %v2815, 1
        %v2817 = vadd.f32 %v2815, %v2816
        %v2818 = vsel %vm1404, %v2762, 0.0
        %v2819 = vrot.slane %v2818, 4
        %v2820 = vadd.f32 %v2818, %v2819
        %v2821 = vrot.slane %v2820, 2
        %v2822 = vadd.f32 %v2820, %v2821
        %v2823 = vrot.slane %v2822, 1
        %v2824 = vadd.f32 %v2822, %v2823
        %v2825 = vsel %vm1404, %v2764, 0.0
        %v2826 = vrot.slane %v2825, 4
        %v2827 = vadd.f32 %v2825, %v2826
        %v2828 = vrot.slane %v2827, 2
        %v2829 = vadd.f32 %v2827, %v2828
        %v2830 = vrot.slane %v2829, 1
        %v2831 = vadd.f32 %v2829, %v2830
        %v2832 = vsel %vm1404, %v2766, 0.0
        %v2833 = vrot.slane %v2832, 4
        %v2834 = vadd.f32 %v2832, %v2833
        %v2835 = vrot.slane %v2834, 2
        %v2836 = vadd.f32 %v2834, %v2835
        %v2837 = vrot.slane %v2836, 1
        %v2838 = vadd.f32 %v2836, %v2837
        %v2839 = vsel %vm1404, %v2768, 0.0
        %v2840 = vrot.slane %v2839, 4
        %v2841 = vadd.f32 %v2839, %v2840
        %v2842 = vrot.slane %v2841, 2
        %v2843 = vadd.f32 %v2841, %v2842
        %v2844 = vrot.slane %v2843, 1
        %v2845 = vadd.f32 %v2843, %v2844
        %v2846 = vsel %vm1404, %v2770, 0.0
        %v2847 = vrot.slane %v2846, 4
        %v2848 = vadd.f32 %v2846, %v2847
        %v2849 = vrot.slane %v2848, 2
        %v2850 = vadd.f32 %v2848, %v2849
        %v2851 = vrot.slane %v2850, 1
        %v2852 = vadd.f32 %v2850, %v2851
        %v2853 = vsel %vm1404, %v2772, 0.0
        %v2854 = vrot.slane %v2853, 4
        %v2855 = vadd.f32 %v2853, %v2854
        %v2856 = vrot.slane %v2855, 2
        %v2857 = vadd.f32 %v2855, %v2856
        %v2858 = vrot.slane %v2857, 1
        %v2859 = vadd.f32 %v2857, %v2858
        %v2860 = vsel %vm1404, %v2774, 0.0
        %v2861 = vrot.slane %v2860, 4
        %v2862 = vadd.f32 %v2860, %v2861
        %v2863 = vrot.slane %v2862, 2
        %v2864 = vadd.f32 %v2862, %v2863
        %v2865 = vrot.slane %v2864, 1
        %v2866 = vadd.f32 %v2864, %v2865
        %v2867 = vsel %vm1404, %v2776, 0.0
        %v2868 = vrot.slane %v2867, 4
        %v2869 = vadd.f32 %v2867, %v2868
        %v2870 = vrot.slane %v2869, 2
        %v2871 = vadd.f32 %v2869, %v2870
        %v2872 = vrot.slane %v2871, 1
        %v2873 = vadd.f32 %v2871, %v2872
        %v2874 = vsel %vm1404, %v2778, 0.0
        %v2875 = vrot.slane %v2874, 4
        %v2876 = vadd.f32 %v2874, %v2875
        %v2877 = vrot.slane %v2876, 2
        %v2878 = vadd.f32 %v2876, %v2877
        %v2879 = vrot.slane %v2878, 1
        %v2880 = vadd.f32 %v2878, %v2879
        %v2881 = vsel %vm1404, %v2780, 0.0
        %v2882 = vrot.slane %v2881, 4
        %v2883 = vadd.f32 %v2881, %v2882
        %v2884 = vrot.slane %v2883, 2
        %v2885 = vadd.f32 %v2883, %v2884
        %v2886 = vrot.slane %v2885, 1
        %v2887 = vadd.f32 %v2885, %v2886
        %v2888 = vsel %vm1404, %v2782, 0.0
        %v2889 = vrot.slane %v2888, 4
        %v2890 = vadd.f32 %v2888, %v2889
        %v2891 = vrot.slane %v2890, 2
        %v2892 = vadd.f32 %v2890, %v2891
        %v2893 = vrot.slane %v2892, 1
        %v2894 = vadd.f32 %v2892, %v2893
        %v2895 = vrcp.pop %v2789
        %v2896 = vrcp.pop %v2796
        %v2897 = vrcp.pop %v2803
        %v2898 = vrcp.pop %v2810
        %v2899 = vrcp.pop %v2817
        %v2900 = vrcp.pop %v2824
        %v2901 = vrcp.pop %v2831
        %v2902 = vrcp.pop %v2838
        %v2903 = vrcp.pop %v2845
        %v2904 = vrcp.pop %v2852
        %v2905 = vrcp.pop %v2859
        %v2906 = vrcp.pop %v2866
        %v2907 = vrcp.pop %v2873
        %v2908 = vrcp.pop %v2880
        %v2909 = vrcp.pop %v2887
        %v2910 = vrcp.pop %v2894
        %v2911 = vmul.f32 %v2752, %v2895
        %v2912 = vmul.f32 %v2754, %v2896
        %v2913 = vmul.f32 %v2756, %v2897
        %v2914 = vmul.f32 %v2758, %v2898
        %v2915 = vmul.f32 %v2760, %v2899
        %v2916 = vmul.f32 %v2762, %v2900
        %v2917 = vmul.f32 %v2764, %v2901
        %v2918 = vmul.f32 %v2766, %v2902
        %v2919 = vmul.f32 %v2768, %v2903
        %v2920 = vmul.f32 %v2770, %v2904
        %v2921 = vmul.f32 %v2772, %v2905
        %v2922 = vmul.f32 %v2774, %v2906
        %v2923 = vmul.f32 %v2776, %v2907
        %v2924 = vmul.f32 %v2778, %v2908
        %v2925 = vmul.f32 %v2780, %v2909
        %v2926 = vmul.f32 %v2782, %v2910
        %v2927 = vmul.f32 %v1614, %v2607
        %v2928 = vmul.f32 %v1615, %v2608
        %v2929 = vmul.f32 %v1616, %v2609
        %v2930 = vmul.f32 %v1617, %v2610
        %v2931 = vmul.f32 %v1618, %v2611
        %v2932 = vmul.f32 %v1619, %v2612
        %v2933 = vmul.f32 %v1620, %v2613
        %v2934 = vmul.f32 %v1621, %v2614
        %v2935 = vmul.f32 %v1622, %v2615
        %v2936 = vmul.f32 %v1623, %v2616
        %v2937 = vmul.f32 %v1624, %v2617
        %v2938 = vmul.f32 %v1625, %v2618
        %v2939 = vmul.f32 %v1626, %v2619
        %v2940 = vmul.f32 %v1627, %v2620
        %v2941 = vmul.f32 %v1628, %v2621
        %v2942 = vmul.f32 %v1629, %v2622
        %v2943 = vsel %vm1404, %v2927, 0.0
        %v2944 = vrot.slane %v2943, 4
        %v2945 = vadd.f32 %v2943, %v2944
        %v2946 = vrot.slane %v2945, 2
        %v2947 = vadd.f32 %v2945, %v2946
        %v2948 = vrot.slane %v2947, 1
        %v2949 = vadd.f32 %v2947, %v2948
        %v2950 = vsel %vm1404, %v2928, 0.0
        %v2951 = vrot.slane %v2950, 4
        %v2952 = vadd.f32 %v2950, %v2951
        %v2953 = vrot.slane %v2952, 2
        %v2954 = vadd.f32 %v2952, %v2953
        %v2955 = vrot.slane %v2954, 1
        %v2956 = vadd.f32 %v2954, %v2955
        %v2957 = vsel %vm1404, %v2929, 0.0
        %v2958 = vrot.slane %v2957, 4
        %v2959 = vadd.f32 %v2957, %v2958
        %v2960 = vrot.slane %v2959, 2
        %v2961 = vadd.f32 %v2959, %v2960
        %v2962 = vrot.slane %v2961, 1
        %v2963 = vadd.f32 %v2961, %v2962
        %v2964 = vsel %vm1404, %v2930, 0.0
        %v2965 = vrot.slane %v2964, 4
        %v2966 = vadd.f32 %v2964, %v2965
        %v2967 = vrot.slane %v2966, 2
        %v2968 = vadd.f32 %v2966, %v2967
        %v2969 = vrot.slane %v2968, 1
        %v2970 = vadd.f32 %v2968, %v2969
        %v2971 = vsel %vm1404, %v2931, 0.0
        %v2972 = vrot.slane %v2971, 4
        %v2973 = vadd.f32 %v2971, %v2972
        %v2974 = vrot.slane %v2973, 2
        %v2975 = vadd.f32 %v2973, %v2974
        %v2976 = vrot.slane %v2975, 1
        %v2977 = vadd.f32 %v2975, %v2976
        %v2978 = vsel %vm1404, %v2932, 0.0
        %v2979 = vrot.slane %v2978, 4
        %v2980 = vadd.f32 %v2978, %v2979
        %v2981 = vrot.slane %v2980, 2
        %v2982 = vadd.f32 %v2980, %v2981
        %v2983 = vrot.slane %v2982, 1
        %v2984 = vadd.f32 %v2982, %v2983
        %v2985 = vsel %vm1404, %v2933, 0.0
        %v2986 = vrot.slane %v2985, 4
        %v2987 = vadd.f32 %v2985, %v2986
        %v2988 = vrot.slane %v2987, 2
        %v2989 = vadd.f32 %v2987, %v2988
        %v2990 = vrot.slane %v2989, 1
        %v2991 = vadd.f32 %v2989, %v2990
        %v2992 = vsel %vm1404, %v2934, 0.0
        %v2993 = vrot.slane %v2992, 4
        %v2994 = vadd.f32 %v2992, %v2993
        %v2995 = vrot.slane %v2994, 2
        %v2996 = vadd.f32 %v2994, %v2995
        %v2997 = vrot.slane %v2996, 1
        %v2998 = vadd.f32 %v2996, %v2997
        %v2999 = vsel %vm1404, %v2935, 0.0
        %v3000 = vrot.slane %v2999, 4
        %v3001 = vadd.f32 %v2999, %v3000
        %v3002 = vrot.slane %v3001, 2
        %v3003 = vadd.f32 %v3001, %v3002
        %v3004 = vrot.slane %v3003, 1
        %v3005 = vadd.f32 %v3003, %v3004
        %v3006 = vsel %vm1404, %v2936, 0.0
        %v3007 = vrot.slane %v3006, 4
        %v3008 = vadd.f32 %v3006, %v3007
        %v3009 = vrot.slane %v3008, 2
        %v3010 = vadd.f32 %v3008, %v3009
        %v3011 = vrot.slane %v3010, 1
        %v3012 = vadd.f32 %v3010, %v3011
        %v3013 = vsel %vm1404, %v2937, 0.0
        %v3014 = vrot.slane %v3013, 4
        %v3015 = vadd.f32 %v3013, %v3014
        %v3016 = vrot.slane %v3015, 2
        %v3017 = vadd.f32 %v3015, %v3016
        %v3018 = vrot.slane %v3017, 1
        %v3019 = vadd.f32 %v3017, %v3018
        %v3020 = vsel %vm1404, %v2938, 0.0
        %v3021 = vrot.slane %v3020, 4
        %v3022 = vadd.f32 %v3020, %v3021
        %v3023 = vrot.slane %v3022, 2
        %v3024 = vadd.f32 %v3022, %v3023
        %v3025 = vrot.slane %v3024, 1
        %v3026 = vadd.f32 %v3024, %v3025
        %v3027 = vsel %vm1404, %v2939, 0.0
        %v3028 = vrot.slane %v3027, 4
        %v3029 = vadd.f32 %v3027, %v3028
        %v3030 = vrot.slane %v3029, 2
        %v3031 = vadd.f32 %v3029, %v3030
        %v3032 = vrot.slane %v3031, 1
        %v3033 = vadd.f32 %v3031, %v3032
        %v3034 = vsel %vm1404, %v2940, 0.0
        %v3035 = vrot.slane %v3034, 4
        %v3036 = vadd.f32 %v3034, %v3035
        %v3037 = vrot.slane %v3036, 2
        %v3038 = vadd.f32 %v3036, %v3037
        %v3039 = vrot.slane %v3038, 1
        %v3040 = vadd.f32 %v3038, %v3039
        %v3041 = vsel %vm1404, %v2941, 0.0
        %v3042 = vrot.slane %v3041, 4
        %v3043 = vadd.f32 %v3041, %v3042
        %v3044 = vrot.slane %v3043, 2
        %v3045 = vadd.f32 %v3043, %v3044
        %v3046 = vrot.slane %v3045, 1
        %v3047 = vadd.f32 %v3045, %v3046
        %v3048 = vsel %vm1404, %v2942, 0.0
        %v3049 = vrot.slane %v3048, 4
        %v3050 = vadd.f32 %v3048, %v3049
        %v3051 = vrot.slane %v3050, 2
        %v3052 = vadd.f32 %v3050, %v3051
        %v3053 = vrot.slane %v3052, 1
        %v3054 = vadd.f32 %v3052, %v3053
        %v3055 = vmul.f32 %v1598, %v2911
        %v3056 = vmul.f32 %v1599, %v2912
        %v3057 = vmul.f32 %v1600, %v2913
        %v3058 = vmul.f32 %v1601, %v2914
        %v3059 = vmul.f32 %v1602, %v2915
        %v3060 = vmul.f32 %v1603, %v2916
        %v3061 = vmul.f32 %v1604, %v2917
        %v3062 = vmul.f32 %v1605, %v2918
        %v3063 = vmul.f32 %v1606, %v2919
        %v3064 = vmul.f32 %v1607, %v2920
        %v3065 = vmul.f32 %v1608, %v2921
        %v3066 = vmul.f32 %v1609, %v2922
        %v3067 = vmul.f32 %v1610, %v2923
        %v3068 = vmul.f32 %v1611, %v2924
        %v3069 = vmul.f32 %v1612, %v2925
        %v3070 = vmul.f32 %v1613, %v2926
        %v3071 = vsel %vm1404, %v3055, 0.0
        %v3072 = vrot.slane %v3071, 4
        %v3073 = vadd.f32 %v3071, %v3072
        %v3074 = vrot.slane %v3073, 2
        %v3075 = vadd.f32 %v3073, %v3074
        %v3076 = vrot.slane %v3075, 1
        %v3077 = vadd.f32 %v3075, %v3076
        %v3078 = vsel %vm1404, %v3056, 0.0
        %v3079 = vrot.slane %v3078, 4
        %v3080 = vadd.f32 %v3078, %v3079
        %v3081 = vrot.slane %v3080, 2
        %v3082 = vadd.f32 %v3080, %v3081
        %v3083 = vrot.slane %v3082, 1
        %v3084 = vadd.f32 %v3082, %v3083
        %v3085 = vsel %vm1404, %v3057, 0.0
        %v3086 = vrot.slane %v3085, 4
        %v3087 = vadd.f32 %v3085, %v3086
        %v3088 = vrot.slane %v3087, 2
        %v3089 = vadd.f32 %v3087, %v3088
        %v3090 = vrot.slane %v3089, 1
        %v3091 = vadd.f32 %v3089, %v3090
        %v3092 = vsel %vm1404, %v3058, 0.0
        %v3093 = vrot.slane %v3092, 4
        %v3094 = vadd.f32 %v3092, %v3093
        %v3095 = vrot.slane %v3094, 2
        %v3096 = vadd.f32 %v3094, %v3095
        %v3097 = vrot.slane %v3096, 1
        %v3098 = vadd.f32 %v3096, %v3097
        %v3099 = vsel %vm1404, %v3059, 0.0
        %v3100 = vrot.slane %v3099, 4
        %v3101 = vadd.f32 %v3099, %v3100
        %v3102 = vrot.slane %v3101, 2
        %v3103 = vadd.f32 %v3101, %v3102
        %v3104 = vrot.slane %v3103, 1
        %v3105 = vadd.f32 %v3103, %v3104
        %v3106 = vsel %vm1404, %v3060, 0.0
        %v3107 = vrot.slane %v3106, 4
        %v3108 = vadd.f32 %v3106, %v3107
        %v3109 = vrot.slane %v3108, 2
        %v3110 = vadd.f32 %v3108, %v3109
        %v3111 = vrot.slane %v3110, 1
        %v3112 = vadd.f32 %v3110, %v3111
        %v3113 = vsel %vm1404, %v3061, 0.0
        %v3114 = vrot.slane %v3113, 4
        %v3115 = vadd.f32 %v3113, %v3114
        %v3116 = vrot.slane %v3115, 2
        %v3117 = vadd.f32 %v3115, %v3116
        %v3118 = vrot.slane %v3117, 1
        %v3119 = vadd.f32 %v3117, %v3118
        %v3120 = vsel %vm1404, %v3062, 0.0
        %v3121 = vrot.slane %v3120, 4
        %v3122 = vadd.f32 %v3120, %v3121
        %v3123 = vrot.slane %v3122, 2
        %v3124 = vadd.f32 %v3122, %v3123
        %v3125 = vrot.slane %v3124, 1
        %v3126 = vadd.f32 %v3124, %v3125
        %v3127 = vsel %vm1404, %v3063, 0.0
        %v3128 = vrot.slane %v3127, 4
        %v3129 = vadd.f32 %v3127, %v3128
        %v3130 = vrot.slane %v3129, 2
        %v3131 = vadd.f32 %v3129, %v3130
        %v3132 = vrot.slane %v3131, 1
        %v3133 = vadd.f32 %v3131, %v3132
        %v3134 = vsel %vm1404, %v3064, 0.0
        %v3135 = vrot.slane %v3134, 4
        %v3136 = vadd.f32 %v3134, %v3135
        %v3137 = vrot.slane %v3136, 2
        %v3138 = vadd.f32 %v3136, %v3137
        %v3139 = vrot.slane %v3138, 1
        %v3140 = vadd.f32 %v3138, %v3139
        %v3141 = vsel %vm1404, %v3065, 0.0
        %v3142 = vrot.slane %v3141, 4
        %v3143 = vadd.f32 %v3141, %v3142
        %v3144 = vrot.slane %v3143, 2
        %v3145 = vadd.f32 %v3143, %v3144
        %v3146 = vrot.slane %v3145, 1
        %v3147 = vadd.f32 %v3145, %v3146
        %v3148 = vsel %vm1404, %v3066, 0.0
        %v3149 = vrot.slane %v3148, 4
        %v3150 = vadd.f32 %v3148, %v3149
        %v3151 = vrot.slane %v3150, 2
        %v3152 = vadd.f32 %v3150, %v3151
        %v3153 = vrot.slane %v3152, 1
        %v3154 = vadd.f32 %v3152, %v3153
        %v3155 = vsel %vm1404, %v3067, 0.0
        %v3156 = vrot.slane %v3155, 4
        %v3157 = vadd.f32 %v3155, %v3156
        %v3158 = vrot.slane %v3157, 2
        %v3159 = vadd.f32 %v3157, %v3158
        %v3160 = vrot.slane %v3159, 1
        %v3161 = vadd.f32 %v3159, %v3160
        %v3162 = vsel %vm1404, %v3068, 0.0
        %v3163 = vrot.slane %v3162, 4
        %v3164 = vadd.f32 %v3162, %v3163
        %v3165 = vrot.slane %v3164, 2
        %v3166 = vadd.f32 %v3164, %v3165
        %v3167 = vrot.slane %v3166, 1
        %v3168 = vadd.f32 %v3166, %v3167
        %v3169 = vsel %vm1404, %v3069, 0.0
        %v3170 = vrot.slane %v3169, 4
        %v3171 = vadd.f32 %v3169, %v3170
        %v3172 = vrot.slane %v3171, 2
        %v3173 = vadd.f32 %v3171, %v3172
        %v3174 = vrot.slane %v3173, 1
        %v3175 = vadd.f32 %v3173, %v3174
        %v3176 = vsel %vm1404, %v3070, 0.0
        %v3177 = vrot.slane %v3176, 4
        %v3178 = vadd.f32 %v3176, %v3177
        %v3179 = vrot.slane %v3178, 2
        %v3180 = vadd.f32 %v3178, %v3179
        %v3181 = vrot.slane %v3180, 1
        %v3182 = vadd.f32 %v3180, %v3181
        %vm3199 = vcmask 1041409
        %v3200 = vsel %vm3199, %v3084, %v3077
        %vm3201 = vcmask 1042434
        %v3202 = vsel %vm3201, %v3091, %v3200
        %vm3203 = vcmask 1043459
        %v3204 = vsel %vm3203, %v3098, %v3202
        %vm3205 = vcmask 1044484
        %v3206 = vsel %vm3205, %v3105, %v3204
        %vm3207 = vcmask 1045509
        %v3208 = vsel %vm3207, %v3112, %v3206
        %vm3209 = vcmask 1046534
        %v3210 = vsel %vm3209, %v3119, %v3208
        %vm3211 = vcmask 1047559
        %v3212 = vsel %vm3211, %v3126, %v3210
        %v3213 = vsel %vm3199, %v3140, %v3133
        %v3214 = vsel %vm3201, %v3147, %v3213
        %v3215 = vsel %vm3203, %v3154, %v3214
        %v3216 = vsel %vm3205, %v3161, %v3215
        %v3217 = vsel %vm3207, %v3168, %v3216
        %v3218 = vsel %vm3209, %v3175, %v3217
        %v3219 = vsel %vm3211, %v3182, %v3218
        %v3220 = vsel %vm1404, %v3212, 0
        %v3222 = vsel %vm1404, %v3219, 0
        %3224 = vmatprep.subr.mxu0 0.0
        %3225 = vmatpush1.msra.mxu0 %v1640
        %3226 = vmatprep.subr.mxu0 0.0
        %3227 = vmatpush1.msra.mxu0 %v1641
        %3228 = vmatprep.subr.mxu0 0.0
        %3229 = vmatpush1.msra.mxu0 0.0
        %3230 = vmatprep.subr.mxu0 0.0
        %3231 = vmatpush1.msra.mxu0 0.0
        %3232 = vmatprep.subr.mxu0 0.0
        %3233 = vmatpush1.msra.mxu0 0.0
        %3234 = vmatprep.subr.mxu0 0.0
        %3235 = vmatpush1.msra.mxu0 0.0
        %3236 = vmatprep.subr.mxu0 0.0
        %3237 = vmatpush1.msra.mxu0 0.0
        %3238 = vmatprep.subr.mxu0 0.0
        %3239 = vmatpush1.msra.mxu0 0.0
        %3240 = vmatprep.subr.mxu0 0.0
        %3241 = vmatpush1.msra.mxu0 0.0
        %3242 = vmatprep.subr.mxu0 0.0
        %3243 = vmatpush1.msra.mxu0 0.0
        %3244 = vmatprep.subr.mxu0 0.0
        %3245 = vmatpush1.msra.mxu0 0.0
        %3246 = vmatprep.subr.mxu0 0.0
        %3247 = vmatpush1.msra.mxu0 0.0
        %3248 = vmatprep.subr.mxu0 0.0
        %3249 = vmatpush1.msra.mxu0 0.0
        %3250 = vmatprep.subr.mxu0 0.0
        %3251 = vmatpush1.msra.mxu0 0.0
        %3252 = vmatprep.subr.mxu0 0.0
        %3253 = vmatpush1.msra.mxu0 0.0
        %3254 = vmatprep.subr.mxu0 0.0
        %3255 = vmatpush1.msra.mxu0 0.0
        %3256 = vmatprep.subr.mxu0 0.0
        %3257 = vmatpush1.msra.mxu0 0.0
        %3258 = vmatprep.subr.mxu0 0.0
        %3259 = vmatpush1.msra.mxu0 0.0
        %3260 = vmatprep.subr.mxu0 0.0
        %3261 = vmatpush1.msra.mxu0 0.0
        %3262 = vmatprep.subr.mxu0 0.0
        %3263 = vmatpush1.msra.mxu0 0.0
        %3264 = vmatprep.subr.mxu0 0.0
        %3265 = vmatpush1.msra.mxu0 0.0
        %3266 = vmatprep.subr.mxu0 0.0
        %3267 = vmatpush1.msra.mxu0 0.0
        %3268 = vmatprep.subr.mxu0 0.0
        %3269 = vmatpush1.msra.mxu0 0.0
        %3270 = vmatprep.subr.mxu0 0.0
        %3271 = vmatpush1.msra.mxu0 0.0
        %3272 = vmatprep.subr.mxu0 0.0
        %3273 = vmatpush1.msra.mxu0 0.0
        %3274 = vmatprep.subr.mxu0 0.0
        %3275 = vmatpush1.msra.mxu0 0.0
        %3276 = vmatprep.subr.mxu0 0.0
        %3277 = vmatpush1.msra.mxu0 0.0
        %3278 = vmatprep.subr.mxu0 0.0
        %3279 = vmatpush1.msra.mxu0 0.0
        %3280 = vmatprep.subr.mxu0 0.0
        %3281 = vmatpush1.msra.mxu0 0.0
        %3282 = vmatprep.subr.mxu0 0.0
        %3283 = vmatpush1.msra.mxu0 0.0
        %3284 = vmatprep.subr.mxu0 0.0
        %3285 = vmatpush1.msra.mxu0 0.0
        %3286 = vmatprep.subr.mxu0 0.0
        %3287 = vmatpush1.msra.mxu0 0.0
        %3288 = vmatprep.mubr.f32.mxu0 0.0
        %3289 = vmatmul.mubr.f32.gmra.mrb[0].mxu0 %v3220
        %v3290 = vpop.f32.mrb[0].mxu0
        %v3291 = vadd.f32 0.0, %v3290
        %v3292 = vpop.f32.mrb[0].mxu0
        %3293 = vmatprep.mubr.f32.mxu0 0.0
        %3294 = vmatmul.mubr.f32.gmra.mrb[0].mxu0 %v3222
        %v3295 = vpop.f32.mrb[0].mxu0
        %v3296 = vadd.f32 0.0, %v3295
        %v3297 = vpop.f32.mrb[0].mxu0
        %3298 = vdwg.mxu0
        %v3315 = vsel %vm3199, %v2956, %v2949
        %v3316 = vsel %vm3201, %v2963, %v3315
        %v3317 = vsel %vm3203, %v2970, %v3316
        %v3318 = vsel %vm3205, %v2977, %v3317
        %v3319 = vsel %vm3207, %v2984, %v3318
        %v3320 = vsel %vm3209, %v2991, %v3319
        %v3321 = vsel %vm3211, %v2998, %v3320
        %v3322 = vsel %vm3199, %v3012, %v3005
        %v3323 = vsel %vm3201, %v3019, %v3322
        %v3324 = vsel %vm3203, %v3026, %v3323
        %v3325 = vsel %vm3205, %v3033, %v3324
        %v3326 = vsel %vm3207, %v3040, %v3325
        %v3327 = vsel %vm3209, %v3047, %v3326
        %v3328 = vsel %vm3211, %v3054, %v3327
        %v3329 = vsel %vm1404, %v3321, 0
        %v3331 = vsel %vm1404, %v3328, 0
        %3333 = vmatprep.subr.mxu0 0.0
        %3334 = vmatpush1.msra.mxu0 %v1638
        %3335 = vmatprep.subr.mxu0 0.0
        %3336 = vmatpush1.msra.mxu0 %v1639
        %3337 = vmatprep.subr.mxu0 0.0
        %3338 = vmatpush1.msra.mxu0 0.0
        %3339 = vmatprep.subr.mxu0 0.0
        %3340 = vmatpush1.msra.mxu0 0.0
        %3341 = vmatprep.subr.mxu0 0.0
        %3342 = vmatpush1.msra.mxu0 0.0
        %3343 = vmatprep.subr.mxu0 0.0
        %3344 = vmatpush1.msra.mxu0 0.0
        %3345 = vmatprep.subr.mxu0 0.0
        %3346 = vmatpush1.msra.mxu0 0.0
        %3347 = vmatprep.subr.mxu0 0.0
        %3348 = vmatpush1.msra.mxu0 0.0
        %3349 = vmatprep.subr.mxu0 0.0
        %3350 = vmatpush1.msra.mxu0 0.0
        %3351 = vmatprep.subr.mxu0 0.0
        %3352 = vmatpush1.msra.mxu0 0.0
        %3353 = vmatprep.subr.mxu0 0.0
        %3354 = vmatpush1.msra.mxu0 0.0
        %3355 = vmatprep.subr.mxu0 0.0
        %3356 = vmatpush1.msra.mxu0 0.0
        %3357 = vmatprep.subr.mxu0 0.0
        %3358 = vmatpush1.msra.mxu0 0.0
        %3359 = vmatprep.subr.mxu0 0.0
        %3360 = vmatpush1.msra.mxu0 0.0
        %3361 = vmatprep.subr.mxu0 0.0
        %3362 = vmatpush1.msra.mxu0 0.0
        %3363 = vmatprep.subr.mxu0 0.0
        %3364 = vmatpush1.msra.mxu0 0.0
        %3365 = vmatprep.subr.mxu0 0.0
        %3366 = vmatpush1.msra.mxu0 0.0
        %3367 = vmatprep.subr.mxu0 0.0
        %3368 = vmatpush1.msra.mxu0 0.0
        %3369 = vmatprep.subr.mxu0 0.0
        %3370 = vmatpush1.msra.mxu0 0.0
        %3371 = vmatprep.subr.mxu0 0.0
        %3372 = vmatpush1.msra.mxu0 0.0
        %3373 = vmatprep.subr.mxu0 0.0
        %3374 = vmatpush1.msra.mxu0 0.0
        %3375 = vmatprep.subr.mxu0 0.0
        %3376 = vmatpush1.msra.mxu0 0.0
        %3377 = vmatprep.subr.mxu0 0.0
        %3378 = vmatpush1.msra.mxu0 0.0
        %3379 = vmatprep.subr.mxu0 0.0
        %3380 = vmatpush1.msra.mxu0 0.0
        %3381 = vmatprep.subr.mxu0 0.0
        %3382 = vmatpush1.msra.mxu0 0.0
        %3383 = vmatprep.subr.mxu0 0.0
        %3384 = vmatpush1.msra.mxu0 0.0
        %3385 = vmatprep.subr.mxu0 0.0
        %3386 = vmatpush1.msra.mxu0 0.0
        %3387 = vmatprep.subr.mxu0 0.0
        %3388 = vmatpush1.msra.mxu0 0.0
        %3389 = vmatprep.subr.mxu0 0.0
        %3390 = vmatpush1.msra.mxu0 0.0
        %3391 = vmatprep.subr.mxu0 0.0
        %3392 = vmatpush1.msra.mxu0 0.0
        %3393 = vmatprep.subr.mxu0 0.0
        %3394 = vmatpush1.msra.mxu0 0.0
        %3395 = vmatprep.subr.mxu0 0.0
        %3396 = vmatpush1.msra.mxu0 0.0
        %3397 = vmatprep.mubr.f32.mxu0 0.0
        %3398 = vmatmul.mubr.f32.gmra.mrb[0].mxu0 %v3329
        %v3399 = vpop.f32.mrb[0].mxu0
        %v3400 = vadd.f32 %v3291, %v3399
        %v3401 = vpop.f32.mrb[0].mxu0
        %3402 = vmatprep.mubr.f32.mxu0 0.0
        %3403 = vmatmul.mubr.f32.gmra.mrb[0].mxu0 %v3331
        %v3404 = vpop.f32.mrb[0].mxu0
        %v3405 = vadd.f32 %v3296, %v3404
        %v3406 = vpop.f32.mrb[0].mxu0
        %3407 = vdwg.mxu0
        %v3409 = vlaneseq
        %v3410 = vshrl.u32 %v3409, 7
        %v3411 = vsub.s32 0, %v3410
        %v3412 = vrot.slane %v1642, %v3411
        %v3414 = vadd.f32 %v3400, %v3412
        %v3415 = vadd.f32 %v3405, %v3412
        %v3416 = vmax.f32 %v3414, 0.0
        %v3417 = vmax.f32 %v3415, 0.0
        %vm3418 = vcmask 261120
        %3419 = vst.msk [vmem:[%s483] sm:$0xff] %vm3418, %v3416
        %3420 = vst.msk [vmem:[%s483 + $0x8] sm:$0xff] %vm3418, %v3417
        %s3421 = sand.u32 %s321, 1
        %s3422 = scalar_lea.sflag [#allocation3], %s3421
        %s3423 = sand.u32 %s321, 1
        %s3424 = smul.addr %s3423, 16
        %s3425 = scalar_lea.vmem [#allocation2], %s3424
        // Predicated region
        $region69: #{building_block_forward.3} parent=67 // pred_check
          %p3426 = pneg %p331
        $region70: #{building_block_forward.3} parent=67 // pred_check_branch
          %3428 = sbr.rel (%p3426) target = $region72
        $region71: #{building_block_forward.3} parent=67 // pred_region
          %s3429 = smul.u32 2, %s31
          %s3431 = ssub.s32 256, 256
          %3432 = vsyncadd %s3422, %s3431
          %s3433 = smul.addr %s30, 2
          %s3434 = sadd.s32 %s3429, %s3433
          %s3435 = smul.addr %s3434, 128
          %s3436 = scalar_lea.hbm %s12, %s3435
          %s3437 = sshll.u32 %s3425, 4
          %s3438 = int_to_ptr.vmem [resolvable:$true] %s3437
          %3443 = dma.vmem_to_hbm [thread:$0]  %s3438, 256, %s3436, %s3422, 128, 128, 8
        $region72: #{building_block_forward.3} parent=67 // pred_fallthru
          _
      $region68: #{building_block_forward.3} parent=5 // pred_fallthru
        _
      %p3444 = scmp.le.s32.totalorder 2, %s21
      // Predicated region
      $region73: #{building_block_forward.3} parent=5 // pred_check
        %p3445 = pneg %p3444
      $region74: #{building_block_forward.3} parent=5 // pred_check_branch
        %3447 = sbr.rel (%p3445) target = $region76
      $region75: #{building_block_forward.3} parent=5 // pred_region
        %s3448 = ssub.s32 %s21, 2
        // Predicated region
        $region77: #{building_block_forward.3} parent=75 // pred_check
          %p3449 = pneg %p337
        $region78: #{building_block_forward.3} parent=75 // pred_check_branch
          %3451 = sbr.rel (%p3449) target = $region80
        $region79: #{building_block_forward.3} parent=75 // pred_region
          %s3452 = sand.u32 %s322, 1
          %s3453 = scalar_lea.sflag [#allocation3], %s3452
          %s3454 = sand.u32 %s322, 1
          %s3455 = smul.addr %s3454, 16
          %s3456 = scalar_lea.vmem [#allocation2], %s3455
          %3457 = dma.done %s3453, 256
        $region80: #{building_block_forward.3} parent=75 // pred_fallthru
          _
      $region76: #{building_block_forward.3} parent=5 // pred_fallthru
        _
    $region6: #{building_block_forward.3} parent=1 // loop_footer
      %s25 = sadd.s32 1, %s21
    $region7: #{building_block_forward.3} parent=1 // loop_footer_branch
      %20 = sbr.rel target = $region3
    $region8: #{building_block_forward.3} parent=1 // loop_exit
      _
    %3458 = vsyncpa [#allocation3], 1
    %s3459 = scalar_lea.sflag [#allocation3], 1
    %3460 = vsyncpa %s3459, 1

</llo_original>
